<compile_context>
chip_gen: v7x
topology: tpu7x:2x2x1
jax: 0.10.0
libtpu: 0.0.40
codegen_flags: <defaults>
</compile_context>

<pallas_src>
import functools

import jax
import jax.numpy as jnp
import numpy as np
from jax.experimental import pallas as pl
from jax.experimental.pallas import tpu as pltpu


NUM_REL_CLS = 51
HIDDEN_DIM = 512
NUM_OBJ = 10          # size of the synthetic class/word tables
NUM_RES_BLOCKS = 9


def _vmem():
    return pl.BlockSpec(memory_space=pltpu.MemorySpace.VMEM)


# -----------------------------------------------------------------------------
# Pallas kernels
# -----------------------------------------------------------------------------
def _linear_kernel(x_ref, w_ref, b_ref, o_ref, *, relu):
    # x: [N, Din]   w: [Din, Dout] (pre-transposed)   b: [1, Dout]
    x = x_ref[...]
    w = w_ref[...]
    y = jnp.dot(x.astype(w.dtype), w, preferred_element_type=jnp.float32)
    y = y + b_ref[...]
    if relu:
        y = jnp.maximum(y, 0.0)
    o_ref[...] = y


def linear(x, w, b, relu=False):
    """y = [relu](x @ w + b); w stored pre-transposed as [Din, Dout]."""
    n = x.shape[0]
    dout = w.shape[1]
    kernel = functools.partial(_linear_kernel, relu=relu)
    return pl.pallas_call(
        kernel,
        out_shape=jax.ShapeDtypeStruct((n, dout), jnp.float32),
        in_specs=[_vmem()] * 3,
        out_specs=_vmem(),
    )(x.astype(jnp.float32), w, b.reshape(1, dout).astype(jnp.float32))


def _mlp_head_kernel(x_ref, w1_ref, b1_ref, w2_ref, b2_ref, o_ref):
    """o = relu(x @ w1 + b1) @ w2 + b2, fused."""
    x = x_ref[...]
    w1 = w1_ref[...]
    h = jnp.dot(x.astype(w1.dtype), w1,
                preferred_element_type=jnp.float32) + b1_ref[...]
    h = jnp.maximum(h, 0.0)
    w2 = w2_ref[...]
    o_ref[...] = jnp.dot(h.astype(w2.dtype), w2,
                         preferred_element_type=jnp.float32) + b2_ref[...]


def mlp_head(x, w1, b1, w2, b2):
    n = x.shape[0]
    dout = w2.shape[1]
    return pl.pallas_call(
        _mlp_head_kernel,
        out_shape=jax.ShapeDtypeStruct((n, dout), jnp.float32),
        in_specs=[_vmem()] * 5,
        out_specs=_vmem(),
    )(x.astype(jnp.float32), w1, b1.reshape(1, -1).astype(jnp.float32),
      w2, b2.reshape(1, -1).astype(jnp.float32))


def _mlp_head_pair_kernel(x_ref, w1_ref, b1_ref, w2_ref, b2_ref, o_ref):
    """One grid step == one independent linear-relu-linear head."""
    x = x_ref[0]
    w1 = w1_ref[0]
    h = jnp.dot(x.astype(w1.dtype), w1,
                preferred_element_type=jnp.float32) + b1_ref[0]
    h = jnp.maximum(h, 0.0)
    w2 = w2_ref[0]
    o_ref[0] = jnp.dot(h.astype(w2.dtype), w2,
                       preferred_element_type=jnp.float32) + b2_ref[0]


def mlp_head_pair(x2, w1_2, b1_2, w2_2, b2_2):
    """Two stacked heads (fc_o1 / fc_o2 chains) in one grid=(2,) pallas_call."""
    _, n, din = x2.shape
    dhid = w1_2.shape[2]
    dout = w2_2.shape[2]
    return pl.pallas_call(
        _mlp_head_pair_kernel,
        out_shape=jax.ShapeDtypeStruct((2, n, dout), jnp.float32),
        grid_spec=pltpu.PrefetchScalarGridSpec(
            num_scalar_prefetch=0,
            grid=(2,),
            in_specs=[
                pl.BlockSpec((1, n, din), lambda i: (i, 0, 0)),
                pl.BlockSpec((1, din, dhid), lambda i: (i, 0, 0)),
                pl.BlockSpec((1, 1, dhid), lambda i: (i, 0, 0)),
                pl.BlockSpec((1, dhid, dout), lambda i: (i, 0, 0)),
                pl.BlockSpec((1, 1, dout), lambda i: (i, 0, 0)),
            ],
            out_specs=pl.BlockSpec((1, n, dout), lambda i: (i, 0, 0)),
        ),
        compiler_params=pltpu.CompilerParams(
            dimension_semantics=("parallel",)),
    )(x2.astype(jnp.float32), w1_2, b1_2.astype(jnp.float32),
      w2_2, b2_2.astype(jnp.float32))


def _emd_fused_kernel(x_ref, w1_ref, b1_ref, o1w_ref, o2w_ref,
                      w2a_ref, w2b_ref, w2c_ref, b2_ref, o_ref):
    """emd1 = x @ W1 + b1 (fc_emd_1);
       gcn  = relu([o1_words, emd1, o2_words] @ W2 + b2) with W2 pre-split."""
    w1 = w1_ref[...]
    emd1 = jnp.dot(x_ref[...].astype(w1.dtype), w1,
                   preferred_element_type=jnp.float32) + b1_ref[...]
    w2a = w2a_ref[...]
    w2b = w2b_ref[...]
    w2c = w2c_ref[...]
    h = (jnp.dot(o1w_ref[...].astype(w2a.dtype), w2a,
                 preferred_element_type=jnp.float32)
         + jnp.dot(emd1.astype(w2b.dtype), w2b,
                   preferred_element_type=jnp.float32)
         + jnp.dot(o2w_ref[...].astype(w2c.dtype), w2c,
                   preferred_element_type=jnp.float32)
         + b2_ref[...])
    o_ref[...] = jnp.maximum(h, 0.0)


def emd_fused(x_flat, o1_words, o2_words, p):
    n = x_flat.shape[0]
    return pl.pallas_call(
        _emd_fused_kernel,
        out_shape=jax.ShapeDtypeStruct((n, HIDDEN_DIM), jnp.float32),
        in_specs=[_vmem()] * 9,
        out_specs=_vmem(),
    )(x_flat.astype(jnp.float32), p['fc_emd_1_w'],
      p['fc_emd_1_b'].reshape(1, -1).astype(jnp.float32),
      o1_words.astype(jnp.float32), o2_words.astype(jnp.float32),
      p['fc_emd_2_wa'], p['fc_emd_2_wb'], p['fc_emd_2_wc'],
      p['fc_emd_2_b'].reshape(1, -1).astype(jnp.float32))


def _res_chain_kernel(x_ref, box_ref, wg_ref, wkqv_ref, o_ref):
    """One grid step == one ResBlock2.  o_ref is the VMEM-resident gcn_fc."""
    i = pl.program_id(0)

    @pl.when(i == 0)
    def _():
        o_ref[...] = x_ref[...]

    x = o_ref[...]                                       # [N, 512] f32
    xb = x.astype(jnp.bfloat16)
    bb = box_ref[...].astype(jnp.bfloat16)               # [N, 22]

    # Stacked projections: K|Q|V for both branches in one wide bf16 matmul.
    # Scale folding: WQ carries 1/16, WG carries 1/4, WV carries 0.1.
    proj = jnp.dot(xb, wkqv_ref[0], preferred_element_type=jnp.float32)  # [N,1536]
    g = jnp.dot(bb, wg_ref[0], preferred_element_type=jnp.float32)       # [N, 512]

    k = proj[:, 0:512]
    q = proj[:, 512:1024]
    v = proj[:, 1024:1536]

    def attend(kh, qh, gh, vh):
        # WA = K @ Q^T   (the /16 is already folded into WQ)
        wa = jax.lax.dot_general(kh, qh, (((1,), (1,)), ((), ())),
                                 preferred_element_type=jnp.float32)     # [N,N]
        gate = jnp.maximum(
            jax.lax.dot_general(gh, gh, (((1,), (1,)), ((), ())),
                                preferred_element_type=jnp.float32), 0.0)
        # max subtraction is exact: exp(max) cancels in the global normalization
        wa = wa - jnp.max(wa, keepdims=True)
        num = gate * jnp.exp(wa)
        denom = jnp.sum(num, keepdims=True)                              # [1,1]
        w_attn = num * pl.reciprocal(denom, approx=True)
        # FR*0.1 is folded into WV, so this already carries the residual scale.
        return jnp.dot(w_attn, vh, preferred_element_type=jnp.float32)   # [N,256]

    fr1 = attend(k[:, :256], q[:, :256], g[:, :256], v[:, :256])
    fr2 = attend(k[:, 256:], q[:, 256:], g[:, 256:], v[:, 256:])

    o_ref[...] = jnp.concatenate([fr1, fr2], axis=1) + x


def res_chain(x, box, wg, wkqv):
    """Apply the 9 ResBlock2 layers in a single grid-pipelined pallas_call."""
    n = x.shape[0]
    return pl.pallas_call(
        _res_chain_kernel,
        out_shape=jax.ShapeDtypeStruct((n, 512), jnp.float32),
        grid_spec=pltpu.PrefetchScalarGridSpec(
            num_scalar_prefetch=0,
            grid=(NUM_RES_BLOCKS,),
            in_specs=[
                pl.BlockSpec((n, 512), lambda i: (0, 0)),          # x (init only)
                pl.BlockSpec((n, 22), lambda i: (0, 0)),           # box (resident)
                pl.BlockSpec((1, 22, 512), lambda i: (i, 0, 0)),   # WG[i]
                pl.BlockSpec((1, 512, 1536), lambda i: (i, 0, 0)), # WK|WQ|WV [i]
            ],
            out_specs=pl.BlockSpec((n, 512), lambda i: (0, 0)),    # accumulator
        ),
        compiler_params=pltpu.CompilerParams(
            dimension_semantics=("arbitrary",)),
    )(x.astype(jnp.float32), box.astype(jnp.float32), wg, wkqv)


def _res_chain_reference(x, box, wg, wkqv):
    """Pure-JAX reference for the fused ResBlock chain (same folded weights)."""
    x = x.astype(jnp.float32)
    bb = box.astype(jnp.bfloat16)
    for i in range(NUM_RES_BLOCKS):
        xb = x.astype(jnp.bfloat16)
        proj = jnp.dot(xb, wkqv[i], preferred_element_type=jnp.float32)
        g = jnp.dot(bb, wg[i], preferred_element_type=jnp.float32)
        k, q, v = proj[:, :512], proj[:, 512:1024], proj[:, 1024:]

        def attend(kh, qh, gh, vh):
            wa = kh @ qh.T
            gate = jnp.maximum(gh @ gh.T, 0.0)
            num = gate * jnp.exp(wa - jnp.max(wa))
            return (num / jnp.sum(num)) @ vh

        fr1 = attend(k[:, :256], q[:, :256], g[:, :256], v[:, :256])
        fr2 = attend(k[:, 256:], q[:, 256:], g[:, 256:], v[:, 256:])
        x = jnp.concatenate([fr1, fr2], axis=1) + x
    return x


# -----------------------------------------------------------------------------
# Deterministic parameter initialization (synthetic; no checkpoint / .npy load)
# -----------------------------------------------------------------------------
def _init_linear_t(key, in_f, out_f, scale=0.05, dtype=jnp.float32):
    """nn.Linear, stored pre-transposed as [in_f, out_f]."""
    kw, kb = jax.random.split(key)
    w = (jax.random.normal(kw, (in_f, out_f), jnp.float32) * scale).astype(dtype)
    b = jax.random.normal(kb, (out_f,), jnp.float32) * scale
    return w, b


def init_params(key):
    keys = iter(jax.random.split(key, 128))
    p = {}
    scale = 0.05

    # --- 9 ResBlock2 layers: stacked, branch-concatenated, scale-folded, bf16.
    wg_l, wkqv_l = [], []
    for _ in range(NUM_RES_BLOCKS):
        # [22, 512] == concat(WG_1^T, WG_2^T); 1/4 per factor -> /16 on G@G^T
        wg = jax.random.normal(next(keys), (22, 512), jnp.float32) * scale * 0.25
        wk = jax.random.normal(next(keys), (512, 512), jnp.float32) * scale
        # 1/16 folded so K@Q^T already carries the /16
        wq = jax.random.normal(next(keys), (512, 512), jnp.float32) * scale / 16.0
        # 0.1 folded so FR already carries the residual scale
        wv = jax.random.normal(next(keys), (512, 512), jnp.float32) * scale * 0.1
        wg_l.append(wg)
        wkqv_l.append(jnp.concatenate([wk, wq, wv], axis=1))        # [512, 1536]
    p['res_WG'] = jnp.stack(wg_l).astype(jnp.bfloat16)              # [9, 22, 512]
    p['res_WKQV'] = jnp.stack(wkqv_l).astype(jnp.bfloat16)          # [9, 512, 1536]

    # --- fc_emd_1 / fc_emd_2 (fc_emd_2 weight pre-split at the concat boundaries)
    p['fc_emd_1_w'], p['fc_emd_1_b'] = _init_linear_t(
        next(keys), 512 * 3, HIDDEN_DIM, dtype=jnp.bfloat16)
    w2, b2 = _init_linear_t(next(keys), HIDDEN_DIM + 400, HIDDEN_DIM)
    p['fc_emd_2_wa'] = w2[:200].astype(jnp.bfloat16)        # rows for o1_words
    p['fc_emd_2_wb'] = w2[200:712].astype(jnp.bfloat16)     # rows for emd1
    p['fc_emd_2_wc'] = w2[712:].astype(jnp.bfloat16)        # rows for o2_words
    p['fc_emd_2_b'] = b2

    # --- fc_cls [512,51] and fc_binary_cls [512,1] merged into one [512,52]
    fc_cls_w, fc_cls_b = _init_linear_t(next(keys), HIDDEN_DIM, NUM_REL_CLS)
    fc_bin_w, fc_bin_b = _init_linear_t(next(keys), HIDDEN_DIM, 1)
    p['fc_cls_bin_w'] = jnp.concatenate([fc_cls_w, fc_bin_w], axis=1)  # [512,52]
    p['fc_cls_bin_b'] = jnp.concatenate([fc_cls_b, fc_bin_b], axis=0)  # [52]

    # --- fc_o1 / fc_o2 heads stacked along a leading dim of 2
    o1_w, o1_b = _init_linear_t(next(keys), 512 + 200, HIDDEN_DIM, dtype=jnp.bfloat16)
    o2_w, o2_b = _init_linear_t(next(keys), 512 + 200, HIDDEN_DIM, dtype=jnp.bfloat16)
    o1c_w, o1c_b = _init_linear_t(next(keys), 512, 51)
    o2c_w, o2c_b = _init_linear_t(next(keys), 512, 51)
    p['fc_o12_w1'] = jnp.stack([o1_w, o2_w])                        # [2,712,512] bf16
    p['fc_o12_b1'] = jnp.stack([o1_b, o2_b]).reshape(2, 1, -1)      # [2,1,512]
    p['fc_o12_w2'] = jnp.stack([o1c_w, o2c_w])                      # [2,512,51]
    p['fc_o12_b2'] = jnp.stack([o1c_b, o2c_b]).reshape(2, 1, -1)    # [2,1,51]

    p['fc_box_w'], p['fc_box_b'] = _init_linear_t(next(keys), 22, 64)
    p['fc_box_cls_w'], p['fc_box_cls_b'] = _init_linear_t(next(keys), 64, 51)

    # --- Synthetic stand-ins for the .npy tables (deterministic).
    # TODO(synk): original loads rel_matrix.npy / rel_binary_matrix.npy /
    #             word_embedding.npy from disk; replaced with random tables.
    p['matrix'] = jax.random.normal(
        next(keys), (NUM_OBJ, NUM_OBJ, NUM_REL_CLS), jnp.float32) * 0.1
    p['matrix_binary'] = jax.random.normal(
        next(keys), (NUM_OBJ, NUM_OBJ, 2, 2), jnp.float32) * 0.1
    p['words'] = jax.random.normal(next(keys), (NUM_OBJ, 200), jnp.float32) * 0.1
    return p


# -----------------------------------------------------------------------------
# ResGCN forward (glue in plain JAX, matmuls / ResBlocks in Pallas)
# -----------------------------------------------------------------------------
def resgcn_forward(params, rel_inds, sub_obj_preds, input_ggnn, box_features):
    input_rel_num, node_num, feat_dim = input_ggnn.shape
    assert input_rel_num == rel_inds.shape[0]
    assert node_num * feat_dim == 512 * 3

    s_idx = sub_obj_preds[:, 0]
    o_idx = sub_obj_preds[:, 1]

    # host-side numpy gather loops of the original -> JAX gathers
    batch_in_matrix_sub = params['matrix'][s_idx, o_idx]                       # [N,51]
    batch_in_matrix_binary = params['matrix_binary'][s_idx, o_idx][:, 0, 1:2]  # [N,1]

    o1_feat = input_ggnn[:, :, 0:512].reshape(input_rel_num, -1)     # [N, 512]
    o2_feat = input_ggnn[:, :, 512:1024].reshape(input_rel_num, -1)  # [N, 512]
    x_flat = input_ggnn.reshape(input_rel_num, -1)                   # [N, 1536]

    o1_words = params['words'][s_idx - 1]                            # [N, 200]
    o2_words = params['words'][o_idx - 1]                            # [N, 200]

    # fc_emd_1 -> concat(o1_words, emd1, o2_words) -> fc_emd_2 + relu, one kernel
    gcn_fc = emd_fused(x_flat, o1_words, o2_words, params)           # [N, 512]

    # 9 ResBlock2 layers fused into one grid-pipelined Pallas call
    gcn_fc = res_chain(gcn_fc, box_features,
                       params['res_WG'], params['res_WKQV'])         # [N, 512]

    # fc_cls + fc_binary_cls merged (one [512,52] matmul)
    cls_bin = linear(gcn_fc, params['fc_cls_bin_w'], params['fc_cls_bin_b'])
    rel_dists1 = cls_bin[:, :NUM_REL_CLS]                            # [N, 51]
    rel_binary_dists = cls_bin[:, NUM_REL_CLS:]                      # [N, 1]

    # fc_o1 / fc_o2 linear-relu-linear heads, run as one grid=(2,) call
    o1_feat_words = jnp.concatenate([o1_feat, o1_words], axis=1)     # [N, 712]
    o2_feat_words = jnp.concatenate([o2_feat, o2_words], axis=1)     # [N, 712]
    x2 = jnp.stack([o1_feat_words, o2_feat_words])                   # [2, N, 712]
    o12 = mlp_head_pair(x2, params['fc_o12_w1'], params['fc_o12_b1'],
                        params['fc_o12_w2'], params['fc_o12_b2'])    # [2, N, 51]
    o1_dists, o2_dists = o12[0], o12[1]

    box_dist = mlp_head(box_features, params['fc_box_w'], params['fc_box_b'],
                        params['fc_box_cls_w'], params['fc_box_cls_b'])

    rel_dists = (rel_dists1 + batch_in_matrix_sub * 5.0
                 + o1_dists + o2_dists + box_dist)
    rel_binary_dists = rel_binary_dists + batch_in_matrix_binary

    return [rel_dists, rel_binary_dists, rel_dists1, batch_in_matrix_sub,
            o1_dists, o2_dists, box_dist]


# -----------------------------------------------------------------------------
# Main
# -----------------------------------------------------------------------------
if __name__ == "__main__":
    key = jax.random.PRNGKey(0)
    k_par, k_x, k_box, k_pred = jax.random.split(key, 4)

    params = init_params(k_par)

    N = 8                       # number of relations (rows)
    rel_inds = jnp.arange(N, dtype=jnp.int32)
    input_ggnn = jax.random.normal(k_x, (N, 1, 512 * 3), jnp.float32)   # [N,1,1536]
    box_features = jax.random.normal(k_box, (N, 22), jnp.float32)       # [N,22]
    sub_obj_preds = jax.random.randint(k_pred, (N, 2), 1, NUM_OBJ, jnp.int32)

    fwd = jax.jit(functools.partial(resgcn_forward, params))
    outs = jax.block_until_ready(
        fwd(rel_inds, sub_obj_preds, input_ggnn, box_features))

    # shape / finiteness checks
    assert outs[0].shape == (N, NUM_REL_CLS)       # rel_dists
    assert outs[1].shape == (N, 1)                 # rel_binary_dists
    assert outs[2].shape == (N, NUM_REL_CLS)       # rel_dists1
    assert all(bool(jnp.all(jnp.isfinite(o))) for o in outs)

    # numerical check of the fused ResBlock chain against a pure-JAX reference
    gcn_in = jax.random.normal(jax.random.PRNGKey(1), (N, 512), jnp.float32)
    got = jax.block_until_ready(jax.jit(res_chain)(
        gcn_in, box_features, params['res_WG'], params['res_WKQV']))
    ref = _res_chain_reference(gcn_in, box_features,
                               params['res_WG'], params['res_WKQV'])
    np.testing.assert_allclose(np.asarray(got), np.asarray(ref),
                               rtol=5e-2, atol=5e-2)

    print("KERNEL_OK")
</pallas_src>

<mosaic_0001>
module attributes {stable_mosaic.version = 11 : i64} {
  func.func @_emd_fused_kernel(%arg0: memref<8x1536xf32, #tpu.memory_space<vmem>>, %arg1: memref<1536x512xbf16, #tpu.memory_space<vmem>>, %arg2: memref<1x512xf32, #tpu.memory_space<vmem>>, %arg3: memref<8x200xf32, #tpu.memory_space<vmem>>, %arg4: memref<8x200xf32, #tpu.memory_space<vmem>>, %arg5: memref<200x512xbf16, #tpu.memory_space<vmem>>, %arg6: memref<512x512xbf16, #tpu.memory_space<vmem>>, %arg7: memref<200x512xbf16, #tpu.memory_space<vmem>>, %arg8: memref<1x512xf32, #tpu.memory_space<vmem>>, %arg9: memref<8x512xf32, #tpu.memory_space<vmem>>) attributes {dimension_semantics = [], scalar_prefetch = 0 : i64, scratch_operands = 0 : i64, tpu.core_type = #tpu.core_type<tc>} {
    %c0 = arith.constant 0 : index
    %c0_0 = arith.constant 0 : index
    %0 = vector.load %arg1[%c0, %c0_0] : memref<1536x512xbf16, #tpu.memory_space<vmem>>, vector<1536x512xbf16>
    %c0_1 = arith.constant 0 : index
    %c0_2 = arith.constant 0 : index
    %1 = vector.load %arg0[%c0_1, %c0_2] : memref<8x1536xf32, #tpu.memory_space<vmem>>, vector<8x1536xf32>
    %2 = arith.truncf %1 : vector<8x1536xf32> to vector<8x1536xbf16>
    %cst = arith.constant dense<0.000000e+00> : vector<8x512xf32>
    %3 = tpu.matmul %2, %0, %cst {dimension_numbers = #tpu.dot_dimension_numbers<[1], [0], [0], [1], [0, 0, 1, 1], [], []>} : vector<8x1536xbf16>, vector<1536x512xbf16>, vector<8x512xf32> -> vector<8x512xf32>
    %c0_3 = arith.constant 0 : index
    %c0_4 = arith.constant 0 : index
    %4 = vector.load %arg2[%c0_3, %c0_4] : memref<1x512xf32, #tpu.memory_space<vmem>>, vector<1x512xf32>
    %5 = vector.broadcast %4 : vector<1x512xf32> to vector<8x512xf32>
    %6 = arith.addf %3, %5 : vector<8x512xf32>
    %c0_5 = arith.constant 0 : index
    %c0_6 = arith.constant 0 : index
    %7 = vector.load %arg5[%c0_5, %c0_6] : memref<200x512xbf16, #tpu.memory_space<vmem>>, vector<200x512xbf16>
    %c0_7 = arith.constant 0 : index
    %c0_8 = arith.constant 0 : index
    %8 = vector.load %arg6[%c0_7, %c0_8] : memref<512x512xbf16, #tpu.memory_space<vmem>>, vector<512x512xbf16>
    %c0_9 = arith.constant 0 : index
    %c0_10 = arith.constant 0 : index
    %9 = vector.load %arg7[%c0_9, %c0_10] : memref<200x512xbf16, #tpu.memory_space<vmem>>, vector<200x512xbf16>
    %c0_11 = arith.constant 0 : index
    %c0_12 = arith.constant 0 : index
    %10 = vector.load %arg3[%c0_11, %c0_12] : memref<8x200xf32, #tpu.memory_space<vmem>>, vector<8x200xf32>
    %11 = arith.truncf %10 : vector<8x200xf32> to vector<8x200xbf16>
    %cst_13 = arith.constant dense<0.000000e+00> : vector<8x512xf32>
    %12 = tpu.matmul %11, %7, %cst_13 {dimension_numbers = #tpu.dot_dimension_numbers<[1], [0], [0], [1], [0, 0, 1, 1], [], []>} : vector<8x200xbf16>, vector<200x512xbf16>, vector<8x512xf32> -> vector<8x512xf32>
    %13 = arith.truncf %6 : vector<8x512xf32> to vector<8x512xbf16>
    %cst_14 = arith.constant dense<0.000000e+00> : vector<8x512xf32>
    %14 = tpu.matmul %13, %8, %cst_14 {dimension_numbers = #tpu.dot_dimension_numbers<[1], [0], [0], [1], [0, 0, 1, 1], [], []>} : vector<8x512xbf16>, vector<512x512xbf16>, vector<8x512xf32> -> vector<8x512xf32>
    %15 = arith.addf %12, %14 : vector<8x512xf32>
    %c0_15 = arith.constant 0 : index
    %c0_16 = arith.constant 0 : index
    %16 = vector.load %arg4[%c0_15, %c0_16] : memref<8x200xf32, #tpu.memory_space<vmem>>, vector<8x200xf32>
    %17 = arith.truncf %16 : vector<8x200xf32> to vector<8x200xbf16>
    %cst_17 = arith.constant dense<0.000000e+00> : vector<8x512xf32>
    %18 = tpu.matmul %17, %9, %cst_17 {dimension_numbers = #tpu.dot_dimension_numbers<[1], [0], [0], [1], [0, 0, 1, 1], [], []>} : vector<8x200xbf16>, vector<200x512xbf16>, vector<8x512xf32> -> vector<8x512xf32>
    %19 = arith.addf %15, %18 : vector<8x512xf32>
    %c0_18 = arith.constant 0 : index
    %c0_19 = arith.constant 0 : index
    %20 = vector.load %arg8[%c0_18, %c0_19] : memref<1x512xf32, #tpu.memory_space<vmem>>, vector<1x512xf32>
    %21 = vector.broadcast %20 : vector<1x512xf32> to vector<8x512xf32>
    %22 = arith.addf %19, %21 : vector<8x512xf32>
    %cst_20 = arith.constant 0.000000e+00 : f32
    %23 = vector.broadcast %cst_20 : f32 to vector<8x512xf32>
    %24 = arith.maximumf %22, %23 : vector<8x512xf32>
    %c0_21 = arith.constant 0 : index
    %c0_22 = arith.constant 0 : index
    %25 = vector.load %arg9[%c0_21, %c0_22] : memref<8x512xf32, #tpu.memory_space<vmem>>, vector<8x512xf32>
    tpu.vector_store %arg9[%c0_21, %c0_22], %24 {strides = array<i32>} : memref<8x512xf32, #tpu.memory_space<vmem>>, vector<8x512xf32>,
    return
  }
}

module attributes {stable_mosaic.version = 11 : i64} {
  func.func @_mlp_head_pair_kernel(%arg0: i32, %arg1: memref<1x8x712xf32, #tpu.memory_space<vmem>>, %arg2: memref<1x712x512xbf16, #tpu.memory_space<vmem>>, %arg3: memref<1x1x512xf32, #tpu.memory_space<vmem>>, %arg4: memref<1x512x51xf32, #tpu.memory_space<vmem>>, %arg5: memref<1x1x51xf32, #tpu.memory_space<vmem>>, %arg6: memref<1x8x51xf32, #tpu.memory_space<vmem>>) attributes {dimension_semantics = [#tpu.dimension_semantics<parallel>], iteration_bounds = array<i64: 2>, scalar_prefetch = 0 : i64, scratch_operands = 0 : i64, tpu.core_type = #tpu.core_type<tc>, window_params = [{transform_indices = @transform_0, window_bounds = array<i64: 1, 8, 712>}, {transform_indices = @transform_1, window_bounds = array<i64: 1, 712, 512>}, {transform_indices = @transform_2, window_bounds = array<i64: 1, 1, 512>}, {transform_indices = @transform_3, window_bounds = array<i64: 1, 512, 51>}, {transform_indices = @transform_4, window_bounds = array<i64: 1, 1, 51>}, {transform_indices = @transform_5, window_bounds = array<i64: 1, 8, 51>}]} {
    %c0 = arith.constant 0 : index
    %c0_0 = arith.constant 0 : index
    %c0_1 = arith.constant 0 : index
    %0 = vector.load %arg1[%c0, %c0_0, %c0_1] : memref<1x8x712xf32, #tpu.memory_space<vmem>>, vector<1x8x712xf32>
    %1 = vector.shape_cast %0 : vector<1x8x712xf32> to vector<8x712xf32>
    %c0_2 = arith.constant 0 : index
    %c0_3 = arith.constant 0 : index
    %c0_4 = arith.constant 0 : index
    %2 = vector.load %arg2[%c0_2, %c0_3, %c0_4] : memref<1x712x512xbf16, #tpu.memory_space<vmem>>, vector<1x712x512xbf16>
    %3 = vector.shape_cast %2 : vector<1x712x512xbf16> to vector<712x512xbf16>
    %4 = arith.truncf %1 : vector<8x712xf32> to vector<8x712xbf16>
    %cst = arith.constant dense<0.000000e+00> : vector<8x512xf32>
    %5 = tpu.matmul %4, %3, %cst {dimension_numbers = #tpu.dot_dimension_numbers<[1], [0], [0], [1], [0, 0, 1, 1], [], []>} : vector<8x712xbf16>, vector<712x512xbf16>, vector<8x512xf32> -> vector<8x512xf32>
    %c0_5 = arith.constant 0 : index
    %c0_6 = arith.constant 0 : index
    %c0_7 = arith.constant 0 : index
    %6 = vector.load %arg3[%c0_5, %c0_6, %c0_7] : memref<1x1x512xf32, #tpu.memory_space<vmem>>, vector<1x1x512xf32>
    %7 = vector.shape_cast %6 : vector<1x1x512xf32> to vector<1x512xf32>
    %8 = vector.broadcast %7 : vector<1x512xf32> to vector<8x512xf32>
    %9 = arith.addf %5, %8 : vector<8x512xf32>
    %cst_8 = arith.constant 0.000000e+00 : f32
    %10 = vector.broadcast %cst_8 : f32 to vector<8x512xf32>
    %11 = arith.maximumf %9, %10 : vector<8x512xf32>
    %c0_9 = arith.constant 0 : index
    %c0_10 = arith.constant 0 : index
    %c0_11 = arith.constant 0 : index
    %12 = vector.load %arg4[%c0_9, %c0_10, %c0_11] : memref<1x512x51xf32, #tpu.memory_space<vmem>>, vector<1x512x51xf32>
    %13 = vector.shape_cast %12 : vector<1x512x51xf32> to vector<512x51xf32>
    %cst_12 = arith.constant dense<0.000000e+00> : vector<8x51xf32>
    %14 = tpu.matmul %11, %13, %cst_12 {dimension_numbers = #tpu.dot_dimension_numbers<[1], [0], [0], [1], [0, 0, 1, 1], [], []>} : vector<8x512xf32>, vector<512x51xf32>, vector<8x51xf32> -> vector<8x51xf32>
    %c0_13 = arith.constant 0 : index
    %c0_14 = arith.constant 0 : index
    %c0_15 = arith.constant 0 : index
    %15 = vector.load %arg5[%c0_13, %c0_14, %c0_15] : memref<1x1x51xf32, #tpu.memory_space<vmem>>, vector<1x1x51xf32>
    %16 = vector.shape_cast %15 : vector<1x1x51xf32> to vector<1x51xf32>
    %17 = vector.broadcast %16 : vector<1x51xf32> to vector<8x51xf32>
    %18 = arith.addf %14, %17 : vector<8x51xf32>
    %c0_16 = arith.constant 0 : index
    %c0_17 = arith.constant 0 : index
    %c0_18 = arith.constant 0 : index
    %19 = vector.load %arg6[%c0_16, %c0_17, %c0_18] : memref<1x8x51xf32, #tpu.memory_space<vmem>>, vector<1x8x51xf32>
    %20 = vector.shape_cast %19 : vector<1x8x51xf32> to vector<8x51xf32>
    %21 = vector.shape_cast %18 : vector<8x51xf32> to vector<1x8x51xf32>
    tpu.vector_store %arg6[%c0_16, %c0_17, %c0_18], %21 {strides = array<i32>} : memref<1x8x51xf32, #tpu.memory_space<vmem>>, vector<1x8x51xf32>,
    return
  }
  func.func @transform_0(%arg0: i32) -> (i32, i32, i32) {
    %c0_i32 = arith.constant 0 : i32
    %c0_i32_0 = arith.constant 0 : i32
    %c0_i32_1 = arith.constant 0 : i32
    return %arg0, %c0_i32, %c0_i32_0 : i32, i32, i32
  }
  func.func @transform_1(%arg0: i32) -> (i32, i32, i32) {
    %c0_i32 = arith.constant 0 : i32
    %c0_i32_0 = arith.constant 0 : i32
    %c0_i32_1 = arith.constant 0 : i32
    return %arg0, %c0_i32, %c0_i32_0 : i32, i32, i32
  }
  func.func @transform_2(%arg0: i32) -> (i32, i32, i32) {
    %c0_i32 = arith.constant 0 : i32
    %c0_i32_0 = arith.constant 0 : i32
    %c0_i32_1 = arith.constant 0 : i32
    return %arg0, %c0_i32, %c0_i32_0 : i32, i32, i32
  }
  func.func @transform_3(%arg0: i32) -> (i32, i32, i32) {
    %c0_i32 = arith.constant 0 : i32
    %c0_i32_0 = arith.constant 0 : i32
    %c0_i32_1 = arith.constant 0 : i32
    return %arg0, %c0_i32, %c0_i32_0 : i32, i32, i32
  }
  func.func @transform_4(%arg0: i32) -> (i32, i32, i32) {
    %c0_i32 = arith.constant 0 : i32
    %c0_i32_0 = arith.constant 0 : i32
    %c0_i32_1 = arith.constant 0 : i32
    return %arg0, %c0_i32, %c0_i32_0 : i32, i32, i32
  }
  func.func @transform_5(%arg0: i32) -> (i32, i32, i32) {
    %c0_i32 = arith.constant 0 : i32
    %c0_i32_0 = arith.constant 0 : i32
    %c0_i32_1 = arith.constant 0 : i32
    return %arg0, %c0_i32, %c0_i32_0 : i32, i32, i32
  }
}

module attributes {stable_mosaic.version = 11 : i64} {
  func.func @_res_chain_kernel(%arg0: i32, %arg1: memref<8x512xf32, #tpu.memory_space<vmem>>, %arg2: memref<8x22xf32, #tpu.memory_space<vmem>>, %arg3: memref<1x22x512xbf16, #tpu.memory_space<vmem>>, %arg4: memref<1x512x1536xbf16, #tpu.memory_space<vmem>>, %arg5: memref<8x512xf32, #tpu.memory_space<vmem>>) attributes {dimension_semantics = [#tpu.dimension_semantics<arbitrary>], iteration_bounds = array<i64: 9>, scalar_prefetch = 0 : i64, scratch_operands = 0 : i64, tpu.core_type = #tpu.core_type<tc>, window_params = [{pipeline_mode = #tpu.pipeline_mode<synchronous>, transform_indices = @transform_0, window_bounds = array<i64: 8, 512>}, {pipeline_mode = #tpu.pipeline_mode<synchronous>, transform_indices = @transform_1, window_bounds = array<i64: 8, 22>}, {transform_indices = @transform_2, window_bounds = array<i64: 1, 22, 512>}, {transform_indices = @transform_3, window_bounds = array<i64: 1, 512, 1536>}, {pipeline_mode = #tpu.pipeline_mode<synchronous>, transform_indices = @transform_4, window_bounds = array<i64: 8, 512>}]} {
    %c0_i32 = arith.constant 0 : i32
    %0 = arith.cmpi eq, %arg0, %c0_i32 : i32
    %1 = arith.extui %0 : i1 to i32
    %c0_i32_0 = arith.constant 0 : i32
    %2 = arith.cmpi ne, %1, %c0_i32_0 : i32
    scf.if %2 {
      %c0_25 = arith.constant 0 : index
      %c0_26 = arith.constant 0 : index
      %71 = vector.load %arg1[%c0_25, %c0_26] : memref<8x512xf32, #tpu.memory_space<vmem>>, vector<8x512xf32>
      %c0_27 = arith.constant 0 : index
      %c0_28 = arith.constant 0 : index
      %72 = vector.load %arg5[%c0_27, %c0_28] : memref<8x512xf32, #tpu.memory_space<vmem>>, vector<8x512xf32>
      tpu.vector_store %arg5[%c0_27, %c0_28], %71 {strides = array<i32>} : memref<8x512xf32, #tpu.memory_space<vmem>>, vector<8x512xf32>,
    } else {
    }
    %c0 = arith.constant 0 : index
    %c0_1 = arith.constant 0 : index
    %3 = vector.load %arg5[%c0, %c0_1] : memref<8x512xf32, #tpu.memory_space<vmem>>, vector<8x512xf32>
    %4 = arith.truncf %3 : vector<8x512xf32> to vector<8x512xbf16>
    %c0_2 = arith.constant 0 : index
    %c0_3 = arith.constant 0 : index
    %5 = vector.load %arg2[%c0_2, %c0_3] : memref<8x22xf32, #tpu.memory_space<vmem>>, vector<8x22xf32>
    %6 = arith.truncf %5 : vector<8x22xf32> to vector<8x22xbf16>
    %c0_4 = arith.constant 0 : index
    %c0_5 = arith.constant 0 : index
    %c0_6 = arith.constant 0 : index
    %7 = vector.load %arg4[%c0_4, %c0_5, %c0_6] : memref<1x512x1536xbf16, #tpu.memory_space<vmem>>, vector<1x512x1536xbf16>
    %8 = vector.shape_cast %7 : vector<1x512x1536xbf16> to vector<512x1536xbf16>
    %cst = arith.constant dense<0.000000e+00> : vector<8x1536xf32>
    %9 = tpu.matmul %4, %8, %cst {dimension_numbers = #tpu.dot_dimension_numbers<[1], [0], [0], [1], [0, 0, 1, 1], [], []>} : vector<8x512xbf16>, vector<512x1536xbf16>, vector<8x1536xf32> -> vector<8x1536xf32>
    %c0_7 = arith.constant 0 : index
    %c0_8 = arith.constant 0 : index
    %c0_9 = arith.constant 0 : index
    %10 = vector.load %arg3[%c0_7, %c0_8, %c0_9] : memref<1x22x512xbf16, #tpu.memory_space<vmem>>, vector<1x22x512xbf16>
    %11 = vector.shape_cast %10 : vector<1x22x512xbf16> to vector<22x512xbf16>
    %cst_10 = arith.constant dense<0.000000e+00> : vector<8x512xf32>
    %12 = tpu.matmul %6, %11, %cst_10 {dimension_numbers = #tpu.dot_dimension_numbers<[1], [0], [0], [1], [0, 0, 1, 1], [], []>} : vector<8x22xbf16>, vector<22x512xbf16>, vector<8x512xf32> -> vector<8x512xf32>
    %13 = vector.extract_strided_slice %9 {offsets = [0, 0], sizes = [8, 512], strides = [1, 1]} : vector<8x1536xf32> to vector<8x512xf32>
    %14 = vector.extract_strided_slice %9 {offsets = [0, 512], sizes = [8, 512], strides = [1, 1]} : vector<8x1536xf32> to vector<8x512xf32>
    %15 = vector.extract_strided_slice %9 {offsets = [0, 1024], sizes = [8, 512], strides = [1, 1]} : vector<8x1536xf32> to vector<8x512xf32>
    %16 = vector.extract_strided_slice %13 {offsets = [0, 0], sizes = [8, 256], strides = [1, 1]} : vector<8x512xf32> to vector<8x256xf32>
    %17 = vector.extract_strided_slice %14 {offsets = [0, 0], sizes = [8, 256], strides = [1, 1]} : vector<8x512xf32> to vector<8x256xf32>
    %18 = vector.extract_strided_slice %12 {offsets = [0, 0], sizes = [8, 256], strides = [1, 1]} : vector<8x512xf32> to vector<8x256xf32>
    %19 = vector.extract_strided_slice %15 {offsets = [0, 0], sizes = [8, 256], strides = [1, 1]} : vector<8x512xf32> to vector<8x256xf32>
    %cst_11 = arith.constant dense<0.000000e+00> : vector<8x8xf32>
    %20 = tpu.matmul %16, %17, %cst_11 {dimension_numbers = #tpu.dot_dimension_numbers<[1], [1], [0], [0], [0, 0, 1, 0], [], []>} : vector<8x256xf32>, vector<8x256xf32>, vector<8x8xf32> -> vector<8x8xf32>
    %cst_12 = arith.constant dense<0.000000e+00> : vector<8x8xf32>
    %21 = tpu.matmul %18, %18, %cst_12 {dimension_numbers = #tpu.dot_dimension_numbers<[1], [1], [0], [0], [0, 0, 1, 0], [], []>} : vector<8x256xf32>, vector<8x256xf32>, vector<8x8xf32> -> vector<8x8xf32>
    %cst_13 = arith.constant 0.000000e+00 : f32
    %22 = vector.broadcast %cst_13 : f32 to vector<8x8xf32>
    %23 = arith.maximumf %21, %22 : vector<8x8xf32>
    %24 = vector.shape_cast %20 : vector<8x8xf32> to vector<1x8x8xf32>
    %cst_14 = arith.constant dense<0xFF800000> : vector<1xf32>
    %25 = vector.multi_reduction <maximumf>, %24, %cst_14 [1, 2] : vector<1x8x8xf32> to vector<1xf32>
    %26 = vector.shape_cast %25 : vector<1xf32> to vector<1x1x1xf32>
    %27 = vector.extract %26[0, 0, 0] : f32 from vector<1x1x1xf32>
    %28 = vector.broadcast %27 : f32 to vector<1x1xf32>
    %29 = vector.broadcast %28 : vector<1x1xf32> to vector<8x8xf32>
    %30 = arith.subf %20, %29 : vector<8x8xf32>
    %31 = math.exp %30 : vector<8x8xf32>
    %32 = arith.mulf %23, %31 : vector<8x8xf32>
    %33 = vector.shape_cast %32 : vector<8x8xf32> to vector<1x8x8xf32>
    %cst_15 = arith.constant dense<0.000000e+00> : vector<1xf32>
    %34 = vector.multi_reduction <add>, %33, %cst_15 [1, 2] : vector<1x8x8xf32> to vector<1xf32>
    %35 = vector.shape_cast %34 : vector<1xf32> to vector<1x1x1xf32>
    %36 = vector.extract %35[0, 0, 0] : f32 from vector<1x1x1xf32>
    %37 = vector.broadcast %36 : f32 to vector<1x1xf32>
    %38 = tpu.reciprocal %37 {approx = true} : vector<1x1xf32> -> vector<1x1xf32>
    %39 = vector.broadcast %38 : vector<1x1xf32> to vector<8x8xf32>
    %40 = arith.mulf %32, %39 : vector<8x8xf32>
    %cst_16 = arith.constant dense<0.000000e+00> : vector<8x256xf32>
    %41 = tpu.matmul %40, %19, %cst_16 {dimension_numbers = #tpu.dot_dimension_numbers<[1], [0], [0], [1], [0, 0, 1, 1], [], []>} : vector<8x8xf32>, vector<8x256xf32>, vector<8x256xf32> -> vector<8x256xf32>
    %42 = vector.extract_strided_slice %13 {offsets = [0, 256], sizes = [8, 256], strides = [1, 1]} : vector<8x512xf32> to vector<8x256xf32>
    %43 = vector.extract_strided_slice %14 {offsets = [0, 256], sizes = [8, 256], strides = [1, 1]} : vector<8x512xf32> to vector<8x256xf32>
    %44 = vector.extract_strided_slice %12 {offsets = [0, 256], sizes = [8, 256], strides = [1, 1]} : vector<8x512xf32> to vector<8x256xf32>
    %45 = vector.extract_strided_slice %15 {offsets = [0, 256], sizes = [8, 256], strides = [1, 1]} : vector<8x512xf32> to vector<8x256xf32>
    %cst_17 = arith.constant dense<0.000000e+00> : vector<8x8xf32>
    %46 = tpu.matmul %42, %43, %cst_17 {dimension_numbers = #tpu.dot_dimension_numbers<[1], [1], [0], [0], [0, 0, 1, 0], [], []>} : vector<8x256xf32>, vector<8x256xf32>, vector<8x8xf32> -> vector<8x8xf32>
    %cst_18 = arith.constant dense<0.000000e+00> : vector<8x8xf32>
    %47 = tpu.matmul %44, %44, %cst_18 {dimension_numbers = #tpu.dot_dimension_numbers<[1], [1], [0], [0], [0, 0, 1, 0], [], []>} : vector<8x256xf32>, vector<8x256xf32>, vector<8x8xf32> -> vector<8x8xf32>
    %cst_19 = arith.constant 0.000000e+00 : f32
    %48 = vector.broadcast %cst_19 : f32 to vector<8x8xf32>
    %49 = arith.maximumf %47, %48 : vector<8x8xf32>
    %50 = vector.shape_cast %46 : vector<8x8xf32> to vector<1x8x8xf32>
    %cst_20 = arith.constant dense<0xFF800000> : vector<1xf32>
    %51 = vector.multi_reduction <maximumf>, %50, %cst_20 [1, 2] : vector<1x8x8xf32> to vector<1xf32>
    %52 = vector.shape_cast %51 : vector<1xf32> to vector<1x1x1xf32>
    %53 = vector.extract %52[0, 0, 0] : f32 from vector<1x1x1xf32>
    %54 = vector.broadcast %53 : f32 to vector<1x1xf32>
    %55 = vector.broadcast %54 : vector<1x1xf32> to vector<8x8xf32>
    %56 = arith.subf %46, %55 : vector<8x8xf32>
    %57 = math.exp %56 : vector<8x8xf32>
    %58 = arith.mulf %49, %57 : vector<8x8xf32>
    %59 = vector.shape_cast %58 : vector<8x8xf32> to vector<1x8x8xf32>
    %cst_21 = arith.constant dense<0.000000e+00> : vector<1xf32>
    %60 = vector.multi_reduction <add>, %59, %cst_21 [1, 2] : vector<1x8x8xf32> to vector<1xf32>
    %61 = vector.shape_cast %60 : vector<1xf32> to vector<1x1x1xf32>
    %62 = vector.extract %61[0, 0, 0] : f32 from vector<1x1x1xf32>
    %63 = vector.broadcast %62 : f32 to vector<1x1xf32>
    %64 = tpu.reciprocal %63 {approx = true} : vector<1x1xf32> -> vector<1x1xf32>
    %65 = vector.broadcast %64 : vector<1x1xf32> to vector<8x8xf32>
    %66 = arith.mulf %58, %65 : vector<8x8xf32>
    %cst_22 = arith.constant dense<0.000000e+00> : vector<8x256xf32>
    %67 = tpu.matmul %66, %45, %cst_22 {dimension_numbers = #tpu.dot_dimension_numbers<[1], [0], [0], [1], [0, 0, 1, 1], [], []>} : vector<8x8xf32>, vector<8x256xf32>, vector<8x256xf32> -> vector<8x256xf32>
    %68 = tpu.concatenate %41, %67 in 1 : vector<8x256xf32>, vector<8x256xf32> -> vector<8x512xf32>
    %69 = arith.addf %68, %3 : vector<8x512xf32>
    %c0_23 = arith.constant 0 : index
    %c0_24 = arith.constant 0 : index
    %70 = vector.load %arg5[%c0_23, %c0_24] : memref<8x512xf32, #tpu.memory_space<vmem>>, vector<8x512xf32>
    tpu.vector_store %arg5[%c0_23, %c0_24], %69 {strides = array<i32>} : memref<8x512xf32, #tpu.memory_space<vmem>>, vector<8x512xf32>,
    return
  }
  func.func @transform_0(%arg0: i32) -> (i32, i32) {
    %c0_i32 = arith.constant 0 : i32
    %c0_i32_0 = arith.constant 0 : i32
    %c0_i32_1 = arith.constant 0 : i32
    return %c0_i32, %c0_i32_0 : i32, i32
  }
  func.func @transform_1(%arg0: i32) -> (i32, i32) {
    %c0_i32 = arith.constant 0 : i32
    %c0_i32_0 = arith.constant 0 : i32
    %c0_i32_1 = arith.constant 0 : i32
    return %c0_i32, %c0_i32_0 : i32, i32
  }
  func.func @transform_2(%arg0: i32) -> (i32, i32, i32) {
    %c0_i32 = arith.constant 0 : i32
    %c0_i32_0 = arith.constant 0 : i32
    %c0_i32_1 = arith.constant 0 : i32
    return %arg0, %c0_i32, %c0_i32_0 : i32, i32, i32
  }
  func.func @transform_3(%arg0: i32) -> (i32, i32, i32) {
    %c0_i32 = arith.constant 0 : i32
    %c0_i32_0 = arith.constant 0 : i32
    %c0_i32_1 = arith.constant 0 : i32
    return %arg0, %c0_i32, %c0_i32_0 : i32, i32, i32
  }
  func.func @transform_4(%arg0: i32) -> (i32, i32) {
    %c0_i32 = arith.constant 0 : i32
    %c0_i32_0 = arith.constant 0 : i32
    %c0_i32_1 = arith.constant 0 : i32
    return %c0_i32, %c0_i32_0 : i32, i32
  }
}

module attributes {stable_mosaic.version = 11 : i64} {
  func.func @_linear_kernel(%arg0: memref<8x512xf32, #tpu.memory_space<vmem>>, %arg1: memref<512x52xf32, #tpu.memory_space<vmem>>, %arg2: memref<1x52xf32, #tpu.memory_space<vmem>>, %arg3: memref<8x52xf32, #tpu.memory_space<vmem>>) attributes {dimension_semantics = [], scalar_prefetch = 0 : i64, scratch_operands = 0 : i64, tpu.core_type = #tpu.core_type<tc>} {
    %c0 = arith.constant 0 : index
    %c0_0 = arith.constant 0 : index
    %0 = vector.load %arg0[%c0, %c0_0] : memref<8x512xf32, #tpu.memory_space<vmem>>, vector<8x512xf32>
    %c0_1 = arith.constant 0 : index
    %c0_2 = arith.constant 0 : index
    %1 = vector.load %arg1[%c0_1, %c0_2] : memref<512x52xf32, #tpu.memory_space<vmem>>, vector<512x52xf32>
    %cst = arith.constant dense<0.000000e+00> : vector<8x52xf32>
    %2 = tpu.matmul %0, %1, %cst {dimension_numbers = #tpu.dot_dimension_numbers<[1], [0], [0], [1], [0, 0, 1, 1], [], []>} : vector<8x512xf32>, vector<512x52xf32>, vector<8x52xf32> -> vector<8x52xf32>
    %c0_3 = arith.constant 0 : index
    %c0_4 = arith.constant 0 : index
    %3 = vector.load %arg2[%c0_3, %c0_4] : memref<1x52xf32, #tpu.memory_space<vmem>>, vector<1x52xf32>
    %4 = vector.broadcast %3 : vector<1x52xf32> to vector<8x52xf32>
    %5 = arith.addf %2, %4 : vector<8x52xf32>
    %c0_5 = arith.constant 0 : index
    %c0_6 = arith.constant 0 : index
    %6 = vector.load %arg3[%c0_5, %c0_6] : memref<8x52xf32, #tpu.memory_space<vmem>>, vector<8x52xf32>
    tpu.vector_store %arg3[%c0_5, %c0_6], %5 {strides = array<i32>} : memref<8x52xf32, #tpu.memory_space<vmem>>, vector<8x52xf32>,
    return
  }
}

module attributes {stable_mosaic.version = 11 : i64} {
  func.func @_mlp_head_kernel(%arg0: memref<8x22xf32, #tpu.memory_space<vmem>>, %arg1: memref<22x64xf32, #tpu.memory_space<vmem>>, %arg2: memref<1x64xf32, #tpu.memory_space<vmem>>, %arg3: memref<64x51xf32, #tpu.memory_space<vmem>>, %arg4: memref<1x51xf32, #tpu.memory_space<vmem>>, %arg5: memref<8x51xf32, #tpu.memory_space<vmem>>) attributes {dimension_semantics = [], scalar_prefetch = 0 : i64, scratch_operands = 0 : i64, tpu.core_type = #tpu.core_type<tc>} {
    %c0 = arith.constant 0 : index
    %c0_0 = arith.constant 0 : index
    %0 = vector.load %arg0[%c0, %c0_0] : memref<8x22xf32, #tpu.memory_space<vmem>>, vector<8x22xf32>
    %c0_1 = arith.constant 0 : index
    %c0_2 = arith.constant 0 : index
    %1 = vector.load %arg1[%c0_1, %c0_2] : memref<22x64xf32, #tpu.memory_space<vmem>>, vector<22x64xf32>
    %cst = arith.constant dense<0.000000e+00> : vector<8x64xf32>
    %2 = tpu.matmul %0, %1, %cst {dimension_numbers = #tpu.dot_dimension_numbers<[1], [0], [0], [1], [0, 0, 1, 1], [], []>} : vector<8x22xf32>, vector<22x64xf32>, vector<8x64xf32> -> vector<8x64xf32>
    %c0_3 = arith.constant 0 : index
    %c0_4 = arith.constant 0 : index
    %3 = vector.load %arg2[%c0_3, %c0_4] : memref<1x64xf32, #tpu.memory_space<vmem>>, vector<1x64xf32>
    %4 = vector.broadcast %3 : vector<1x64xf32> to vector<8x64xf32>
    %5 = arith.addf %2, %4 : vector<8x64xf32>
    %cst_5 = arith.constant 0.000000e+00 : f32
    %6 = vector.broadcast %cst_5 : f32 to vector<8x64xf32>
    %7 = arith.maximumf %5, %6 : vector<8x64xf32>
    %c0_6 = arith.constant 0 : index
    %c0_7 = arith.constant 0 : index
    %8 = vector.load %arg3[%c0_6, %c0_7] : memref<64x51xf32, #tpu.memory_space<vmem>>, vector<64x51xf32>
    %cst_8 = arith.constant dense<0.000000e+00> : vector<8x51xf32>
    %9 = tpu.matmul %7, %8, %cst_8 {dimension_numbers = #tpu.dot_dimension_numbers<[1], [0], [0], [1], [0, 0, 1, 1], [], []>} : vector<8x64xf32>, vector<64x51xf32>, vector<8x51xf32> -> vector<8x51xf32>
    %c0_9 = arith.constant 0 : index
    %c0_10 = arith.constant 0 : index
    %10 = vector.load %arg4[%c0_9, %c0_10] : memref<1x51xf32, #tpu.memory_space<vmem>>, vector<1x51xf32>
    %11 = vector.broadcast %10 : vector<1x51xf32> to vector<8x51xf32>
    %12 = arith.addf %9, %11 : vector<8x51xf32>
    %c0_11 = arith.constant 0 : index
    %c0_12 = arith.constant 0 : index
    %13 = vector.load %arg5[%c0_11, %c0_12] : memref<8x51xf32, #tpu.memory_space<vmem>>, vector<8x51xf32>
    tpu.vector_store %arg5[%c0_11, %c0_12], %12 {strides = array<i32>} : memref<8x51xf32, #tpu.memory_space<vmem>>, vector<8x51xf32>,
    return
  }
}

</mosaic_0001>

<llo_original>
// kernel: resgcn_forward.8
$region0: #{resgcn_forward.8}
  #allocation0 [shape = 'u32[]', space=smem, size = 0x4, offset = 0x4, fixed_abs, tag = 'smem constant byte address 0x4 - core index']
  #allocation1 [shape = 'u32[144,128]{1,0:T(1,128)}', space=vmem, size = 0x12000, scoped, tag = 'internal scratch']
  %s0 = inlined_call_operand.vmem [shape: f32[2,8,712], index: 0, kind: input, shape index: {}]
  %s1 = inlined_call_operand.hbm [shape: bf16[2,712,512], index: 1, kind: input, shape index: {}]
  %s2 = inlined_call_operand.hbm [shape: f32[2,1,512], index: 2, kind: input, shape index: {}]
  %s3 = inlined_call_operand.hbm [shape: f32[2,512,51], index: 3, kind: input, shape index: {}]
  %s4 = inlined_call_operand.hbm [shape: f32[2,1,51], index: 4, kind: input, shape index: {}]
  %s5 = inlined_call_operand.vmem [shape: f32[2,8,51], index: 5, kind: output, shape index: {}]
  %s6 = sld [smem:[#allocation0]]
  $region69: #{resgcn_forward.8} parent=0
    _
  %s8 = ssub.s32 1, %s6
  %s9 = scalar_select 0, %s8, %s6
  $region1: #{resgcn_forward.8} parent=0
    #allocation2 [shape = 'u8[1458176]{0}', space=vmem, size = 0x164000, scoped, tag = 'input window, operand 1']
    #allocation3 [shape = 's32[2]{0}', space=sflag, size = 0x8, scoped, tag = 'scoped memory for resgcn_forward.8']
    #allocation4 [shape = 'u8[4096]{0}', space=vmem, size = 0x1000, scoped, tag = 'input window, operand 2']
    #allocation5 [shape = 's32[2]{0}', space=sflag, size = 0x8, scoped, tag = 'scoped memory for resgcn_forward.8']
    #allocation6 [shape = 'u8[524288]{0}', space=vmem, size = 0x80000, scoped, tag = 'input window, operand 3']
    #allocation7 [shape = 'u8[1024]{0}', space=vmem, size = 0x400, scoped, tag = 'input window, operand 4']
    #allocation8 [shape = 's32[2]{0}', space=sflag, size = 0x8, scoped, tag = 'scoped memory for resgcn_forward.8']
    %10 = vsyncpa [#allocation3], 0
    %s11 = scalar_lea.sflag [#allocation3], 1
    %12 = vsyncpa %s11, 0
    %13 = vsyncpa [#allocation5], 0
    %s14 = scalar_lea.sflag [#allocation5], 1
    %15 = vsyncpa %s14, 0
    %16 = vsyncpa [#allocation8], 0
    %s17 = scalar_lea.sflag [#allocation8], 1
    %18 = vsyncpa %s17, 0
    loop: start=0, step=1, limit=4
    $region2: #{resgcn_forward.8} parent=1 // loop_pre_header
      _
    $region3: #{resgcn_forward.8} parent=1 // loop_header
      %s20 = sphi 0, %s24
      %p21 = scmp.ge.s32.totalorder %s20, 4
      %s30 = sphi 0, %s32
      %s33 = sphi 0, %s30
      %s34 = sphi 0, %s33
      %s50 = sphi 0, %s34
      %s56 = sphi 0, %s58
      %s59 = sphi 0, %s56
      %s60 = sphi 0, %s59
      %s76 = sphi 0, %s60
      %s82 = sphi 0, %s84
      %s85 = sphi 0, %s82
      %s86 = sphi 0, %s85
      %s102 = sphi 0, %s86
      %s108 = sphi 0, %s110
      %s111 = sphi 0, %s108
      %s112 = sphi 0, %s111
      %s128 = sphi 0, %s112
      %s134 = sphi 0, %s136
      %s137 = sphi 0, %s134
      %s138 = sphi 0, %s137
      %s154 = sphi 0, %s138
      %s160 = sphi 0, %s162
      %s163 = sphi 0, %s160
      %s164 = sphi 0, %s163
      %s180 = sphi 0, %s164
    $region4: #{resgcn_forward.8} parent=1 // loop_header_branch
      %23 = sbr.rel (%p21) target = $region8
    $region5: #{resgcn_forward.8} parent=1 // loop_body
      %s25 = ssub.s32 %s20, 1
      %s26 = ssub.s32 %s20, 2
      %s27 = sadd.s32 %s20, 1
      %s28 = ssub.s32 %s20, %s27
      %p29 = scmp.eq.s32.totalorder %s28, 0
      %s31 = sadd.s32 %s30, 1
      %s32 = scalar_select %p29, %s30, %s31
      %p35 = pneg %p29
      %p36 = scmp.eq.s32.totalorder %s20, 1
      %p37 = por %p35, %p36
      %p38 = scmp.ne.s32.totalorder %s30, %s33
      %p39 = scmp.eq.s32.totalorder %s20, 0
      %p40 = por %p38, %p39
      %p41 = scmp.ne.s32.totalorder %s30, %s33
      %p42 = scmp.eq.s32.totalorder %s25, 1
      %p43 = por %p41, %p42
      %p44 = scmp.ne.s32.totalorder %s33, %s34
      %p45 = scmp.eq.s32.totalorder %s25, 0
      %p46 = por %p44, %p45
      %p47 = scmp.ne.s32.totalorder %s33, %s34
      %p48 = scmp.eq.s32.totalorder %s26, 1
      %p49 = por %p47, %p48
      %p51 = scmp.ne.s32.totalorder %s34, %s50
      %p52 = scmp.eq.s32.totalorder %s26, 0
      %p53 = por %p51, %p52
      %s54 = ssub.s32 %s20, %s27
      %p55 = scmp.eq.s32.totalorder %s54, 0
      %s57 = sadd.s32 %s56, 1
      %s58 = scalar_select %p55, %s56, %s57
      %p61 = pneg %p55
      %p62 = scmp.eq.s32.totalorder %s20, 1
      %p63 = por %p61, %p62
      %p64 = scmp.ne.s32.totalorder %s56, %s59
      %p65 = scmp.eq.s32.totalorder %s20, 0
      %p66 = por %p64, %p65
      %p67 = scmp.ne.s32.totalorder %s56, %s59
      %p68 = scmp.eq.s32.totalorder %s25, 1
      %p69 = por %p67, %p68
      %p70 = scmp.ne.s32.totalorder %s59, %s60
      %p71 = scmp.eq.s32.totalorder %s25, 0
      %p72 = por %p70, %p71
      %p73 = scmp.ne.s32.totalorder %s59, %s60
      %p74 = scmp.eq.s32.totalorder %s26, 1
      %p75 = por %p73, %p74
      %p77 = scmp.ne.s32.totalorder %s60, %s76
      %p78 = scmp.eq.s32.totalorder %s26, 0
      %p79 = por %p77, %p78
      %s80 = ssub.s32 %s20, %s27
      %p81 = scmp.eq.s32.totalorder %s80, 0
      %s83 = sadd.s32 %s82, 1
      %s84 = scalar_select %p81, %s82, %s83
      %p87 = pneg %p81
      %p88 = scmp.eq.s32.totalorder %s20, 1
      %p89 = por %p87, %p88
      %p90 = scmp.ne.s32.totalorder %s82, %s85
      %p91 = scmp.eq.s32.totalorder %s20, 0
      %p92 = por %p90, %p91
      %p93 = scmp.ne.s32.totalorder %s82, %s85
      %p94 = scmp.eq.s32.totalorder %s25, 1
      %p95 = por %p93, %p94
      %p96 = scmp.ne.s32.totalorder %s85, %s86
      %p97 = scmp.eq.s32.totalorder %s25, 0
      %p98 = por %p96, %p97
      %p99 = scmp.ne.s32.totalorder %s85, %s86
      %p100 = scmp.eq.s32.totalorder %s26, 1
      %p101 = por %p99, %p100
      %p103 = scmp.ne.s32.totalorder %s86, %s102
      %p104 = scmp.eq.s32.totalorder %s26, 0
      %p105 = por %p103, %p104
      %s106 = ssub.s32 %s20, %s27
      %p107 = scmp.eq.s32.totalorder %s106, 0
      %s109 = sadd.s32 %s108, 1
      %s110 = scalar_select %p107, %s108, %s109
      %p113 = pneg %p107
      %p114 = scmp.eq.s32.totalorder %s20, 1
      %p115 = por %p113, %p114
      %p116 = scmp.ne.s32.totalorder %s108, %s111
      %p117 = scmp.eq.s32.totalorder %s20, 0
      %p118 = por %p116, %p117
      %p119 = scmp.ne.s32.totalorder %s108, %s111
      %p120 = scmp.eq.s32.totalorder %s25, 1
      %p121 = por %p119, %p120
      %p122 = scmp.ne.s32.totalorder %s111, %s112
      %p123 = scmp.eq.s32.totalorder %s25, 0
      %p124 = por %p122, %p123
      %p125 = scmp.ne.s32.totalorder %s111, %s112
      %p126 = scmp.eq.s32.totalorder %s26, 1
      %p127 = por %p125, %p126
      %p129 = scmp.ne.s32.totalorder %s112, %s128
      %p130 = scmp.eq.s32.totalorder %s26, 0
      %p131 = por %p129, %p130
      %s132 = ssub.s32 %s20, %s27
      %p133 = scmp.eq.s32.totalorder %s132, 0
      %s135 = sadd.s32 %s134, 1
      %s136 = scalar_select %p133, %s134, %s135
      %p139 = pneg %p133
      %p140 = scmp.eq.s32.totalorder %s20, 1
      %p141 = por %p139, %p140
      %p142 = scmp.ne.s32.totalorder %s134, %s137
      %p143 = scmp.eq.s32.totalorder %s20, 0
      %p144 = por %p142, %p143
      %p145 = scmp.ne.s32.totalorder %s134, %s137
      %p146 = scmp.eq.s32.totalorder %s25, 1
      %p147 = por %p145, %p146
      %p148 = scmp.ne.s32.totalorder %s137, %s138
      %p149 = scmp.eq.s32.totalorder %s25, 0
      %p150 = por %p148, %p149
      %p151 = scmp.ne.s32.totalorder %s137, %s138
      %p152 = scmp.eq.s32.totalorder %s26, 1
      %p153 = por %p151, %p152
      %p155 = scmp.ne.s32.totalorder %s138, %s154
      %p156 = scmp.eq.s32.totalorder %s26, 0
      %p157 = por %p155, %p156
      %s158 = ssub.s32 %s20, %s27
      %p159 = scmp.eq.s32.totalorder %s158, 0
      %s161 = sadd.s32 %s160, 1
      %s162 = scalar_select %p159, %s160, %s161
      %p165 = pneg %p159
      %p166 = scmp.eq.s32.totalorder %s20, 1
      %p167 = por %p165, %p166
      %p168 = scmp.ne.s32.totalorder %s160, %s163
      %p169 = scmp.eq.s32.totalorder %s20, 0
      %p170 = por %p168, %p169
      %p171 = scmp.ne.s32.totalorder %s160, %s163
      %p172 = scmp.eq.s32.totalorder %s25, 1
      %p173 = por %p171, %p172
      %p174 = scmp.ne.s32.totalorder %s163, %s164
      %p175 = scmp.eq.s32.totalorder %s25, 0
      %p176 = por %p174, %p175
      %p177 = scmp.ne.s32.totalorder %s163, %s164
      %p178 = scmp.eq.s32.totalorder %s26, 1
      %p179 = por %p177, %p178
      %p181 = scmp.ne.s32.totalorder %s164, %s180
      %p182 = scmp.eq.s32.totalorder %s26, 0
      %p183 = por %p181, %p182
      %p184 = scmp.le.s32.totalorder 1, %s20
      %p185 = scmp.lt.s32.totalorder %s20, 3
      %p186 = pnand %p184, %p185
      %p187 = pneg %p186
      // Predicated region
      $region9: #{resgcn_forward.8} parent=5 // pred_check
        _
      $region10: #{resgcn_forward.8} parent=5 // pred_check_branch
        %189 = sbr.rel (%p186) target = $region12
      $region11: #{resgcn_forward.8} parent=5 // pred_region
        %s190 = ssub.s32 %s20, 1
      $region12: #{resgcn_forward.8} parent=5 // pred_fallthru
        _
      %p191 = scmp.lt.s32.totalorder %s20, 2
      // Predicated region
      $region13: #{resgcn_forward.8} parent=5 // pred_check
        %p192 = pneg %p191
      $region14: #{resgcn_forward.8} parent=5 // pred_check_branch
        %194 = sbr.rel (%p192) target = $region16
      $region15: #{resgcn_forward.8} parent=5 // pred_region
        // Predicated region
        $region17: #{resgcn_forward.8} parent=15 // pred_check
          %p195 = pneg %p40
        $region18: #{resgcn_forward.8} parent=15 // pred_check_branch
          %197 = sbr.rel (%p195) target = $region20
        $region19: #{resgcn_forward.8} parent=15 // pred_region
          %p198 = scmp.lt.s32.totalorder %s20, 1
          %s199 = scalar_select %p198, %s20, 1
          %s200 = smul.addr %s199, 6
          %s201 = smul.addr %s200, 8
          %s202 = scalar_lea.vmem %s0, %s201
        $region20: #{resgcn_forward.8} parent=15 // pred_fallthru
          _
        // Predicated region
        $region21: #{resgcn_forward.8} parent=15 // pred_check
          %p203 = pneg %p66
        $region22: #{resgcn_forward.8} parent=15 // pred_check_branch
          %205 = sbr.rel (%p203) target = $region24
        $region23: #{resgcn_forward.8} parent=15 // pred_region
          %s206 = sand.u32 %s56, 1
          %s207 = scalar_lea.sflag [#allocation3], %s206
          %s208 = sand.u32 %s56, 1
          %s209 = smul.addr %s208, 1424
          %s210 = scalar_lea.vmem [#allocation2], %s209
          %s212 = ssub.s32 22784, 22784
          %213 = vsyncadd %s207, %s212
          %s214 = smul.addr %s20, 356
          %s215 = smul.addr %s214, 64
          %s216 = scalar_lea.hbm %s1, %s215
          %s217 = sshll.u32 %s210, 4
          %s218 = int_to_ptr.vmem [resolvable:$true] %s217
          %223 = dma.hbm_to_vmem [thread:$0]  %s216, 22784, %s218, %s207, 256, 256, 16
        $region24: #{resgcn_forward.8} parent=15 // pred_fallthru
          _
        // Predicated region
        $region25: #{resgcn_forward.8} parent=15 // pred_check
          %p224 = pneg %p92
        $region26: #{resgcn_forward.8} parent=15 // pred_check_branch
          %226 = sbr.rel (%p224) target = $region28
        $region27: #{resgcn_forward.8} parent=15 // pred_region
          %s227 = sand.u32 %s20, 1
          %s228 = scalar_lea.sflag [#allocation5], %s227
          %s229 = sand.u32 %s82, 1
          %s230 = smul.addr %s229, 4
          %s231 = scalar_lea.vmem [#allocation4], %s230
          %s233 = ssub.s32 64, 64
          %234 = vsyncadd %s228, %s233
          %s235 = smul.addr %s20, 4
          %s236 = smul.addr %s235, 16
          %s237 = scalar_lea.hbm %s2, %s236
          %s239 = sshll.u32 %s231, 4
          %s240 = int_to_ptr.vmem [resolvable:$true] %s239
          %242 = dma.hbm_to_vmem [thread:$0]  %s237, 64, %s240, %s228
        $region28: #{resgcn_forward.8} parent=15 // pred_fallthru
          _
        // Predicated region
        $region29: #{resgcn_forward.8} parent=15 // pred_check
          %p243 = pneg %p118
        $region30: #{resgcn_forward.8} parent=15 // pred_check_branch
          %245 = sbr.rel (%p243) target = $region32
        $region31: #{resgcn_forward.8} parent=15 // pred_region
          %s246 = sand.u32 %s20, 1
          %s247 = scalar_lea.sflag [#allocation5], %s246
          %s248 = sand.u32 %s108, 1
          %s249 = smul.addr %s248, 512
          %s250 = scalar_lea.vmem [#allocation6], %s249
          %s252 = ssub.s32 8192, 8192
          %253 = vsyncadd %s247, %s252
          %s254 = smul.addr %s20, 64
          %s255 = smul.addr %s254, 128
          %s256 = scalar_lea.hbm %s3, %s255
          %s257 = sshll.u32 %s250, 4
          %s258 = int_to_ptr.vmem [resolvable:$true] %s257
          %263 = dma.hbm_to_vmem [thread:$0]  %s256, 8192, %s258, %s247, 128, 128, 8
        $region32: #{resgcn_forward.8} parent=15 // pred_fallthru
          _
        // Predicated region
        $region33: #{resgcn_forward.8} parent=15 // pred_check
          %p264 = pneg %p144
        $region34: #{resgcn_forward.8} parent=15 // pred_check_branch
          %266 = sbr.rel (%p264) target = $region36
        $region35: #{resgcn_forward.8} parent=15 // pred_region
          %s267 = sand.u32 %s134, 1
          %s268 = scalar_lea.sflag [#allocation8], %s267
          %s269 = sand.u32 %s134, 1
          %s270 = scalar_lea.vmem [#allocation7], %s269
          %s272 = ssub.s32 16, 16
          %273 = vsyncadd %s268, %s272
          %s274 = smul.addr %s20, 16
          %s275 = scalar_lea.hbm %s4, %s274
          %s277 = sshll.u32 %s270, 4
          %s278 = int_to_ptr.vmem [resolvable:$true] %s277
          %280 = dma.hbm_to_vmem [thread:$0]  %s275, 16, %s278, %s268
        $region36: #{resgcn_forward.8} parent=15 // pred_fallthru
          _
      $region16: #{resgcn_forward.8} parent=5 // pred_fallthru
        _
      %p281 = scmp.le.s32.totalorder 1, %s20
      %p282 = scmp.lt.s32.totalorder %s20, 3
      %p283 = pnand %p281, %p282
      %p284 = pneg %p283
      // Predicated region
      $region37: #{resgcn_forward.8} parent=5 // pred_check
        _
      $region38: #{resgcn_forward.8} parent=5 // pred_check_branch
        %286 = sbr.rel (%p283) target = $region40
      $region39: #{resgcn_forward.8} parent=5 // pred_region
        %s287 = ssub.s32 %s20, 1
        %s288 = sand.u32 %s59, 1
        %s289 = scalar_lea.sflag [#allocation3], %s288
        %s290 = sand.u32 %s59, 1
        %s291 = smul.addr %s290, 1424
        %s292 = scalar_lea.vmem [#allocation2], %s291
        // Predicated region
        $region41: #{resgcn_forward.8} parent=39 // pred_check
          %p293 = pneg %p72
        $region42: #{resgcn_forward.8} parent=39 // pred_check_branch
          %295 = sbr.rel (%p293) target = $region44
        $region43: #{resgcn_forward.8} parent=39 // pred_region
          %296 = dma.done %s289, 22784
        $region44: #{resgcn_forward.8} parent=39 // pred_fallthru
          _
        %s297 = sand.u32 %s25, 1
        %s298 = scalar_lea.sflag [#allocation5], %s297
        %s299 = sand.u32 %s85, 1
        %s300 = smul.addr %s299, 4
        %s301 = scalar_lea.vmem [#allocation4], %s300
        // Predicated region
        $region45: #{resgcn_forward.8} parent=39 // pred_check
          %p302 = pneg %p98
        $region46: #{resgcn_forward.8} parent=39 // pred_check_branch
          %304 = sbr.rel (%p302) target = $region48
        $region47: #{resgcn_forward.8} parent=39 // pred_region
          %305 = dma.done %s298, 64
        $region48: #{resgcn_forward.8} parent=39 // pred_fallthru
          _
        %s306 = sand.u32 %s25, 1
        %s307 = scalar_lea.sflag [#allocation5], %s306
        %s308 = sand.u32 %s111, 1
        %s309 = smul.addr %s308, 512
        %s310 = scalar_lea.vmem [#allocation6], %s309
        // Predicated region
        $region49: #{resgcn_forward.8} parent=39 // pred_check
          %p311 = pneg %p124
        $region50: #{resgcn_forward.8} parent=39 // pred_check_branch
          %313 = sbr.rel (%p311) target = $region52
        $region51: #{resgcn_forward.8} parent=39 // pred_region
          %314 = dma.done %s307, 8192
        $region52: #{resgcn_forward.8} parent=39 // pred_fallthru
          _
        %s315 = sand.u32 %s137, 1
        %s316 = scalar_lea.sflag [#allocation8], %s315
        %s317 = sand.u32 %s137, 1
        %s318 = scalar_lea.vmem [#allocation7], %s317
        // Predicated region
        $region53: #{resgcn_forward.8} parent=39 // pred_check
          %p319 = pneg %p150
        $region54: #{resgcn_forward.8} parent=39 // pred_check_branch
          %321 = sbr.rel (%p319) target = $region56
        $region55: #{resgcn_forward.8} parent=39 // pred_region
          %322 = dma.done %s316, 16
        $region56: #{resgcn_forward.8} parent=39 // pred_fallthru
          _
        %p323 = scmp.lt.s32.totalorder %s25, 1
        %s324 = scalar_select %p323, %s25, 1
        %s325 = smul.addr %s324, 6
        %s326 = smul.addr %s325, 8
        %s327 = scalar_lea.vmem %s0, %s326
        %p328 = pneg %p46
        %p329 = pneg %p43
        %s330 = sand.u32 %s59, 1
        %s331 = scalar_lea.sflag [#allocation3], %s330
        %s332 = sand.u32 %s59, 1
        %s333 = smul.addr %s332, 1424
        %s334 = scalar_lea.vmem [#allocation2], %s333
        %p335 = pneg %p72
        %p336 = pneg %p69
        %s337 = sand.u32 %s25, 1
        %s338 = scalar_lea.sflag [#allocation5], %s337
        %s339 = sand.u32 %s85, 1
        %s340 = smul.addr %s339, 4
        %s341 = scalar_lea.vmem [#allocation4], %s340
        %p342 = pneg %p98
        %p343 = pneg %p95
        %s344 = sand.u32 %s25, 1
        %s345 = scalar_lea.sflag [#allocation5], %s344
        %s346 = sand.u32 %s111, 1
        %s347 = smul.addr %s346, 512
        %s348 = scalar_lea.vmem [#allocation6], %s347
        %p349 = pneg %p124
        %p350 = pneg %p121
        %s351 = sand.u32 %s137, 1
        %s352 = scalar_lea.sflag [#allocation8], %s351
        %s353 = sand.u32 %s137, 1
        %s354 = scalar_lea.vmem [#allocation7], %s353
        %p355 = pneg %p150
        %p356 = pneg %p147
        %p357 = pneg %p176
        %p358 = pneg %p173
        %p359 = scmp.lt.s32.totalorder %s25, 1
        %s360 = scalar_select %p359, %s25, 1
        %s361 = smul.addr %s360, 8
        %s362 = scalar_lea.vmem %s5, %s361
        %p363 = scmp.lt.s32.totalorder %s25, 1
        %s364 = scalar_select %p363, %s25, 1
        %s365 = smul.addr %s364, 6
        %s366 = smul.addr %s365, 8
        %s367 = scalar_lea.vmem %s0, %s366
        %p368 = scmp.lt.s32.totalorder %s25, 1
        %s369 = scalar_select %p368, %s25, 1
        %s370 = smul.addr %s369, 8
        %s371 = scalar_lea.vmem %s5, %s370
        %v373 = vld [vmem:[%s367] sm:$0xff]
        %v374 = vld [vmem:[%s367 + $0x8] sm:$0xff]
        %v375 = vld [vmem:[%s367 + $0x10] sm:$0xff]
        %v376 = vld [vmem:[%s367 + $0x18] sm:$0xff]
        %v377 = vld [vmem:[%s367 + $0x20] sm:$0xff]
        %v378 = vld [vmem:[%s367 + $0x28] sm:$0xff]
        %v379 = vld [vmem:[%s292] sm:$0xff]
        %v380 = vld [vmem:[%s292 + $0x8] sm:$0xff]
        %v381 = vld [vmem:[%s292 + $0x10] sm:$0xff]
        %v382 = vld [vmem:[%s292 + $0x18] sm:$0xff]
        %v383 = vld [vmem:[%s292 + $0x20] sm:$0xff]
        %v384 = vld [vmem:[%s292 + $0x28] sm:$0xff]
        %v385 = vld [vmem:[%s292 + $0x30] sm:$0xff]
        %v386 = vld [vmem:[%s292 + $0x38] sm:$0xff]
        %v387 = vld [vmem:[%s292 + $0x40] sm:$0xff]
        %v388 = vld [vmem:[%s292 + $0x48] sm:$0xff]
        %v389 = vld [vmem:[%s292 + $0x50] sm:$0xff]
        %v390 = vld [vmem:[%s292 + $0x58] sm:$0xff]
        %v391 = vld [vmem:[%s292 + $0x60] sm:$0xff]
        %v392 = vld [vmem:[%s292 + $0x68] sm:$0xff]
        %v393 = vld [vmem:[%s292 + $0x70] sm:$0xff]
        %v394 = vld [vmem:[%s292 + $0x78] sm:$0xff]
        %v395 = vld [vmem:[%s292 + $0x80] sm:$0xff]
        %v396 = vld [vmem:[%s292 + $0x88] sm:$0xff]
        %v397 = vld [vmem:[%s292 + $0x90] sm:$0xff]
        %v398 = vld [vmem:[%s292 + $0x98] sm:$0xff]
        %v399 = vld [vmem:[%s292 + $0xa0] sm:$0xff]
        %v400 = vld [vmem:[%s292 + $0xa8] sm:$0xff]
        %v401 = vld [vmem:[%s292 + $0xb0] sm:$0xff]
        %v402 = vld [vmem:[%s292 + $0xb8] sm:$0xff]
        %v403 = vld [vmem:[%s292 + $0xc0] sm:$0xff]
        %v404 = vld [vmem:[%s292 + $0xc8] sm:$0xff]
        %v405 = vld [vmem:[%s292 + $0xd0] sm:$0xff]
        %v406 = vld [vmem:[%s292 + $0xd8] sm:$0xff]
        %v407 = vld [vmem:[%s292 + $0xe0] sm:$0xff]
        %v408 = vld [vmem:[%s292 + $0xe8] sm:$0xff]
        %v409 = vld [vmem:[%s292 + $0xf0] sm:$0xff]
        %v410 = vld [vmem:[%s292 + $0xf8] sm:$0xff]
        %v411 = vld [vmem:[%s292 + $0x100] sm:$0xff]
        %v412 = vld [vmem:[%s292 + $0x108] sm:$0xff]
        %v413 = vld [vmem:[%s292 + $0x110] sm:$0xff]
        %v414 = vld [vmem:[%s292 + $0x118] sm:$0xff]
        %v415 = vld [vmem:[%s292 + $0x120] sm:$0xff]
        %v416 = vld [vmem:[%s292 + $0x128] sm:$0xff]
        %v417 = vld [vmem:[%s292 + $0x130] sm:$0xff]
        %v418 = vld [vmem:[%s292 + $0x138] sm:$0xff]
        %v419 = vld [vmem:[%s292 + $0x140] sm:$0xff]
        %v420 = vld [vmem:[%s292 + $0x148] sm:$0xff]
        %v421 = vld [vmem:[%s292 + $0x150] sm:$0xff]
        %v422 = vld [vmem:[%s292 + $0x158] sm:$0xff]
        %v423 = vld [vmem:[%s292 + $0x160] sm:$0xff]
        %v424 = vld [vmem:[%s292 + $0x168] sm:$0xff]
        %v425 = vld [vmem:[%s292 + $0x170] sm:$0xff]
        %v426 = vld [vmem:[%s292 + $0x178] sm:$0xff]
        %v427 = vld [vmem:[%s292 + $0x180] sm:$0xff]
        %v428 = vld [vmem:[%s292 + $0x188] sm:$0xff]
        %v429 = vld [vmem:[%s292 + $0x190] sm:$0xff]
        %v430 = vld [vmem:[%s292 + $0x198] sm:$0xff]
        %v431 = vld [vmem:[%s292 + $0x1a0] sm:$0xff]
        %v432 = vld [vmem:[%s292 + $0x1a8] sm:$0xff]
        %v433 = vld [vmem:[%s292 + $0x1b0] sm:$0xff]
        %v434 = vld [vmem:[%s292 + $0x1b8] sm:$0xff]
        %v435 = vld [vmem:[%s292 + $0x1c0] sm:$0xff]
        %v436 = vld [vmem:[%s292 + $0x1c8] sm:$0xff]
        %v437 = vld [vmem:[%s292 + $0x1d0] sm:$0xff]
        %v438 = vld [vmem:[%s292 + $0x1d8] sm:$0xff]
        %v439 = vld [vmem:[%s292 + $0x1e0] sm:$0xff]
        %v440 = vld [vmem:[%s292 + $0x1e8] sm:$0xff]
        %v441 = vld [vmem:[%s292 + $0x1f0] sm:$0xff]
        %v442 = vld [vmem:[%s292 + $0x1f8] sm:$0xff]
        %v443 = vld [vmem:[%s292 + $0x200] sm:$0xff]
        %v444 = vld [vmem:[%s292 + $0x208] sm:$0xff]
        %v445 = vld [vmem:[%s292 + $0x210] sm:$0xff]
        %v446 = vld [vmem:[%s292 + $0x218] sm:$0xff]
        %v447 = vld [vmem:[%s292 + $0x220] sm:$0xff]
        %v448 = vld [vmem:[%s292 + $0x228] sm:$0xff]
        %v449 = vld [vmem:[%s292 + $0x230] sm:$0xff]
        %v450 = vld [vmem:[%s292 + $0x238] sm:$0xff]
        %v451 = vld [vmem:[%s292 + $0x240] sm:$0xff]
        %v452 = vld [vmem:[%s292 + $0x248] sm:$0xff]
        %v453 = vld [vmem:[%s292 + $0x250] sm:$0xff]
        %v454 = vld [vmem:[%s292 + $0x258] sm:$0xff]
        %v455 = vld [vmem:[%s292 + $0x260] sm:$0xff]
        %v456 = vld [vmem:[%s292 + $0x268] sm:$0xff]
        %v457 = vld [vmem:[%s292 + $0x270] sm:$0xff]
        %v458 = vld [vmem:[%s292 + $0x278] sm:$0xff]
        %v459 = vld [vmem:[%s292 + $0x280] sm:$0xff]
        %v460 = vld [vmem:[%s292 + $0x288] sm:$0xff]
        %v461 = vld [vmem:[%s292 + $0x290] sm:$0xff]
        %v462 = vld [vmem:[%s292 + $0x298] sm:$0xff]
        %v463 = vld [vmem:[%s292 + $0x2a0] sm:$0xff]
        %v464 = vld [vmem:[%s292 + $0x2a8] sm:$0xff]
        %v465 = vld [vmem:[%s292 + $0x2b0] sm:$0xff]
        %v466 = vld [vmem:[%s292 + $0x2b8] sm:$0xff]
        %v467 = vld [vmem:[%s292 + $0x2c0] sm:$0xff]
        %v468 = vld [vmem:[%s292 + $0x2c8] sm:$0xff]
        %v469 = vld [vmem:[%s292 + $0x2d0] sm:$0xff]
        %v470 = vld [vmem:[%s292 + $0x2d8] sm:$0xff]
        %v471 = vld [vmem:[%s292 + $0x2e0] sm:$0xff]
        %v472 = vld [vmem:[%s292 + $0x2e8] sm:$0xff]
        %v473 = vld [vmem:[%s292 + $0x2f0] sm:$0xff]
        %v474 = vld [vmem:[%s292 + $0x2f8] sm:$0xff]
        %v475 = vld [vmem:[%s292 + $0x300] sm:$0xff]
        %v476 = vld [vmem:[%s292 + $0x308] sm:$0xff]
        %v477 = vld [vmem:[%s292 + $0x310] sm:$0xff]
        %v478 = vld [vmem:[%s292 + $0x318] sm:$0xff]
        %v479 = vld [vmem:[%s292 + $0x320] sm:$0xff]
        %v480 = vld [vmem:[%s292 + $0x328] sm:$0xff]
        %v481 = vld [vmem:[%s292 + $0x330] sm:$0xff]
        %v482 = vld [vmem:[%s292 + $0x338] sm:$0xff]
        %v483 = vld [vmem:[%s292 + $0x340] sm:$0xff]
        %v484 = vld [vmem:[%s292 + $0x348] sm:$0xff]
        %v485 = vld [vmem:[%s292 + $0x350] sm:$0xff]
        %v486 = vld [vmem:[%s292 + $0x358] sm:$0xff]
        %v487 = vld [vmem:[%s292 + $0x360] sm:$0xff]
        %v488 = vld [vmem:[%s292 + $0x368] sm:$0xff]
        %v489 = vld [vmem:[%s292 + $0x370] sm:$0xff]
        %v490 = vld [vmem:[%s292 + $0x378] sm:$0xff]
        %v491 = vld [vmem:[%s292 + $0x380] sm:$0xff]
        %v492 = vld [vmem:[%s292 + $0x388] sm:$0xff]
        %v493 = vld [vmem:[%s292 + $0x390] sm:$0xff]
        %v494 = vld [vmem:[%s292 + $0x398] sm:$0xff]
        %v495 = vld [vmem:[%s292 + $0x3a0] sm:$0xff]
        %v496 = vld [vmem:[%s292 + $0x3a8] sm:$0xff]
        %v497 = vld [vmem:[%s292 + $0x3b0] sm:$0xff]
        %v498 = vld [vmem:[%s292 + $0x3b8] sm:$0xff]
        %v499 = vld [vmem:[%s292 + $0x3c0] sm:$0xff]
        %v500 = vld [vmem:[%s292 + $0x3c8] sm:$0xff]
        %v501 = vld [vmem:[%s292 + $0x3d0] sm:$0xff]
        %v502 = vld [vmem:[%s292 + $0x3d8] sm:$0xff]
        %v503 = vld [vmem:[%s292 + $0x3e0] sm:$0xff]
        %v504 = vld [vmem:[%s292 + $0x3e8] sm:$0xff]
        %v505 = vld [vmem:[%s292 + $0x3f0] sm:$0xff]
        %v506 = vld [vmem:[%s292 + $0x3f8] sm:$0xff]
        %v507 = vld [vmem:[%s292 + $0x400] sm:$0xff]
        %v508 = vld [vmem:[%s292 + $0x408] sm:$0xff]
        %v509 = vld [vmem:[%s292 + $0x410] sm:$0xff]
        %v510 = vld [vmem:[%s292 + $0x418] sm:$0xff]
        %v511 = vld [vmem:[%s292 + $0x420] sm:$0xff]
        %v512 = vld [vmem:[%s292 + $0x428] sm:$0xff]
        %v513 = vld [vmem:[%s292 + $0x430] sm:$0xff]
        %v514 = vld [vmem:[%s292 + $0x438] sm:$0xff]
        %v515 = vld [vmem:[%s292 + $0x440] sm:$0xff]
        %v516 = vld [vmem:[%s292 + $0x448] sm:$0xff]
        %v517 = vld [vmem:[%s292 + $0x450] sm:$0xff]
        %v518 = vld [vmem:[%s292 + $0x458] sm:$0xff]
        %v519 = vld [vmem:[%s292 + $0x460] sm:$0xff]
        %v520 = vld [vmem:[%s292 + $0x468] sm:$0xff]
        %v521 = vld [vmem:[%s292 + $0x470] sm:$0xff]
        %v522 = vld [vmem:[%s292 + $0x478] sm:$0xff]
        %v523 = vld [vmem:[%s292 + $0x480] sm:$0xff]
        %v524 = vld [vmem:[%s292 + $0x488] sm:$0xff]
        %v525 = vld [vmem:[%s292 + $0x490] sm:$0xff]
        %v526 = vld [vmem:[%s292 + $0x498] sm:$0xff]
        %v527 = vld [vmem:[%s292 + $0x4a0] sm:$0xff]
        %v528 = vld [vmem:[%s292 + $0x4a8] sm:$0xff]
        %v529 = vld [vmem:[%s292 + $0x4b0] sm:$0xff]
        %v530 = vld [vmem:[%s292 + $0x4b8] sm:$0xff]
        %v531 = vld [vmem:[%s292 + $0x4c0] sm:$0xff]
        %v532 = vld [vmem:[%s292 + $0x4c8] sm:$0xff]
        %v533 = vld [vmem:[%s292 + $0x4d0] sm:$0xff]
        %v534 = vld [vmem:[%s292 + $0x4d8] sm:$0xff]
        %v535 = vld [vmem:[%s292 + $0x4e0] sm:$0xff]
        %v536 = vld [vmem:[%s292 + $0x4e8] sm:$0xff]
        %v537 = vld [vmem:[%s292 + $0x4f0] sm:$0xff]
        %v538 = vld [vmem:[%s292 + $0x4f8] sm:$0xff]
        %v539 = vld [vmem:[%s292 + $0x500] sm:$0xff]
        %v540 = vld [vmem:[%s292 + $0x508] sm:$0xff]
        %v541 = vld [vmem:[%s292 + $0x510] sm:$0xff]
        %v542 = vld [vmem:[%s292 + $0x518] sm:$0xff]
        %v543 = vld [vmem:[%s292 + $0x520] sm:$0xff]
        %v544 = vld [vmem:[%s292 + $0x528] sm:$0xff]
        %v545 = vld [vmem:[%s292 + $0x530] sm:$0xff]
        %v546 = vld [vmem:[%s292 + $0x538] sm:$0xff]
        %v547 = vld [vmem:[%s292 + $0x540] sm:$0xff]
        %v548 = vld [vmem:[%s292 + $0x548] sm:$0xff]
        %v549 = vld [vmem:[%s292 + $0x550] sm:$0xff]
        %v550 = vld [vmem:[%s292 + $0x558] sm:$0xff]
        %v551 = vld [vmem:[%s292 + $0x560] sm:$0xff]
        %v552 = vld [vmem:[%s292 + $0x568] sm:$0xff]
        %v553 = vld [vmem:[%s292 + $0x570] sm:$0xff]
        %v554 = vld [vmem:[%s292 + $0x578] sm:$0xff]
        %v555 = vld [vmem:[%s292 + $0x580] sm:$0xff]
        %v556 = vld [vmem:[%s292 + $0x588] sm:$0xff]
        %v557 = vpack.c.bf16 %v373, %v373
        %v558 = vpack.c.bf16 %v374, %v374
        %v559 = vpack.c.bf16 %v375, %v375
        %v560 = vpack.c.bf16 %v376, %v376
        %v561 = vpack.c.bf16 %v377, %v377
        %v562 = vpack.c.bf16 %v378, %v378
        %v563 = vld [vmem:[%s301] sm:$0xf]
        %v565 = vlaneseq
        %v566 = vshrl.u32 %v565, 7
        %v567 = vsub.s32 0, %v566
        %v568 = vrot.slane %v563, %v567
        %v569 = vlaneseq
        %v570 = vshrl.u32 %v569, 7
        %v571 = vsub.s32 1, %v570
        %v572 = vrot.slane %v563, %v571
        %v573 = vlaneseq
        %v574 = vshrl.u32 %v573, 7
        %v575 = vsub.s32 2, %v574
        %v576 = vrot.slane %v563, %v575
        %v577 = vlaneseq
        %v578 = vshrl.u32 %v577, 7
        %v579 = vsub.s32 3, %v578
        %v580 = vrot.slane %v563, %v579
        %v763 = vunpack.c.l.b16 %v379
        %v764 = vunpack.c.h.b16 %v379
        %v765 = vunpack.c.l.b16 %v380
        %v766 = vunpack.c.h.b16 %v380
        %v767 = vunpack.c.l.b16 %v381
        %v768 = vunpack.c.h.b16 %v381
        %v769 = vunpack.c.l.b16 %v382
        %v770 = vunpack.c.h.b16 %v382
        %v771 = vunpack.c.l.b16 %v383
        %v772 = vunpack.c.h.b16 %v383
        %v773 = vunpack.c.l.b16 %v384
        %v774 = vunpack.c.h.b16 %v384
        %v775 = vunpack.c.l.b16 %v385
        %v776 = vunpack.c.h.b16 %v385
        %v777 = vunpack.c.l.b16 %v386
        %v778 = vunpack.c.h.b16 %v386
        %v779 = vunpack.c.l.b16 %v387
        %v780 = vunpack.c.h.b16 %v387
        %v781 = vunpack.c.l.b16 %v388
        %v782 = vunpack.c.h.b16 %v388
        %v783 = vunpack.c.l.b16 %v389
        %v784 = vunpack.c.h.b16 %v389
        %v785 = vunpack.c.l.b16 %v390
        %v786 = vunpack.c.h.b16 %v390
        %v787 = vunpack.c.l.b16 %v391
        %v788 = vunpack.c.h.b16 %v391
        %v789 = vunpack.c.l.b16 %v392
        %v790 = vunpack.c.h.b16 %v392
        %v791 = vunpack.c.l.b16 %v393
        %v792 = vunpack.c.h.b16 %v393
        %v793 = vunpack.c.l.b16 %v394
        %v794 = vunpack.c.h.b16 %v394
        %v795 = vunpack.c.l.b16 %v395
        %v796 = vunpack.c.h.b16 %v395
        %v797 = vunpack.c.l.b16 %v396
        %v798 = vunpack.c.h.b16 %v396
        %v799 = vunpack.c.l.b16 %v397
        %v800 = vunpack.c.h.b16 %v397
        %v801 = vunpack.c.l.b16 %v398
        %v802 = vunpack.c.h.b16 %v398
        %v803 = vunpack.c.l.b16 %v399
        %v804 = vunpack.c.h.b16 %v399
        %v805 = vunpack.c.l.b16 %v400
        %v806 = vunpack.c.h.b16 %v400
        %v807 = vunpack.c.l.b16 %v401
        %v808 = vunpack.c.h.b16 %v401
        %v809 = vunpack.c.l.b16 %v402
        %v810 = vunpack.c.h.b16 %v402
        %v811 = vunpack.c.l.b16 %v403
        %v812 = vunpack.c.h.b16 %v403
        %v813 = vunpack.c.l.b16 %v404
        %v814 = vunpack.c.h.b16 %v404
        %v815 = vunpack.c.l.b16 %v405
        %v816 = vunpack.c.h.b16 %v405
        %v817 = vunpack.c.l.b16 %v406
        %v818 = vunpack.c.h.b16 %v406
        %v819 = vunpack.c.l.b16 %v407
        %v820 = vunpack.c.h.b16 %v407
        %v821 = vunpack.c.l.b16 %v408
        %v822 = vunpack.c.h.b16 %v408
        %v823 = vunpack.c.l.b16 %v409
        %v824 = vunpack.c.h.b16 %v409
        %v825 = vunpack.c.l.b16 %v410
        %v826 = vunpack.c.h.b16 %v410
        %v827 = vunpack.c.l.b16 %v411
        %v828 = vunpack.c.h.b16 %v411
        %v829 = vunpack.c.l.b16 %v412
        %v830 = vunpack.c.h.b16 %v412
        %v831 = vunpack.c.l.b16 %v413
        %v832 = vunpack.c.h.b16 %v413
        %v833 = vunpack.c.l.b16 %v414
        %v834 = vunpack.c.h.b16 %v414
        %v835 = vunpack.c.l.b16 %v415
        %v836 = vunpack.c.h.b16 %v415
        %v837 = vunpack.c.l.b16 %v416
        %v838 = vunpack.c.h.b16 %v416
        %v839 = vunpack.c.l.b16 %v417
        %v840 = vunpack.c.h.b16 %v417
        %v841 = vunpack.c.l.b16 %v418
        %v842 = vunpack.c.h.b16 %v418
        %v843 = vunpack.c.l.b16 %v419
        %v844 = vunpack.c.h.b16 %v419
        %v845 = vunpack.c.l.b16 %v420
        %v846 = vunpack.c.h.b16 %v420
        %v847 = vunpack.c.l.b16 %v421
        %v848 = vunpack.c.h.b16 %v421
        %v849 = vunpack.c.l.b16 %v422
        %v850 = vunpack.c.h.b16 %v422
        %v851 = vunpack.c.l.b16 %v423
        %v852 = vunpack.c.h.b16 %v423
        %v853 = vunpack.c.l.b16 %v424
        %v854 = vunpack.c.h.b16 %v424
        %v855 = vunpack.c.l.b16 %v425
        %v856 = vunpack.c.h.b16 %v425
        %v857 = vunpack.c.l.b16 %v426
        %v858 = vunpack.c.h.b16 %v426
        %v859 = vunpack.c.l.b16 %v427
        %v860 = vunpack.c.h.b16 %v427
        %v861 = vunpack.c.l.b16 %v428
        %v862 = vunpack.c.h.b16 %v428
        %v863 = vunpack.c.l.b16 %v429
        %v864 = vunpack.c.h.b16 %v429
        %v865 = vunpack.c.l.b16 %v430
        %v866 = vunpack.c.h.b16 %v430
        %v867 = vunpack.c.l.b16 %v431
        %v868 = vunpack.c.h.b16 %v431
        %v869 = vunpack.c.l.b16 %v432
        %v870 = vunpack.c.h.b16 %v432
        %v871 = vunpack.c.l.b16 %v433
        %v872 = vunpack.c.h.b16 %v433
        %v873 = vunpack.c.l.b16 %v434
        %v874 = vunpack.c.h.b16 %v434
        %v875 = vunpack.c.l.b16 %v435
        %v876 = vunpack.c.h.b16 %v435
        %v877 = vunpack.c.l.b16 %v436
        %v878 = vunpack.c.h.b16 %v436
        %v879 = vunpack.c.l.b16 %v437
        %v880 = vunpack.c.h.b16 %v437
        %v881 = vunpack.c.l.b16 %v438
        %v882 = vunpack.c.h.b16 %v438
        %v883 = vunpack.c.l.b16 %v439
        %v884 = vunpack.c.h.b16 %v439
        %v885 = vunpack.c.l.b16 %v440
        %v886 = vunpack.c.h.b16 %v440
        %v887 = vunpack.c.l.b16 %v441
        %v888 = vunpack.c.h.b16 %v441
        %v889 = vunpack.c.l.b16 %v442
        %v890 = vunpack.c.h.b16 %v442
        %v891 = vunpack.c.l.b16 %v443
        %v892 = vunpack.c.h.b16 %v443
        %v893 = vunpack.c.l.b16 %v444
        %v894 = vunpack.c.h.b16 %v444
        %v895 = vunpack.c.l.b16 %v445
        %v896 = vunpack.c.h.b16 %v445
        %v897 = vunpack.c.l.b16 %v446
        %v898 = vunpack.c.h.b16 %v446
        %v899 = vunpack.c.l.b16 %v447
        %v900 = vunpack.c.h.b16 %v447
        %v901 = vunpack.c.l.b16 %v448
        %v902 = vunpack.c.h.b16 %v448
        %v903 = vunpack.c.l.b16 %v449
        %v904 = vunpack.c.h.b16 %v449
        %v905 = vunpack.c.l.b16 %v450
        %v906 = vunpack.c.h.b16 %v450
        %v907 = vunpack.c.l.b16 %v451
        %v908 = vunpack.c.h.b16 %v451
        %v909 = vunpack.c.l.b16 %v452
        %v910 = vunpack.c.h.b16 %v452
        %v911 = vunpack.c.l.b16 %v453
        %v912 = vunpack.c.h.b16 %v453
        %v913 = vunpack.c.l.b16 %v454
        %v914 = vunpack.c.h.b16 %v454
        %v915 = vunpack.c.l.b16 %v455
        %v916 = vunpack.c.h.b16 %v455
        %v917 = vunpack.c.l.b16 %v456
        %v918 = vunpack.c.h.b16 %v456
        %v919 = vunpack.c.l.b16 %v457
        %v920 = vunpack.c.h.b16 %v457
        %v921 = vunpack.c.l.b16 %v458
        %v922 = vunpack.c.h.b16 %v458
        %v923 = vunpack.c.l.b16 %v459
        %v924 = vunpack.c.h.b16 %v459
        %v925 = vunpack.c.l.b16 %v460
        %v926 = vunpack.c.h.b16 %v460
        %v927 = vunpack.c.l.b16 %v461
        %v928 = vunpack.c.h.b16 %v461
        %v929 = vunpack.c.l.b16 %v462
        %v930 = vunpack.c.h.b16 %v462
        %v931 = vunpack.c.l.b16 %v463
        %v932 = vunpack.c.h.b16 %v463
        %v933 = vunpack.c.l.b16 %v464
        %v934 = vunpack.c.h.b16 %v464
        %v935 = vunpack.c.l.b16 %v465
        %v936 = vunpack.c.h.b16 %v465
        %v937 = vunpack.c.l.b16 %v466
        %v938 = vunpack.c.h.b16 %v466
        %v939 = vunpack.c.l.b16 %v467
        %v940 = vunpack.c.h.b16 %v467
        %v941 = vunpack.c.l.b16 %v468
        %v942 = vunpack.c.h.b16 %v468
        %v943 = vunpack.c.l.b16 %v469
        %v944 = vunpack.c.h.b16 %v469
        %v945 = vunpack.c.l.b16 %v470
        %v946 = vunpack.c.h.b16 %v470
        %v947 = vunpack.c.l.b16 %v471
        %v948 = vunpack.c.h.b16 %v471
        %v949 = vunpack.c.l.b16 %v472
        %v950 = vunpack.c.h.b16 %v472
        %v951 = vunpack.c.l.b16 %v473
        %v952 = vunpack.c.h.b16 %v473
        %v953 = vunpack.c.l.b16 %v474
        %v954 = vunpack.c.h.b16 %v474
        %v955 = vunpack.c.l.b16 %v475
        %v956 = vunpack.c.h.b16 %v475
        %v957 = vunpack.c.l.b16 %v476
        %v958 = vunpack.c.h.b16 %v476
        %v959 = vunpack.c.l.b16 %v477
        %v960 = vunpack.c.h.b16 %v477
        %v961 = vunpack.c.l.b16 %v478
        %v962 = vunpack.c.h.b16 %v478
        %v963 = vunpack.c.l.b16 %v479
        %v964 = vunpack.c.h.b16 %v479
        %v965 = vunpack.c.l.b16 %v480
        %v966 = vunpack.c.h.b16 %v480
        %v967 = vunpack.c.l.b16 %v481
        %v968 = vunpack.c.h.b16 %v481
        %v969 = vunpack.c.l.b16 %v482
        %v970 = vunpack.c.h.b16 %v482
        %v971 = vunpack.c.l.b16 %v483
        %v972 = vunpack.c.h.b16 %v483
        %v973 = vunpack.c.l.b16 %v484
        %v974 = vunpack.c.h.b16 %v484
        %v975 = vunpack.c.l.b16 %v485
        %v976 = vunpack.c.h.b16 %v485
        %v977 = vunpack.c.l.b16 %v486
        %v978 = vunpack.c.h.b16 %v486
        %v979 = vunpack.c.l.b16 %v487
        %v980 = vunpack.c.h.b16 %v487
        %v981 = vunpack.c.l.b16 %v488
        %v982 = vunpack.c.h.b16 %v488
        %v983 = vunpack.c.l.b16 %v489
        %v984 = vunpack.c.h.b16 %v489
        %v985 = vunpack.c.l.b16 %v490
        %v986 = vunpack.c.h.b16 %v490
        %v987 = vunpack.c.l.b16 %v491
        %v988 = vunpack.c.h.b16 %v491
        %v989 = vunpack.c.l.b16 %v492
        %v990 = vunpack.c.h.b16 %v492
        %v991 = vunpack.c.l.b16 %v493
        %v992 = vunpack.c.h.b16 %v493
        %v993 = vunpack.c.l.b16 %v494
        %v994 = vunpack.c.h.b16 %v494
        %v995 = vunpack.c.l.b16 %v495
        %v996 = vunpack.c.h.b16 %v495
        %v997 = vunpack.c.l.b16 %v496
        %v998 = vunpack.c.h.b16 %v496
        %v999 = vunpack.c.l.b16 %v497
        %v1000 = vunpack.c.h.b16 %v497
        %v1001 = vunpack.c.l.b16 %v498
        %v1002 = vunpack.c.h.b16 %v498
        %v1003 = vunpack.c.l.b16 %v499
        %v1004 = vunpack.c.h.b16 %v499
        %v1005 = vunpack.c.l.b16 %v500
        %v1006 = vunpack.c.h.b16 %v500
        %v1007 = vunpack.c.l.b16 %v501
        %v1008 = vunpack.c.h.b16 %v501
        %v1009 = vunpack.c.l.b16 %v502
        %v1010 = vunpack.c.h.b16 %v502
        %v1011 = vunpack.c.l.b16 %v503
        %v1012 = vunpack.c.h.b16 %v503
        %v1013 = vunpack.c.l.b16 %v504
        %v1014 = vunpack.c.h.b16 %v504
        %v1015 = vunpack.c.l.b16 %v505
        %v1016 = vunpack.c.h.b16 %v505
        %v1017 = vunpack.c.l.b16 %v506
        %v1018 = vunpack.c.h.b16 %v506
        %v1019 = vunpack.c.l.b16 %v507
        %v1020 = vunpack.c.h.b16 %v507
        %v1021 = vunpack.c.l.b16 %v508
        %v1022 = vunpack.c.h.b16 %v508
        %v1023 = vunpack.c.l.b16 %v509
        %v1024 = vunpack.c.h.b16 %v509
        %v1025 = vunpack.c.l.b16 %v510
        %v1026 = vunpack.c.h.b16 %v510
        %v1027 = vunpack.c.l.b16 %v511
        %v1028 = vunpack.c.h.b16 %v511
        %v1029 = vunpack.c.l.b16 %v512
        %v1030 = vunpack.c.h.b16 %v512
        %v1031 = vunpack.c.l.b16 %v513
        %v1032 = vunpack.c.h.b16 %v513
        %v1033 = vunpack.c.l.b16 %v514
        %v1034 = vunpack.c.h.b16 %v514
        %v1035 = vunpack.c.l.b16 %v515
        %v1036 = vunpack.c.h.b16 %v515
        %v1037 = vunpack.c.l.b16 %v516
        %v1038 = vunpack.c.h.b16 %v516
        %v1039 = vunpack.c.l.b16 %v517
        %v1040 = vunpack.c.h.b16 %v517
        %v1041 = vunpack.c.l.b16 %v518
        %v1042 = vunpack.c.h.b16 %v518
        %v1043 = vunpack.c.l.b16 %v519
        %v1044 = vunpack.c.h.b16 %v519
        %v1045 = vunpack.c.l.b16 %v520
        %v1046 = vunpack.c.h.b16 %v520
        %v1047 = vunpack.c.l.b16 %v521
        %v1048 = vunpack.c.h.b16 %v521
        %v1049 = vunpack.c.l.b16 %v522
        %v1050 = vunpack.c.h.b16 %v522
        %v1051 = vunpack.c.l.b16 %v523
        %v1052 = vunpack.c.h.b16 %v523
        %v1053 = vunpack.c.l.b16 %v524
        %v1054 = vunpack.c.h.b16 %v524
        %v1055 = vunpack.c.l.b16 %v525
        %v1056 = vunpack.c.h.b16 %v525
        %v1057 = vunpack.c.l.b16 %v526
        %v1058 = vunpack.c.h.b16 %v526
        %v1059 = vunpack.c.l.b16 %v527
        %v1060 = vunpack.c.h.b16 %v527
        %v1061 = vunpack.c.l.b16 %v528
        %v1062 = vunpack.c.h.b16 %v528
        %v1063 = vunpack.c.l.b16 %v529
        %v1064 = vunpack.c.h.b16 %v529
        %v1065 = vunpack.c.l.b16 %v530
        %v1066 = vunpack.c.h.b16 %v530
        %v1067 = vunpack.c.l.b16 %v531
        %v1068 = vunpack.c.h.b16 %v531
        %v1069 = vunpack.c.l.b16 %v532
        %v1070 = vunpack.c.h.b16 %v532
        %v1071 = vunpack.c.l.b16 %v533
        %v1072 = vunpack.c.h.b16 %v533
        %v1073 = vunpack.c.l.b16 %v534
        %v1074 = vunpack.c.h.b16 %v534
        %v1075 = vunpack.c.l.b16 %v535
        %v1076 = vunpack.c.h.b16 %v535
        %v1077 = vunpack.c.l.b16 %v536
        %v1078 = vunpack.c.h.b16 %v536
        %v1079 = vunpack.c.l.b16 %v537
        %v1080 = vunpack.c.h.b16 %v537
        %v1081 = vunpack.c.l.b16 %v538
        %v1082 = vunpack.c.h.b16 %v538
        %v1083 = vunpack.c.l.b16 %v539
        %v1084 = vunpack.c.h.b16 %v539
        %v1085 = vunpack.c.l.b16 %v540
        %v1086 = vunpack.c.h.b16 %v540
        %v1087 = vunpack.c.l.b16 %v541
        %v1088 = vunpack.c.h.b16 %v541
        %v1089 = vunpack.c.l.b16 %v542
        %v1090 = vunpack.c.h.b16 %v542
        %v1091 = vunpack.c.l.b16 %v543
        %v1092 = vunpack.c.h.b16 %v543
        %v1093 = vunpack.c.l.b16 %v544
        %v1094 = vunpack.c.h.b16 %v544
        %v1095 = vunpack.c.l.b16 %v545
        %v1096 = vunpack.c.h.b16 %v545
        %v1097 = vunpack.c.l.b16 %v546
        %v1098 = vunpack.c.h.b16 %v546
        %v1099 = vunpack.c.l.b16 %v547
        %v1100 = vunpack.c.h.b16 %v547
        %v1101 = vunpack.c.l.b16 %v548
        %v1102 = vunpack.c.h.b16 %v548
        %v1103 = vunpack.c.l.b16 %v549
        %v1104 = vunpack.c.h.b16 %v549
        %v1105 = vunpack.c.l.b16 %v550
        %v1106 = vunpack.c.h.b16 %v550
        %v1107 = vunpack.c.l.b16 %v551
        %v1108 = vunpack.c.h.b16 %v551
        %v1109 = vunpack.c.l.b16 %v552
        %v1110 = vunpack.c.h.b16 %v552
        %v1111 = vunpack.c.l.b16 %v553
        %v1112 = vunpack.c.h.b16 %v553
        %v1113 = vunpack.c.l.b16 %v554
        %v1114 = vunpack.c.h.b16 %v554
        %v1115 = vunpack.c.l.b16 %v555
        %v1116 = vunpack.c.h.b16 %v555
        %v1117 = vunpack.c.l.b16 %v556
        %v1118 = vunpack.c.h.b16 %v556
        %v1119 = vpack.c.b16 %v767, %v763
        %v1120 = vpack.c.b16 %v768, %v764
        %v1121 = vpack.c.b16 %v769, %v765
        %v1122 = vpack.c.b16 %v770, %v766
        %v1123 = vpack.c.b16 %v775, %v771
        %v1124 = vpack.c.b16 %v776, %v772
        %v1125 = vpack.c.b16 %v777, %v773
        %v1126 = vpack.c.b16 %v778, %v774
        %v1127 = vpack.c.b16 %v783, %v779
        %v1128 = vpack.c.b16 %v784, %v780
        %v1129 = vpack.c.b16 %v785, %v781
        %v1130 = vpack.c.b16 %v786, %v782
        %v1131 = vpack.c.b16 %v791, %v787
        %v1132 = vpack.c.b16 %v792, %v788
        %v1133 = vpack.c.b16 %v793, %v789
        %v1134 = vpack.c.b16 %v794, %v790
        %v1135 = vpack.c.b16 %v799, %v795
        %v1136 = vpack.c.b16 %v800, %v796
        %v1137 = vpack.c.b16 %v801, %v797
        %v1138 = vpack.c.b16 %v802, %v798
        %v1139 = vpack.c.b16 %v807, %v803
        %v1140 = vpack.c.b16 %v808, %v804
        %v1141 = vpack.c.b16 %v809, %v805
        %v1142 = vpack.c.b16 %v810, %v806
        %v1143 = vpack.c.b16 %v815, %v811
        %v1144 = vpack.c.b16 %v816, %v812
        %v1145 = vpack.c.b16 %v817, %v813
        %v1146 = vpack.c.b16 %v818, %v814
        %v1147 = vpack.c.b16 %v823, %v819
        %v1148 = vpack.c.b16 %v824, %v820
        %v1149 = vpack.c.b16 %v825, %v821
        %v1150 = vpack.c.b16 %v826, %v822
        %v1151 = vpack.c.b16 %v831, %v827
        %v1152 = vpack.c.b16 %v832, %v828
        %v1153 = vpack.c.b16 %v833, %v829
        %v1154 = vpack.c.b16 %v834, %v830
        %v1155 = vpack.c.b16 %v839, %v835
        %v1156 = vpack.c.b16 %v840, %v836
        %v1157 = vpack.c.b16 %v841, %v837
        %v1158 = vpack.c.b16 %v842, %v838
        %v1159 = vpack.c.b16 %v847, %v843
        %v1160 = vpack.c.b16 %v848, %v844
        %v1161 = vpack.c.b16 %v849, %v845
        %v1162 = vpack.c.b16 %v850, %v846
        %v1163 = vpack.c.b16 %v855, %v851
        %v1164 = vpack.c.b16 %v856, %v852
        %v1165 = vpack.c.b16 %v857, %v853
        %v1166 = vpack.c.b16 %v858, %v854
        %v1167 = vpack.c.b16 %v863, %v859
        %v1168 = vpack.c.b16 %v864, %v860
        %v1169 = vpack.c.b16 %v865, %v861
        %v1170 = vpack.c.b16 %v866, %v862
        %v1171 = vpack.c.b16 %v871, %v867
        %v1172 = vpack.c.b16 %v872, %v868
        %v1173 = vpack.c.b16 %v873, %v869
        %v1174 = vpack.c.b16 %v874, %v870
        %v1175 = vpack.c.b16 %v879, %v875
        %v1176 = vpack.c.b16 %v880, %v876
        %v1177 = vpack.c.b16 %v881, %v877
        %v1178 = vpack.c.b16 %v882, %v878
        %v1179 = vpack.c.b16 %v887, %v883
        %v1180 = vpack.c.b16 %v888, %v884
        %v1181 = vpack.c.b16 %v889, %v885
        %v1182 = vpack.c.b16 %v890, %v886
        %v1183 = vpack.c.b16 %v895, %v891
        %v1184 = vpack.c.b16 %v896, %v892
        %v1185 = vpack.c.b16 %v897, %v893
        %v1186 = vpack.c.b16 %v898, %v894
        %v1187 = vpack.c.b16 %v903, %v899
        %v1188 = vpack.c.b16 %v904, %v900
        %v1189 = vpack.c.b16 %v905, %v901
        %v1190 = vpack.c.b16 %v906, %v902
        %v1191 = vpack.c.b16 %v911, %v907
        %v1192 = vpack.c.b16 %v912, %v908
        %v1193 = vpack.c.b16 %v913, %v909
        %v1194 = vpack.c.b16 %v914, %v910
        %v1195 = vpack.c.b16 %v919, %v915
        %v1196 = vpack.c.b16 %v920, %v916
        %v1197 = vpack.c.b16 %v921, %v917
        %v1198 = vpack.c.b16 %v922, %v918
        %v1199 = vpack.c.b16 %v927, %v923
        %v1200 = vpack.c.b16 %v928, %v924
        %v1201 = vpack.c.b16 %v929, %v925
        %v1202 = vpack.c.b16 %v930, %v926
        %v1203 = vpack.c.b16 %v935, %v931
        %v1204 = vpack.c.b16 %v936, %v932
        %v1205 = vpack.c.b16 %v937, %v933
        %v1206 = vpack.c.b16 %v938, %v934
        %v1207 = vpack.c.b16 %v943, %v939
        %v1208 = vpack.c.b16 %v944, %v940
        %v1209 = vpack.c.b16 %v945, %v941
        %v1210 = vpack.c.b16 %v946, %v942
        %v1211 = vpack.c.b16 %v951, %v947
        %v1212 = vpack.c.b16 %v952, %v948
        %v1213 = vpack.c.b16 %v953, %v949
        %v1214 = vpack.c.b16 %v954, %v950
        %v1215 = vpack.c.b16 %v959, %v955
        %v1216 = vpack.c.b16 %v960, %v956
        %v1217 = vpack.c.b16 %v961, %v957
        %v1218 = vpack.c.b16 %v962, %v958
        %v1219 = vpack.c.b16 %v967, %v963
        %v1220 = vpack.c.b16 %v968, %v964
        %v1221 = vpack.c.b16 %v969, %v965
        %v1222 = vpack.c.b16 %v970, %v966
        %v1223 = vpack.c.b16 %v975, %v971
        %v1224 = vpack.c.b16 %v976, %v972
        %v1225 = vpack.c.b16 %v977, %v973
        %v1226 = vpack.c.b16 %v978, %v974
        %v1227 = vpack.c.b16 %v983, %v979
        %v1228 = vpack.c.b16 %v984, %v980
        %v1229 = vpack.c.b16 %v985, %v981
        %v1230 = vpack.c.b16 %v986, %v982
        %v1231 = vpack.c.b16 %v991, %v987
        %v1232 = vpack.c.b16 %v992, %v988
        %v1233 = vpack.c.b16 %v993, %v989
        %v1234 = vpack.c.b16 %v994, %v990
        %v1235 = vpack.c.b16 %v999, %v995
        %v1236 = vpack.c.b16 %v1000, %v996
        %v1237 = vpack.c.b16 %v1001, %v997
        %v1238 = vpack.c.b16 %v1002, %v998
        %v1239 = vpack.c.b16 %v1007, %v1003
        %v1240 = vpack.c.b16 %v1008, %v1004
        %v1241 = vpack.c.b16 %v1009, %v1005
        %v1242 = vpack.c.b16 %v1010, %v1006
        %v1243 = vpack.c.b16 %v1015, %v1011
        %v1244 = vpack.c.b16 %v1016, %v1012
        %v1245 = vpack.c.b16 %v1017, %v1013
        %v1246 = vpack.c.b16 %v1018, %v1014
        %v1247 = vpack.c.b16 %v1023, %v1019
        %v1248 = vpack.c.b16 %v1024, %v1020
        %v1249 = vpack.c.b16 %v1025, %v1021
        %v1250 = vpack.c.b16 %v1026, %v1022
        %v1251 = vpack.c.b16 %v1031, %v1027
        %v1252 = vpack.c.b16 %v1032, %v1028
        %v1253 = vpack.c.b16 %v1033, %v1029
        %v1254 = vpack.c.b16 %v1034, %v1030
        %v1255 = vpack.c.b16 %v1039, %v1035
        %v1256 = vpack.c.b16 %v1040, %v1036
        %v1257 = vpack.c.b16 %v1041, %v1037
        %v1258 = vpack.c.b16 %v1042, %v1038
        %v1259 = vpack.c.b16 %v1047, %v1043
        %v1260 = vpack.c.b16 %v1048, %v1044
        %v1261 = vpack.c.b16 %v1049, %v1045
        %v1262 = vpack.c.b16 %v1050, %v1046
        %v1263 = vpack.c.b16 %v1055, %v1051
        %v1264 = vpack.c.b16 %v1056, %v1052
        %v1265 = vpack.c.b16 %v1057, %v1053
        %v1266 = vpack.c.b16 %v1058, %v1054
        %v1267 = vpack.c.b16 %v1063, %v1059
        %v1268 = vpack.c.b16 %v1064, %v1060
        %v1269 = vpack.c.b16 %v1065, %v1061
        %v1270 = vpack.c.b16 %v1066, %v1062
        %v1271 = vpack.c.b16 %v1071, %v1067
        %v1272 = vpack.c.b16 %v1072, %v1068
        %v1273 = vpack.c.b16 %v1073, %v1069
        %v1274 = vpack.c.b16 %v1074, %v1070
        %v1275 = vpack.c.b16 %v1079, %v1075
        %v1276 = vpack.c.b16 %v1080, %v1076
        %v1277 = vpack.c.b16 %v1081, %v1077
        %v1278 = vpack.c.b16 %v1082, %v1078
        %v1279 = vpack.c.b16 %v1087, %v1083
        %v1280 = vpack.c.b16 %v1088, %v1084
        %v1281 = vpack.c.b16 %v1089, %v1085
        %v1282 = vpack.c.b16 %v1090, %v1086
        %v1283 = vpack.c.b16 %v1095, %v1091
        %v1284 = vpack.c.b16 %v1096, %v1092
        %v1285 = vpack.c.b16 %v1097, %v1093
        %v1286 = vpack.c.b16 %v1098, %v1094
        %v1287 = vpack.c.b16 %v1103, %v1099
        %v1288 = vpack.c.b16 %v1104, %v1100
        %v1289 = vpack.c.b16 %v1105, %v1101
        %v1290 = vpack.c.b16 %v1106, %v1102
        %v1291 = vpack.c.b16 %v1111, %v1107
        %v1292 = vpack.c.b16 %v1112, %v1108
        %v1293 = vpack.c.b16 %v1113, %v1109
        %v1294 = vpack.c.b16 %v1114, %v1110
        %v1295 = vpack.c.b16 %v1115, %v1115
        %v1296 = vpack.c.b16 %v1116, %v1116
        %v1297 = vpack.c.b16 %v1117, %v1117
        %v1298 = vpack.c.b16 %v1118, %v1118
        %vm1475 = vcmask 588800
        %v1477 = vsel %vm1475, %v562, 0
        %vm1479 = vcmask 1043456
        %v1481 = vsel %vm1479, %v1295, 0
        %v1484 = vsel %vm1479, %v1296, 0
        %v1487 = vsel %vm1479, %v1297, 0
        %v1490 = vsel %vm1479, %v1298, 0
        %1492 = vmatprep.subr.bf16.mxu0 %v1120
        %1493 = vmatpush1.bf16.msra.mxu0 %v1119
        %1494 = vmatprep.subr.bf16.mxu0 %v1124
        %1495 = vmatpush1.bf16.msra.mxu0 %v1123
        %1496 = vmatprep.subr.bf16.mxu0 %v1128
        %1497 = vmatpush1.bf16.msra.mxu0 %v1127
        %1498 = vmatprep.subr.bf16.mxu0 %v1132
        %1499 = vmatpush1.bf16.msra.mxu0 %v1131
        %1500 = vmatprep.subr.bf16.mxu0 %v1136
        %1501 = vmatpush1.bf16.msra.mxu0 %v1135
        %1502 = vmatprep.subr.bf16.mxu0 %v1140
        %1503 = vmatpush1.bf16.msra.mxu0 %v1139
        %1504 = vmatprep.subr.bf16.mxu0 %v1144
        %1505 = vmatpush1.bf16.msra.mxu0 %v1143
        %1506 = vmatprep.subr.bf16.mxu0 %v1148
        %1507 = vmatpush1.bf16.msra.mxu0 %v1147
        %1508 = vmatprep.subr.bf16.mxu0 %v1152
        %1509 = vmatpush1.bf16.msra.mxu0 %v1151
        %1510 = vmatprep.subr.bf16.mxu0 %v1156
        %1511 = vmatpush1.bf16.msra.mxu0 %v1155
        %1512 = vmatprep.subr.bf16.mxu0 %v1160
        %1513 = vmatpush1.bf16.msra.mxu0 %v1159
        %1514 = vmatprep.subr.bf16.mxu0 %v1164
        %1515 = vmatpush1.bf16.msra.mxu0 %v1163
        %1516 = vmatprep.subr.bf16.mxu0 %v1168
        %1517 = vmatpush1.bf16.msra.mxu0 %v1167
        %1518 = vmatprep.subr.bf16.mxu0 %v1172
        %1519 = vmatpush1.bf16.msra.mxu0 %v1171
        %1520 = vmatprep.subr.bf16.mxu0 %v1176
        %1521 = vmatpush1.bf16.msra.mxu0 %v1175
        %1522 = vmatprep.subr.bf16.mxu0 %v1180
        %1523 = vmatpush1.bf16.msra.mxu0 %v1179
        %1524 = vmatprep.mubr.bf16.mxu0 %v558
        %1525 = vmatmul.mubr.bf16.gmra.mrb[0].mxu0 %v557
        %v1526 = vpop.f32.mrb[0].mxu0
        %v1527 = vadd.f32 %v568, %v1526
        %v1528 = vpop.f32.mrb[0].mxu0
        %v1529 = vadd.f32 %v572, %v1528
        %v1530 = vpop.f32.mrb[0].mxu0
        %v1531 = vpop.f32.mrb[0].mxu0
        %1532 = vdwg.mxu0
        %1533 = vmatprep.subr.bf16.mxu0 %v1184
        %1534 = vmatpush1.bf16.msra.mxu0 %v1183
        %1535 = vmatprep.subr.bf16.mxu0 %v1188
        %1536 = vmatpush1.bf16.msra.mxu0 %v1187
        %1537 = vmatprep.subr.bf16.mxu0 %v1192
        %1538 = vmatpush1.bf16.msra.mxu0 %v1191
        %1539 = vmatprep.subr.bf16.mxu0 %v1196
        %1540 = vmatpush1.bf16.msra.mxu0 %v1195
        %1541 = vmatprep.subr.bf16.mxu0 %v1200
        %1542 = vmatpush1.bf16.msra.mxu0 %v1199
        %1543 = vmatprep.subr.bf16.mxu0 %v1204
        %1544 = vmatpush1.bf16.msra.mxu0 %v1203
        %1545 = vmatprep.subr.bf16.mxu0 %v1208
        %1546 = vmatpush1.bf16.msra.mxu0 %v1207
        %1547 = vmatprep.subr.bf16.mxu0 %v1212
        %1548 = vmatpush1.bf16.msra.mxu0 %v1211
        %1549 = vmatprep.subr.bf16.mxu0 %v1216
        %1550 = vmatpush1.bf16.msra.mxu0 %v1215
        %1551 = vmatprep.subr.bf16.mxu0 %v1220
        %1552 = vmatpush1.bf16.msra.mxu0 %v1219
        %1553 = vmatprep.subr.bf16.mxu0 %v1224
        %1554 = vmatpush1.bf16.msra.mxu0 %v1223
        %1555 = vmatprep.subr.bf16.mxu0 %v1228
        %1556 = vmatpush1.bf16.msra.mxu0 %v1227
        %1557 = vmatprep.subr.bf16.mxu0 %v1232
        %1558 = vmatpush1.bf16.msra.mxu0 %v1231
        %1559 = vmatprep.subr.bf16.mxu0 %v1236
        %1560 = vmatpush1.bf16.msra.mxu0 %v1235
        %1561 = vmatprep.subr.bf16.mxu0 %v1240
        %1562 = vmatpush1.bf16.msra.mxu0 %v1239
        %1563 = vmatprep.subr.bf16.mxu0 %v1244
        %1564 = vmatpush1.bf16.msra.mxu0 %v1243
        %1565 = vmatprep.mubr.bf16.mxu0 %v560
        %1566 = vmatmul.mubr.bf16.gmra.mrb[0].mxu0 %v559
        %v1567 = vpop.f32.mrb[0].mxu0
        %v1568 = vadd.f32 %v1527, %v1567
        %v1569 = vpop.f32.mrb[0].mxu0
        %v1570 = vadd.f32 %v1529, %v1569
        %v1571 = vpop.f32.mrb[0].mxu0
        %v1572 = vpop.f32.mrb[0].mxu0
        %1573 = vdwg.mxu0
        %1574 = vmatprep.subr.bf16.mxu0 %v1248
        %1575 = vmatpush1.bf16.msra.mxu0 %v1247
        %1576 = vmatprep.subr.bf16.mxu0 %v1252
        %1577 = vmatpush1.bf16.msra.mxu0 %v1251
        %1578 = vmatprep.subr.bf16.mxu0 %v1256
        %1579 = vmatpush1.bf16.msra.mxu0 %v1255
        %1580 = vmatprep.subr.bf16.mxu0 %v1260
        %1581 = vmatpush1.bf16.msra.mxu0 %v1259
        %1582 = vmatprep.subr.bf16.mxu0 %v1264
        %1583 = vmatpush1.bf16.msra.mxu0 %v1263
        %1584 = vmatprep.subr.bf16.mxu0 %v1268
        %1585 = vmatpush1.bf16.msra.mxu0 %v1267
        %1586 = vmatprep.subr.bf16.mxu0 %v1272
        %1587 = vmatpush1.bf16.msra.mxu0 %v1271
        %1588 = vmatprep.subr.bf16.mxu0 %v1276
        %1589 = vmatpush1.bf16.msra.mxu0 %v1275
        %1590 = vmatprep.subr.bf16.mxu0 %v1280
        %1591 = vmatpush1.bf16.msra.mxu0 %v1279
        %1592 = vmatprep.subr.bf16.mxu0 %v1284
        %1593 = vmatpush1.bf16.msra.mxu0 %v1283
        %1594 = vmatprep.subr.bf16.mxu0 %v1288
        %1595 = vmatpush1.bf16.msra.mxu0 %v1287
        %1596 = vmatprep.subr.bf16.mxu0 %v1292
        %1597 = vmatpush1.bf16.msra.mxu0 %v1291
        %1598 = vmatprep.subr.bf16.mxu0 %v1484
        %1599 = vmatpush1.bf16.msra.mxu0 %v1481
        %1600 = vmatprep.subr.bf16.mxu0 0
        %1601 = vmatpush1.bf16.msra.mxu0 0
        %1602 = vmatprep.subr.bf16.mxu0 0
        %1603 = vmatpush1.bf16.msra.mxu0 0
        %1604 = vmatprep.subr.bf16.mxu0 0
        %1605 = vmatpush1.bf16.msra.mxu0 0
        %1606 = vmatprep.mubr.bf16.mxu0 %v1477
        %1607 = vmatmul.mubr.bf16.gmra.mrb[0].mxu0 %v561
        %v1608 = vpop.f32.mrb[0].mxu0
        %v1609 = vadd.f32 %v1568, %v1608
        %v1610 = vpop.f32.mrb[0].mxu0
        %v1611 = vadd.f32 %v1570, %v1610
        %v1612 = vpop.f32.mrb[0].mxu0
        %v1613 = vpop.f32.mrb[0].mxu0
        %1614 = vdwg.mxu0
        %1615 = vmatprep.subr.bf16.mxu0 %v1122
        %1616 = vmatpush1.bf16.msra.mxu0 %v1121
        %1617 = vmatprep.subr.bf16.mxu0 %v1126
        %1618 = vmatpush1.bf16.msra.mxu0 %v1125
        %1619 = vmatprep.subr.bf16.mxu0 %v1130
        %1620 = vmatpush1.bf16.msra.mxu0 %v1129
        %1621 = vmatprep.subr.bf16.mxu0 %v1134
        %1622 = vmatpush1.bf16.msra.mxu0 %v1133
        %1623 = vmatprep.subr.bf16.mxu0 %v1138
        %1624 = vmatpush1.bf16.msra.mxu0 %v1137
        %1625 = vmatprep.subr.bf16.mxu0 %v1142
        %1626 = vmatpush1.bf16.msra.mxu0 %v1141
        %1627 = vmatprep.subr.bf16.mxu0 %v1146
        %1628 = vmatpush1.bf16.msra.mxu0 %v1145
        %1629 = vmatprep.subr.bf16.mxu0 %v1150
        %1630 = vmatpush1.bf16.msra.mxu0 %v1149
        %1631 = vmatprep.subr.bf16.mxu0 %v1154
        %1632 = vmatpush1.bf16.msra.mxu0 %v1153
        %1633 = vmatprep.subr.bf16.mxu0 %v1158
        %1634 = vmatpush1.bf16.msra.mxu0 %v1157
        %1635 = vmatprep.subr.bf16.mxu0 %v1162
        %1636 = vmatpush1.bf16.msra.mxu0 %v1161
        %1637 = vmatprep.subr.bf16.mxu0 %v1166
        %1638 = vmatpush1.bf16.msra.mxu0 %v1165
        %1639 = vmatprep.subr.bf16.mxu0 %v1170
        %1640 = vmatpush1.bf16.msra.mxu0 %v1169
        %1641 = vmatprep.subr.bf16.mxu0 %v1174
        %1642 = vmatpush1.bf16.msra.mxu0 %v1173
        %1643 = vmatprep.subr.bf16.mxu0 %v1178
        %1644 = vmatpush1.bf16.msra.mxu0 %v1177
        %1645 = vmatprep.subr.bf16.mxu0 %v1182
        %1646 = vmatpush1.bf16.msra.mxu0 %v1181
        %1647 = vmatprep.mubr.bf16.mxu0 %v558
        %1648 = vmatmul.mubr.bf16.gmra.mrb[0].mxu0 %v557
        %v1649 = vpop.f32.mrb[0].mxu0
        %v1650 = vadd.f32 %v576, %v1649
        %v1651 = vpop.f32.mrb[0].mxu0
        %v1652 = vadd.f32 %v580, %v1651
        %v1653 = vpop.f32.mrb[0].mxu0
        %v1654 = vpop.f32.mrb[0].mxu0
        %1655 = vdwg.mxu0
        %1656 = vmatprep.subr.bf16.mxu0 %v1186
        %1657 = vmatpush1.bf16.msra.mxu0 %v1185
        %1658 = vmatprep.subr.bf16.mxu0 %v1190
        %1659 = vmatpush1.bf16.msra.mxu0 %v1189
        %1660 = vmatprep.subr.bf16.mxu0 %v1194
        %1661 = vmatpush1.bf16.msra.mxu0 %v1193
        %1662 = vmatprep.subr.bf16.mxu0 %v1198
        %1663 = vmatpush1.bf16.msra.mxu0 %v1197
        %1664 = vmatprep.subr.bf16.mxu0 %v1202
        %1665 = vmatpush1.bf16.msra.mxu0 %v1201
        %1666 = vmatprep.subr.bf16.mxu0 %v1206
        %1667 = vmatpush1.bf16.msra.mxu0 %v1205
        %1668 = vmatprep.subr.bf16.mxu0 %v1210
        %1669 = vmatpush1.bf16.msra.mxu0 %v1209
        %1670 = vmatprep.subr.bf16.mxu0 %v1214
        %1671 = vmatpush1.bf16.msra.mxu0 %v1213
        %1672 = vmatprep.subr.bf16.mxu0 %v1218
        %1673 = vmatpush1.bf16.msra.mxu0 %v1217
        %1674 = vmatprep.subr.bf16.mxu0 %v1222
        %1675 = vmatpush1.bf16.msra.mxu0 %v1221
        %1676 = vmatprep.subr.bf16.mxu0 %v1226
        %1677 = vmatpush1.bf16.msra.mxu0 %v1225
        %1678 = vmatprep.subr.bf16.mxu0 %v1230
        %1679 = vmatpush1.bf16.msra.mxu0 %v1229
        %1680 = vmatprep.subr.bf16.mxu0 %v1234
        %1681 = vmatpush1.bf16.msra.mxu0 %v1233
        %1682 = vmatprep.subr.bf16.mxu0 %v1238
        %1683 = vmatpush1.bf16.msra.mxu0 %v1237
        %1684 = vmatprep.subr.bf16.mxu0 %v1242
        %1685 = vmatpush1.bf16.msra.mxu0 %v1241
        %1686 = vmatprep.subr.bf16.mxu0 %v1246
        %1687 = vmatpush1.bf16.msra.mxu0 %v1245
        %1688 = vmatprep.mubr.bf16.mxu0 %v560
        %1689 = vmatmul.mubr.bf16.gmra.mrb[0].mxu0 %v559
        %v1690 = vpop.f32.mrb[0].mxu0
        %v1691 = vadd.f32 %v1650, %v1690
        %v1692 = vpop.f32.mrb[0].mxu0
        %v1693 = vadd.f32 %v1652, %v1692
        %v1694 = vpop.f32.mrb[0].mxu0
        %v1695 = vpop.f32.mrb[0].mxu0
        %1696 = vdwg.mxu0
        %1697 = vmatprep.subr.bf16.mxu0 %v1250
        %1698 = vmatpush1.bf16.msra.mxu0 %v1249
        %1699 = vmatprep.subr.bf16.mxu0 %v1254
        %1700 = vmatpush1.bf16.msra.mxu0 %v1253
        %1701 = vmatprep.subr.bf16.mxu0 %v1258
        %1702 = vmatpush1.bf16.msra.mxu0 %v1257
        %1703 = vmatprep.subr.bf16.mxu0 %v1262
        %1704 = vmatpush1.bf16.msra.mxu0 %v1261
        %1705 = vmatprep.subr.bf16.mxu0 %v1266
        %1706 = vmatpush1.bf16.msra.mxu0 %v1265
        %1707 = vmatprep.subr.bf16.mxu0 %v1270
        %1708 = vmatpush1.bf16.msra.mxu0 %v1269
        %1709 = vmatprep.subr.bf16.mxu0 %v1274
        %1710 = vmatpush1.bf16.msra.mxu0 %v1273
        %1711 = vmatprep.subr.bf16.mxu0 %v1278
        %1712 = vmatpush1.bf16.msra.mxu0 %v1277
        %1713 = vmatprep.subr.bf16.mxu0 %v1282
        %1714 = vmatpush1.bf16.msra.mxu0 %v1281
        %1715 = vmatprep.subr.bf16.mxu0 %v1286
        %1716 = vmatpush1.bf16.msra.mxu0 %v1285
        %1717 = vmatprep.subr.bf16.mxu0 %v1290
        %1718 = vmatpush1.bf16.msra.mxu0 %v1289
        %1719 = vmatprep.subr.bf16.mxu0 %v1294
        %1720 = vmatpush1.bf16.msra.mxu0 %v1293
        %1721 = vmatprep.subr.bf16.mxu0 %v1490
        %1722 = vmatpush1.bf16.msra.mxu0 %v1487
        %1723 = vmatprep.subr.bf16.mxu0 0
        %1724 = vmatpush1.bf16.msra.mxu0 0
        %1725 = vmatprep.subr.bf16.mxu0 0
        %1726 = vmatpush1.bf16.msra.mxu0 0
        %1727 = vmatprep.subr.bf16.mxu0 0
        %1728 = vmatpush1.bf16.msra.mxu0 0
        %1729 = vmatprep.mubr.bf16.mxu0 %v1477
        %1730 = vmatmul.mubr.bf16.gmra.mrb[0].mxu0 %v561
        %v1731 = vpop.f32.mrb[0].mxu0
        %v1732 = vadd.f32 %v1691, %v1731
        %v1733 = vpop.f32.mrb[0].mxu0
        %v1734 = vadd.f32 %v1693, %v1733
        %v1735 = vpop.f32.mrb[0].mxu0
        %v1736 = vpop.f32.mrb[0].mxu0
        %1737 = vdwg.mxu0
        %v1738 = vmax.f32 %v1609, 0.0
        %v1739 = vmax.f32 %v1611, 0.0
        %v1740 = vmax.f32 %v1732, 0.0
        %v1741 = vmax.f32 %v1734, 0.0
        %v1742 = vld [vmem:[%s310] sm:$0xff]
        %v1743 = vld [vmem:[%s310 + $0x8] sm:$0xff]
        %v1744 = vld [vmem:[%s310 + $0x10] sm:$0xff]
        %v1745 = vld [vmem:[%s310 + $0x18] sm:$0xff]
        %v1746 = vld [vmem:[%s310 + $0x20] sm:$0xff]
        %v1747 = vld [vmem:[%s310 + $0x28] sm:$0xff]
        %v1748 = vld [vmem:[%s310 + $0x30] sm:$0xff]
        %v1749 = vld [vmem:[%s310 + $0x38] sm:$0xff]
        %v1750 = vld [vmem:[%s310 + $0x40] sm:$0xff]
        %v1751 = vld [vmem:[%s310 + $0x48] sm:$0xff]
        %v1752 = vld [vmem:[%s310 + $0x50] sm:$0xff]
        %v1753 = vld [vmem:[%s310 + $0x58] sm:$0xff]
        %v1754 = vld [vmem:[%s310 + $0x60] sm:$0xff]
        %v1755 = vld [vmem:[%s310 + $0x68] sm:$0xff]
        %v1756 = vld [vmem:[%s310 + $0x70] sm:$0xff]
        %v1757 = vld [vmem:[%s310 + $0x78] sm:$0xff]
        %v1758 = vld [vmem:[%s310 + $0x80] sm:$0xff]
        %v1759 = vld [vmem:[%s310 + $0x88] sm:$0xff]
        %v1760 = vld [vmem:[%s310 + $0x90] sm:$0xff]
        %v1761 = vld [vmem:[%s310 + $0x98] sm:$0xff]
        %v1762 = vld [vmem:[%s310 + $0xa0] sm:$0xff]
        %v1763 = vld [vmem:[%s310 + $0xa8] sm:$0xff]
        %v1764 = vld [vmem:[%s310 + $0xb0] sm:$0xff]
        %v1765 = vld [vmem:[%s310 + $0xb8] sm:$0xff]
        %v1766 = vld [vmem:[%s310 + $0xc0] sm:$0xff]
        %v1767 = vld [vmem:[%s310 + $0xc8] sm:$0xff]
        %v1768 = vld [vmem:[%s310 + $0xd0] sm:$0xff]
        %v1769 = vld [vmem:[%s310 + $0xd8] sm:$0xff]
        %v1770 = vld [vmem:[%s310 + $0xe0] sm:$0xff]
        %v1771 = vld [vmem:[%s310 + $0xe8] sm:$0xff]
        %v1772 = vld [vmem:[%s310 + $0xf0] sm:$0xff]
        %v1773 = vld [vmem:[%s310 + $0xf8] sm:$0xff]
        %v1774 = vld [vmem:[%s310 + $0x100] sm:$0xff]
        %v1775 = vld [vmem:[%s310 + $0x108] sm:$0xff]
        %v1776 = vld [vmem:[%s310 + $0x110] sm:$0xff]
        %v1777 = vld [vmem:[%s310 + $0x118] sm:$0xff]
        %v1778 = vld [vmem:[%s310 + $0x120] sm:$0xff]
        %v1779 = vld [vmem:[%s310 + $0x128] sm:$0xff]
        %v1780 = vld [vmem:[%s310 + $0x130] sm:$0xff]
        %v1781 = vld [vmem:[%s310 + $0x138] sm:$0xff]
        %v1782 = vld [vmem:[%s310 + $0x140] sm:$0xff]
        %v1783 = vld [vmem:[%s310 + $0x148] sm:$0xff]
        %v1784 = vld [vmem:[%s310 + $0x150] sm:$0xff]
        %v1785 = vld [vmem:[%s310 + $0x158] sm:$0xff]
        %v1786 = vld [vmem:[%s310 + $0x160] sm:$0xff]
        %v1787 = vld [vmem:[%s310 + $0x168] sm:$0xff]
        %v1788 = vld [vmem:[%s310 + $0x170] sm:$0xff]
        %v1789 = vld [vmem:[%s310 + $0x178] sm:$0xff]
        %v1790 = vld [vmem:[%s310 + $0x180] sm:$0xff]
        %v1791 = vld [vmem:[%s310 + $0x188] sm:$0xff]
        %v1792 = vld [vmem:[%s310 + $0x190] sm:$0xff]
        %v1793 = vld [vmem:[%s310 + $0x198] sm:$0xff]
        %v1794 = vld [vmem:[%s310 + $0x1a0] sm:$0xff]
        %v1795 = vld [vmem:[%s310 + $0x1a8] sm:$0xff]
        %v1796 = vld [vmem:[%s310 + $0x1b0] sm:$0xff]
        %v1797 = vld [vmem:[%s310 + $0x1b8] sm:$0xff]
        %v1798 = vld [vmem:[%s310 + $0x1c0] sm:$0xff]
        %v1799 = vld [vmem:[%s310 + $0x1c8] sm:$0xff]
        %v1800 = vld [vmem:[%s310 + $0x1d0] sm:$0xff]
        %v1801 = vld [vmem:[%s310 + $0x1d8] sm:$0xff]
        %v1802 = vld [vmem:[%s310 + $0x1e0] sm:$0xff]
        %v1803 = vld [vmem:[%s310 + $0x1e8] sm:$0xff]
        %v1804 = vld [vmem:[%s310 + $0x1f0] sm:$0xff]
        %v1805 = vld [vmem:[%s310 + $0x1f8] sm:$0xff]
        %v1806 = vld [vmem:[%s318] sm:$0x1]
        %v1808 = vlaneseq
        %v1809 = vshrl.u32 %v1808, 7
        %v1810 = vsub.s32 0, %v1809
        %v1811 = vrot.slane %v1806, %v1810
        %1813 = vmatprep.subr.mxu0 0.0
        %1814 = vmatpush1.msra.mxu0 %v1742
        %1815 = vmatprep.subr.mxu0 0.0
        %1816 = vmatpush1.msra.mxu0 %v1743
        %1817 = vmatprep.subr.mxu0 0.0
        %1818 = vmatpush1.msra.mxu0 %v1744
        %1819 = vmatprep.subr.mxu0 0.0
        %1820 = vmatpush1.msra.mxu0 %v1745
        %1821 = vmatprep.subr.mxu0 0.0
        %1822 = vmatpush1.msra.mxu0 %v1746
        %1823 = vmatprep.subr.mxu0 0.0
        %1824 = vmatpush1.msra.mxu0 %v1747
        %1825 = vmatprep.subr.mxu0 0.0
        %1826 = vmatpush1.msra.mxu0 %v1748
        %1827 = vmatprep.subr.mxu0 0.0
        %1828 = vmatpush1.msra.mxu0 %v1749
        %1829 = vmatprep.subr.mxu0 0.0
        %1830 = vmatpush1.msra.mxu0 %v1750
        %1831 = vmatprep.subr.mxu0 0.0
        %1832 = vmatpush1.msra.mxu0 %v1751
        %1833 = vmatprep.subr.mxu0 0.0
        %1834 = vmatpush1.msra.mxu0 %v1752
        %1835 = vmatprep.subr.mxu0 0.0
        %1836 = vmatpush1.msra.mxu0 %v1753
        %1837 = vmatprep.subr.mxu0 0.0
        %1838 = vmatpush1.msra.mxu0 %v1754
        %1839 = vmatprep.subr.mxu0 0.0
        %1840 = vmatpush1.msra.mxu0 %v1755
        %1841 = vmatprep.subr.mxu0 0.0
        %1842 = vmatpush1.msra.mxu0 %v1756
        %1843 = vmatprep.subr.mxu0 0.0
        %1844 = vmatpush1.msra.mxu0 %v1757
        %1845 = vmatprep.subr.mxu0 0.0
        %1846 = vmatpush1.msra.mxu0 %v1758
        %1847 = vmatprep.subr.mxu0 0.0
        %1848 = vmatpush1.msra.mxu0 %v1759
        %1849 = vmatprep.subr.mxu0 0.0
        %1850 = vmatpush1.msra.mxu0 %v1760
        %1851 = vmatprep.subr.mxu0 0.0
        %1852 = vmatpush1.msra.mxu0 %v1761
        %1853 = vmatprep.subr.mxu0 0.0
        %1854 = vmatpush1.msra.mxu0 %v1762
        %1855 = vmatprep.subr.mxu0 0.0
        %1856 = vmatpush1.msra.mxu0 %v1763
        %1857 = vmatprep.subr.mxu0 0.0
        %1858 = vmatpush1.msra.mxu0 %v1764
        %1859 = vmatprep.subr.mxu0 0.0
        %1860 = vmatpush1.msra.mxu0 %v1765
        %1861 = vmatprep.subr.mxu0 0.0
        %1862 = vmatpush1.msra.mxu0 %v1766
        %1863 = vmatprep.subr.mxu0 0.0
        %1864 = vmatpush1.msra.mxu0 %v1767
        %1865 = vmatprep.subr.mxu0 0.0
        %1866 = vmatpush1.msra.mxu0 %v1768
        %1867 = vmatprep.subr.mxu0 0.0
        %1868 = vmatpush1.msra.mxu0 %v1769
        %1869 = vmatprep.subr.mxu0 0.0
        %1870 = vmatpush1.msra.mxu0 %v1770
        %1871 = vmatprep.subr.mxu0 0.0
        %1872 = vmatpush1.msra.mxu0 %v1771
        %1873 = vmatprep.subr.mxu0 0.0
        %1874 = vmatpush1.msra.mxu0 %v1772
        %1875 = vmatprep.subr.mxu0 0.0
        %1876 = vmatpush1.msra.mxu0 %v1773
        %1877 = vmatprep.mubr.f32.mxu0 %v1739
        %1878 = vmatmul.mubr.f32.gmra.mrb[0].mxu0 %v1738
        %v1879 = vpop.f32.mrb[0].mxu0
        %v1880 = vadd.f32 %v1811, %v1879
        %v1881 = vpop.f32.mrb[0].mxu0
        %1882 = vdwg.mxu0
        %1883 = vmatprep.subr.mxu0 0.0
        %1884 = vmatpush1.msra.mxu0 %v1774
        %1885 = vmatprep.subr.mxu0 0.0
        %1886 = vmatpush1.msra.mxu0 %v1775
        %1887 = vmatprep.subr.mxu0 0.0
        %1888 = vmatpush1.msra.mxu0 %v1776
        %1889 = vmatprep.subr.mxu0 0.0
        %1890 = vmatpush1.msra.mxu0 %v1777
        %1891 = vmatprep.subr.mxu0 0.0
        %1892 = vmatpush1.msra.mxu0 %v1778
        %1893 = vmatprep.subr.mxu0 0.0
        %1894 = vmatpush1.msra.mxu0 %v1779
        %1895 = vmatprep.subr.mxu0 0.0
        %1896 = vmatpush1.msra.mxu0 %v1780
        %1897 = vmatprep.subr.mxu0 0.0
        %1898 = vmatpush1.msra.mxu0 %v1781
        %1899 = vmatprep.subr.mxu0 0.0
        %1900 = vmatpush1.msra.mxu0 %v1782
        %1901 = vmatprep.subr.mxu0 0.0
        %1902 = vmatpush1.msra.mxu0 %v1783
        %1903 = vmatprep.subr.mxu0 0.0
        %1904 = vmatpush1.msra.mxu0 %v1784
        %1905 = vmatprep.subr.mxu0 0.0
        %1906 = vmatpush1.msra.mxu0 %v1785
        %1907 = vmatprep.subr.mxu0 0.0
        %1908 = vmatpush1.msra.mxu0 %v1786
        %1909 = vmatprep.subr.mxu0 0.0
        %1910 = vmatpush1.msra.mxu0 %v1787
        %1911 = vmatprep.subr.mxu0 0.0
        %1912 = vmatpush1.msra.mxu0 %v1788
        %1913 = vmatprep.subr.mxu0 0.0
        %1914 = vmatpush1.msra.mxu0 %v1789
        %1915 = vmatprep.subr.mxu0 0.0
        %1916 = vmatpush1.msra.mxu0 %v1790
        %1917 = vmatprep.subr.mxu0 0.0
        %1918 = vmatpush1.msra.mxu0 %v1791
        %1919 = vmatprep.subr.mxu0 0.0
        %1920 = vmatpush1.msra.mxu0 %v1792
        %1921 = vmatprep.subr.mxu0 0.0
        %1922 = vmatpush1.msra.mxu0 %v1793
        %1923 = vmatprep.subr.mxu0 0.0
        %1924 = vmatpush1.msra.mxu0 %v1794
        %1925 = vmatprep.subr.mxu0 0.0
        %1926 = vmatpush1.msra.mxu0 %v1795
        %1927 = vmatprep.subr.mxu0 0.0
        %1928 = vmatpush1.msra.mxu0 %v1796
        %1929 = vmatprep.subr.mxu0 0.0
        %1930 = vmatpush1.msra.mxu0 %v1797
        %1931 = vmatprep.subr.mxu0 0.0
        %1932 = vmatpush1.msra.mxu0 %v1798
        %1933 = vmatprep.subr.mxu0 0.0
        %1934 = vmatpush1.msra.mxu0 %v1799
        %1935 = vmatprep.subr.mxu0 0.0
        %1936 = vmatpush1.msra.mxu0 %v1800
        %1937 = vmatprep.subr.mxu0 0.0
        %1938 = vmatpush1.msra.mxu0 %v1801
        %1939 = vmatprep.subr.mxu0 0.0
        %1940 = vmatpush1.msra.mxu0 %v1802
        %1941 = vmatprep.subr.mxu0 0.0
        %1942 = vmatpush1.msra.mxu0 %v1803
        %1943 = vmatprep.subr.mxu0 0.0
        %1944 = vmatpush1.msra.mxu0 %v1804
        %1945 = vmatprep.subr.mxu0 0.0
        %1946 = vmatpush1.msra.mxu0 %v1805
        %1947 = vmatprep.mubr.f32.mxu0 %v1741
        %1948 = vmatmul.mubr.f32.gmra.mrb[0].mxu0 %v1740
        %v1949 = vpop.f32.mrb[0].mxu0
        %v1950 = vadd.f32 %v1880, %v1949
        %v1951 = vpop.f32.mrb[0].mxu0
        %1952 = vdwg.mxu0
        %vm1953 = vcmask 416768
        %1954 = vst.msk [vmem:[%s371] sm:$0xff] %vm1953, %v1950
        %p1955 = scmp.lt.s32.totalorder %s25, 1
        %s1956 = scalar_select %p1955, %s25, 1
        %s1957 = smul.addr %s1956, 8
        %s1958 = scalar_lea.vmem %s5, %s1957
        // Predicated region
        $region57: #{resgcn_forward.8} parent=39 // pred_check
          %p1959 = pneg %p173
        $region58: #{resgcn_forward.8} parent=39 // pred_check_branch
          %1961 = sbr.rel (%p1959) target = $region60
        $region59: #{resgcn_forward.8} parent=39 // pred_region
          _
        $region60: #{resgcn_forward.8} parent=39 // pred_fallthru
          _
      $region40: #{resgcn_forward.8} parent=5 // pred_fallthru
        _
      %p1962 = scmp.le.s32.totalorder 2, %s20
      // Predicated region
      $region61: #{resgcn_forward.8} parent=5 // pred_check
        %p1963 = pneg %p1962
      $region62: #{resgcn_forward.8} parent=5 // pred_check_branch
        %1965 = sbr.rel (%p1963) target = $region64
      $region63: #{resgcn_forward.8} parent=5 // pred_region
        %s1966 = ssub.s32 %s20, 2
        // Predicated region
        $region65: #{resgcn_forward.8} parent=63 // pred_check
          %p1967 = pneg %p179
        $region66: #{resgcn_forward.8} parent=63 // pred_check_branch
          %1969 = sbr.rel (%p1967) target = $region68
        $region67: #{resgcn_forward.8} parent=63 // pred_region
          %p1970 = scmp.lt.s32.totalorder %s26, 1
          %s1971 = scalar_select %p1970, %s26, 1
          %s1972 = smul.addr %s1971, 8
          %s1973 = scalar_lea.vmem %s5, %s1972
        $region68: #{resgcn_forward.8} parent=63 // pred_fallthru
          _
      $region64: #{resgcn_forward.8} parent=5 // pred_fallthru
        _
    $region6: #{resgcn_forward.8} parent=1 // loop_footer
      %s24 = sadd.s32 1, %s20
    $region7: #{resgcn_forward.8} parent=1 // loop_footer_branch
      %19 = sbr.rel target = $region3
    $region8: #{resgcn_forward.8} parent=1 // loop_exit
      _
    %1974 = vsyncpa [#allocation3], 1
    %s1975 = scalar_lea.sflag [#allocation3], 1
    %1976 = vsyncpa %s1975, 1
    %1977 = vsyncpa [#allocation5], 1
    %s1978 = scalar_lea.sflag [#allocation5], 1
    %1979 = vsyncpa %s1978, 1
    %1980 = vsyncpa [#allocation8], 1
    %s1981 = scalar_lea.sflag [#allocation8], 1
    %1982 = vsyncpa %s1981, 1

// kernel: resgcn_forward.7
$region0: #{resgcn_forward.7}
  #allocation0 [shape = 'u32[]', space=smem, size = 0x4, offset = 0x4, fixed_abs, tag = 'smem constant byte address 0x4 - core index']
  #allocation1 [shape = 'u32[144,128]{1,0:T(1,128)}', space=vmem, size = 0x12000, scoped, tag = 'internal scratch']
  %s0 = inlined_call_operand.vmem [shape: f32[8,512], index: 0, kind: input, shape index: {}]
  %s1 = inlined_call_operand.vmem [shape: f32[512,52], index: 1, kind: input, shape index: {}]
  %s2 = inlined_call_operand.vmem [shape: f32[1,52], index: 2, kind: input, shape index: {}]
  %s3 = inlined_call_operand.vmem [shape: f32[8,52], index: 3, kind: output, shape index: {}]
  %s4 = sld [smem:[#allocation0]]
  $region22: #{resgcn_forward.7} parent=0
    _
  %s6 = ssub.s32 1, %s4
  %s7 = scalar_select 0, %s6, %s4
  // Predicated region
  $region2: #{resgcn_forward.7} parent=0 // pred_check
    _
  $region3: #{resgcn_forward.7} parent=0 // pred_check_branch
    %9 = sbr.rel (0) target = $region5
  $region4: #{resgcn_forward.7} parent=0 // pred_region
    _
  $region5: #{resgcn_forward.7} parent=0 // pred_fallthru
    _
  // Predicated region
  $region6: #{resgcn_forward.7} parent=0 // pred_check
    _
  $region7: #{resgcn_forward.7} parent=0 // pred_check_branch
    %11 = sbr.rel (0) target = $region9
  $region8: #{resgcn_forward.7} parent=0 // pred_region
    _
  $region9: #{resgcn_forward.7} parent=0 // pred_fallthru
    _
  // Predicated region
  $region10: #{resgcn_forward.7} parent=0 // pred_check
    _
  $region11: #{resgcn_forward.7} parent=0 // pred_check_branch
    %13 = sbr.rel (0) target = $region13
  $region12: #{resgcn_forward.7} parent=0 // pred_region
    _
  $region13: #{resgcn_forward.7} parent=0 // pred_fallthru
    _
  %v14 = vld [vmem:[%s0] sm:$0xff]
  %v15 = vld [vmem:[%s0 + $0x8] sm:$0xff]
  %v16 = vld [vmem:[%s0 + $0x10] sm:$0xff]
  %v17 = vld [vmem:[%s0 + $0x18] sm:$0xff]
  %v18 = vld [vmem:[%s1] sm:$0xff]
  %v19 = vld [vmem:[%s1 + $0x8] sm:$0xff]
  %v20 = vld [vmem:[%s1 + $0x10] sm:$0xff]
  %v21 = vld [vmem:[%s1 + $0x18] sm:$0xff]
  %v22 = vld [vmem:[%s1 + $0x20] sm:$0xff]
  %v23 = vld [vmem:[%s1 + $0x28] sm:$0xff]
  %v24 = vld [vmem:[%s1 + $0x30] sm:$0xff]
  %v25 = vld [vmem:[%s1 + $0x38] sm:$0xff]
  %v26 = vld [vmem:[%s1 + $0x40] sm:$0xff]
  %v27 = vld [vmem:[%s1 + $0x48] sm:$0xff]
  %v28 = vld [vmem:[%s1 + $0x50] sm:$0xff]
  %v29 = vld [vmem:[%s1 + $0x58] sm:$0xff]
  %v30 = vld [vmem:[%s1 + $0x60] sm:$0xff]
  %v31 = vld [vmem:[%s1 + $0x68] sm:$0xff]
  %v32 = vld [vmem:[%s1 + $0x70] sm:$0xff]
  %v33 = vld [vmem:[%s1 + $0x78] sm:$0xff]
  %v34 = vld [vmem:[%s1 + $0x80] sm:$0xff]
  %v35 = vld [vmem:[%s1 + $0x88] sm:$0xff]
  %v36 = vld [vmem:[%s1 + $0x90] sm:$0xff]
  %v37 = vld [vmem:[%s1 + $0x98] sm:$0xff]
  %v38 = vld [vmem:[%s1 + $0xa0] sm:$0xff]
  %v39 = vld [vmem:[%s1 + $0xa8] sm:$0xff]
  %v40 = vld [vmem:[%s1 + $0xb0] sm:$0xff]
  %v41 = vld [vmem:[%s1 + $0xb8] sm:$0xff]
  %v42 = vld [vmem:[%s1 + $0xc0] sm:$0xff]
  %v43 = vld [vmem:[%s1 + $0xc8] sm:$0xff]
  %v44 = vld [vmem:[%s1 + $0xd0] sm:$0xff]
  %v45 = vld [vmem:[%s1 + $0xd8] sm:$0xff]
  %v46 = vld [vmem:[%s1 + $0xe0] sm:$0xff]
  %v47 = vld [vmem:[%s1 + $0xe8] sm:$0xff]
  %v48 = vld [vmem:[%s1 + $0xf0] sm:$0xff]
  %v49 = vld [vmem:[%s1 + $0xf8] sm:$0xff]
  %v50 = vld [vmem:[%s1 + $0x100] sm:$0xff]
  %v51 = vld [vmem:[%s1 + $0x108] sm:$0xff]
  %v52 = vld [vmem:[%s1 + $0x110] sm:$0xff]
  %v53 = vld [vmem:[%s1 + $0x118] sm:$0xff]
  %v54 = vld [vmem:[%s1 + $0x120] sm:$0xff]
  %v55 = vld [vmem:[%s1 + $0x128] sm:$0xff]
  %v56 = vld [vmem:[%s1 + $0x130] sm:$0xff]
  %v57 = vld [vmem:[%s1 + $0x138] sm:$0xff]
  %v58 = vld [vmem:[%s1 + $0x140] sm:$0xff]
  %v59 = vld [vmem:[%s1 + $0x148] sm:$0xff]
  %v60 = vld [vmem:[%s1 + $0x150] sm:$0xff]
  %v61 = vld [vmem:[%s1 + $0x158] sm:$0xff]
  %v62 = vld [vmem:[%s1 + $0x160] sm:$0xff]
  %v63 = vld [vmem:[%s1 + $0x168] sm:$0xff]
  %v64 = vld [vmem:[%s1 + $0x170] sm:$0xff]
  %v65 = vld [vmem:[%s1 + $0x178] sm:$0xff]
  %v66 = vld [vmem:[%s1 + $0x180] sm:$0xff]
  %v67 = vld [vmem:[%s1 + $0x188] sm:$0xff]
  %v68 = vld [vmem:[%s1 + $0x190] sm:$0xff]
  %v69 = vld [vmem:[%s1 + $0x198] sm:$0xff]
  %v70 = vld [vmem:[%s1 + $0x1a0] sm:$0xff]
  %v71 = vld [vmem:[%s1 + $0x1a8] sm:$0xff]
  %v72 = vld [vmem:[%s1 + $0x1b0] sm:$0xff]
  %v73 = vld [vmem:[%s1 + $0x1b8] sm:$0xff]
  %v74 = vld [vmem:[%s1 + $0x1c0] sm:$0xff]
  %v75 = vld [vmem:[%s1 + $0x1c8] sm:$0xff]
  %v76 = vld [vmem:[%s1 + $0x1d0] sm:$0xff]
  %v77 = vld [vmem:[%s1 + $0x1d8] sm:$0xff]
  %v78 = vld [vmem:[%s1 + $0x1e0] sm:$0xff]
  %v79 = vld [vmem:[%s1 + $0x1e8] sm:$0xff]
  %v80 = vld [vmem:[%s1 + $0x1f0] sm:$0xff]
  %v81 = vld [vmem:[%s1 + $0x1f8] sm:$0xff]
  %v82 = vld [vmem:[%s2] sm:$0x1]
  %v84 = vlaneseq
  %v85 = vshrl.u32 %v84, 7
  %v86 = vsub.s32 0, %v85
  %v87 = vrot.slane %v82, %v86
  %89 = vmatprep.subr.mxu0 0.0
  %90 = vmatpush1.msra.mxu0 %v18
  %91 = vmatprep.subr.mxu0 0.0
  %92 = vmatpush1.msra.mxu0 %v19
  %93 = vmatprep.subr.mxu0 0.0
  %94 = vmatpush1.msra.mxu0 %v20
  %95 = vmatprep.subr.mxu0 0.0
  %96 = vmatpush1.msra.mxu0 %v21
  %97 = vmatprep.subr.mxu0 0.0
  %98 = vmatpush1.msra.mxu0 %v22
  %99 = vmatprep.subr.mxu0 0.0
  %100 = vmatpush1.msra.mxu0 %v23
  %101 = vmatprep.subr.mxu0 0.0
  %102 = vmatpush1.msra.mxu0 %v24
  %103 = vmatprep.subr.mxu0 0.0
  %104 = vmatpush1.msra.mxu0 %v25
  %105 = vmatprep.subr.mxu0 0.0
  %106 = vmatpush1.msra.mxu0 %v26
  %107 = vmatprep.subr.mxu0 0.0
  %108 = vmatpush1.msra.mxu0 %v27
  %109 = vmatprep.subr.mxu0 0.0
  %110 = vmatpush1.msra.mxu0 %v28
  %111 = vmatprep.subr.mxu0 0.0
  %112 = vmatpush1.msra.mxu0 %v29
  %113 = vmatprep.subr.mxu0 0.0
  %114 = vmatpush1.msra.mxu0 %v30
  %115 = vmatprep.subr.mxu0 0.0
  %116 = vmatpush1.msra.mxu0 %v31
  %117 = vmatprep.subr.mxu0 0.0
  %118 = vmatpush1.msra.mxu0 %v32
  %119 = vmatprep.subr.mxu0 0.0
  %120 = vmatpush1.msra.mxu0 %v33
  %121 = vmatprep.subr.mxu0 0.0
  %122 = vmatpush1.msra.mxu0 %v34
  %123 = vmatprep.subr.mxu0 0.0
  %124 = vmatpush1.msra.mxu0 %v35
  %125 = vmatprep.subr.mxu0 0.0
  %126 = vmatpush1.msra.mxu0 %v36
  %127 = vmatprep.subr.mxu0 0.0
  %128 = vmatpush1.msra.mxu0 %v37
  %129 = vmatprep.subr.mxu0 0.0
  %130 = vmatpush1.msra.mxu0 %v38
  %131 = vmatprep.subr.mxu0 0.0
  %132 = vmatpush1.msra.mxu0 %v39
  %133 = vmatprep.subr.mxu0 0.0
  %134 = vmatpush1.msra.mxu0 %v40
  %135 = vmatprep.subr.mxu0 0.0
  %136 = vmatpush1.msra.mxu0 %v41
  %137 = vmatprep.subr.mxu0 0.0
  %138 = vmatpush1.msra.mxu0 %v42
  %139 = vmatprep.subr.mxu0 0.0
  %140 = vmatpush1.msra.mxu0 %v43
  %141 = vmatprep.subr.mxu0 0.0
  %142 = vmatpush1.msra.mxu0 %v44
  %143 = vmatprep.subr.mxu0 0.0
  %144 = vmatpush1.msra.mxu0 %v45
  %145 = vmatprep.subr.mxu0 0.0
  %146 = vmatpush1.msra.mxu0 %v46
  %147 = vmatprep.subr.mxu0 0.0
  %148 = vmatpush1.msra.mxu0 %v47
  %149 = vmatprep.subr.mxu0 0.0
  %150 = vmatpush1.msra.mxu0 %v48
  %151 = vmatprep.subr.mxu0 0.0
  %152 = vmatpush1.msra.mxu0 %v49
  %153 = vmatprep.mubr.f32.mxu0 %v15
  %154 = vmatmul.mubr.f32.gmra.mrb[0].mxu0 %v14
  %v155 = vpop.f32.mrb[0].mxu0
  %v156 = vadd.f32 %v87, %v155
  %v157 = vpop.f32.mrb[0].mxu0
  %158 = vdwg.mxu0
  %159 = vmatprep.subr.mxu0 0.0
  %160 = vmatpush1.msra.mxu0 %v50
  %161 = vmatprep.subr.mxu0 0.0
  %162 = vmatpush1.msra.mxu0 %v51
  %163 = vmatprep.subr.mxu0 0.0
  %164 = vmatpush1.msra.mxu0 %v52
  %165 = vmatprep.subr.mxu0 0.0
  %166 = vmatpush1.msra.mxu0 %v53
  %167 = vmatprep.subr.mxu0 0.0
  %168 = vmatpush1.msra.mxu0 %v54
  %169 = vmatprep.subr.mxu0 0.0
  %170 = vmatpush1.msra.mxu0 %v55
  %171 = vmatprep.subr.mxu0 0.0
  %172 = vmatpush1.msra.mxu0 %v56
  %173 = vmatprep.subr.mxu0 0.0
  %174 = vmatpush1.msra.mxu0 %v57
  %175 = vmatprep.subr.mxu0 0.0
  %176 = vmatpush1.msra.mxu0 %v58
  %177 = vmatprep.subr.mxu0 0.0
  %178 = vmatpush1.msra.mxu0 %v59
  %179 = vmatprep.subr.mxu0 0.0
  %180 = vmatpush1.msra.mxu0 %v60
  %181 = vmatprep.subr.mxu0 0.0
  %182 = vmatpush1.msra.mxu0 %v61
  %183 = vmatprep.subr.mxu0 0.0
  %184 = vmatpush1.msra.mxu0 %v62
  %185 = vmatprep.subr.mxu0 0.0
  %186 = vmatpush1.msra.mxu0 %v63
  %187 = vmatprep.subr.mxu0 0.0
  %188 = vmatpush1.msra.mxu0 %v64
  %189 = vmatprep.subr.mxu0 0.0
  %190 = vmatpush1.msra.mxu0 %v65
  %191 = vmatprep.subr.mxu0 0.0
  %192 = vmatpush1.msra.mxu0 %v66
  %193 = vmatprep.subr.mxu0 0.0
  %194 = vmatpush1.msra.mxu0 %v67
  %195 = vmatprep.subr.mxu0 0.0
  %196 = vmatpush1.msra.mxu0 %v68
  %197 = vmatprep.subr.mxu0 0.0
  %198 = vmatpush1.msra.mxu0 %v69
  %199 = vmatprep.subr.mxu0 0.0
  %200 = vmatpush1.msra.mxu0 %v70
  %201 = vmatprep.subr.mxu0 0.0
  %202 = vmatpush1.msra.mxu0 %v71
  %203 = vmatprep.subr.mxu0 0.0
  %204 = vmatpush1.msra.mxu0 %v72
  %205 = vmatprep.subr.mxu0 0.0
  %206 = vmatpush1.msra.mxu0 %v73
  %207 = vmatprep.subr.mxu0 0.0
  %208 = vmatpush1.msra.mxu0 %v74
  %209 = vmatprep.subr.mxu0 0.0
  %210 = vmatpush1.msra.mxu0 %v75
  %211 = vmatprep.subr.mxu0 0.0
  %212 = vmatpush1.msra.mxu0 %v76
  %213 = vmatprep.subr.mxu0 0.0
  %214 = vmatpush1.msra.mxu0 %v77
  %215 = vmatprep.subr.mxu0 0.0
  %216 = vmatpush1.msra.mxu0 %v78
  %217 = vmatprep.subr.mxu0 0.0
  %218 = vmatpush1.msra.mxu0 %v79
  %219 = vmatprep.subr.mxu0 0.0
  %220 = vmatpush1.msra.mxu0 %v80
  %221 = vmatprep.subr.mxu0 0.0
  %222 = vmatpush1.msra.mxu0 %v81
  %223 = vmatprep.mubr.f32.mxu0 %v17
  %224 = vmatmul.mubr.f32.gmra.mrb[0].mxu0 %v16
  %v225 = vpop.f32.mrb[0].mxu0
  %v226 = vadd.f32 %v156, %v225
  %v227 = vpop.f32.mrb[0].mxu0
  %228 = vdwg.mxu0
  %vm229 = vcmask 424960
  %230 = vst.msk [vmem:[%s3] sm:$0xff] %vm229, %v226
  // Predicated region
  $region14: #{resgcn_forward.7} parent=0 // pred_check
    _
  $region15: #{resgcn_forward.7} parent=0 // pred_check_branch
    %232 = sbr.rel (0) target = $region17
  $region16: #{resgcn_forward.7} parent=0 // pred_region
    _
  $region17: #{resgcn_forward.7} parent=0 // pred_fallthru
    _
  // Predicated region
  $region18: #{resgcn_forward.7} parent=0 // pred_check
    _
  $region19: #{resgcn_forward.7} parent=0 // pred_check_branch
    %234 = sbr.rel (0) target = $region21
  $region20: #{resgcn_forward.7} parent=0 // pred_region
    _
  $region21: #{resgcn_forward.7} parent=0 // pred_fallthru
    _

// kernel: resgcn_forward.6
$region0: #{resgcn_forward.6}
  #allocation0 [shape = 'u32[]', space=smem, size = 0x4, offset = 0x4, fixed_abs, tag = 'smem constant byte address 0x4 - core index']
  #allocation1 [shape = 'u32[144,128]{1,0:T(1,128)}', space=vmem, size = 0x12000, scoped, tag = 'internal scratch']
  %s0 = inlined_call_operand.vmem [shape: f32[8,512], index: 0, kind: input, shape index: {}]
  %s1 = inlined_call_operand.vmem [shape: f32[8,22], index: 1, kind: input, shape index: {}]
  %s2 = inlined_call_operand.vmem [shape: bf16[9,22,512], index: 2, kind: input, shape index: {}]
  %s3 = inlined_call_operand.vmem [shape: bf16[9,512,1536], index: 3, kind: input, shape index: {}]
  %s4 = inlined_call_operand.vmem [shape: f32[8,512], index: 4, kind: output, shape index: {}]
  %s5 = sld [smem:[#allocation0]]
  $region53: #{resgcn_forward.6} parent=0
    _
  %s7 = ssub.s32 1, %s5
  %s8 = scalar_select 0, %s7, %s5
  loop: start=0, step=1, limit=11
  $region2: #{resgcn_forward.6} parent=0 // loop_pre_header
    _
  $region3: #{resgcn_forward.6} parent=0 // loop_header
    %s10 = sphi 0, %s14
    %p11 = scmp.ge.s32.totalorder %s10, 11
    %s18 = sphi 0, %s18
    %s20 = sphi 0, %s18
    %s21 = sphi 0, %s20
    %s35 = sphi 0, %s21
    %s39 = sphi 0, %s39
    %s41 = sphi 0, %s39
    %s42 = sphi 0, %s41
    %s56 = sphi 0, %s42
    %s62 = sphi 0, %s64
    %s65 = sphi 0, %s62
    %s66 = sphi 0, %s65
    %s82 = sphi 0, %s66
    %s88 = sphi 0, %s90
    %s91 = sphi 0, %s88
    %s92 = sphi 0, %s91
    %s108 = sphi 0, %s92
    %s112 = sphi 0, %s112
    %s114 = sphi 0, %s112
    %s115 = sphi 0, %s114
    %s129 = sphi 0, %s115
  $region4: #{resgcn_forward.6} parent=0 // loop_header_branch
    %13 = sbr.rel (%p11) target = $region8
  $region5: #{resgcn_forward.6} parent=0 // loop_body
    %s15 = ssub.s32 %s10, 1
    %s16 = ssub.s32 %s10, 2
    %s17 = sadd.s32 %s10, 1
    %s19 = sadd.s32 %s18, 1
    %p22 = scmp.eq.s32.totalorder %s10, 8
    %p23 = scmp.ne.s32.totalorder %s18, %s20
    %p24 = scmp.eq.s32.totalorder %s10, 0
    %p25 = por %p23, %p24
    %p26 = scmp.ne.s32.totalorder %s18, %s20
    %p27 = scmp.eq.s32.totalorder %s15, 8
    %p28 = por %p26, %p27
    %p29 = scmp.ne.s32.totalorder %s20, %s21
    %p30 = scmp.eq.s32.totalorder %s15, 0
    %p31 = por %p29, %p30
    %p32 = scmp.ne.s32.totalorder %s20, %s21
    %p33 = scmp.eq.s32.totalorder %s16, 8
    %p34 = por %p32, %p33
    %p36 = scmp.ne.s32.totalorder %s21, %s35
    %p37 = scmp.eq.s32.totalorder %s16, 0
    %p38 = por %p36, %p37
    %s40 = sadd.s32 %s39, 1
    %p43 = scmp.eq.s32.totalorder %s10, 8
    %p44 = scmp.ne.s32.totalorder %s39, %s41
    %p45 = scmp.eq.s32.totalorder %s10, 0
    %p46 = por %p44, %p45
    %p47 = scmp.ne.s32.totalorder %s39, %s41
    %p48 = scmp.eq.s32.totalorder %s15, 8
    %p49 = por %p47, %p48
    %p50 = scmp.ne.s32.totalorder %s41, %s42
    %p51 = scmp.eq.s32.totalorder %s15, 0
    %p52 = por %p50, %p51
    %p53 = scmp.ne.s32.totalorder %s41, %s42
    %p54 = scmp.eq.s32.totalorder %s16, 8
    %p55 = por %p53, %p54
    %p57 = scmp.ne.s32.totalorder %s42, %s56
    %p58 = scmp.eq.s32.totalorder %s16, 0
    %p59 = por %p57, %p58
    %s60 = ssub.s32 %s10, %s17
    %p61 = scmp.eq.s32.totalorder %s60, 0
    %s63 = sadd.s32 %s62, 1
    %s64 = scalar_select %p61, %s62, %s63
    %p67 = pneg %p61
    %p68 = scmp.eq.s32.totalorder %s10, 8
    %p69 = por %p67, %p68
    %p70 = scmp.ne.s32.totalorder %s62, %s65
    %p71 = scmp.eq.s32.totalorder %s10, 0
    %p72 = por %p70, %p71
    %p73 = scmp.ne.s32.totalorder %s62, %s65
    %p74 = scmp.eq.s32.totalorder %s15, 8
    %p75 = por %p73, %p74
    %p76 = scmp.ne.s32.totalorder %s65, %s66
    %p77 = scmp.eq.s32.totalorder %s15, 0
    %p78 = por %p76, %p77
    %p79 = scmp.ne.s32.totalorder %s65, %s66
    %p80 = scmp.eq.s32.totalorder %s16, 8
    %p81 = por %p79, %p80
    %p83 = scmp.ne.s32.totalorder %s66, %s82
    %p84 = scmp.eq.s32.totalorder %s16, 0
    %p85 = por %p83, %p84
    %s86 = ssub.s32 %s10, %s17
    %p87 = scmp.eq.s32.totalorder %s86, 0
    %s89 = sadd.s32 %s88, 1
    %s90 = scalar_select %p87, %s88, %s89
    %p93 = pneg %p87
    %p94 = scmp.eq.s32.totalorder %s10, 8
    %p95 = por %p93, %p94
    %p96 = scmp.ne.s32.totalorder %s88, %s91
    %p97 = scmp.eq.s32.totalorder %s10, 0
    %p98 = por %p96, %p97
    %p99 = scmp.ne.s32.totalorder %s88, %s91
    %p100 = scmp.eq.s32.totalorder %s15, 8
    %p101 = por %p99, %p100
    %p102 = scmp.ne.s32.totalorder %s91, %s92
    %p103 = scmp.eq.s32.totalorder %s15, 0
    %p104 = por %p102, %p103
    %p105 = scmp.ne.s32.totalorder %s91, %s92
    %p106 = scmp.eq.s32.totalorder %s16, 8
    %p107 = por %p105, %p106
    %p109 = scmp.ne.s32.totalorder %s92, %s108
    %p110 = scmp.eq.s32.totalorder %s16, 0
    %p111 = por %p109, %p110
    %s113 = sadd.s32 %s112, 1
    %p116 = scmp.eq.s32.totalorder %s10, 8
    %p117 = scmp.ne.s32.totalorder %s112, %s114
    %p118 = scmp.eq.s32.totalorder %s10, 0
    %p119 = por %p117, %p118
    %p120 = scmp.ne.s32.totalorder %s112, %s114
    %p121 = scmp.eq.s32.totalorder %s15, 8
    %p122 = por %p120, %p121
    %p123 = scmp.ne.s32.totalorder %s114, %s115
    %p124 = scmp.eq.s32.totalorder %s15, 0
    %p125 = por %p123, %p124
    %p126 = scmp.ne.s32.totalorder %s114, %s115
    %p127 = scmp.eq.s32.totalorder %s16, 8
    %p128 = por %p126, %p127
    %p130 = scmp.ne.s32.totalorder %s115, %s129
    %p131 = scmp.eq.s32.totalorder %s16, 0
    %p132 = por %p130, %p131
    %p133 = scmp.le.s32.totalorder 1, %s10
    %p134 = scmp.lt.s32.totalorder %s10, 10
    %p135 = pnand %p133, %p134
    %p136 = pneg %p135
    // Predicated region
    $region9: #{resgcn_forward.6} parent=5 // pred_check
      _
    $region10: #{resgcn_forward.6} parent=5 // pred_check_branch
      %138 = sbr.rel (%p135) target = $region12
    $region11: #{resgcn_forward.6} parent=5 // pred_region
      %s139 = ssub.s32 %s10, 1
      // Predicated region
      $region13: #{resgcn_forward.6} parent=11 // pred_check
        %p140 = pneg %p31
      $region14: #{resgcn_forward.6} parent=11 // pred_check_branch
        %142 = sbr.rel (%p140) target = $region16
      $region15: #{resgcn_forward.6} parent=11 // pred_region
        _
      $region16: #{resgcn_forward.6} parent=11 // pred_fallthru
        _
      // Predicated region
      $region17: #{resgcn_forward.6} parent=11 // pred_check
        %p143 = pneg %p52
      $region18: #{resgcn_forward.6} parent=11 // pred_check_branch
        %145 = sbr.rel (%p143) target = $region20
      $region19: #{resgcn_forward.6} parent=11 // pred_region
        _
      $region20: #{resgcn_forward.6} parent=11 // pred_fallthru
        _
    $region12: #{resgcn_forward.6} parent=5 // pred_fallthru
      _
    %p146 = scmp.lt.s32.totalorder %s10, 9
    // Predicated region
    $region21: #{resgcn_forward.6} parent=5 // pred_check
      %p147 = pneg %p146
    $region22: #{resgcn_forward.6} parent=5 // pred_check_branch
      %149 = sbr.rel (%p147) target = $region24
    $region23: #{resgcn_forward.6} parent=5 // pred_region
      // Predicated region
      $region25: #{resgcn_forward.6} parent=23 // pred_check
        %p150 = pneg %p72
      $region26: #{resgcn_forward.6} parent=23 // pred_check_branch
        %152 = sbr.rel (%p150) target = $region28
      $region27: #{resgcn_forward.6} parent=23 // pred_region
        %p153 = scmp.lt.s32.totalorder %s10, 8
        %s154 = scalar_select %p153, %s10, 8
        %s155 = smul.addr %s154, 12
        %s156 = smul.addr %s155, 4
        %s157 = scalar_lea.vmem %s2, %s156
      $region28: #{resgcn_forward.6} parent=23 // pred_fallthru
        _
      // Predicated region
      $region29: #{resgcn_forward.6} parent=23 // pred_check
        %p158 = pneg %p98
      $region30: #{resgcn_forward.6} parent=23 // pred_check_branch
        %160 = sbr.rel (%p158) target = $region32
      $region31: #{resgcn_forward.6} parent=23 // pred_region
        %p161 = scmp.lt.s32.totalorder %s10, 8
        %s162 = scalar_select %p161, %s10, 8
        %s163 = smul.addr %s162, 768
        %s164 = smul.addr %s163, 4
        %s165 = scalar_lea.vmem %s3, %s164
      $region32: #{resgcn_forward.6} parent=23 // pred_fallthru
        _
    $region24: #{resgcn_forward.6} parent=5 // pred_fallthru
      _
    %p166 = scmp.le.s32.totalorder 1, %s10
    %p167 = scmp.lt.s32.totalorder %s10, 10
    %p168 = pnand %p166, %p167
    %p169 = pneg %p168
    // Predicated region
    $region33: #{resgcn_forward.6} parent=5 // pred_check
      _
    $region34: #{resgcn_forward.6} parent=5 // pred_check_branch
      %171 = sbr.rel (%p168) target = $region36
    $region35: #{resgcn_forward.6} parent=5 // pred_region
      %s172 = ssub.s32 %s10, 1
      %p173 = pneg %p31
      %p174 = pneg %p28
      %p175 = pneg %p52
      %p176 = pneg %p49
      %p177 = scmp.lt.s32.totalorder %s15, 8
      %s178 = scalar_select %p177, %s15, 8
      %s179 = smul.addr %s178, 12
      %s180 = smul.addr %s179, 4
      %s181 = scalar_lea.vmem %s2, %s180
      %p182 = pneg %p78
      %p183 = pneg %p75
      %p184 = scmp.lt.s32.totalorder %s15, 8
      %s185 = scalar_select %p184, %s15, 8
      %s186 = smul.addr %s185, 768
      %s187 = smul.addr %s186, 4
      %s188 = scalar_lea.vmem %s3, %s187
      %p189 = pneg %p104
      %p190 = pneg %p101
      %p191 = pneg %p125
      %p192 = pneg %p122
      %p193 = scmp.lt.s32.totalorder %s15, 8
      %s194 = scalar_select %p193, %s15, 8
      %s195 = smul.addr %s194, 12
      %s196 = smul.addr %s195, 4
      %s197 = scalar_lea.vmem %s2, %s196
      %p198 = scmp.lt.s32.totalorder %s15, 8
      %s199 = scalar_select %p198, %s15, 8
      %s200 = smul.addr %s199, 768
      %s201 = smul.addr %s200, 4
      %s202 = scalar_lea.vmem %s3, %s201
      %p204 = scmp.eq.s32.totalorder %s15, 0
      // Predicated region
      $region37: #{resgcn_forward.6} parent=35 // pred_check
        %p205 = pneg %p204
      $region38: #{resgcn_forward.6} parent=35 // pred_check_branch
        %207 = sbr.rel (%p205) target = $region40
      $region39: #{resgcn_forward.6} parent=35 // pred_region
        %v208 = vld [vmem:[%s0] sm:$0xff]
        %v209 = vld [vmem:[%s0 + $0x8] sm:$0xff]
        %v210 = vld [vmem:[%s0 + $0x10] sm:$0xff]
        %v211 = vld [vmem:[%s0 + $0x18] sm:$0xff]
        %212 = vst [vmem:[%s4] sm:$0xff] %v208
        %213 = vst [vmem:[%s4 + $0x8] sm:$0xff] %v209
        %214 = vst [vmem:[%s4 + $0x10] sm:$0xff] %v210
        %215 = vst [vmem:[%s4 + $0x18] sm:$0xff] %v211
      $region40: #{resgcn_forward.6} parent=35 // pred_fallthru
        _
      %v216 = vld [vmem:[%s4] sm:$0xff]
      %v217 = vld [vmem:[%s4 + $0x8] sm:$0xff]
      %v218 = vld [vmem:[%s4 + $0x10] sm:$0xff]
      %v219 = vld [vmem:[%s4 + $0x18] sm:$0xff]
      %v220 = vpack.c.bf16 %v216, %v216
      %v221 = vpack.c.bf16 %v217, %v217
      %v222 = vpack.c.bf16 %v218, %v218
      %v223 = vpack.c.bf16 %v219, %v219
      %v224 = vld [vmem:[%s1] sm:$0xff]
      %v225 = vpack.c.bf16 %v224, %v224
      %v226 = vld [vmem:[%s202] sm:$0xff]
      %v227 = vld [vmem:[%s202 + $0x8] sm:$0xff]
      %v228 = vld [vmem:[%s202 + $0x10] sm:$0xff]
      %v229 = vld [vmem:[%s202 + $0x18] sm:$0xff]
      %v230 = vld [vmem:[%s202 + $0x20] sm:$0xff]
      %v231 = vld [vmem:[%s202 + $0x28] sm:$0xff]
      %v232 = vld [vmem:[%s202 + $0x30] sm:$0xff]
      %v233 = vld [vmem:[%s202 + $0x38] sm:$0xff]
      %v234 = vld [vmem:[%s202 + $0x40] sm:$0xff]
      %v235 = vld [vmem:[%s202 + $0x48] sm:$0xff]
      %v236 = vld [vmem:[%s202 + $0x50] sm:$0xff]
      %v237 = vld [vmem:[%s202 + $0x58] sm:$0xff]
      %v238 = vld [vmem:[%s202 + $0x60] sm:$0xff]
      %v239 = vld [vmem:[%s202 + $0x68] sm:$0xff]
      %v240 = vld [vmem:[%s202 + $0x70] sm:$0xff]
      %v241 = vld [vmem:[%s202 + $0x78] sm:$0xff]
      %v242 = vld [vmem:[%s202 + $0x80] sm:$0xff]
      %v243 = vld [vmem:[%s202 + $0x88] sm:$0xff]
      %v244 = vld [vmem:[%s202 + $0x90] sm:$0xff]
      %v245 = vld [vmem:[%s202 + $0x98] sm:$0xff]
      %v246 = vld [vmem:[%s202 + $0xa0] sm:$0xff]
      %v247 = vld [vmem:[%s202 + $0xa8] sm:$0xff]
      %v248 = vld [vmem:[%s202 + $0xb0] sm:$0xff]
      %v249 = vld [vmem:[%s202 + $0xb8] sm:$0xff]
      %v250 = vld [vmem:[%s202 + $0xc0] sm:$0xff]
      %v251 = vld [vmem:[%s202 + $0xc8] sm:$0xff]
      %v252 = vld [vmem:[%s202 + $0xd0] sm:$0xff]
      %v253 = vld [vmem:[%s202 + $0xd8] sm:$0xff]
      %v254 = vld [vmem:[%s202 + $0xe0] sm:$0xff]
      %v255 = vld [vmem:[%s202 + $0xe8] sm:$0xff]
      %v256 = vld [vmem:[%s202 + $0xf0] sm:$0xff]
      %v257 = vld [vmem:[%s202 + $0xf8] sm:$0xff]
      %v258 = vld [vmem:[%s202 + $0x100] sm:$0xff]
      %v259 = vld [vmem:[%s202 + $0x108] sm:$0xff]
      %v260 = vld [vmem:[%s202 + $0x110] sm:$0xff]
      %v261 = vld [vmem:[%s202 + $0x118] sm:$0xff]
      %v262 = vld [vmem:[%s202 + $0x120] sm:$0xff]
      %v263 = vld [vmem:[%s202 + $0x128] sm:$0xff]
      %v264 = vld [vmem:[%s202 + $0x130] sm:$0xff]
      %v265 = vld [vmem:[%s202 + $0x138] sm:$0xff]
      %v266 = vld [vmem:[%s202 + $0x140] sm:$0xff]
      %v267 = vld [vmem:[%s202 + $0x148] sm:$0xff]
      %v268 = vld [vmem:[%s202 + $0x150] sm:$0xff]
      %v269 = vld [vmem:[%s202 + $0x158] sm:$0xff]
      %v270 = vld [vmem:[%s202 + $0x160] sm:$0xff]
      %v271 = vld [vmem:[%s202 + $0x168] sm:$0xff]
      %v272 = vld [vmem:[%s202 + $0x170] sm:$0xff]
      %v273 = vld [vmem:[%s202 + $0x178] sm:$0xff]
      %v274 = vld [vmem:[%s202 + $0x180] sm:$0xff]
      %v275 = vld [vmem:[%s202 + $0x188] sm:$0xff]
      %v276 = vld [vmem:[%s202 + $0x190] sm:$0xff]
      %v277 = vld [vmem:[%s202 + $0x198] sm:$0xff]
      %v278 = vld [vmem:[%s202 + $0x1a0] sm:$0xff]
      %v279 = vld [vmem:[%s202 + $0x1a8] sm:$0xff]
      %v280 = vld [vmem:[%s202 + $0x1b0] sm:$0xff]
      %v281 = vld [vmem:[%s202 + $0x1b8] sm:$0xff]
      %v282 = vld [vmem:[%s202 + $0x1c0] sm:$0xff]
      %v283 = vld [vmem:[%s202 + $0x1c8] sm:$0xff]
      %v284 = vld [vmem:[%s202 + $0x1d0] sm:$0xff]
      %v285 = vld [vmem:[%s202 + $0x1d8] sm:$0xff]
      %v286 = vld [vmem:[%s202 + $0x1e0] sm:$0xff]
      %v287 = vld [vmem:[%s202 + $0x1e8] sm:$0xff]
      %v288 = vld [vmem:[%s202 + $0x1f0] sm:$0xff]
      %v289 = vld [vmem:[%s202 + $0x1f8] sm:$0xff]
      %v290 = vld [vmem:[%s202 + $0x200] sm:$0xff]
      %v291 = vld [vmem:[%s202 + $0x208] sm:$0xff]
      %v292 = vld [vmem:[%s202 + $0x210] sm:$0xff]
      %v293 = vld [vmem:[%s202 + $0x218] sm:$0xff]
      %v294 = vld [vmem:[%s202 + $0x220] sm:$0xff]
      %v295 = vld [vmem:[%s202 + $0x228] sm:$0xff]
      %v296 = vld [vmem:[%s202 + $0x230] sm:$0xff]
      %v297 = vld [vmem:[%s202 + $0x238] sm:$0xff]
      %v298 = vld [vmem:[%s202 + $0x240] sm:$0xff]
      %v299 = vld [vmem:[%s202 + $0x248] sm:$0xff]
      %v300 = vld [vmem:[%s202 + $0x250] sm:$0xff]
      %v301 = vld [vmem:[%s202 + $0x258] sm:$0xff]
      %v302 = vld [vmem:[%s202 + $0x260] sm:$0xff]
      %v303 = vld [vmem:[%s202 + $0x268] sm:$0xff]
      %v304 = vld [vmem:[%s202 + $0x270] sm:$0xff]
      %v305 = vld [vmem:[%s202 + $0x278] sm:$0xff]
      %v306 = vld [vmem:[%s202 + $0x280] sm:$0xff]
      %v307 = vld [vmem:[%s202 + $0x288] sm:$0xff]
      %v308 = vld [vmem:[%s202 + $0x290] sm:$0xff]
      %v309 = vld [vmem:[%s202 + $0x298] sm:$0xff]
      %v310 = vld [vmem:[%s202 + $0x2a0] sm:$0xff]
      %v311 = vld [vmem:[%s202 + $0x2a8] sm:$0xff]
      %v312 = vld [vmem:[%s202 + $0x2b0] sm:$0xff]
      %v313 = vld [vmem:[%s202 + $0x2b8] sm:$0xff]
      %v314 = vld [vmem:[%s202 + $0x2c0] sm:$0xff]
      %v315 = vld [vmem:[%s202 + $0x2c8] sm:$0xff]
      %v316 = vld [vmem:[%s202 + $0x2d0] sm:$0xff]
      %v317 = vld [vmem:[%s202 + $0x2d8] sm:$0xff]
      %v318 = vld [vmem:[%s202 + $0x2e0] sm:$0xff]
      %v319 = vld [vmem:[%s202 + $0x2e8] sm:$0xff]
      %v320 = vld [vmem:[%s202 + $0x2f0] sm:$0xff]
      %v321 = vld [vmem:[%s202 + $0x2f8] sm:$0xff]
      %v322 = vld [vmem:[%s202 + $0x300] sm:$0xff]
      %v323 = vld [vmem:[%s202 + $0x308] sm:$0xff]
      %v324 = vld [vmem:[%s202 + $0x310] sm:$0xff]
      %v325 = vld [vmem:[%s202 + $0x318] sm:$0xff]
      %v326 = vld [vmem:[%s202 + $0x320] sm:$0xff]
      %v327 = vld [vmem:[%s202 + $0x328] sm:$0xff]
      %v328 = vld [vmem:[%s202 + $0x330] sm:$0xff]
      %v329 = vld [vmem:[%s202 + $0x338] sm:$0xff]
      %v330 = vld [vmem:[%s202 + $0x340] sm:$0xff]
      %v331 = vld [vmem:[%s202 + $0x348] sm:$0xff]
      %v332 = vld [vmem:[%s202 + $0x350] sm:$0xff]
      %v333 = vld [vmem:[%s202 + $0x358] sm:$0xff]
      %v334 = vld [vmem:[%s202 + $0x360] sm:$0xff]
      %v335 = vld [vmem:[%s202 + $0x368] sm:$0xff]
      %v336 = vld [vmem:[%s202 + $0x370] sm:$0xff]
      %v337 = vld [vmem:[%s202 + $0x378] sm:$0xff]
      %v338 = vld [vmem:[%s202 + $0x380] sm:$0xff]
      %v339 = vld [vmem:[%s202 + $0x388] sm:$0xff]
      %v340 = vld [vmem:[%s202 + $0x390] sm:$0xff]
      %v341 = vld [vmem:[%s202 + $0x398] sm:$0xff]
      %v342 = vld [vmem:[%s202 + $0x3a0] sm:$0xff]
      %v343 = vld [vmem:[%s202 + $0x3a8] sm:$0xff]
      %v344 = vld [vmem:[%s202 + $0x3b0] sm:$0xff]
      %v345 = vld [vmem:[%s202 + $0x3b8] sm:$0xff]
      %v346 = vld [vmem:[%s202 + $0x3c0] sm:$0xff]
      %v347 = vld [vmem:[%s202 + $0x3c8] sm:$0xff]
      %v348 = vld [vmem:[%s202 + $0x3d0] sm:$0xff]
      %v349 = vld [vmem:[%s202 + $0x3d8] sm:$0xff]
      %v350 = vld [vmem:[%s202 + $0x3e0] sm:$0xff]
      %v351 = vld [vmem:[%s202 + $0x3e8] sm:$0xff]
      %v352 = vld [vmem:[%s202 + $0x3f0] sm:$0xff]
      %v353 = vld [vmem:[%s202 + $0x3f8] sm:$0xff]
      %v354 = vld [vmem:[%s202 + $0x400] sm:$0xff]
      %v355 = vld [vmem:[%s202 + $0x408] sm:$0xff]
      %v356 = vld [vmem:[%s202 + $0x410] sm:$0xff]
      %v357 = vld [vmem:[%s202 + $0x418] sm:$0xff]
      %v358 = vld [vmem:[%s202 + $0x420] sm:$0xff]
      %v359 = vld [vmem:[%s202 + $0x428] sm:$0xff]
      %v360 = vld [vmem:[%s202 + $0x430] sm:$0xff]
      %v361 = vld [vmem:[%s202 + $0x438] sm:$0xff]
      %v362 = vld [vmem:[%s202 + $0x440] sm:$0xff]
      %v363 = vld [vmem:[%s202 + $0x448] sm:$0xff]
      %v364 = vld [vmem:[%s202 + $0x450] sm:$0xff]
      %v365 = vld [vmem:[%s202 + $0x458] sm:$0xff]
      %v366 = vld [vmem:[%s202 + $0x460] sm:$0xff]
      %v367 = vld [vmem:[%s202 + $0x468] sm:$0xff]
      %v368 = vld [vmem:[%s202 + $0x470] sm:$0xff]
      %v369 = vld [vmem:[%s202 + $0x478] sm:$0xff]
      %v370 = vld [vmem:[%s202 + $0x480] sm:$0xff]
      %v371 = vld [vmem:[%s202 + $0x488] sm:$0xff]
      %v372 = vld [vmem:[%s202 + $0x490] sm:$0xff]
      %v373 = vld [vmem:[%s202 + $0x498] sm:$0xff]
      %v374 = vld [vmem:[%s202 + $0x4a0] sm:$0xff]
      %v375 = vld [vmem:[%s202 + $0x4a8] sm:$0xff]
      %v376 = vld [vmem:[%s202 + $0x4b0] sm:$0xff]
      %v377 = vld [vmem:[%s202 + $0x4b8] sm:$0xff]
      %v378 = vld [vmem:[%s202 + $0x4c0] sm:$0xff]
      %v379 = vld [vmem:[%s202 + $0x4c8] sm:$0xff]
      %v380 = vld [vmem:[%s202 + $0x4d0] sm:$0xff]
      %v381 = vld [vmem:[%s202 + $0x4d8] sm:$0xff]
      %v382 = vld [vmem:[%s202 + $0x4e0] sm:$0xff]
      %v383 = vld [vmem:[%s202 + $0x4e8] sm:$0xff]
      %v384 = vld [vmem:[%s202 + $0x4f0] sm:$0xff]
      %v385 = vld [vmem:[%s202 + $0x4f8] sm:$0xff]
      %v386 = vld [vmem:[%s202 + $0x500] sm:$0xff]
      %v387 = vld [vmem:[%s202 + $0x508] sm:$0xff]
      %v388 = vld [vmem:[%s202 + $0x510] sm:$0xff]
      %v389 = vld [vmem:[%s202 + $0x518] sm:$0xff]
      %v390 = vld [vmem:[%s202 + $0x520] sm:$0xff]
      %v391 = vld [vmem:[%s202 + $0x528] sm:$0xff]
      %v392 = vld [vmem:[%s202 + $0x530] sm:$0xff]
      %v393 = vld [vmem:[%s202 + $0x538] sm:$0xff]
      %v394 = vld [vmem:[%s202 + $0x540] sm:$0xff]
      %v395 = vld [vmem:[%s202 + $0x548] sm:$0xff]
      %v396 = vld [vmem:[%s202 + $0x550] sm:$0xff]
      %v397 = vld [vmem:[%s202 + $0x558] sm:$0xff]
      %v398 = vld [vmem:[%s202 + $0x560] sm:$0xff]
      %v399 = vld [vmem:[%s202 + $0x568] sm:$0xff]
      %v400 = vld [vmem:[%s202 + $0x570] sm:$0xff]
      %v401 = vld [vmem:[%s202 + $0x578] sm:$0xff]
      %v402 = vld [vmem:[%s202 + $0x580] sm:$0xff]
      %v403 = vld [vmem:[%s202 + $0x588] sm:$0xff]
      %v404 = vld [vmem:[%s202 + $0x590] sm:$0xff]
      %v405 = vld [vmem:[%s202 + $0x598] sm:$0xff]
      %v406 = vld [vmem:[%s202 + $0x5a0] sm:$0xff]
      %v407 = vld [vmem:[%s202 + $0x5a8] sm:$0xff]
      %v408 = vld [vmem:[%s202 + $0x5b0] sm:$0xff]
      %v409 = vld [vmem:[%s202 + $0x5b8] sm:$0xff]
      %v410 = vld [vmem:[%s202 + $0x5c0] sm:$0xff]
      %v411 = vld [vmem:[%s202 + $0x5c8] sm:$0xff]
      %v412 = vld [vmem:[%s202 + $0x5d0] sm:$0xff]
      %v413 = vld [vmem:[%s202 + $0x5d8] sm:$0xff]
      %v414 = vld [vmem:[%s202 + $0x5e0] sm:$0xff]
      %v415 = vld [vmem:[%s202 + $0x5e8] sm:$0xff]
      %v416 = vld [vmem:[%s202 + $0x5f0] sm:$0xff]
      %v417 = vld [vmem:[%s202 + $0x5f8] sm:$0xff]
      %v418 = vld [vmem:[%s202 + $0x600] sm:$0xff]
      %v419 = vld [vmem:[%s202 + $0x608] sm:$0xff]
      %v420 = vld [vmem:[%s202 + $0x610] sm:$0xff]
      %v421 = vld [vmem:[%s202 + $0x618] sm:$0xff]
      %v422 = vld [vmem:[%s202 + $0x620] sm:$0xff]
      %v423 = vld [vmem:[%s202 + $0x628] sm:$0xff]
      %v424 = vld [vmem:[%s202 + $0x630] sm:$0xff]
      %v425 = vld [vmem:[%s202 + $0x638] sm:$0xff]
      %v426 = vld [vmem:[%s202 + $0x640] sm:$0xff]
      %v427 = vld [vmem:[%s202 + $0x648] sm:$0xff]
      %v428 = vld [vmem:[%s202 + $0x650] sm:$0xff]
      %v429 = vld [vmem:[%s202 + $0x658] sm:$0xff]
      %v430 = vld [vmem:[%s202 + $0x660] sm:$0xff]
      %v431 = vld [vmem:[%s202 + $0x668] sm:$0xff]
      %v432 = vld [vmem:[%s202 + $0x670] sm:$0xff]
      %v433 = vld [vmem:[%s202 + $0x678] sm:$0xff]
      %v434 = vld [vmem:[%s202 + $0x680] sm:$0xff]
      %v435 = vld [vmem:[%s202 + $0x688] sm:$0xff]
      %v436 = vld [vmem:[%s202 + $0x690] sm:$0xff]
      %v437 = vld [vmem:[%s202 + $0x698] sm:$0xff]
      %v438 = vld [vmem:[%s202 + $0x6a0] sm:$0xff]
      %v439 = vld [vmem:[%s202 + $0x6a8] sm:$0xff]
      %v440 = vld [vmem:[%s202 + $0x6b0] sm:$0xff]
      %v441 = vld [vmem:[%s202 + $0x6b8] sm:$0xff]
      %v442 = vld [vmem:[%s202 + $0x6c0] sm:$0xff]
      %v443 = vld [vmem:[%s202 + $0x6c8] sm:$0xff]
      %v444 = vld [vmem:[%s202 + $0x6d0] sm:$0xff]
      %v445 = vld [vmem:[%s202 + $0x6d8] sm:$0xff]
      %v446 = vld [vmem:[%s202 + $0x6e0] sm:$0xff]
      %v447 = vld [vmem:[%s202 + $0x6e8] sm:$0xff]
      %v448 = vld [vmem:[%s202 + $0x6f0] sm:$0xff]
      %v449 = vld [vmem:[%s202 + $0x6f8] sm:$0xff]
      %v450 = vld [vmem:[%s202 + $0x700] sm:$0xff]
      %v451 = vld [vmem:[%s202 + $0x708] sm:$0xff]
      %v452 = vld [vmem:[%s202 + $0x710] sm:$0xff]
      %v453 = vld [vmem:[%s202 + $0x718] sm:$0xff]
      %v454 = vld [vmem:[%s202 + $0x720] sm:$0xff]
      %v455 = vld [vmem:[%s202 + $0x728] sm:$0xff]
      %v456 = vld [vmem:[%s202 + $0x730] sm:$0xff]
      %v457 = vld [vmem:[%s202 + $0x738] sm:$0xff]
      %v458 = vld [vmem:[%s202 + $0x740] sm:$0xff]
      %v459 = vld [vmem:[%s202 + $0x748] sm:$0xff]
      %v460 = vld [vmem:[%s202 + $0x750] sm:$0xff]
      %v461 = vld [vmem:[%s202 + $0x758] sm:$0xff]
      %v462 = vld [vmem:[%s202 + $0x760] sm:$0xff]
      %v463 = vld [vmem:[%s202 + $0x768] sm:$0xff]
      %v464 = vld [vmem:[%s202 + $0x770] sm:$0xff]
      %v465 = vld [vmem:[%s202 + $0x778] sm:$0xff]
      %v466 = vld [vmem:[%s202 + $0x780] sm:$0xff]
      %v467 = vld [vmem:[%s202 + $0x788] sm:$0xff]
      %v468 = vld [vmem:[%s202 + $0x790] sm:$0xff]
      %v469 = vld [vmem:[%s202 + $0x798] sm:$0xff]
      %v470 = vld [vmem:[%s202 + $0x7a0] sm:$0xff]
      %v471 = vld [vmem:[%s202 + $0x7a8] sm:$0xff]
      %v472 = vld [vmem:[%s202 + $0x7b0] sm:$0xff]
      %v473 = vld [vmem:[%s202 + $0x7b8] sm:$0xff]
      %v474 = vld [vmem:[%s202 + $0x7c0] sm:$0xff]
      %v475 = vld [vmem:[%s202 + $0x7c8] sm:$0xff]
      %v476 = vld [vmem:[%s202 + $0x7d0] sm:$0xff]
      %v477 = vld [vmem:[%s202 + $0x7d8] sm:$0xff]
      %v478 = vld [vmem:[%s202 + $0x7e0] sm:$0xff]
      %v479 = vld [vmem:[%s202 + $0x7e8] sm:$0xff]
      %v480 = vld [vmem:[%s202 + $0x7f0] sm:$0xff]
      %v481 = vld [vmem:[%s202 + $0x7f8] sm:$0xff]
      %v482 = vld [vmem:[%s202 + $0x800] sm:$0xff]
      %v483 = vld [vmem:[%s202 + $0x808] sm:$0xff]
      %v484 = vld [vmem:[%s202 + $0x810] sm:$0xff]
      %v485 = vld [vmem:[%s202 + $0x818] sm:$0xff]
      %v486 = vld [vmem:[%s202 + $0x820] sm:$0xff]
      %v487 = vld [vmem:[%s202 + $0x828] sm:$0xff]
      %v488 = vld [vmem:[%s202 + $0x830] sm:$0xff]
      %v489 = vld [vmem:[%s202 + $0x838] sm:$0xff]
      %v490 = vld [vmem:[%s202 + $0x840] sm:$0xff]
      %v491 = vld [vmem:[%s202 + $0x848] sm:$0xff]
      %v492 = vld [vmem:[%s202 + $0x850] sm:$0xff]
      %v493 = vld [vmem:[%s202 + $0x858] sm:$0xff]
      %v494 = vld [vmem:[%s202 + $0x860] sm:$0xff]
      %v495 = vld [vmem:[%s202 + $0x868] sm:$0xff]
      %v496 = vld [vmem:[%s202 + $0x870] sm:$0xff]
      %v497 = vld [vmem:[%s202 + $0x878] sm:$0xff]
      %v498 = vld [vmem:[%s202 + $0x880] sm:$0xff]
      %v499 = vld [vmem:[%s202 + $0x888] sm:$0xff]
      %v500 = vld [vmem:[%s202 + $0x890] sm:$0xff]
      %v501 = vld [vmem:[%s202 + $0x898] sm:$0xff]
      %v502 = vld [vmem:[%s202 + $0x8a0] sm:$0xff]
      %v503 = vld [vmem:[%s202 + $0x8a8] sm:$0xff]
      %v504 = vld [vmem:[%s202 + $0x8b0] sm:$0xff]
      %v505 = vld [vmem:[%s202 + $0x8b8] sm:$0xff]
      %v506 = vld [vmem:[%s202 + $0x8c0] sm:$0xff]
      %v507 = vld [vmem:[%s202 + $0x8c8] sm:$0xff]
      %v508 = vld [vmem:[%s202 + $0x8d0] sm:$0xff]
      %v509 = vld [vmem:[%s202 + $0x8d8] sm:$0xff]
      %v510 = vld [vmem:[%s202 + $0x8e0] sm:$0xff]
      %v511 = vld [vmem:[%s202 + $0x8e8] sm:$0xff]
      %v512 = vld [vmem:[%s202 + $0x8f0] sm:$0xff]
      %v513 = vld [vmem:[%s202 + $0x8f8] sm:$0xff]
      %v514 = vld [vmem:[%s202 + $0x900] sm:$0xff]
      %v515 = vld [vmem:[%s202 + $0x908] sm:$0xff]
      %v516 = vld [vmem:[%s202 + $0x910] sm:$0xff]
      %v517 = vld [vmem:[%s202 + $0x918] sm:$0xff]
      %v518 = vld [vmem:[%s202 + $0x920] sm:$0xff]
      %v519 = vld [vmem:[%s202 + $0x928] sm:$0xff]
      %v520 = vld [vmem:[%s202 + $0x930] sm:$0xff]
      %v521 = vld [vmem:[%s202 + $0x938] sm:$0xff]
      %v522 = vld [vmem:[%s202 + $0x940] sm:$0xff]
      %v523 = vld [vmem:[%s202 + $0x948] sm:$0xff]
      %v524 = vld [vmem:[%s202 + $0x950] sm:$0xff]
      %v525 = vld [vmem:[%s202 + $0x958] sm:$0xff]
      %v526 = vld [vmem:[%s202 + $0x960] sm:$0xff]
      %v527 = vld [vmem:[%s202 + $0x968] sm:$0xff]
      %v528 = vld [vmem:[%s202 + $0x970] sm:$0xff]
      %v529 = vld [vmem:[%s202 + $0x978] sm:$0xff]
      %v530 = vld [vmem:[%s202 + $0x980] sm:$0xff]
      %v531 = vld [vmem:[%s202 + $0x988] sm:$0xff]
      %v532 = vld [vmem:[%s202 + $0x990] sm:$0xff]
      %v533 = vld [vmem:[%s202 + $0x998] sm:$0xff]
      %v534 = vld [vmem:[%s202 + $0x9a0] sm:$0xff]
      %v535 = vld [vmem:[%s202 + $0x9a8] sm:$0xff]
      %v536 = vld [vmem:[%s202 + $0x9b0] sm:$0xff]
      %v537 = vld [vmem:[%s202 + $0x9b8] sm:$0xff]
      %v538 = vld [vmem:[%s202 + $0x9c0] sm:$0xff]
      %v539 = vld [vmem:[%s202 + $0x9c8] sm:$0xff]
      %v540 = vld [vmem:[%s202 + $0x9d0] sm:$0xff]
      %v541 = vld [vmem:[%s202 + $0x9d8] sm:$0xff]
      %v542 = vld [vmem:[%s202 + $0x9e0] sm:$0xff]
      %v543 = vld [vmem:[%s202 + $0x9e8] sm:$0xff]
      %v544 = vld [vmem:[%s202 + $0x9f0] sm:$0xff]
      %v545 = vld [vmem:[%s202 + $0x9f8] sm:$0xff]
      %v546 = vld [vmem:[%s202 + $0xa00] sm:$0xff]
      %v547 = vld [vmem:[%s202 + $0xa08] sm:$0xff]
      %v548 = vld [vmem:[%s202 + $0xa10] sm:$0xff]
      %v549 = vld [vmem:[%s202 + $0xa18] sm:$0xff]
      %v550 = vld [vmem:[%s202 + $0xa20] sm:$0xff]
      %v551 = vld [vmem:[%s202 + $0xa28] sm:$0xff]
      %v552 = vld [vmem:[%s202 + $0xa30] sm:$0xff]
      %v553 = vld [vmem:[%s202 + $0xa38] sm:$0xff]
      %v554 = vld [vmem:[%s202 + $0xa40] sm:$0xff]
      %v555 = vld [vmem:[%s202 + $0xa48] sm:$0xff]
      %v556 = vld [vmem:[%s202 + $0xa50] sm:$0xff]
      %v557 = vld [vmem:[%s202 + $0xa58] sm:$0xff]
      %v558 = vld [vmem:[%s202 + $0xa60] sm:$0xff]
      %v559 = vld [vmem:[%s202 + $0xa68] sm:$0xff]
      %v560 = vld [vmem:[%s202 + $0xa70] sm:$0xff]
      %v561 = vld [vmem:[%s202 + $0xa78] sm:$0xff]
      %v562 = vld [vmem:[%s202 + $0xa80] sm:$0xff]
      %v563 = vld [vmem:[%s202 + $0xa88] sm:$0xff]
      %v564 = vld [vmem:[%s202 + $0xa90] sm:$0xff]
      %v565 = vld [vmem:[%s202 + $0xa98] sm:$0xff]
      %v566 = vld [vmem:[%s202 + $0xaa0] sm:$0xff]
      %v567 = vld [vmem:[%s202 + $0xaa8] sm:$0xff]
      %v568 = vld [vmem:[%s202 + $0xab0] sm:$0xff]
      %v569 = vld [vmem:[%s202 + $0xab8] sm:$0xff]
      %v570 = vld [vmem:[%s202 + $0xac0] sm:$0xff]
      %v571 = vld [vmem:[%s202 + $0xac8] sm:$0xff]
      %v572 = vld [vmem:[%s202 + $0xad0] sm:$0xff]
      %v573 = vld [vmem:[%s202 + $0xad8] sm:$0xff]
      %v574 = vld [vmem:[%s202 + $0xae0] sm:$0xff]
      %v575 = vld [vmem:[%s202 + $0xae8] sm:$0xff]
      %v576 = vld [vmem:[%s202 + $0xaf0] sm:$0xff]
      %v577 = vld [vmem:[%s202 + $0xaf8] sm:$0xff]
      %v578 = vld [vmem:[%s202 + $0xb00] sm:$0xff]
      %v579 = vld [vmem:[%s202 + $0xb08] sm:$0xff]
      %v580 = vld [vmem:[%s202 + $0xb10] sm:$0xff]
      %v581 = vld [vmem:[%s202 + $0xb18] sm:$0xff]
      %v582 = vld [vmem:[%s202 + $0xb20] sm:$0xff]
      %v583 = vld [vmem:[%s202 + $0xb28] sm:$0xff]
      %v584 = vld [vmem:[%s202 + $0xb30] sm:$0xff]
      %v585 = vld [vmem:[%s202 + $0xb38] sm:$0xff]
      %v586 = vld [vmem:[%s202 + $0xb40] sm:$0xff]
      %v587 = vld [vmem:[%s202 + $0xb48] sm:$0xff]
      %v588 = vld [vmem:[%s202 + $0xb50] sm:$0xff]
      %v589 = vld [vmem:[%s202 + $0xb58] sm:$0xff]
      %v590 = vld [vmem:[%s202 + $0xb60] sm:$0xff]
      %v591 = vld [vmem:[%s202 + $0xb68] sm:$0xff]
      %v592 = vld [vmem:[%s202 + $0xb70] sm:$0xff]
      %v593 = vld [vmem:[%s202 + $0xb78] sm:$0xff]
      %v594 = vld [vmem:[%s202 + $0xb80] sm:$0xff]
      %v595 = vld [vmem:[%s202 + $0xb88] sm:$0xff]
      %v596 = vld [vmem:[%s202 + $0xb90] sm:$0xff]
      %v597 = vld [vmem:[%s202 + $0xb98] sm:$0xff]
      %v598 = vld [vmem:[%s202 + $0xba0] sm:$0xff]
      %v599 = vld [vmem:[%s202 + $0xba8] sm:$0xff]
      %v600 = vld [vmem:[%s202 + $0xbb0] sm:$0xff]
      %v601 = vld [vmem:[%s202 + $0xbb8] sm:$0xff]
      %v602 = vld [vmem:[%s202 + $0xbc0] sm:$0xff]
      %v603 = vld [vmem:[%s202 + $0xbc8] sm:$0xff]
      %v604 = vld [vmem:[%s202 + $0xbd0] sm:$0xff]
      %v605 = vld [vmem:[%s202 + $0xbd8] sm:$0xff]
      %v606 = vld [vmem:[%s202 + $0xbe0] sm:$0xff]
      %v607 = vld [vmem:[%s202 + $0xbe8] sm:$0xff]
      %v608 = vld [vmem:[%s202 + $0xbf0] sm:$0xff]
      %v609 = vld [vmem:[%s202 + $0xbf8] sm:$0xff]
      %v994 = vunpack.c.l.b16 %v226
      %v995 = vunpack.c.h.b16 %v226
      %v996 = vunpack.c.l.b16 %v227
      %v997 = vunpack.c.h.b16 %v227
      %v998 = vunpack.c.l.b16 %v228
      %v999 = vunpack.c.h.b16 %v228
      %v1000 = vunpack.c.l.b16 %v229
      %v1001 = vunpack.c.h.b16 %v229
      %v1002 = vunpack.c.l.b16 %v230
      %v1003 = vunpack.c.h.b16 %v230
      %v1004 = vunpack.c.l.b16 %v231
      %v1005 = vunpack.c.h.b16 %v231
      %v1006 = vunpack.c.l.b16 %v232
      %v1007 = vunpack.c.h.b16 %v232
      %v1008 = vunpack.c.l.b16 %v233
      %v1009 = vunpack.c.h.b16 %v233
      %v1010 = vunpack.c.l.b16 %v234
      %v1011 = vunpack.c.h.b16 %v234
      %v1012 = vunpack.c.l.b16 %v235
      %v1013 = vunpack.c.h.b16 %v235
      %v1014 = vunpack.c.l.b16 %v236
      %v1015 = vunpack.c.h.b16 %v236
      %v1016 = vunpack.c.l.b16 %v237
      %v1017 = vunpack.c.h.b16 %v237
      %v1018 = vunpack.c.l.b16 %v238
      %v1019 = vunpack.c.h.b16 %v238
      %v1020 = vunpack.c.l.b16 %v239
      %v1021 = vunpack.c.h.b16 %v239
      %v1022 = vunpack.c.l.b16 %v240
      %v1023 = vunpack.c.h.b16 %v240
      %v1024 = vunpack.c.l.b16 %v241
      %v1025 = vunpack.c.h.b16 %v241
      %v1026 = vunpack.c.l.b16 %v242
      %v1027 = vunpack.c.h.b16 %v242
      %v1028 = vunpack.c.l.b16 %v243
      %v1029 = vunpack.c.h.b16 %v243
      %v1030 = vunpack.c.l.b16 %v244
      %v1031 = vunpack.c.h.b16 %v244
      %v1032 = vunpack.c.l.b16 %v245
      %v1033 = vunpack.c.h.b16 %v245
      %v1034 = vunpack.c.l.b16 %v246
      %v1035 = vunpack.c.h.b16 %v246
      %v1036 = vunpack.c.l.b16 %v247
      %v1037 = vunpack.c.h.b16 %v247
      %v1038 = vunpack.c.l.b16 %v248
      %v1039 = vunpack.c.h.b16 %v248
      %v1040 = vunpack.c.l.b16 %v249
      %v1041 = vunpack.c.h.b16 %v249
      %v1042 = vunpack.c.l.b16 %v250
      %v1043 = vunpack.c.h.b16 %v250
      %v1044 = vunpack.c.l.b16 %v251
      %v1045 = vunpack.c.h.b16 %v251
      %v1046 = vunpack.c.l.b16 %v252
      %v1047 = vunpack.c.h.b16 %v252
      %v1048 = vunpack.c.l.b16 %v253
      %v1049 = vunpack.c.h.b16 %v253
      %v1050 = vunpack.c.l.b16 %v254
      %v1051 = vunpack.c.h.b16 %v254
      %v1052 = vunpack.c.l.b16 %v255
      %v1053 = vunpack.c.h.b16 %v255
      %v1054 = vunpack.c.l.b16 %v256
      %v1055 = vunpack.c.h.b16 %v256
      %v1056 = vunpack.c.l.b16 %v257
      %v1057 = vunpack.c.h.b16 %v257
      %v1058 = vunpack.c.l.b16 %v258
      %v1059 = vunpack.c.h.b16 %v258
      %v1060 = vunpack.c.l.b16 %v259
      %v1061 = vunpack.c.h.b16 %v259
      %v1062 = vunpack.c.l.b16 %v260
      %v1063 = vunpack.c.h.b16 %v260
      %v1064 = vunpack.c.l.b16 %v261
      %v1065 = vunpack.c.h.b16 %v261
      %v1066 = vunpack.c.l.b16 %v262
      %v1067 = vunpack.c.h.b16 %v262
      %v1068 = vunpack.c.l.b16 %v263
      %v1069 = vunpack.c.h.b16 %v263
      %v1070 = vunpack.c.l.b16 %v264
      %v1071 = vunpack.c.h.b16 %v264
      %v1072 = vunpack.c.l.b16 %v265
      %v1073 = vunpack.c.h.b16 %v265
      %v1074 = vunpack.c.l.b16 %v266
      %v1075 = vunpack.c.h.b16 %v266
      %v1076 = vunpack.c.l.b16 %v267
      %v1077 = vunpack.c.h.b16 %v267
      %v1078 = vunpack.c.l.b16 %v268
      %v1079 = vunpack.c.h.b16 %v268
      %v1080 = vunpack.c.l.b16 %v269
      %v1081 = vunpack.c.h.b16 %v269
      %v1082 = vunpack.c.l.b16 %v270
      %v1083 = vunpack.c.h.b16 %v270
      %v1084 = vunpack.c.l.b16 %v271
      %v1085 = vunpack.c.h.b16 %v271
      %v1086 = vunpack.c.l.b16 %v272
      %v1087 = vunpack.c.h.b16 %v272
      %v1088 = vunpack.c.l.b16 %v273
      %v1089 = vunpack.c.h.b16 %v273
      %v1090 = vunpack.c.l.b16 %v274
      %v1091 = vunpack.c.h.b16 %v274
      %v1092 = vunpack.c.l.b16 %v275
      %v1093 = vunpack.c.h.b16 %v275
      %v1094 = vunpack.c.l.b16 %v276
      %v1095 = vunpack.c.h.b16 %v276
      %v1096 = vunpack.c.l.b16 %v277
      %v1097 = vunpack.c.h.b16 %v277
      %v1098 = vunpack.c.l.b16 %v278
      %v1099 = vunpack.c.h.b16 %v278
      %v1100 = vunpack.c.l.b16 %v279
      %v1101 = vunpack.c.h.b16 %v279
      %v1102 = vunpack.c.l.b16 %v280
      %v1103 = vunpack.c.h.b16 %v280
      %v1104 = vunpack.c.l.b16 %v281
      %v1105 = vunpack.c.h.b16 %v281
      %v1106 = vunpack.c.l.b16 %v282
      %v1107 = vunpack.c.h.b16 %v282
      %v1108 = vunpack.c.l.b16 %v283
      %v1109 = vunpack.c.h.b16 %v283
      %v1110 = vunpack.c.l.b16 %v284
      %v1111 = vunpack.c.h.b16 %v284
      %v1112 = vunpack.c.l.b16 %v285
      %v1113 = vunpack.c.h.b16 %v285
      %v1114 = vunpack.c.l.b16 %v286
      %v1115 = vunpack.c.h.b16 %v286
      %v1116 = vunpack.c.l.b16 %v287
      %v1117 = vunpack.c.h.b16 %v287
      %v1118 = vunpack.c.l.b16 %v288
      %v1119 = vunpack.c.h.b16 %v288
      %v1120 = vunpack.c.l.b16 %v289
      %v1121 = vunpack.c.h.b16 %v289
      %v1122 = vunpack.c.l.b16 %v290
      %v1123 = vunpack.c.h.b16 %v290
      %v1124 = vunpack.c.l.b16 %v291
      %v1125 = vunpack.c.h.b16 %v291
      %v1126 = vunpack.c.l.b16 %v292
      %v1127 = vunpack.c.h.b16 %v292
      %v1128 = vunpack.c.l.b16 %v293
      %v1129 = vunpack.c.h.b16 %v293
      %v1130 = vunpack.c.l.b16 %v294
      %v1131 = vunpack.c.h.b16 %v294
      %v1132 = vunpack.c.l.b16 %v295
      %v1133 = vunpack.c.h.b16 %v295
      %v1134 = vunpack.c.l.b16 %v296
      %v1135 = vunpack.c.h.b16 %v296
      %v1136 = vunpack.c.l.b16 %v297
      %v1137 = vunpack.c.h.b16 %v297
      %v1138 = vunpack.c.l.b16 %v298
      %v1139 = vunpack.c.h.b16 %v298
      %v1140 = vunpack.c.l.b16 %v299
      %v1141 = vunpack.c.h.b16 %v299
      %v1142 = vunpack.c.l.b16 %v300
      %v1143 = vunpack.c.h.b16 %v300
      %v1144 = vunpack.c.l.b16 %v301
      %v1145 = vunpack.c.h.b16 %v301
      %v1146 = vunpack.c.l.b16 %v302
      %v1147 = vunpack.c.h.b16 %v302
      %v1148 = vunpack.c.l.b16 %v303
      %v1149 = vunpack.c.h.b16 %v303
      %v1150 = vunpack.c.l.b16 %v304
      %v1151 = vunpack.c.h.b16 %v304
      %v1152 = vunpack.c.l.b16 %v305
      %v1153 = vunpack.c.h.b16 %v305
      %v1154 = vunpack.c.l.b16 %v306
      %v1155 = vunpack.c.h.b16 %v306
      %v1156 = vunpack.c.l.b16 %v307
      %v1157 = vunpack.c.h.b16 %v307
      %v1158 = vunpack.c.l.b16 %v308
      %v1159 = vunpack.c.h.b16 %v308
      %v1160 = vunpack.c.l.b16 %v309
      %v1161 = vunpack.c.h.b16 %v309
      %v1162 = vunpack.c.l.b16 %v310
      %v1163 = vunpack.c.h.b16 %v310
      %v1164 = vunpack.c.l.b16 %v311
      %v1165 = vunpack.c.h.b16 %v311
      %v1166 = vunpack.c.l.b16 %v312
      %v1167 = vunpack.c.h.b16 %v312
      %v1168 = vunpack.c.l.b16 %v313
      %v1169 = vunpack.c.h.b16 %v313
      %v1170 = vunpack.c.l.b16 %v314
      %v1171 = vunpack.c.h.b16 %v314
      %v1172 = vunpack.c.l.b16 %v315
      %v1173 = vunpack.c.h.b16 %v315
      %v1174 = vunpack.c.l.b16 %v316
      %v1175 = vunpack.c.h.b16 %v316
      %v1176 = vunpack.c.l.b16 %v317
      %v1177 = vunpack.c.h.b16 %v317
      %v1178 = vunpack.c.l.b16 %v318
      %v1179 = vunpack.c.h.b16 %v318
      %v1180 = vunpack.c.l.b16 %v319
      %v1181 = vunpack.c.h.b16 %v319
      %v1182 = vunpack.c.l.b16 %v320
      %v1183 = vunpack.c.h.b16 %v320
      %v1184 = vunpack.c.l.b16 %v321
      %v1185 = vunpack.c.h.b16 %v321
      %v1186 = vunpack.c.l.b16 %v322
      %v1187 = vunpack.c.h.b16 %v322
      %v1188 = vunpack.c.l.b16 %v323
      %v1189 = vunpack.c.h.b16 %v323
      %v1190 = vunpack.c.l.b16 %v324
      %v1191 = vunpack.c.h.b16 %v324
      %v1192 = vunpack.c.l.b16 %v325
      %v1193 = vunpack.c.h.b16 %v325
      %v1194 = vunpack.c.l.b16 %v326
      %v1195 = vunpack.c.h.b16 %v326
      %v1196 = vunpack.c.l.b16 %v327
      %v1197 = vunpack.c.h.b16 %v327
      %v1198 = vunpack.c.l.b16 %v328
      %v1199 = vunpack.c.h.b16 %v328
      %v1200 = vunpack.c.l.b16 %v329
      %v1201 = vunpack.c.h.b16 %v329
      %v1202 = vunpack.c.l.b16 %v330
      %v1203 = vunpack.c.h.b16 %v330
      %v1204 = vunpack.c.l.b16 %v331
      %v1205 = vunpack.c.h.b16 %v331
      %v1206 = vunpack.c.l.b16 %v332
      %v1207 = vunpack.c.h.b16 %v332
      %v1208 = vunpack.c.l.b16 %v333
      %v1209 = vunpack.c.h.b16 %v333
      %v1210 = vunpack.c.l.b16 %v334
      %v1211 = vunpack.c.h.b16 %v334
      %v1212 = vunpack.c.l.b16 %v335
      %v1213 = vunpack.c.h.b16 %v335
      %v1214 = vunpack.c.l.b16 %v336
      %v1215 = vunpack.c.h.b16 %v336
      %v1216 = vunpack.c.l.b16 %v337
      %v1217 = vunpack.c.h.b16 %v337
      %v1218 = vunpack.c.l.b16 %v338
      %v1219 = vunpack.c.h.b16 %v338
      %v1220 = vunpack.c.l.b16 %v339
      %v1221 = vunpack.c.h.b16 %v339
      %v1222 = vunpack.c.l.b16 %v340
      %v1223 = vunpack.c.h.b16 %v340
      %v1224 = vunpack.c.l.b16 %v341
      %v1225 = vunpack.c.h.b16 %v341
      %v1226 = vunpack.c.l.b16 %v342
      %v1227 = vunpack.c.h.b16 %v342
      %v1228 = vunpack.c.l.b16 %v343
      %v1229 = vunpack.c.h.b16 %v343
      %v1230 = vunpack.c.l.b16 %v344
      %v1231 = vunpack.c.h.b16 %v344
      %v1232 = vunpack.c.l.b16 %v345
      %v1233 = vunpack.c.h.b16 %v345
      %v1234 = vunpack.c.l.b16 %v346
      %v1235 = vunpack.c.h.b16 %v346
      %v1236 = vunpack.c.l.b16 %v347
      %v1237 = vunpack.c.h.b16 %v347
      %v1238 = vunpack.c.l.b16 %v348
      %v1239 = vunpack.c.h.b16 %v348
      %v1240 = vunpack.c.l.b16 %v349
      %v1241 = vunpack.c.h.b16 %v349
      %v1242 = vunpack.c.l.b16 %v350
      %v1243 = vunpack.c.h.b16 %v350
      %v1244 = vunpack.c.l.b16 %v351
      %v1245 = vunpack.c.h.b16 %v351
      %v1246 = vunpack.c.l.b16 %v352
      %v1247 = vunpack.c.h.b16 %v352
      %v1248 = vunpack.c.l.b16 %v353
      %v1249 = vunpack.c.h.b16 %v353
      %v1250 = vunpack.c.l.b16 %v354
      %v1251 = vunpack.c.h.b16 %v354
      %v1252 = vunpack.c.l.b16 %v355
      %v1253 = vunpack.c.h.b16 %v355
      %v1254 = vunpack.c.l.b16 %v356
      %v1255 = vunpack.c.h.b16 %v356
      %v1256 = vunpack.c.l.b16 %v357
      %v1257 = vunpack.c.h.b16 %v357
      %v1258 = vunpack.c.l.b16 %v358
      %v1259 = vunpack.c.h.b16 %v358
      %v1260 = vunpack.c.l.b16 %v359
      %v1261 = vunpack.c.h.b16 %v359
      %v1262 = vunpack.c.l.b16 %v360
      %v1263 = vunpack.c.h.b16 %v360
      %v1264 = vunpack.c.l.b16 %v361
      %v1265 = vunpack.c.h.b16 %v361
      %v1266 = vunpack.c.l.b16 %v362
      %v1267 = vunpack.c.h.b16 %v362
      %v1268 = vunpack.c.l.b16 %v363
      %v1269 = vunpack.c.h.b16 %v363
      %v1270 = vunpack.c.l.b16 %v364
      %v1271 = vunpack.c.h.b16 %v364
      %v1272 = vunpack.c.l.b16 %v365
      %v1273 = vunpack.c.h.b16 %v365
      %v1274 = vunpack.c.l.b16 %v366
      %v1275 = vunpack.c.h.b16 %v366
      %v1276 = vunpack.c.l.b16 %v367
      %v1277 = vunpack.c.h.b16 %v367
      %v1278 = vunpack.c.l.b16 %v368
      %v1279 = vunpack.c.h.b16 %v368
      %v1280 = vunpack.c.l.b16 %v369
      %v1281 = vunpack.c.h.b16 %v369
      %v1282 = vunpack.c.l.b16 %v370
      %v1283 = vunpack.c.h.b16 %v370
      %v1284 = vunpack.c.l.b16 %v371
      %v1285 = vunpack.c.h.b16 %v371
      %v1286 = vunpack.c.l.b16 %v372
      %v1287 = vunpack.c.h.b16 %v372
      %v1288 = vunpack.c.l.b16 %v373
      %v1289 = vunpack.c.h.b16 %v373
      %v1290 = vunpack.c.l.b16 %v374
      %v1291 = vunpack.c.h.b16 %v374
      %v1292 = vunpack.c.l.b16 %v375
      %v1293 = vunpack.c.h.b16 %v375
      %v1294 = vunpack.c.l.b16 %v376
      %v1295 = vunpack.c.h.b16 %v376
      %v1296 = vunpack.c.l.b16 %v377
      %v1297 = vunpack.c.h.b16 %v377
      %v1298 = vunpack.c.l.b16 %v378
      %v1299 = vunpack.c.h.b16 %v378
      %v1300 = vunpack.c.l.b16 %v379
      %v1301 = vunpack.c.h.b16 %v379
      %v1302 = vunpack.c.l.b16 %v380
      %v1303 = vunpack.c.h.b16 %v380
      %v1304 = vunpack.c.l.b16 %v381
      %v1305 = vunpack.c.h.b16 %v381
      %v1306 = vunpack.c.l.b16 %v382
      %v1307 = vunpack.c.h.b16 %v382
      %v1308 = vunpack.c.l.b16 %v383
      %v1309 = vunpack.c.h.b16 %v383
      %v1310 = vunpack.c.l.b16 %v384
      %v1311 = vunpack.c.h.b16 %v384
      %v1312 = vunpack.c.l.b16 %v385
      %v1313 = vunpack.c.h.b16 %v385
      %v1314 = vunpack.c.l.b16 %v386
      %v1315 = vunpack.c.h.b16 %v386
      %v1316 = vunpack.c.l.b16 %v387
      %v1317 = vunpack.c.h.b16 %v387
      %v1318 = vunpack.c.l.b16 %v388
      %v1319 = vunpack.c.h.b16 %v388
      %v1320 = vunpack.c.l.b16 %v389
      %v1321 = vunpack.c.h.b16 %v389
      %v1322 = vunpack.c.l.b16 %v390
      %v1323 = vunpack.c.h.b16 %v390
      %v1324 = vunpack.c.l.b16 %v391
      %v1325 = vunpack.c.h.b16 %v391
      %v1326 = vunpack.c.l.b16 %v392
      %v1327 = vunpack.c.h.b16 %v392
      %v1328 = vunpack.c.l.b16 %v393
      %v1329 = vunpack.c.h.b16 %v393
      %v1330 = vunpack.c.l.b16 %v394
      %v1331 = vunpack.c.h.b16 %v394
      %v1332 = vunpack.c.l.b16 %v395
      %v1333 = vunpack.c.h.b16 %v395
      %v1334 = vunpack.c.l.b16 %v396
      %v1335 = vunpack.c.h.b16 %v396
      %v1336 = vunpack.c.l.b16 %v397
      %v1337 = vunpack.c.h.b16 %v397
      %v1338 = vunpack.c.l.b16 %v398
      %v1339 = vunpack.c.h.b16 %v398
      %v1340 = vunpack.c.l.b16 %v399
      %v1341 = vunpack.c.h.b16 %v399
      %v1342 = vunpack.c.l.b16 %v400
      %v1343 = vunpack.c.h.b16 %v400
      %v1344 = vunpack.c.l.b16 %v401
      %v1345 = vunpack.c.h.b16 %v401
      %v1346 = vunpack.c.l.b16 %v402
      %v1347 = vunpack.c.h.b16 %v402
      %v1348 = vunpack.c.l.b16 %v403
      %v1349 = vunpack.c.h.b16 %v403
      %v1350 = vunpack.c.l.b16 %v404
      %v1351 = vunpack.c.h.b16 %v404
      %v1352 = vunpack.c.l.b16 %v405
      %v1353 = vunpack.c.h.b16 %v405
      %v1354 = vunpack.c.l.b16 %v406
      %v1355 = vunpack.c.h.b16 %v406
      %v1356 = vunpack.c.l.b16 %v407
      %v1357 = vunpack.c.h.b16 %v407
      %v1358 = vunpack.c.l.b16 %v408
      %v1359 = vunpack.c.h.b16 %v408
      %v1360 = vunpack.c.l.b16 %v409
      %v1361 = vunpack.c.h.b16 %v409
      %v1362 = vunpack.c.l.b16 %v410
      %v1363 = vunpack.c.h.b16 %v410
      %v1364 = vunpack.c.l.b16 %v411
      %v1365 = vunpack.c.h.b16 %v411
      %v1366 = vunpack.c.l.b16 %v412
      %v1367 = vunpack.c.h.b16 %v412
      %v1368 = vunpack.c.l.b16 %v413
      %v1369 = vunpack.c.h.b16 %v413
      %v1370 = vunpack.c.l.b16 %v414
      %v1371 = vunpack.c.h.b16 %v414
      %v1372 = vunpack.c.l.b16 %v415
      %v1373 = vunpack.c.h.b16 %v415
      %v1374 = vunpack.c.l.b16 %v416
      %v1375 = vunpack.c.h.b16 %v416
      %v1376 = vunpack.c.l.b16 %v417
      %v1377 = vunpack.c.h.b16 %v417
      %v1378 = vunpack.c.l.b16 %v418
      %v1379 = vunpack.c.h.b16 %v418
      %v1380 = vunpack.c.l.b16 %v419
      %v1381 = vunpack.c.h.b16 %v419
      %v1382 = vunpack.c.l.b16 %v420
      %v1383 = vunpack.c.h.b16 %v420
      %v1384 = vunpack.c.l.b16 %v421
      %v1385 = vunpack.c.h.b16 %v421
      %v1386 = vunpack.c.l.b16 %v422
      %v1387 = vunpack.c.h.b16 %v422
      %v1388 = vunpack.c.l.b16 %v423
      %v1389 = vunpack.c.h.b16 %v423
      %v1390 = vunpack.c.l.b16 %v424
      %v1391 = vunpack.c.h.b16 %v424
      %v1392 = vunpack.c.l.b16 %v425
      %v1393 = vunpack.c.h.b16 %v425
      %v1394 = vunpack.c.l.b16 %v426
      %v1395 = vunpack.c.h.b16 %v426
      %v1396 = vunpack.c.l.b16 %v427
      %v1397 = vunpack.c.h.b16 %v427
      %v1398 = vunpack.c.l.b16 %v428
      %v1399 = vunpack.c.h.b16 %v428
      %v1400 = vunpack.c.l.b16 %v429
      %v1401 = vunpack.c.h.b16 %v429
      %v1402 = vunpack.c.l.b16 %v430
      %v1403 = vunpack.c.h.b16 %v430
      %v1404 = vunpack.c.l.b16 %v431
      %v1405 = vunpack.c.h.b16 %v431
      %v1406 = vunpack.c.l.b16 %v432
      %v1407 = vunpack.c.h.b16 %v432
      %v1408 = vunpack.c.l.b16 %v433
      %v1409 = vunpack.c.h.b16 %v433
      %v1410 = vunpack.c.l.b16 %v434
      %v1411 = vunpack.c.h.b16 %v434
      %v1412 = vunpack.c.l.b16 %v435
      %v1413 = vunpack.c.h.b16 %v435
      %v1414 = vunpack.c.l.b16 %v436
      %v1415 = vunpack.c.h.b16 %v436
      %v1416 = vunpack.c.l.b16 %v437
      %v1417 = vunpack.c.h.b16 %v437
      %v1418 = vunpack.c.l.b16 %v438
      %v1419 = vunpack.c.h.b16 %v438
      %v1420 = vunpack.c.l.b16 %v439
      %v1421 = vunpack.c.h.b16 %v439
      %v1422 = vunpack.c.l.b16 %v440
      %v1423 = vunpack.c.h.b16 %v440
      %v1424 = vunpack.c.l.b16 %v441
      %v1425 = vunpack.c.h.b16 %v441
      %v1426 = vunpack.c.l.b16 %v442
      %v1427 = vunpack.c.h.b16 %v442
      %v1428 = vunpack.c.l.b16 %v443
      %v1429 = vunpack.c.h.b16 %v443
      %v1430 = vunpack.c.l.b16 %v444
      %v1431 = vunpack.c.h.b16 %v444
      %v1432 = vunpack.c.l.b16 %v445
      %v1433 = vunpack.c.h.b16 %v445
      %v1434 = vunpack.c.l.b16 %v446
      %v1435 = vunpack.c.h.b16 %v446
      %v1436 = vunpack.c.l.b16 %v447
      %v1437 = vunpack.c.h.b16 %v447
      %v1438 = vunpack.c.l.b16 %v448
      %v1439 = vunpack.c.h.b16 %v448
      %v1440 = vunpack.c.l.b16 %v449
      %v1441 = vunpack.c.h.b16 %v449
      %v1442 = vunpack.c.l.b16 %v450
      %v1443 = vunpack.c.h.b16 %v450
      %v1444 = vunpack.c.l.b16 %v451
      %v1445 = vunpack.c.h.b16 %v451
      %v1446 = vunpack.c.l.b16 %v452
      %v1447 = vunpack.c.h.b16 %v452
      %v1448 = vunpack.c.l.b16 %v453
      %v1449 = vunpack.c.h.b16 %v453
      %v1450 = vunpack.c.l.b16 %v454
      %v1451 = vunpack.c.h.b16 %v454
      %v1452 = vunpack.c.l.b16 %v455
      %v1453 = vunpack.c.h.b16 %v455
      %v1454 = vunpack.c.l.b16 %v456
      %v1455 = vunpack.c.h.b16 %v456
      %v1456 = vunpack.c.l.b16 %v457
      %v1457 = vunpack.c.h.b16 %v457
      %v1458 = vunpack.c.l.b16 %v458
      %v1459 = vunpack.c.h.b16 %v458
      %v1460 = vunpack.c.l.b16 %v459
      %v1461 = vunpack.c.h.b16 %v459
      %v1462 = vunpack.c.l.b16 %v460
      %v1463 = vunpack.c.h.b16 %v460
      %v1464 = vunpack.c.l.b16 %v461
      %v1465 = vunpack.c.h.b16 %v461
      %v1466 = vunpack.c.l.b16 %v462
      %v1467 = vunpack.c.h.b16 %v462
      %v1468 = vunpack.c.l.b16 %v463
      %v1469 = vunpack.c.h.b16 %v463
      %v1470 = vunpack.c.l.b16 %v464
      %v1471 = vunpack.c.h.b16 %v464
      %v1472 = vunpack.c.l.b16 %v465
      %v1473 = vunpack.c.h.b16 %v465
      %v1474 = vunpack.c.l.b16 %v466
      %v1475 = vunpack.c.h.b16 %v466
      %v1476 = vunpack.c.l.b16 %v467
      %v1477 = vunpack.c.h.b16 %v467
      %v1478 = vunpack.c.l.b16 %v468
      %v1479 = vunpack.c.h.b16 %v468
      %v1480 = vunpack.c.l.b16 %v469
      %v1481 = vunpack.c.h.b16 %v469
      %v1482 = vunpack.c.l.b16 %v470
      %v1483 = vunpack.c.h.b16 %v470
      %v1484 = vunpack.c.l.b16 %v471
      %v1485 = vunpack.c.h.b16 %v471
      %v1486 = vunpack.c.l.b16 %v472
      %v1487 = vunpack.c.h.b16 %v472
      %v1488 = vunpack.c.l.b16 %v473
      %v1489 = vunpack.c.h.b16 %v473
      %v1490 = vunpack.c.l.b16 %v474
      %v1491 = vunpack.c.h.b16 %v474
      %v1492 = vunpack.c.l.b16 %v475
      %v1493 = vunpack.c.h.b16 %v475
      %v1494 = vunpack.c.l.b16 %v476
      %v1495 = vunpack.c.h.b16 %v476
      %v1496 = vunpack.c.l.b16 %v477
      %v1497 = vunpack.c.h.b16 %v477
      %v1498 = vunpack.c.l.b16 %v478
      %v1499 = vunpack.c.h.b16 %v478
      %v1500 = vunpack.c.l.b16 %v479
      %v1501 = vunpack.c.h.b16 %v479
      %v1502 = vunpack.c.l.b16 %v480
      %v1503 = vunpack.c.h.b16 %v480
      %v1504 = vunpack.c.l.b16 %v481
      %v1505 = vunpack.c.h.b16 %v481
      %v1506 = vunpack.c.l.b16 %v482
      %v1507 = vunpack.c.h.b16 %v482
      %v1508 = vunpack.c.l.b16 %v483
      %v1509 = vunpack.c.h.b16 %v483
      %v1510 = vunpack.c.l.b16 %v484
      %v1511 = vunpack.c.h.b16 %v484
      %v1512 = vunpack.c.l.b16 %v485
      %v1513 = vunpack.c.h.b16 %v485
      %v1514 = vunpack.c.l.b16 %v486
      %v1515 = vunpack.c.h.b16 %v486
      %v1516 = vunpack.c.l.b16 %v487
      %v1517 = vunpack.c.h.b16 %v487
      %v1518 = vunpack.c.l.b16 %v488
      %v1519 = vunpack.c.h.b16 %v488
      %v1520 = vunpack.c.l.b16 %v489
      %v1521 = vunpack.c.h.b16 %v489
      %v1522 = vunpack.c.l.b16 %v490
      %v1523 = vunpack.c.h.b16 %v490
      %v1524 = vunpack.c.l.b16 %v491
      %v1525 = vunpack.c.h.b16 %v491
      %v1526 = vunpack.c.l.b16 %v492
      %v1527 = vunpack.c.h.b16 %v492
      %v1528 = vunpack.c.l.b16 %v493
      %v1529 = vunpack.c.h.b16 %v493
      %v1530 = vunpack.c.l.b16 %v494
      %v1531 = vunpack.c.h.b16 %v494
      %v1532 = vunpack.c.l.b16 %v495
      %v1533 = vunpack.c.h.b16 %v495
      %v1534 = vunpack.c.l.b16 %v496
      %v1535 = vunpack.c.h.b16 %v496
      %v1536 = vunpack.c.l.b16 %v497
      %v1537 = vunpack.c.h.b16 %v497
      %v1538 = vunpack.c.l.b16 %v498
      %v1539 = vunpack.c.h.b16 %v498
      %v1540 = vunpack.c.l.b16 %v499
      %v1541 = vunpack.c.h.b16 %v499
      %v1542 = vunpack.c.l.b16 %v500
      %v1543 = vunpack.c.h.b16 %v500
      %v1544 = vunpack.c.l.b16 %v501
      %v1545 = vunpack.c.h.b16 %v501
      %v1546 = vunpack.c.l.b16 %v502
      %v1547 = vunpack.c.h.b16 %v502
      %v1548 = vunpack.c.l.b16 %v503
      %v1549 = vunpack.c.h.b16 %v503
      %v1550 = vunpack.c.l.b16 %v504
      %v1551 = vunpack.c.h.b16 %v504
      %v1552 = vunpack.c.l.b16 %v505
      %v1553 = vunpack.c.h.b16 %v505
      %v1554 = vunpack.c.l.b16 %v506
      %v1555 = vunpack.c.h.b16 %v506
      %v1556 = vunpack.c.l.b16 %v507
      %v1557 = vunpack.c.h.b16 %v507
      %v1558 = vunpack.c.l.b16 %v508
      %v1559 = vunpack.c.h.b16 %v508
      %v1560 = vunpack.c.l.b16 %v509
      %v1561 = vunpack.c.h.b16 %v509
      %v1562 = vunpack.c.l.b16 %v510
      %v1563 = vunpack.c.h.b16 %v510
      %v1564 = vunpack.c.l.b16 %v511
      %v1565 = vunpack.c.h.b16 %v511
      %v1566 = vunpack.c.l.b16 %v512
      %v1567 = vunpack.c.h.b16 %v512
      %v1568 = vunpack.c.l.b16 %v513
      %v1569 = vunpack.c.h.b16 %v513
      %v1570 = vunpack.c.l.b16 %v514
      %v1571 = vunpack.c.h.b16 %v514
      %v1572 = vunpack.c.l.b16 %v515
      %v1573 = vunpack.c.h.b16 %v515
      %v1574 = vunpack.c.l.b16 %v516
      %v1575 = vunpack.c.h.b16 %v516
      %v1576 = vunpack.c.l.b16 %v517
      %v1577 = vunpack.c.h.b16 %v517
      %v1578 = vunpack.c.l.b16 %v518
      %v1579 = vunpack.c.h.b16 %v518
      %v1580 = vunpack.c.l.b16 %v519
      %v1581 = vunpack.c.h.b16 %v519
      %v1582 = vunpack.c.l.b16 %v520
      %v1583 = vunpack.c.h.b16 %v520
      %v1584 = vunpack.c.l.b16 %v521
      %v1585 = vunpack.c.h.b16 %v521
      %v1586 = vunpack.c.l.b16 %v522
      %v1587 = vunpack.c.h.b16 %v522
      %v1588 = vunpack.c.l.b16 %v523
      %v1589 = vunpack.c.h.b16 %v523
      %v1590 = vunpack.c.l.b16 %v524
      %v1591 = vunpack.c.h.b16 %v524
      %v1592 = vunpack.c.l.b16 %v525
      %v1593 = vunpack.c.h.b16 %v525
      %v1594 = vunpack.c.l.b16 %v526
      %v1595 = vunpack.c.h.b16 %v526
      %v1596 = vunpack.c.l.b16 %v527
      %v1597 = vunpack.c.h.b16 %v527
      %v1598 = vunpack.c.l.b16 %v528
      %v1599 = vunpack.c.h.b16 %v528
      %v1600 = vunpack.c.l.b16 %v529
      %v1601 = vunpack.c.h.b16 %v529
      %v1602 = vunpack.c.l.b16 %v530
      %v1603 = vunpack.c.h.b16 %v530
      %v1604 = vunpack.c.l.b16 %v531
      %v1605 = vunpack.c.h.b16 %v531
      %v1606 = vunpack.c.l.b16 %v532
      %v1607 = vunpack.c.h.b16 %v532
      %v1608 = vunpack.c.l.b16 %v533
      %v1609 = vunpack.c.h.b16 %v533
      %v1610 = vunpack.c.l.b16 %v534
      %v1611 = vunpack.c.h.b16 %v534
      %v1612 = vunpack.c.l.b16 %v535
      %v1613 = vunpack.c.h.b16 %v535
      %v1614 = vunpack.c.l.b16 %v536
      %v1615 = vunpack.c.h.b16 %v536
      %v1616 = vunpack.c.l.b16 %v537
      %v1617 = vunpack.c.h.b16 %v537
      %v1618 = vunpack.c.l.b16 %v538
      %v1619 = vunpack.c.h.b16 %v538
      %v1620 = vunpack.c.l.b16 %v539
      %v1621 = vunpack.c.h.b16 %v539
      %v1622 = vunpack.c.l.b16 %v540
      %v1623 = vunpack.c.h.b16 %v540
      %v1624 = vunpack.c.l.b16 %v541
      %v1625 = vunpack.c.h.b16 %v541
      %v1626 = vunpack.c.l.b16 %v542
      %v1627 = vunpack.c.h.b16 %v542
      %v1628 = vunpack.c.l.b16 %v543
      %v1629 = vunpack.c.h.b16 %v543
      %v1630 = vunpack.c.l.b16 %v544
      %v1631 = vunpack.c.h.b16 %v544
      %v1632 = vunpack.c.l.b16 %v545
      %v1633 = vunpack.c.h.b16 %v545
      %v1634 = vunpack.c.l.b16 %v546
      %v1635 = vunpack.c.h.b16 %v546
      %v1636 = vunpack.c.l.b16 %v547
      %v1637 = vunpack.c.h.b16 %v547
      %v1638 = vunpack.c.l.b16 %v548
      %v1639 = vunpack.c.h.b16 %v548
      %v1640 = vunpack.c.l.b16 %v549
      %v1641 = vunpack.c.h.b16 %v549
      %v1642 = vunpack.c.l.b16 %v550
      %v1643 = vunpack.c.h.b16 %v550
      %v1644 = vunpack.c.l.b16 %v551
      %v1645 = vunpack.c.h.b16 %v551
      %v1646 = vunpack.c.l.b16 %v552
      %v1647 = vunpack.c.h.b16 %v552
      %v1648 = vunpack.c.l.b16 %v553
      %v1649 = vunpack.c.h.b16 %v553
      %v1650 = vunpack.c.l.b16 %v554
      %v1651 = vunpack.c.h.b16 %v554
      %v1652 = vunpack.c.l.b16 %v555
      %v1653 = vunpack.c.h.b16 %v555
      %v1654 = vunpack.c.l.b16 %v556
      %v1655 = vunpack.c.h.b16 %v556
      %v1656 = vunpack.c.l.b16 %v557
      %v1657 = vunpack.c.h.b16 %v557
      %v1658 = vunpack.c.l.b16 %v558
      %v1659 = vunpack.c.h.b16 %v558
      %v1660 = vunpack.c.l.b16 %v559
      %v1661 = vunpack.c.h.b16 %v559
      %v1662 = vunpack.c.l.b16 %v560
      %v1663 = vunpack.c.h.b16 %v560
      %v1664 = vunpack.c.l.b16 %v561
      %v1665 = vunpack.c.h.b16 %v561
      %v1666 = vunpack.c.l.b16 %v562
      %v1667 = vunpack.c.h.b16 %v562
      %v1668 = vunpack.c.l.b16 %v563
      %v1669 = vunpack.c.h.b16 %v563
      %v1670 = vunpack.c.l.b16 %v564
      %v1671 = vunpack.c.h.b16 %v564
      %v1672 = vunpack.c.l.b16 %v565
      %v1673 = vunpack.c.h.b16 %v565
      %v1674 = vunpack.c.l.b16 %v566
      %v1675 = vunpack.c.h.b16 %v566
      %v1676 = vunpack.c.l.b16 %v567
      %v1677 = vunpack.c.h.b16 %v567
      %v1678 = vunpack.c.l.b16 %v568
      %v1679 = vunpack.c.h.b16 %v568
      %v1680 = vunpack.c.l.b16 %v569
      %v1681 = vunpack.c.h.b16 %v569
      %v1682 = vunpack.c.l.b16 %v570
      %v1683 = vunpack.c.h.b16 %v570
      %v1684 = vunpack.c.l.b16 %v571
      %v1685 = vunpack.c.h.b16 %v571
      %v1686 = vunpack.c.l.b16 %v572
      %v1687 = vunpack.c.h.b16 %v572
      %v1688 = vunpack.c.l.b16 %v573
      %v1689 = vunpack.c.h.b16 %v573
      %v1690 = vunpack.c.l.b16 %v574
      %v1691 = vunpack.c.h.b16 %v574
      %v1692 = vunpack.c.l.b16 %v575
      %v1693 = vunpack.c.h.b16 %v575
      %v1694 = vunpack.c.l.b16 %v576
      %v1695 = vunpack.c.h.b16 %v576
      %v1696 = vunpack.c.l.b16 %v577
      %v1697 = vunpack.c.h.b16 %v577
      %v1698 = vunpack.c.l.b16 %v578
      %v1699 = vunpack.c.h.b16 %v578
      %v1700 = vunpack.c.l.b16 %v579
      %v1701 = vunpack.c.h.b16 %v579
      %v1702 = vunpack.c.l.b16 %v580
      %v1703 = vunpack.c.h.b16 %v580
      %v1704 = vunpack.c.l.b16 %v581
      %v1705 = vunpack.c.h.b16 %v581
      %v1706 = vunpack.c.l.b16 %v582
      %v1707 = vunpack.c.h.b16 %v582
      %v1708 = vunpack.c.l.b16 %v583
      %v1709 = vunpack.c.h.b16 %v583
      %v1710 = vunpack.c.l.b16 %v584
      %v1711 = vunpack.c.h.b16 %v584
      %v1712 = vunpack.c.l.b16 %v585
      %v1713 = vunpack.c.h.b16 %v585
      %v1714 = vunpack.c.l.b16 %v586
      %v1715 = vunpack.c.h.b16 %v586
      %v1716 = vunpack.c.l.b16 %v587
      %v1717 = vunpack.c.h.b16 %v587
      %v1718 = vunpack.c.l.b16 %v588
      %v1719 = vunpack.c.h.b16 %v588
      %v1720 = vunpack.c.l.b16 %v589
      %v1721 = vunpack.c.h.b16 %v589
      %v1722 = vunpack.c.l.b16 %v590
      %v1723 = vunpack.c.h.b16 %v590
      %v1724 = vunpack.c.l.b16 %v591
      %v1725 = vunpack.c.h.b16 %v591
      %v1726 = vunpack.c.l.b16 %v592
      %v1727 = vunpack.c.h.b16 %v592
      %v1728 = vunpack.c.l.b16 %v593
      %v1729 = vunpack.c.h.b16 %v593
      %v1730 = vunpack.c.l.b16 %v594
      %v1731 = vunpack.c.h.b16 %v594
      %v1732 = vunpack.c.l.b16 %v595
      %v1733 = vunpack.c.h.b16 %v595
      %v1734 = vunpack.c.l.b16 %v596
      %v1735 = vunpack.c.h.b16 %v596
      %v1736 = vunpack.c.l.b16 %v597
      %v1737 = vunpack.c.h.b16 %v597
      %v1738 = vunpack.c.l.b16 %v598
      %v1739 = vunpack.c.h.b16 %v598
      %v1740 = vunpack.c.l.b16 %v599
      %v1741 = vunpack.c.h.b16 %v599
      %v1742 = vunpack.c.l.b16 %v600
      %v1743 = vunpack.c.h.b16 %v600
      %v1744 = vunpack.c.l.b16 %v601
      %v1745 = vunpack.c.h.b16 %v601
      %v1746 = vunpack.c.l.b16 %v602
      %v1747 = vunpack.c.h.b16 %v602
      %v1748 = vunpack.c.l.b16 %v603
      %v1749 = vunpack.c.h.b16 %v603
      %v1750 = vunpack.c.l.b16 %v604
      %v1751 = vunpack.c.h.b16 %v604
      %v1752 = vunpack.c.l.b16 %v605
      %v1753 = vunpack.c.h.b16 %v605
      %v1754 = vunpack.c.l.b16 %v606
      %v1755 = vunpack.c.h.b16 %v606
      %v1756 = vunpack.c.l.b16 %v607
      %v1757 = vunpack.c.h.b16 %v607
      %v1758 = vunpack.c.l.b16 %v608
      %v1759 = vunpack.c.h.b16 %v608
      %v1760 = vunpack.c.l.b16 %v609
      %v1761 = vunpack.c.h.b16 %v609
      %v1762 = vpack.c.b16 %v1006, %v994
      %v1763 = vpack.c.b16 %v1007, %v995
      %v1764 = vpack.c.b16 %v1008, %v996
      %v1765 = vpack.c.b16 %v1009, %v997
      %v1766 = vpack.c.b16 %v1010, %v998
      %v1767 = vpack.c.b16 %v1011, %v999
      %v1768 = vpack.c.b16 %v1012, %v1000
      %v1769 = vpack.c.b16 %v1013, %v1001
      %v1770 = vpack.c.b16 %v1014, %v1002
      %v1771 = vpack.c.b16 %v1015, %v1003
      %v1772 = vpack.c.b16 %v1016, %v1004
      %v1773 = vpack.c.b16 %v1017, %v1005
      %v1774 = vpack.c.b16 %v1030, %v1018
      %v1775 = vpack.c.b16 %v1031, %v1019
      %v1776 = vpack.c.b16 %v1032, %v1020
      %v1777 = vpack.c.b16 %v1033, %v1021
      %v1778 = vpack.c.b16 %v1034, %v1022
      %v1779 = vpack.c.b16 %v1035, %v1023
      %v1780 = vpack.c.b16 %v1036, %v1024
      %v1781 = vpack.c.b16 %v1037, %v1025
      %v1782 = vpack.c.b16 %v1038, %v1026
      %v1783 = vpack.c.b16 %v1039, %v1027
      %v1784 = vpack.c.b16 %v1040, %v1028
      %v1785 = vpack.c.b16 %v1041, %v1029
      %v1786 = vpack.c.b16 %v1054, %v1042
      %v1787 = vpack.c.b16 %v1055, %v1043
      %v1788 = vpack.c.b16 %v1056, %v1044
      %v1789 = vpack.c.b16 %v1057, %v1045
      %v1790 = vpack.c.b16 %v1058, %v1046
      %v1791 = vpack.c.b16 %v1059, %v1047
      %v1792 = vpack.c.b16 %v1060, %v1048
      %v1793 = vpack.c.b16 %v1061, %v1049
      %v1794 = vpack.c.b16 %v1062, %v1050
      %v1795 = vpack.c.b16 %v1063, %v1051
      %v1796 = vpack.c.b16 %v1064, %v1052
      %v1797 = vpack.c.b16 %v1065, %v1053
      %v1798 = vpack.c.b16 %v1078, %v1066
      %v1799 = vpack.c.b16 %v1079, %v1067
      %v1800 = vpack.c.b16 %v1080, %v1068
      %v1801 = vpack.c.b16 %v1081, %v1069
      %v1802 = vpack.c.b16 %v1082, %v1070
      %v1803 = vpack.c.b16 %v1083, %v1071
      %v1804 = vpack.c.b16 %v1084, %v1072
      %v1805 = vpack.c.b16 %v1085, %v1073
      %v1806 = vpack.c.b16 %v1086, %v1074
      %v1807 = vpack.c.b16 %v1087, %v1075
      %v1808 = vpack.c.b16 %v1088, %v1076
      %v1809 = vpack.c.b16 %v1089, %v1077
      %v1810 = vpack.c.b16 %v1102, %v1090
      %v1811 = vpack.c.b16 %v1103, %v1091
      %v1812 = vpack.c.b16 %v1104, %v1092
      %v1813 = vpack.c.b16 %v1105, %v1093
      %v1814 = vpack.c.b16 %v1106, %v1094
      %v1815 = vpack.c.b16 %v1107, %v1095
      %v1816 = vpack.c.b16 %v1108, %v1096
      %v1817 = vpack.c.b16 %v1109, %v1097
      %v1818 = vpack.c.b16 %v1110, %v1098
      %v1819 = vpack.c.b16 %v1111, %v1099
      %v1820 = vpack.c.b16 %v1112, %v1100
      %v1821 = vpack.c.b16 %v1113, %v1101
      %v1822 = vpack.c.b16 %v1126, %v1114
      %v1823 = vpack.c.b16 %v1127, %v1115
      %v1824 = vpack.c.b16 %v1128, %v1116
      %v1825 = vpack.c.b16 %v1129, %v1117
      %v1826 = vpack.c.b16 %v1130, %v1118
      %v1827 = vpack.c.b16 %v1131, %v1119
      %v1828 = vpack.c.b16 %v1132, %v1120
      %v1829 = vpack.c.b16 %v1133, %v1121
      %v1830 = vpack.c.b16 %v1134, %v1122
      %v1831 = vpack.c.b16 %v1135, %v1123
      %v1832 = vpack.c.b16 %v1136, %v1124
      %v1833 = vpack.c.b16 %v1137, %v1125
      %v1834 = vpack.c.b16 %v1150, %v1138
      %v1835 = vpack.c.b16 %v1151, %v1139
      %v1836 = vpack.c.b16 %v1152, %v1140
      %v1837 = vpack.c.b16 %v1153, %v1141
      %v1838 = vpack.c.b16 %v1154, %v1142
      %v1839 = vpack.c.b16 %v1155, %v1143
      %v1840 = vpack.c.b16 %v1156, %v1144
      %v1841 = vpack.c.b16 %v1157, %v1145
      %v1842 = vpack.c.b16 %v1158, %v1146
      %v1843 = vpack.c.b16 %v1159, %v1147
      %v1844 = vpack.c.b16 %v1160, %v1148
      %v1845 = vpack.c.b16 %v1161, %v1149
      %v1846 = vpack.c.b16 %v1174, %v1162
      %v1847 = vpack.c.b16 %v1175, %v1163
      %v1848 = vpack.c.b16 %v1176, %v1164
      %v1849 = vpack.c.b16 %v1177, %v1165
      %v1850 = vpack.c.b16 %v1178, %v1166
      %v1851 = vpack.c.b16 %v1179, %v1167
      %v1852 = vpack.c.b16 %v1180, %v1168
      %v1853 = vpack.c.b16 %v1181, %v1169
      %v1854 = vpack.c.b16 %v1182, %v1170
      %v1855 = vpack.c.b16 %v1183, %v1171
      %v1856 = vpack.c.b16 %v1184, %v1172
      %v1857 = vpack.c.b16 %v1185, %v1173
      %v1858 = vpack.c.b16 %v1198, %v1186
      %v1859 = vpack.c.b16 %v1199, %v1187
      %v1860 = vpack.c.b16 %v1200, %v1188
      %v1861 = vpack.c.b16 %v1201, %v1189
      %v1862 = vpack.c.b16 %v1202, %v1190
      %v1863 = vpack.c.b16 %v1203, %v1191
      %v1864 = vpack.c.b16 %v1204, %v1192
      %v1865 = vpack.c.b16 %v1205, %v1193
      %v1866 = vpack.c.b16 %v1206, %v1194
      %v1867 = vpack.c.b16 %v1207, %v1195
      %v1868 = vpack.c.b16 %v1208, %v1196
      %v1869 = vpack.c.b16 %v1209, %v1197
      %v1870 = vpack.c.b16 %v1222, %v1210
      %v1871 = vpack.c.b16 %v1223, %v1211
      %v1872 = vpack.c.b16 %v1224, %v1212
      %v1873 = vpack.c.b16 %v1225, %v1213
      %v1874 = vpack.c.b16 %v1226, %v1214
      %v1875 = vpack.c.b16 %v1227, %v1215
      %v1876 = vpack.c.b16 %v1228, %v1216
      %v1877 = vpack.c.b16 %v1229, %v1217
      %v1878 = vpack.c.b16 %v1230, %v1218
      %v1879 = vpack.c.b16 %v1231, %v1219
      %v1880 = vpack.c.b16 %v1232, %v1220
      %v1881 = vpack.c.b16 %v1233, %v1221
      %v1882 = vpack.c.b16 %v1246, %v1234
      %v1883 = vpack.c.b16 %v1247, %v1235
      %v1884 = vpack.c.b16 %v1248, %v1236
      %v1885 = vpack.c.b16 %v1249, %v1237
      %v1886 = vpack.c.b16 %v1250, %v1238
      %v1887 = vpack.c.b16 %v1251, %v1239
      %v1888 = vpack.c.b16 %v1252, %v1240
      %v1889 = vpack.c.b16 %v1253, %v1241
      %v1890 = vpack.c.b16 %v1254, %v1242
      %v1891 = vpack.c.b16 %v1255, %v1243
      %v1892 = vpack.c.b16 %v1256, %v1244
      %v1893 = vpack.c.b16 %v1257, %v1245
      %v1894 = vpack.c.b16 %v1270, %v1258
      %v1895 = vpack.c.b16 %v1271, %v1259
      %v1896 = vpack.c.b16 %v1272, %v1260
      %v1897 = vpack.c.b16 %v1273, %v1261
      %v1898 = vpack.c.b16 %v1274, %v1262
      %v1899 = vpack.c.b16 %v1275, %v1263
      %v1900 = vpack.c.b16 %v1276, %v1264
      %v1901 = vpack.c.b16 %v1277, %v1265
      %v1902 = vpack.c.b16 %v1278, %v1266
      %v1903 = vpack.c.b16 %v1279, %v1267
      %v1904 = vpack.c.b16 %v1280, %v1268
      %v1905 = vpack.c.b16 %v1281, %v1269
      %v1906 = vpack.c.b16 %v1294, %v1282
      %v1907 = vpack.c.b16 %v1295, %v1283
      %v1908 = vpack.c.b16 %v1296, %v1284
      %v1909 = vpack.c.b16 %v1297, %v1285
      %v1910 = vpack.c.b16 %v1298, %v1286
      %v1911 = vpack.c.b16 %v1299, %v1287
      %v1912 = vpack.c.b16 %v1300, %v1288
      %v1913 = vpack.c.b16 %v1301, %v1289
      %v1914 = vpack.c.b16 %v1302, %v1290
      %v1915 = vpack.c.b16 %v1303, %v1291
      %v1916 = vpack.c.b16 %v1304, %v1292
      %v1917 = vpack.c.b16 %v1305, %v1293
      %v1918 = vpack.c.b16 %v1318, %v1306
      %v1919 = vpack.c.b16 %v1319, %v1307
      %v1920 = vpack.c.b16 %v1320, %v1308
      %v1921 = vpack.c.b16 %v1321, %v1309
      %v1922 = vpack.c.b16 %v1322, %v1310
      %v1923 = vpack.c.b16 %v1323, %v1311
      %v1924 = vpack.c.b16 %v1324, %v1312
      %v1925 = vpack.c.b16 %v1325, %v1313
      %v1926 = vpack.c.b16 %v1326, %v1314
      %v1927 = vpack.c.b16 %v1327, %v1315
      %v1928 = vpack.c.b16 %v1328, %v1316
      %v1929 = vpack.c.b16 %v1329, %v1317
      %v1930 = vpack.c.b16 %v1342, %v1330
      %v1931 = vpack.c.b16 %v1343, %v1331
      %v1932 = vpack.c.b16 %v1344, %v1332
      %v1933 = vpack.c.b16 %v1345, %v1333
      %v1934 = vpack.c.b16 %v1346, %v1334
      %v1935 = vpack.c.b16 %v1347, %v1335
      %v1936 = vpack.c.b16 %v1348, %v1336
      %v1937 = vpack.c.b16 %v1349, %v1337
      %v1938 = vpack.c.b16 %v1350, %v1338
      %v1939 = vpack.c.b16 %v1351, %v1339
      %v1940 = vpack.c.b16 %v1352, %v1340
      %v1941 = vpack.c.b16 %v1353, %v1341
      %v1942 = vpack.c.b16 %v1366, %v1354
      %v1943 = vpack.c.b16 %v1367, %v1355
      %v1944 = vpack.c.b16 %v1368, %v1356
      %v1945 = vpack.c.b16 %v1369, %v1357
      %v1946 = vpack.c.b16 %v1370, %v1358
      %v1947 = vpack.c.b16 %v1371, %v1359
      %v1948 = vpack.c.b16 %v1372, %v1360
      %v1949 = vpack.c.b16 %v1373, %v1361
      %v1950 = vpack.c.b16 %v1374, %v1362
      %v1951 = vpack.c.b16 %v1375, %v1363
      %v1952 = vpack.c.b16 %v1376, %v1364
      %v1953 = vpack.c.b16 %v1377, %v1365
      %v1954 = vpack.c.b16 %v1390, %v1378
      %v1955 = vpack.c.b16 %v1391, %v1379
      %v1956 = vpack.c.b16 %v1392, %v1380
      %v1957 = vpack.c.b16 %v1393, %v1381
      %v1958 = vpack.c.b16 %v1394, %v1382
      %v1959 = vpack.c.b16 %v1395, %v1383
      %v1960 = vpack.c.b16 %v1396, %v1384
      %v1961 = vpack.c.b16 %v1397, %v1385
      %v1962 = vpack.c.b16 %v1398, %v1386
      %v1963 = vpack.c.b16 %v1399, %v1387
      %v1964 = vpack.c.b16 %v1400, %v1388
      %v1965 = vpack.c.b16 %v1401, %v1389
      %v1966 = vpack.c.b16 %v1414, %v1402
      %v1967 = vpack.c.b16 %v1415, %v1403
      %v1968 = vpack.c.b16 %v1416, %v1404
      %v1969 = vpack.c.b16 %v1417, %v1405
      %v1970 = vpack.c.b16 %v1418, %v1406
      %v1971 = vpack.c.b16 %v1419, %v1407
      %v1972 = vpack.c.b16 %v1420, %v1408
      %v1973 = vpack.c.b16 %v1421, %v1409
      %v1974 = vpack.c.b16 %v1422, %v1410
      %v1975 = vpack.c.b16 %v1423, %v1411
      %v1976 = vpack.c.b16 %v1424, %v1412
      %v1977 = vpack.c.b16 %v1425, %v1413
      %v1978 = vpack.c.b16 %v1438, %v1426
      %v1979 = vpack.c.b16 %v1439, %v1427
      %v1980 = vpack.c.b16 %v1440, %v1428
      %v1981 = vpack.c.b16 %v1441, %v1429
      %v1982 = vpack.c.b16 %v1442, %v1430
      %v1983 = vpack.c.b16 %v1443, %v1431
      %v1984 = vpack.c.b16 %v1444, %v1432
      %v1985 = vpack.c.b16 %v1445, %v1433
      %v1986 = vpack.c.b16 %v1446, %v1434
      %v1987 = vpack.c.b16 %v1447, %v1435
      %v1988 = vpack.c.b16 %v1448, %v1436
      %v1989 = vpack.c.b16 %v1449, %v1437
      %v1990 = vpack.c.b16 %v1462, %v1450
      %v1991 = vpack.c.b16 %v1463, %v1451
      %v1992 = vpack.c.b16 %v1464, %v1452
      %v1993 = vpack.c.b16 %v1465, %v1453
      %v1994 = vpack.c.b16 %v1466, %v1454
      %v1995 = vpack.c.b16 %v1467, %v1455
      %v1996 = vpack.c.b16 %v1468, %v1456
      %v1997 = vpack.c.b16 %v1469, %v1457
      %v1998 = vpack.c.b16 %v1470, %v1458
      %v1999 = vpack.c.b16 %v1471, %v1459
      %v2000 = vpack.c.b16 %v1472, %v1460
      %v2001 = vpack.c.b16 %v1473, %v1461
      %v2002 = vpack.c.b16 %v1486, %v1474
      %v2003 = vpack.c.b16 %v1487, %v1475
      %v2004 = vpack.c.b16 %v1488, %v1476
      %v2005 = vpack.c.b16 %v1489, %v1477
      %v2006 = vpack.c.b16 %v1490, %v1478
      %v2007 = vpack.c.b16 %v1491, %v1479
      %v2008 = vpack.c.b16 %v1492, %v1480
      %v2009 = vpack.c.b16 %v1493, %v1481
      %v2010 = vpack.c.b16 %v1494, %v1482
      %v2011 = vpack.c.b16 %v1495, %v1483
      %v2012 = vpack.c.b16 %v1496, %v1484
      %v2013 = vpack.c.b16 %v1497, %v1485
      %v2014 = vpack.c.b16 %v1510, %v1498
      %v2015 = vpack.c.b16 %v1511, %v1499
      %v2016 = vpack.c.b16 %v1512, %v1500
      %v2017 = vpack.c.b16 %v1513, %v1501
      %v2018 = vpack.c.b16 %v1514, %v1502
      %v2019 = vpack.c.b16 %v1515, %v1503
      %v2020 = vpack.c.b16 %v1516, %v1504
      %v2021 = vpack.c.b16 %v1517, %v1505
      %v2022 = vpack.c.b16 %v1518, %v1506
      %v2023 = vpack.c.b16 %v1519, %v1507
      %v2024 = vpack.c.b16 %v1520, %v1508
      %v2025 = vpack.c.b16 %v1521, %v1509
      %v2026 = vpack.c.b16 %v1534, %v1522
      %v2027 = vpack.c.b16 %v1535, %v1523
      %v2028 = vpack.c.b16 %v1536, %v1524
      %v2029 = vpack.c.b16 %v1537, %v1525
      %v2030 = vpack.c.b16 %v1538, %v1526
      %v2031 = vpack.c.b16 %v1539, %v1527
      %v2032 = vpack.c.b16 %v1540, %v1528
      %v2033 = vpack.c.b16 %v1541, %v1529
      %v2034 = vpack.c.b16 %v1542, %v1530
      %v2035 = vpack.c.b16 %v1543, %v1531
      %v2036 = vpack.c.b16 %v1544, %v1532
      %v2037 = vpack.c.b16 %v1545, %v1533
      %v2038 = vpack.c.b16 %v1558, %v1546
      %v2039 = vpack.c.b16 %v1559, %v1547
      %v2040 = vpack.c.b16 %v1560, %v1548
      %v2041 = vpack.c.b16 %v1561, %v1549
      %v2042 = vpack.c.b16 %v1562, %v1550
      %v2043 = vpack.c.b16 %v1563, %v1551
      %v2044 = vpack.c.b16 %v1564, %v1552
      %v2045 = vpack.c.b16 %v1565, %v1553
      %v2046 = vpack.c.b16 %v1566, %v1554
      %v2047 = vpack.c.b16 %v1567, %v1555
      %v2048 = vpack.c.b16 %v1568, %v1556
      %v2049 = vpack.c.b16 %v1569, %v1557
      %v2050 = vpack.c.b16 %v1582, %v1570
      %v2051 = vpack.c.b16 %v1583, %v1571
      %v2052 = vpack.c.b16 %v1584, %v1572
      %v2053 = vpack.c.b16 %v1585, %v1573
      %v2054 = vpack.c.b16 %v1586, %v1574
      %v2055 = vpack.c.b16 %v1587, %v1575
      %v2056 = vpack.c.b16 %v1588, %v1576
      %v2057 = vpack.c.b16 %v1589, %v1577
      %v2058 = vpack.c.b16 %v1590, %v1578
      %v2059 = vpack.c.b16 %v1591, %v1579
      %v2060 = vpack.c.b16 %v1592, %v1580
      %v2061 = vpack.c.b16 %v1593, %v1581
      %v2062 = vpack.c.b16 %v1606, %v1594
      %v2063 = vpack.c.b16 %v1607, %v1595
      %v2064 = vpack.c.b16 %v1608, %v1596
      %v2065 = vpack.c.b16 %v1609, %v1597
      %v2066 = vpack.c.b16 %v1610, %v1598
      %v2067 = vpack.c.b16 %v1611, %v1599
      %v2068 = vpack.c.b16 %v1612, %v1600
      %v2069 = vpack.c.b16 %v1613, %v1601
      %v2070 = vpack.c.b16 %v1614, %v1602
      %v2071 = vpack.c.b16 %v1615, %v1603
      %v2072 = vpack.c.b16 %v1616, %v1604
      %v2073 = vpack.c.b16 %v1617, %v1605
      %v2074 = vpack.c.b16 %v1630, %v1618
      %v2075 = vpack.c.b16 %v1631, %v1619
      %v2076 = vpack.c.b16 %v1632, %v1620
      %v2077 = vpack.c.b16 %v1633, %v1621
      %v2078 = vpack.c.b16 %v1634, %v1622
      %v2079 = vpack.c.b16 %v1635, %v1623
      %v2080 = vpack.c.b16 %v1636, %v1624
      %v2081 = vpack.c.b16 %v1637, %v1625
      %v2082 = vpack.c.b16 %v1638, %v1626
      %v2083 = vpack.c.b16 %v1639, %v1627
      %v2084 = vpack.c.b16 %v1640, %v1628
      %v2085 = vpack.c.b16 %v1641, %v1629
      %v2086 = vpack.c.b16 %v1654, %v1642
      %v2087 = vpack.c.b16 %v1655, %v1643
      %v2088 = vpack.c.b16 %v1656, %v1644
      %v2089 = vpack.c.b16 %v1657, %v1645
      %v2090 = vpack.c.b16 %v1658, %v1646
      %v2091 = vpack.c.b16 %v1659, %v1647
      %v2092 = vpack.c.b16 %v1660, %v1648
      %v2093 = vpack.c.b16 %v1661, %v1649
      %v2094 = vpack.c.b16 %v1662, %v1650
      %v2095 = vpack.c.b16 %v1663, %v1651
      %v2096 = vpack.c.b16 %v1664, %v1652
      %v2097 = vpack.c.b16 %v1665, %v1653
      %v2098 = vpack.c.b16 %v1678, %v1666
      %v2099 = vpack.c.b16 %v1679, %v1667
      %v2100 = vpack.c.b16 %v1680, %v1668
      %v2101 = vpack.c.b16 %v1681, %v1669
      %v2102 = vpack.c.b16 %v1682, %v1670
      %v2103 = vpack.c.b16 %v1683, %v1671
      %v2104 = vpack.c.b16 %v1684, %v1672
      %v2105 = vpack.c.b16 %v1685, %v1673
      %v2106 = vpack.c.b16 %v1686, %v1674
      %v2107 = vpack.c.b16 %v1687, %v1675
      %v2108 = vpack.c.b16 %v1688, %v1676
      %v2109 = vpack.c.b16 %v1689, %v1677
      %v2110 = vpack.c.b16 %v1702, %v1690
      %v2111 = vpack.c.b16 %v1703, %v1691
      %v2112 = vpack.c.b16 %v1704, %v1692
      %v2113 = vpack.c.b16 %v1705, %v1693
      %v2114 = vpack.c.b16 %v1706, %v1694
      %v2115 = vpack.c.b16 %v1707, %v1695
      %v2116 = vpack.c.b16 %v1708, %v1696
      %v2117 = vpack.c.b16 %v1709, %v1697
      %v2118 = vpack.c.b16 %v1710, %v1698
      %v2119 = vpack.c.b16 %v1711, %v1699
      %v2120 = vpack.c.b16 %v1712, %v1700
      %v2121 = vpack.c.b16 %v1713, %v1701
      %v2122 = vpack.c.b16 %v1726, %v1714
      %v2123 = vpack.c.b16 %v1727, %v1715
      %v2124 = vpack.c.b16 %v1728, %v1716
      %v2125 = vpack.c.b16 %v1729, %v1717
      %v2126 = vpack.c.b16 %v1730, %v1718
      %v2127 = vpack.c.b16 %v1731, %v1719
      %v2128 = vpack.c.b16 %v1732, %v1720
      %v2129 = vpack.c.b16 %v1733, %v1721
      %v2130 = vpack.c.b16 %v1734, %v1722
      %v2131 = vpack.c.b16 %v1735, %v1723
      %v2132 = vpack.c.b16 %v1736, %v1724
      %v2133 = vpack.c.b16 %v1737, %v1725
      %v2134 = vpack.c.b16 %v1750, %v1738
      %v2135 = vpack.c.b16 %v1751, %v1739
      %v2136 = vpack.c.b16 %v1752, %v1740
      %v2137 = vpack.c.b16 %v1753, %v1741
      %v2138 = vpack.c.b16 %v1754, %v1742
      %v2139 = vpack.c.b16 %v1755, %v1743
      %v2140 = vpack.c.b16 %v1756, %v1744
      %v2141 = vpack.c.b16 %v1757, %v1745
      %v2142 = vpack.c.b16 %v1758, %v1746
      %v2143 = vpack.c.b16 %v1759, %v1747
      %v2144 = vpack.c.b16 %v1760, %v1748
      %v2145 = vpack.c.b16 %v1761, %v1749
      %2530 = vmatprep.subr.bf16.mxu0 %v1763
      %2531 = vmatpush1.bf16.msra.mxu0 %v1762
      %2532 = vmatprep.subr.bf16.mxu0 %v1775
      %2533 = vmatpush1.bf16.msra.mxu0 %v1774
      %2534 = vmatprep.subr.bf16.mxu0 %v1787
      %2535 = vmatpush1.bf16.msra.mxu0 %v1786
      %2536 = vmatprep.subr.bf16.mxu0 %v1799
      %2537 = vmatpush1.bf16.msra.mxu0 %v1798
      %2538 = vmatprep.subr.bf16.mxu0 %v1811
      %2539 = vmatpush1.bf16.msra.mxu0 %v1810
      %2540 = vmatprep.subr.bf16.mxu0 %v1823
      %2541 = vmatpush1.bf16.msra.mxu0 %v1822
      %2542 = vmatprep.subr.bf16.mxu0 %v1835
      %2543 = vmatpush1.bf16.msra.mxu0 %v1834
      %2544 = vmatprep.subr.bf16.mxu0 %v1847
      %2545 = vmatpush1.bf16.msra.mxu0 %v1846
      %2546 = vmatprep.subr.bf16.mxu0 %v1859
      %2547 = vmatpush1.bf16.msra.mxu0 %v1858
      %2548 = vmatprep.subr.bf16.mxu0 %v1871
      %2549 = vmatpush1.bf16.msra.mxu0 %v1870
      %2550 = vmatprep.subr.bf16.mxu0 %v1883
      %2551 = vmatpush1.bf16.msra.mxu0 %v1882
      %2552 = vmatprep.subr.bf16.mxu0 %v1895
      %2553 = vmatpush1.bf16.msra.mxu0 %v1894
      %2554 = vmatprep.subr.bf16.mxu0 %v1907
      %2555 = vmatpush1.bf16.msra.mxu0 %v1906
      %2556 = vmatprep.subr.bf16.mxu0 %v1919
      %2557 = vmatpush1.bf16.msra.mxu0 %v1918
      %2558 = vmatprep.subr.bf16.mxu0 %v1931
      %2559 = vmatpush1.bf16.msra.mxu0 %v1930
      %2560 = vmatprep.subr.bf16.mxu0 %v1943
      %2561 = vmatpush1.bf16.msra.mxu0 %v1942
      %2562 = vmatprep.mubr.bf16.mxu0 %v221
      %2563 = vmatmul.mubr.bf16.gmra.mrb[0].mxu0 %v220
      %v2564 = vpop.f32.mrb[0].mxu0
      %v2565 = vadd.f32 0.0, %v2564
      %v2566 = vpop.f32.mrb[0].mxu0
      %v2567 = vadd.f32 0.0, %v2566
      %v2568 = vpop.f32.mrb[0].mxu0
      %v2569 = vpop.f32.mrb[0].mxu0
      %2570 = vdwg.mxu0
      %2571 = vmatprep.subr.bf16.mxu0 %v1955
      %2572 = vmatpush1.bf16.msra.mxu0 %v1954
      %2573 = vmatprep.subr.bf16.mxu0 %v1967
      %2574 = vmatpush1.bf16.msra.mxu0 %v1966
      %2575 = vmatprep.subr.bf16.mxu0 %v1979
      %2576 = vmatpush1.bf16.msra.mxu0 %v1978
      %2577 = vmatprep.subr.bf16.mxu0 %v1991
      %2578 = vmatpush1.bf16.msra.mxu0 %v1990
      %2579 = vmatprep.subr.bf16.mxu0 %v2003
      %2580 = vmatpush1.bf16.msra.mxu0 %v2002
      %2581 = vmatprep.subr.bf16.mxu0 %v2015
      %2582 = vmatpush1.bf16.msra.mxu0 %v2014
      %2583 = vmatprep.subr.bf16.mxu0 %v2027
      %2584 = vmatpush1.bf16.msra.mxu0 %v2026
      %2585 = vmatprep.subr.bf16.mxu0 %v2039
      %2586 = vmatpush1.bf16.msra.mxu0 %v2038
      %2587 = vmatprep.subr.bf16.mxu0 %v2051
      %2588 = vmatpush1.bf16.msra.mxu0 %v2050
      %2589 = vmatprep.subr.bf16.mxu0 %v2063
      %2590 = vmatpush1.bf16.msra.mxu0 %v2062
      %2591 = vmatprep.subr.bf16.mxu0 %v2075
      %2592 = vmatpush1.bf16.msra.mxu0 %v2074
      %2593 = vmatprep.subr.bf16.mxu0 %v2087
      %2594 = vmatpush1.bf16.msra.mxu0 %v2086
      %2595 = vmatprep.subr.bf16.mxu0 %v2099
      %2596 = vmatpush1.bf16.msra.mxu0 %v2098
      %2597 = vmatprep.subr.bf16.mxu0 %v2111
      %2598 = vmatpush1.bf16.msra.mxu0 %v2110
      %2599 = vmatprep.subr.bf16.mxu0 %v2123
      %2600 = vmatpush1.bf16.msra.mxu0 %v2122
      %2601 = vmatprep.subr.bf16.mxu0 %v2135
      %2602 = vmatpush1.bf16.msra.mxu0 %v2134
      %2603 = vmatprep.mubr.bf16.mxu0 %v223
      %2604 = vmatmul.mubr.bf16.gmra.mrb[0].mxu0 %v222
      %v2605 = vpop.f32.mrb[0].mxu0
      %v2606 = vadd.f32 %v2565, %v2605
      %v2607 = vpop.f32.mrb[0].mxu0
      %v2608 = vadd.f32 %v2567, %v2607
      %v2609 = vpop.f32.mrb[0].mxu0
      %v2610 = vpop.f32.mrb[0].mxu0
      %2611 = vdwg.mxu0
      %2612 = vmatprep.subr.bf16.mxu0 %v1765
      %2613 = vmatpush1.bf16.msra.mxu0 %v1764
      %2614 = vmatprep.subr.bf16.mxu0 %v1777
      %2615 = vmatpush1.bf16.msra.mxu0 %v1776
      %2616 = vmatprep.subr.bf16.mxu0 %v1789
      %2617 = vmatpush1.bf16.msra.mxu0 %v1788
      %2618 = vmatprep.subr.bf16.mxu0 %v1801
      %2619 = vmatpush1.bf16.msra.mxu0 %v1800
      %2620 = vmatprep.subr.bf16.mxu0 %v1813
      %2621 = vmatpush1.bf16.msra.mxu0 %v1812
      %2622 = vmatprep.subr.bf16.mxu0 %v1825
      %2623 = vmatpush1.bf16.msra.mxu0 %v1824
      %2624 = vmatprep.subr.bf16.mxu0 %v1837
      %2625 = vmatpush1.bf16.msra.mxu0 %v1836
      %2626 = vmatprep.subr.bf16.mxu0 %v1849
      %2627 = vmatpush1.bf16.msra.mxu0 %v1848
      %2628 = vmatprep.subr.bf16.mxu0 %v1861
      %2629 = vmatpush1.bf16.msra.mxu0 %v1860
      %2630 = vmatprep.subr.bf16.mxu0 %v1873
      %2631 = vmatpush1.bf16.msra.mxu0 %v1872
      %2632 = vmatprep.subr.bf16.mxu0 %v1885
      %2633 = vmatpush1.bf16.msra.mxu0 %v1884
      %2634 = vmatprep.subr.bf16.mxu0 %v1897
      %2635 = vmatpush1.bf16.msra.mxu0 %v1896
      %2636 = vmatprep.subr.bf16.mxu0 %v1909
      %2637 = vmatpush1.bf16.msra.mxu0 %v1908
      %2638 = vmatprep.subr.bf16.mxu0 %v1921
      %2639 = vmatpush1.bf16.msra.mxu0 %v1920
      %2640 = vmatprep.subr.bf16.mxu0 %v1933
      %2641 = vmatpush1.bf16.msra.mxu0 %v1932
      %2642 = vmatprep.subr.bf16.mxu0 %v1945
      %2643 = vmatpush1.bf16.msra.mxu0 %v1944
      %2644 = vmatprep.mubr.bf16.mxu0 %v221
      %2645 = vmatmul.mubr.bf16.gmra.mrb[0].mxu0 %v220
      %v2646 = vpop.f32.mrb[0].mxu0
      %v2647 = vadd.f32 0.0, %v2646
      %v2648 = vpop.f32.mrb[0].mxu0
      %v2649 = vadd.f32 0.0, %v2648
      %v2650 = vpop.f32.mrb[0].mxu0
      %v2651 = vpop.f32.mrb[0].mxu0
      %2652 = vdwg.mxu0
      %2653 = vmatprep.subr.bf16.mxu0 %v1957
      %2654 = vmatpush1.bf16.msra.mxu0 %v1956
      %2655 = vmatprep.subr.bf16.mxu0 %v1969
      %2656 = vmatpush1.bf16.msra.mxu0 %v1968
      %2657 = vmatprep.subr.bf16.mxu0 %v1981
      %2658 = vmatpush1.bf16.msra.mxu0 %v1980
      %2659 = vmatprep.subr.bf16.mxu0 %v1993
      %2660 = vmatpush1.bf16.msra.mxu0 %v1992
      %2661 = vmatprep.subr.bf16.mxu0 %v2005
      %2662 = vmatpush1.bf16.msra.mxu0 %v2004
      %2663 = vmatprep.subr.bf16.mxu0 %v2017
      %2664 = vmatpush1.bf16.msra.mxu0 %v2016
      %2665 = vmatprep.subr.bf16.mxu0 %v2029
      %2666 = vmatpush1.bf16.msra.mxu0 %v2028
      %2667 = vmatprep.subr.bf16.mxu0 %v2041
      %2668 = vmatpush1.bf16.msra.mxu0 %v2040
      %2669 = vmatprep.subr.bf16.mxu0 %v2053
      %2670 = vmatpush1.bf16.msra.mxu0 %v2052
      %2671 = vmatprep.subr.bf16.mxu0 %v2065
      %2672 = vmatpush1.bf16.msra.mxu0 %v2064
      %2673 = vmatprep.subr.bf16.mxu0 %v2077
      %2674 = vmatpush1.bf16.msra.mxu0 %v2076
      %2675 = vmatprep.subr.bf16.mxu0 %v2089
      %2676 = vmatpush1.bf16.msra.mxu0 %v2088
      %2677 = vmatprep.subr.bf16.mxu0 %v2101
      %2678 = vmatpush1.bf16.msra.mxu0 %v2100
      %2679 = vmatprep.subr.bf16.mxu0 %v2113
      %2680 = vmatpush1.bf16.msra.mxu0 %v2112
      %2681 = vmatprep.subr.bf16.mxu0 %v2125
      %2682 = vmatpush1.bf16.msra.mxu0 %v2124
      %2683 = vmatprep.subr.bf16.mxu0 %v2137
      %2684 = vmatpush1.bf16.msra.mxu0 %v2136
      %2685 = vmatprep.mubr.bf16.mxu0 %v223
      %2686 = vmatmul.mubr.bf16.gmra.mrb[0].mxu0 %v222
      %v2687 = vpop.f32.mrb[0].mxu0
      %v2688 = vadd.f32 %v2647, %v2687
      %v2689 = vpop.f32.mrb[0].mxu0
      %v2690 = vadd.f32 %v2649, %v2689
      %v2691 = vpop.f32.mrb[0].mxu0
      %v2692 = vpop.f32.mrb[0].mxu0
      %2693 = vdwg.mxu0
      %2694 = vmatprep.subr.bf16.mxu0 %v1767
      %2695 = vmatpush1.bf16.msra.mxu0 %v1766
      %2696 = vmatprep.subr.bf16.mxu0 %v1779
      %2697 = vmatpush1.bf16.msra.mxu0 %v1778
      %2698 = vmatprep.subr.bf16.mxu0 %v1791
      %2699 = vmatpush1.bf16.msra.mxu0 %v1790
      %2700 = vmatprep.subr.bf16.mxu0 %v1803
      %2701 = vmatpush1.bf16.msra.mxu0 %v1802
      %2702 = vmatprep.subr.bf16.mxu0 %v1815
      %2703 = vmatpush1.bf16.msra.mxu0 %v1814
      %2704 = vmatprep.subr.bf16.mxu0 %v1827
      %2705 = vmatpush1.bf16.msra.mxu0 %v1826
      %2706 = vmatprep.subr.bf16.mxu0 %v1839
      %2707 = vmatpush1.bf16.msra.mxu0 %v1838
      %2708 = vmatprep.subr.bf16.mxu0 %v1851
      %2709 = vmatpush1.bf16.msra.mxu0 %v1850
      %2710 = vmatprep.subr.bf16.mxu0 %v1863
      %2711 = vmatpush1.bf16.msra.mxu0 %v1862
      %2712 = vmatprep.subr.bf16.mxu0 %v1875
      %2713 = vmatpush1.bf16.msra.mxu0 %v1874
      %2714 = vmatprep.subr.bf16.mxu0 %v1887
      %2715 = vmatpush1.bf16.msra.mxu0 %v1886
      %2716 = vmatprep.subr.bf16.mxu0 %v1899
      %2717 = vmatpush1.bf16.msra.mxu0 %v1898
      %2718 = vmatprep.subr.bf16.mxu0 %v1911
      %2719 = vmatpush1.bf16.msra.mxu0 %v1910
      %2720 = vmatprep.subr.bf16.mxu0 %v1923
      %2721 = vmatpush1.bf16.msra.mxu0 %v1922
      %2722 = vmatprep.subr.bf16.mxu0 %v1935
      %2723 = vmatpush1.bf16.msra.mxu0 %v1934
      %2724 = vmatprep.subr.bf16.mxu0 %v1947
      %2725 = vmatpush1.bf16.msra.mxu0 %v1946
      %2726 = vmatprep.mubr.bf16.mxu0 %v221
      %2727 = vmatmul.mubr.bf16.gmra.mrb[0].mxu0 %v220
      %v2728 = vpop.f32.mrb[0].mxu0
      %v2729 = vadd.f32 0.0, %v2728
      %v2730 = vpop.f32.mrb[0].mxu0
      %v2731 = vadd.f32 0.0, %v2730
      %v2732 = vpop.f32.mrb[0].mxu0
      %v2733 = vpop.f32.mrb[0].mxu0
      %2734 = vdwg.mxu0
      %2735 = vmatprep.subr.bf16.mxu0 %v1959
      %2736 = vmatpush1.bf16.msra.mxu0 %v1958
      %2737 = vmatprep.subr.bf16.mxu0 %v1971
      %2738 = vmatpush1.bf16.msra.mxu0 %v1970
      %2739 = vmatprep.subr.bf16.mxu0 %v1983
      %2740 = vmatpush1.bf16.msra.mxu0 %v1982
      %2741 = vmatprep.subr.bf16.mxu0 %v1995
      %2742 = vmatpush1.bf16.msra.mxu0 %v1994
      %2743 = vmatprep.subr.bf16.mxu0 %v2007
      %2744 = vmatpush1.bf16.msra.mxu0 %v2006
      %2745 = vmatprep.subr.bf16.mxu0 %v2019
      %2746 = vmatpush1.bf16.msra.mxu0 %v2018
      %2747 = vmatprep.subr.bf16.mxu0 %v2031
      %2748 = vmatpush1.bf16.msra.mxu0 %v2030
      %2749 = vmatprep.subr.bf16.mxu0 %v2043
      %2750 = vmatpush1.bf16.msra.mxu0 %v2042
      %2751 = vmatprep.subr.bf16.mxu0 %v2055
      %2752 = vmatpush1.bf16.msra.mxu0 %v2054
      %2753 = vmatprep.subr.bf16.mxu0 %v2067
      %2754 = vmatpush1.bf16.msra.mxu0 %v2066
      %2755 = vmatprep.subr.bf16.mxu0 %v2079
      %2756 = vmatpush1.bf16.msra.mxu0 %v2078
      %2757 = vmatprep.subr.bf16.mxu0 %v2091
      %2758 = vmatpush1.bf16.msra.mxu0 %v2090
      %2759 = vmatprep.subr.bf16.mxu0 %v2103
      %2760 = vmatpush1.bf16.msra.mxu0 %v2102
      %2761 = vmatprep.subr.bf16.mxu0 %v2115
      %2762 = vmatpush1.bf16.msra.mxu0 %v2114
      %2763 = vmatprep.subr.bf16.mxu0 %v2127
      %2764 = vmatpush1.bf16.msra.mxu0 %v2126
      %2765 = vmatprep.subr.bf16.mxu0 %v2139
      %2766 = vmatpush1.bf16.msra.mxu0 %v2138
      %2767 = vmatprep.mubr.bf16.mxu0 %v223
      %2768 = vmatmul.mubr.bf16.gmra.mrb[0].mxu0 %v222
      %v2769 = vpop.f32.mrb[0].mxu0
      %v2770 = vadd.f32 %v2729, %v2769
      %v2771 = vpop.f32.mrb[0].mxu0
      %v2772 = vadd.f32 %v2731, %v2771
      %v2773 = vpop.f32.mrb[0].mxu0
      %v2774 = vpop.f32.mrb[0].mxu0
      %2775 = vdwg.mxu0
      %2776 = vmatprep.subr.bf16.mxu0 %v1769
      %2777 = vmatpush1.bf16.msra.mxu0 %v1768
      %2778 = vmatprep.subr.bf16.mxu0 %v1781
      %2779 = vmatpush1.bf16.msra.mxu0 %v1780
      %2780 = vmatprep.subr.bf16.mxu0 %v1793
      %2781 = vmatpush1.bf16.msra.mxu0 %v1792
      %2782 = vmatprep.subr.bf16.mxu0 %v1805
      %2783 = vmatpush1.bf16.msra.mxu0 %v1804
      %2784 = vmatprep.subr.bf16.mxu0 %v1817
      %2785 = vmatpush1.bf16.msra.mxu0 %v1816
      %2786 = vmatprep.subr.bf16.mxu0 %v1829
      %2787 = vmatpush1.bf16.msra.mxu0 %v1828
      %2788 = vmatprep.subr.bf16.mxu0 %v1841
      %2789 = vmatpush1.bf16.msra.mxu0 %v1840
      %2790 = vmatprep.subr.bf16.mxu0 %v1853
      %2791 = vmatpush1.bf16.msra.mxu0 %v1852
      %2792 = vmatprep.subr.bf16.mxu0 %v1865
      %2793 = vmatpush1.bf16.msra.mxu0 %v1864
      %2794 = vmatprep.subr.bf16.mxu0 %v1877
      %2795 = vmatpush1.bf16.msra.mxu0 %v1876
      %2796 = vmatprep.subr.bf16.mxu0 %v1889
      %2797 = vmatpush1.bf16.msra.mxu0 %v1888
      %2798 = vmatprep.subr.bf16.mxu0 %v1901
      %2799 = vmatpush1.bf16.msra.mxu0 %v1900
      %2800 = vmatprep.subr.bf16.mxu0 %v1913
      %2801 = vmatpush1.bf16.msra.mxu0 %v1912
      %2802 = vmatprep.subr.bf16.mxu0 %v1925
      %2803 = vmatpush1.bf16.msra.mxu0 %v1924
      %2804 = vmatprep.subr.bf16.mxu0 %v1937
      %2805 = vmatpush1.bf16.msra.mxu0 %v1936
      %2806 = vmatprep.subr.bf16.mxu0 %v1949
      %2807 = vmatpush1.bf16.msra.mxu0 %v1948
      %2808 = vmatprep.mubr.bf16.mxu0 %v221
      %2809 = vmatmul.mubr.bf16.gmra.mrb[0].mxu0 %v220
      %v2810 = vpop.f32.mrb[0].mxu0
      %v2811 = vadd.f32 0.0, %v2810
      %v2812 = vpop.f32.mrb[0].mxu0
      %v2813 = vadd.f32 0.0, %v2812
      %v2814 = vpop.f32.mrb[0].mxu0
      %v2815 = vpop.f32.mrb[0].mxu0
      %2816 = vdwg.mxu0
      %2817 = vmatprep.subr.bf16.mxu0 %v1961
      %2818 = vmatpush1.bf16.msra.mxu0 %v1960
      %2819 = vmatprep.subr.bf16.mxu0 %v1973
      %2820 = vmatpush1.bf16.msra.mxu0 %v1972
      %2821 = vmatprep.subr.bf16.mxu0 %v1985
      %2822 = vmatpush1.bf16.msra.mxu0 %v1984
      %2823 = vmatprep.subr.bf16.mxu0 %v1997
      %2824 = vmatpush1.bf16.msra.mxu0 %v1996
      %2825 = vmatprep.subr.bf16.mxu0 %v2009
      %2826 = vmatpush1.bf16.msra.mxu0 %v2008
      %2827 = vmatprep.subr.bf16.mxu0 %v2021
      %2828 = vmatpush1.bf16.msra.mxu0 %v2020
      %2829 = vmatprep.subr.bf16.mxu0 %v2033
      %2830 = vmatpush1.bf16.msra.mxu0 %v2032
      %2831 = vmatprep.subr.bf16.mxu0 %v2045
      %2832 = vmatpush1.bf16.msra.mxu0 %v2044
      %2833 = vmatprep.subr.bf16.mxu0 %v2057
      %2834 = vmatpush1.bf16.msra.mxu0 %v2056
      %2835 = vmatprep.subr.bf16.mxu0 %v2069
      %2836 = vmatpush1.bf16.msra.mxu0 %v2068
      %2837 = vmatprep.subr.bf16.mxu0 %v2081
      %2838 = vmatpush1.bf16.msra.mxu0 %v2080
      %2839 = vmatprep.subr.bf16.mxu0 %v2093
      %2840 = vmatpush1.bf16.msra.mxu0 %v2092
      %2841 = vmatprep.subr.bf16.mxu0 %v2105
      %2842 = vmatpush1.bf16.msra.mxu0 %v2104
      %2843 = vmatprep.subr.bf16.mxu0 %v2117
      %2844 = vmatpush1.bf16.msra.mxu0 %v2116
      %2845 = vmatprep.subr.bf16.mxu0 %v2129
      %2846 = vmatpush1.bf16.msra.mxu0 %v2128
      %2847 = vmatprep.subr.bf16.mxu0 %v2141
      %2848 = vmatpush1.bf16.msra.mxu0 %v2140
      %2849 = vmatprep.mubr.bf16.mxu0 %v223
      %2850 = vmatmul.mubr.bf16.gmra.mrb[0].mxu0 %v222
      %v2851 = vpop.f32.mrb[0].mxu0
      %v2852 = vadd.f32 %v2811, %v2851
      %v2853 = vpop.f32.mrb[0].mxu0
      %v2854 = vadd.f32 %v2813, %v2853
      %v2855 = vpop.f32.mrb[0].mxu0
      %v2856 = vpop.f32.mrb[0].mxu0
      %2857 = vdwg.mxu0
      %2858 = vmatprep.subr.bf16.mxu0 %v1771
      %2859 = vmatpush1.bf16.msra.mxu0 %v1770
      %2860 = vmatprep.subr.bf16.mxu0 %v1783
      %2861 = vmatpush1.bf16.msra.mxu0 %v1782
      %2862 = vmatprep.subr.bf16.mxu0 %v1795
      %2863 = vmatpush1.bf16.msra.mxu0 %v1794
      %2864 = vmatprep.subr.bf16.mxu0 %v1807
      %2865 = vmatpush1.bf16.msra.mxu0 %v1806
      %2866 = vmatprep.subr.bf16.mxu0 %v1819
      %2867 = vmatpush1.bf16.msra.mxu0 %v1818
      %2868 = vmatprep.subr.bf16.mxu0 %v1831
      %2869 = vmatpush1.bf16.msra.mxu0 %v1830
      %2870 = vmatprep.subr.bf16.mxu0 %v1843
      %2871 = vmatpush1.bf16.msra.mxu0 %v1842
      %2872 = vmatprep.subr.bf16.mxu0 %v1855
      %2873 = vmatpush1.bf16.msra.mxu0 %v1854
      %2874 = vmatprep.subr.bf16.mxu0 %v1867
      %2875 = vmatpush1.bf16.msra.mxu0 %v1866
      %2876 = vmatprep.subr.bf16.mxu0 %v1879
      %2877 = vmatpush1.bf16.msra.mxu0 %v1878
      %2878 = vmatprep.subr.bf16.mxu0 %v1891
      %2879 = vmatpush1.bf16.msra.mxu0 %v1890
      %2880 = vmatprep.subr.bf16.mxu0 %v1903
      %2881 = vmatpush1.bf16.msra.mxu0 %v1902
      %2882 = vmatprep.subr.bf16.mxu0 %v1915
      %2883 = vmatpush1.bf16.msra.mxu0 %v1914
      %2884 = vmatprep.subr.bf16.mxu0 %v1927
      %2885 = vmatpush1.bf16.msra.mxu0 %v1926
      %2886 = vmatprep.subr.bf16.mxu0 %v1939
      %2887 = vmatpush1.bf16.msra.mxu0 %v1938
      %2888 = vmatprep.subr.bf16.mxu0 %v1951
      %2889 = vmatpush1.bf16.msra.mxu0 %v1950
      %2890 = vmatprep.mubr.bf16.mxu0 %v221
      %2891 = vmatmul.mubr.bf16.gmra.mrb[0].mxu0 %v220
      %v2892 = vpop.f32.mrb[0].mxu0
      %v2893 = vadd.f32 0.0, %v2892
      %v2894 = vpop.f32.mrb[0].mxu0
      %v2895 = vadd.f32 0.0, %v2894
      %v2896 = vpop.f32.mrb[0].mxu0
      %v2897 = vpop.f32.mrb[0].mxu0
      %2898 = vdwg.mxu0
      %2899 = vmatprep.subr.bf16.mxu0 %v1963
      %2900 = vmatpush1.bf16.msra.mxu0 %v1962
      %2901 = vmatprep.subr.bf16.mxu0 %v1975
      %2902 = vmatpush1.bf16.msra.mxu0 %v1974
      %2903 = vmatprep.subr.bf16.mxu0 %v1987
      %2904 = vmatpush1.bf16.msra.mxu0 %v1986
      %2905 = vmatprep.subr.bf16.mxu0 %v1999
      %2906 = vmatpush1.bf16.msra.mxu0 %v1998
      %2907 = vmatprep.subr.bf16.mxu0 %v2011
      %2908 = vmatpush1.bf16.msra.mxu0 %v2010
      %2909 = vmatprep.subr.bf16.mxu0 %v2023
      %2910 = vmatpush1.bf16.msra.mxu0 %v2022
      %2911 = vmatprep.subr.bf16.mxu0 %v2035
      %2912 = vmatpush1.bf16.msra.mxu0 %v2034
      %2913 = vmatprep.subr.bf16.mxu0 %v2047
      %2914 = vmatpush1.bf16.msra.mxu0 %v2046
      %2915 = vmatprep.subr.bf16.mxu0 %v2059
      %2916 = vmatpush1.bf16.msra.mxu0 %v2058
      %2917 = vmatprep.subr.bf16.mxu0 %v2071
      %2918 = vmatpush1.bf16.msra.mxu0 %v2070
      %2919 = vmatprep.subr.bf16.mxu0 %v2083
      %2920 = vmatpush1.bf16.msra.mxu0 %v2082
      %2921 = vmatprep.subr.bf16.mxu0 %v2095
      %2922 = vmatpush1.bf16.msra.mxu0 %v2094
      %2923 = vmatprep.subr.bf16.mxu0 %v2107
      %2924 = vmatpush1.bf16.msra.mxu0 %v2106
      %2925 = vmatprep.subr.bf16.mxu0 %v2119
      %2926 = vmatpush1.bf16.msra.mxu0 %v2118
      %2927 = vmatprep.subr.bf16.mxu0 %v2131
      %2928 = vmatpush1.bf16.msra.mxu0 %v2130
      %2929 = vmatprep.subr.bf16.mxu0 %v2143
      %2930 = vmatpush1.bf16.msra.mxu0 %v2142
      %2931 = vmatprep.mubr.bf16.mxu0 %v223
      %2932 = vmatmul.mubr.bf16.gmra.mrb[0].mxu0 %v222
      %v2933 = vpop.f32.mrb[0].mxu0
      %v2934 = vadd.f32 %v2893, %v2933
      %v2935 = vpop.f32.mrb[0].mxu0
      %v2936 = vadd.f32 %v2895, %v2935
      %v2937 = vpop.f32.mrb[0].mxu0
      %v2938 = vpop.f32.mrb[0].mxu0
      %2939 = vdwg.mxu0
      %2940 = vmatprep.subr.bf16.mxu0 %v1773
      %2941 = vmatpush1.bf16.msra.mxu0 %v1772
      %2942 = vmatprep.subr.bf16.mxu0 %v1785
      %2943 = vmatpush1.bf16.msra.mxu0 %v1784
      %2944 = vmatprep.subr.bf16.mxu0 %v1797
      %2945 = vmatpush1.bf16.msra.mxu0 %v1796
      %2946 = vmatprep.subr.bf16.mxu0 %v1809
      %2947 = vmatpush1.bf16.msra.mxu0 %v1808
      %2948 = vmatprep.subr.bf16.mxu0 %v1821
      %2949 = vmatpush1.bf16.msra.mxu0 %v1820
      %2950 = vmatprep.subr.bf16.mxu0 %v1833
      %2951 = vmatpush1.bf16.msra.mxu0 %v1832
      %2952 = vmatprep.subr.bf16.mxu0 %v1845
      %2953 = vmatpush1.bf16.msra.mxu0 %v1844
      %2954 = vmatprep.subr.bf16.mxu0 %v1857
      %2955 = vmatpush1.bf16.msra.mxu0 %v1856
      %2956 = vmatprep.subr.bf16.mxu0 %v1869
      %2957 = vmatpush1.bf16.msra.mxu0 %v1868
      %2958 = vmatprep.subr.bf16.mxu0 %v1881
      %2959 = vmatpush1.bf16.msra.mxu0 %v1880
      %2960 = vmatprep.subr.bf16.mxu0 %v1893
      %2961 = vmatpush1.bf16.msra.mxu0 %v1892
      %2962 = vmatprep.subr.bf16.mxu0 %v1905
      %2963 = vmatpush1.bf16.msra.mxu0 %v1904
      %2964 = vmatprep.subr.bf16.mxu0 %v1917
      %2965 = vmatpush1.bf16.msra.mxu0 %v1916
      %2966 = vmatprep.subr.bf16.mxu0 %v1929
      %2967 = vmatpush1.bf16.msra.mxu0 %v1928
      %2968 = vmatprep.subr.bf16.mxu0 %v1941
      %2969 = vmatpush1.bf16.msra.mxu0 %v1940
      %2970 = vmatprep.subr.bf16.mxu0 %v1953
      %2971 = vmatpush1.bf16.msra.mxu0 %v1952
      %2972 = vmatprep.mubr.bf16.mxu0 %v221
      %2973 = vmatmul.mubr.bf16.gmra.mrb[0].mxu0 %v220
      %v2974 = vpop.f32.mrb[0].mxu0
      %v2975 = vadd.f32 0.0, %v2974
      %v2976 = vpop.f32.mrb[0].mxu0
      %v2977 = vadd.f32 0.0, %v2976
      %v2978 = vpop.f32.mrb[0].mxu0
      %v2979 = vpop.f32.mrb[0].mxu0
      %2980 = vdwg.mxu0
      %2981 = vmatprep.subr.bf16.mxu0 %v1965
      %2982 = vmatpush1.bf16.msra.mxu0 %v1964
      %2983 = vmatprep.subr.bf16.mxu0 %v1977
      %2984 = vmatpush1.bf16.msra.mxu0 %v1976
      %2985 = vmatprep.subr.bf16.mxu0 %v1989
      %2986 = vmatpush1.bf16.msra.mxu0 %v1988
      %2987 = vmatprep.subr.bf16.mxu0 %v2001
      %2988 = vmatpush1.bf16.msra.mxu0 %v2000
      %2989 = vmatprep.subr.bf16.mxu0 %v2013
      %2990 = vmatpush1.bf16.msra.mxu0 %v2012
      %2991 = vmatprep.subr.bf16.mxu0 %v2025
      %2992 = vmatpush1.bf16.msra.mxu0 %v2024
      %2993 = vmatprep.subr.bf16.mxu0 %v2037
      %2994 = vmatpush1.bf16.msra.mxu0 %v2036
      %2995 = vmatprep.subr.bf16.mxu0 %v2049
      %2996 = vmatpush1.bf16.msra.mxu0 %v2048
      %2997 = vmatprep.subr.bf16.mxu0 %v2061
      %2998 = vmatpush1.bf16.msra.mxu0 %v2060
      %2999 = vmatprep.subr.bf16.mxu0 %v2073
      %3000 = vmatpush1.bf16.msra.mxu0 %v2072
      %3001 = vmatprep.subr.bf16.mxu0 %v2085
      %3002 = vmatpush1.bf16.msra.mxu0 %v2084
      %3003 = vmatprep.subr.bf16.mxu0 %v2097
      %3004 = vmatpush1.bf16.msra.mxu0 %v2096
      %3005 = vmatprep.subr.bf16.mxu0 %v2109
      %3006 = vmatpush1.bf16.msra.mxu0 %v2108
      %3007 = vmatprep.subr.bf16.mxu0 %v2121
      %3008 = vmatpush1.bf16.msra.mxu0 %v2120
      %3009 = vmatprep.subr.bf16.mxu0 %v2133
      %3010 = vmatpush1.bf16.msra.mxu0 %v2132
      %3011 = vmatprep.subr.bf16.mxu0 %v2145
      %3012 = vmatpush1.bf16.msra.mxu0 %v2144
      %3013 = vmatprep.mubr.bf16.mxu0 %v223
      %3014 = vmatmul.mubr.bf16.gmra.mrb[0].mxu0 %v222
      %v3015 = vpop.f32.mrb[0].mxu0
      %v3016 = vadd.f32 %v2975, %v3015
      %v3017 = vpop.f32.mrb[0].mxu0
      %v3018 = vadd.f32 %v2977, %v3017
      %v3019 = vpop.f32.mrb[0].mxu0
      %v3020 = vpop.f32.mrb[0].mxu0
      %3021 = vdwg.mxu0
      %v3022 = vld [vmem:[%s197] sm:$0xff]
      %v3023 = vld [vmem:[%s197 + $0x8] sm:$0xff]
      %v3024 = vld [vmem:[%s197 + $0x10] sm:$0xff]
      %v3025 = vld [vmem:[%s197 + $0x18] sm:$0xff]
      %v3026 = vld [vmem:[%s197 + $0x20] sm:$0x77]
      %v3027 = vld [vmem:[%s197 + $0x28] sm:$0x77]
      %v3034 = vunpack.c.l.b16 %v3022
      %v3035 = vunpack.c.h.b16 %v3022
      %v3036 = vunpack.c.l.b16 %v3023
      %v3037 = vunpack.c.h.b16 %v3023
      %v3038 = vunpack.c.l.b16 %v3024
      %v3039 = vunpack.c.h.b16 %v3024
      %v3040 = vunpack.c.l.b16 %v3025
      %v3041 = vunpack.c.h.b16 %v3025
      %v3042 = vunpack.c.l.b16 %v3026
      %v3043 = vunpack.c.h.b16 %v3026
      %v3044 = vunpack.c.l.b16 %v3027
      %v3045 = vunpack.c.h.b16 %v3027
      %v3046 = vpack.c.b16 %v3038, %v3034
      %v3047 = vpack.c.b16 %v3039, %v3035
      %v3048 = vpack.c.b16 %v3040, %v3036
      %v3049 = vpack.c.b16 %v3041, %v3037
      %v3050 = vpack.c.b16 %v3042, %v3042
      %v3051 = vpack.c.b16 %v3043, %v3043
      %v3052 = vpack.c.b16 %v3044, %v3044
      %v3053 = vpack.c.b16 %v3045, %v3045
      %vm3058 = vcmask 179200
      %v3060 = vsel %vm3058, %v225, 0
      %vm3062 = vcmask 1042432
      %v3064 = vsel %vm3062, %v3050, 0
      %v3067 = vsel %vm3062, %v3051, 0
      %v3070 = vsel %vm3062, %v3052, 0
      %v3073 = vsel %vm3062, %v3053, 0
      %3075 = vmatprep.subr.bf16.mxu0 %v3047
      %3076 = vmatpush1.bf16.msra.mxu0 %v3046
      %3077 = vmatprep.subr.bf16.mxu0 %v3067
      %3078 = vmatpush1.bf16.msra.mxu0 %v3064
      %3079 = vmatprep.subr.bf16.mxu0 0
      %3080 = vmatpush1.bf16.msra.mxu0 0
      %3081 = vmatprep.subr.bf16.mxu0 0
      %3082 = vmatpush1.bf16.msra.mxu0 0
      %3083 = vmatprep.subr.bf16.mxu0 0
      %3084 = vmatpush1.bf16.msra.mxu0 0
      %3085 = vmatprep.subr.bf16.mxu0 0
      %3086 = vmatpush1.bf16.msra.mxu0 0
      %3087 = vmatprep.subr.bf16.mxu0 0
      %3088 = vmatpush1.bf16.msra.mxu0 0
      %3089 = vmatprep.subr.bf16.mxu0 0
      %3090 = vmatpush1.bf16.msra.mxu0 0
      %3091 = vmatprep.subr.bf16.mxu0 0
      %3092 = vmatpush1.bf16.msra.mxu0 0
      %3093 = vmatprep.subr.bf16.mxu0 0
      %3094 = vmatpush1.bf16.msra.mxu0 0
      %3095 = vmatprep.subr.bf16.mxu0 0
      %3096 = vmatpush1.bf16.msra.mxu0 0
      %3097 = vmatprep.subr.bf16.mxu0 0
      %3098 = vmatpush1.bf16.msra.mxu0 0
      %3099 = vmatprep.subr.bf16.mxu0 0
      %3100 = vmatpush1.bf16.msra.mxu0 0
      %3101 = vmatprep.subr.bf16.mxu0 0
      %3102 = vmatpush1.bf16.msra.mxu0 0
      %3103 = vmatprep.subr.bf16.mxu0 0
      %3104 = vmatpush1.bf16.msra.mxu0 0
      %3105 = vmatprep.subr.bf16.mxu0 0
      %3106 = vmatpush1.bf16.msra.mxu0 0
      %3107 = vmatprep.mubr.bf16.mxu0 0
      %3108 = vmatmul.mubr.bf16.gmra.mrb[0].mxu0 %v3060
      %v3109 = vpop.f32.mrb[0].mxu0
      %v3110 = vadd.f32 0.0, %v3109
      %v3111 = vpop.f32.mrb[0].mxu0
      %v3112 = vadd.f32 0.0, %v3111
      %v3113 = vpop.f32.mrb[0].mxu0
      %v3114 = vpop.f32.mrb[0].mxu0
      %3115 = vdwg.mxu0
      %3116 = vmatprep.subr.bf16.mxu0 %v3049
      %3117 = vmatpush1.bf16.msra.mxu0 %v3048
      %3118 = vmatprep.subr.bf16.mxu0 %v3073
      %3119 = vmatpush1.bf16.msra.mxu0 %v3070
      %3120 = vmatprep.subr.bf16.mxu0 0
      %3121 = vmatpush1.bf16.msra.mxu0 0
      %3122 = vmatprep.subr.bf16.mxu0 0
      %3123 = vmatpush1.bf16.msra.mxu0 0
      %3124 = vmatprep.subr.bf16.mxu0 0
      %3125 = vmatpush1.bf16.msra.mxu0 0
      %3126 = vmatprep.subr.bf16.mxu0 0
      %3127 = vmatpush1.bf16.msra.mxu0 0
      %3128 = vmatprep.subr.bf16.mxu0 0
      %3129 = vmatpush1.bf16.msra.mxu0 0
      %3130 = vmatprep.subr.bf16.mxu0 0
      %3131 = vmatpush1.bf16.msra.mxu0 0
      %3132 = vmatprep.subr.bf16.mxu0 0
      %3133 = vmatpush1.bf16.msra.mxu0 0
      %3134 = vmatprep.subr.bf16.mxu0 0
      %3135 = vmatpush1.bf16.msra.mxu0 0
      %3136 = vmatprep.subr.bf16.mxu0 0
      %3137 = vmatpush1.bf16.msra.mxu0 0
      %3138 = vmatprep.subr.bf16.mxu0 0
      %3139 = vmatpush1.bf16.msra.mxu0 0
      %3140 = vmatprep.subr.bf16.mxu0 0
      %3141 = vmatpush1.bf16.msra.mxu0 0
      %3142 = vmatprep.subr.bf16.mxu0 0
      %3143 = vmatpush1.bf16.msra.mxu0 0
      %3144 = vmatprep.subr.bf16.mxu0 0
      %3145 = vmatpush1.bf16.msra.mxu0 0
      %3146 = vmatprep.subr.bf16.mxu0 0
      %3147 = vmatpush1.bf16.msra.mxu0 0
      %3148 = vmatprep.mubr.bf16.mxu0 0
      %3149 = vmatmul.mubr.bf16.gmra.mrb[0].mxu0 %v3060
      %v3150 = vpop.f32.mrb[0].mxu0
      %v3151 = vadd.f32 0.0, %v3150
      %v3152 = vpop.f32.mrb[0].mxu0
      %v3153 = vadd.f32 0.0, %v3152
      %v3154 = vpop.f32.mrb[0].mxu0
      %v3155 = vpop.f32.mrb[0].mxu0
      %3156 = vdwg.mxu0
      %3157 = vmatprep.subr.mxu0 %v2772
      %3158 = vmatpush1.xpose.msra.mxu0 %v2770
      %3159 = vmatprep.subr.mxu0 0.0
      %3160 = vmatpush1.xpose.msra.mxu0 0.0
      %3161 = vmatprep.subr.mxu0 0.0
      %3162 = vmatpush1.xpose.msra.mxu0 0.0
      %3163 = vmatprep.subr.mxu0 0.0
      %3164 = vmatpush1.xpose.msra.mxu0 0.0
      %3165 = vmatprep.subr.mxu0 0.0
      %3166 = vmatpush1.xpose.msra.mxu0 0.0
      %3167 = vmatprep.subr.mxu0 0.0
      %3168 = vmatpush1.xpose.msra.mxu0 0.0
      %3169 = vmatprep.subr.mxu0 0.0
      %3170 = vmatpush1.xpose.msra.mxu0 0.0
      %3171 = vmatprep.subr.mxu0 0.0
      %3172 = vmatpush1.xpose.msra.mxu0 0.0
      %3173 = vmatprep.subr.mxu0 0.0
      %3174 = vmatpush1.xpose.msra.mxu0 0.0
      %3175 = vmatprep.subr.mxu0 0.0
      %3176 = vmatpush1.xpose.msra.mxu0 0.0
      %3177 = vmatprep.subr.mxu0 0.0
      %3178 = vmatpush1.xpose.msra.mxu0 0.0
      %3179 = vmatprep.subr.mxu0 0.0
      %3180 = vmatpush1.xpose.msra.mxu0 0.0
      %3181 = vmatprep.subr.mxu0 0.0
      %3182 = vmatpush1.xpose.msra.mxu0 0.0
      %3183 = vmatprep.subr.mxu0 0.0
      %3184 = vmatpush1.xpose.msra.mxu0 0.0
      %3185 = vmatprep.subr.mxu0 0.0
      %3186 = vmatpush1.xpose.msra.mxu0 0.0
      %3187 = vmatprep.subr.mxu0 0.0
      %3188 = vmatpush1.xpose.msra.mxu0 0.0
      %3189 = vmatprep.subr.mxu0 0.0
      %3190 = vmatpush1.xpose.msra.mxu0 0.0
      %3191 = vmatprep.subr.mxu0 0.0
      %3192 = vmatpush1.xpose.msra.mxu0 0.0
      %3193 = vmatprep.subr.mxu0 0.0
      %3194 = vmatpush1.xpose.msra.mxu0 0.0
      %3195 = vmatprep.subr.mxu0 0.0
      %3196 = vmatpush1.xpose.msra.mxu0 0.0
      %3197 = vmatprep.subr.mxu0 0.0
      %3198 = vmatpush1.xpose.msra.mxu0 0.0
      %3199 = vmatprep.subr.mxu0 0.0
      %3200 = vmatpush1.xpose.msra.mxu0 0.0
      %3201 = vmatprep.subr.mxu0 0.0
      %3202 = vmatpush1.xpose.msra.mxu0 0.0
      %3203 = vmatprep.subr.mxu0 0.0
      %3204 = vmatpush1.xpose.msra.mxu0 0.0
      %3205 = vmatprep.subr.mxu0 0.0
      %3206 = vmatpush1.xpose.msra.mxu0 0.0
      %3207 = vmatprep.subr.mxu0 0.0
      %3208 = vmatpush1.xpose.msra.mxu0 0.0
      %3209 = vmatprep.subr.mxu0 0.0
      %3210 = vmatpush1.xpose.msra.mxu0 0.0
      %3211 = vmatprep.subr.mxu0 0.0
      %3212 = vmatpush1.xpose.msra.mxu0 0.0
      %3213 = vmatprep.subr.mxu0 0.0
      %3214 = vmatpush1.xpose.msra.mxu0 0.0
      %3215 = vmatprep.subr.mxu0 0.0
      %3216 = vmatpush1.xpose.msra.mxu0 0.0
      %3217 = vmatprep.subr.mxu0 0.0
      %3218 = vmatpush1.xpose.msra.mxu0 0.0
      %3219 = vmatprep.subr.mxu0 0.0
      %3220 = vmatpush1.xpose.msra.mxu0 0.0
      %3221 = vmatprep.mubr.f32.mxu0 %v2608
      %3222 = vmatmul.mubr.f32.gmra.mrb[0].mxu0 %v2606
      %v3223 = vpop.f32.mrb[0].mxu0
      %v3224 = vadd.f32 0.0, %v3223
      %v3225 = vpop.f32.mrb[0].mxu0
      %3226 = vdwg.mxu0
      %3227 = vmatprep.subr.mxu0 %v3112
      %3228 = vmatpush1.xpose.msra.mxu0 %v3110
      %3229 = vmatprep.subr.mxu0 0.0
      %3230 = vmatpush1.xpose.msra.mxu0 0.0
      %3231 = vmatprep.subr.mxu0 0.0
      %3232 = vmatpush1.xpose.msra.mxu0 0.0
      %3233 = vmatprep.subr.mxu0 0.0
      %3234 = vmatpush1.xpose.msra.mxu0 0.0
      %3235 = vmatprep.subr.mxu0 0.0
      %3236 = vmatpush1.xpose.msra.mxu0 0.0
      %3237 = vmatprep.subr.mxu0 0.0
      %3238 = vmatpush1.xpose.msra.mxu0 0.0
      %3239 = vmatprep.subr.mxu0 0.0
      %3240 = vmatpush1.xpose.msra.mxu0 0.0
      %3241 = vmatprep.subr.mxu0 0.0
      %3242 = vmatpush1.xpose.msra.mxu0 0.0
      %3243 = vmatprep.subr.mxu0 0.0
      %3244 = vmatpush1.xpose.msra.mxu0 0.0
      %3245 = vmatprep.subr.mxu0 0.0
      %3246 = vmatpush1.xpose.msra.mxu0 0.0
      %3247 = vmatprep.subr.mxu0 0.0
      %3248 = vmatpush1.xpose.msra.mxu0 0.0
      %3249 = vmatprep.subr.mxu0 0.0
      %3250 = vmatpush1.xpose.msra.mxu0 0.0
      %3251 = vmatprep.subr.mxu0 0.0
      %3252 = vmatpush1.xpose.msra.mxu0 0.0
      %3253 = vmatprep.subr.mxu0 0.0
      %3254 = vmatpush1.xpose.msra.mxu0 0.0
      %3255 = vmatprep.subr.mxu0 0.0
      %3256 = vmatpush1.xpose.msra.mxu0 0.0
      %3257 = vmatprep.subr.mxu0 0.0
      %3258 = vmatpush1.xpose.msra.mxu0 0.0
      %3259 = vmatprep.subr.mxu0 0.0
      %3260 = vmatpush1.xpose.msra.mxu0 0.0
      %3261 = vmatprep.subr.mxu0 0.0
      %3262 = vmatpush1.xpose.msra.mxu0 0.0
      %3263 = vmatprep.subr.mxu0 0.0
      %3264 = vmatpush1.xpose.msra.mxu0 0.0
      %3265 = vmatprep.subr.mxu0 0.0
      %3266 = vmatpush1.xpose.msra.mxu0 0.0
      %3267 = vmatprep.subr.mxu0 0.0
      %3268 = vmatpush1.xpose.msra.mxu0 0.0
      %3269 = vmatprep.subr.mxu0 0.0
      %3270 = vmatpush1.xpose.msra.mxu0 0.0
      %3271 = vmatprep.subr.mxu0 0.0
      %3272 = vmatpush1.xpose.msra.mxu0 0.0
      %3273 = vmatprep.subr.mxu0 0.0
      %3274 = vmatpush1.xpose.msra.mxu0 0.0
      %3275 = vmatprep.subr.mxu0 0.0
      %3276 = vmatpush1.xpose.msra.mxu0 0.0
      %3277 = vmatprep.subr.mxu0 0.0
      %3278 = vmatpush1.xpose.msra.mxu0 0.0
      %3279 = vmatprep.subr.mxu0 0.0
      %3280 = vmatpush1.xpose.msra.mxu0 0.0
      %3281 = vmatprep.subr.mxu0 0.0
      %3282 = vmatpush1.xpose.msra.mxu0 0.0
      %3283 = vmatprep.subr.mxu0 0.0
      %3284 = vmatpush1.xpose.msra.mxu0 0.0
      %3285 = vmatprep.subr.mxu0 0.0
      %3286 = vmatpush1.xpose.msra.mxu0 0.0
      %3287 = vmatprep.subr.mxu0 0.0
      %3288 = vmatpush1.xpose.msra.mxu0 0.0
      %3289 = vmatprep.subr.mxu0 0.0
      %3290 = vmatpush1.xpose.msra.mxu0 0.0
      %3291 = vmatprep.mubr.f32.mxu0 %v3112
      %3292 = vmatmul.mubr.f32.gmra.mrb[0].mxu0 %v3110
      %v3293 = vpop.f32.mrb[0].mxu0
      %v3294 = vadd.f32 0.0, %v3293
      %v3295 = vpop.f32.mrb[0].mxu0
      %3296 = vdwg.mxu0
      %v3297 = vmax.f32 %v3294, 0.0
      %vm3298 = vcmask 64512
      %v3299 = vsel %vm3298, %v3224, -inf
      %3300 = vmax.xlane.f32.xlu0 %v3299
      %v3301 = vpop.xlane.xlu0 %3300
      %v3302 = vrot.slane %v3301, 4
      %v3303 = vmax.f32 %v3301, %v3302
      %v3304 = vrot.slane %v3303, 2
      %v3305 = vmax.f32 %v3303, %v3304
      %v3306 = vrot.slane %v3305, 1
      %v3307 = vmax.f32 %v3305, %v3306
      %s3308 = vtos %v3307
      %v3309 = vstv %s3308
      %v3310 = vsub.f32 %v3224, %v3309
      %v3311 = vmul.f32 %v3310, 1.442695
      %v3312 = vpow.pop %v3311
      %v3313 = vmul.f32 %v3297, %v3312
      %v3314 = vsel %vm3298, %v3313, 0.0
      %3315 = vadd.xlane.f32.xlu0 %v3314
      %v3316 = vpop.xlane.xlu0 %3315
      %v3317 = vrot.slane %v3316, 4
      %v3318 = vadd.f32 %v3316, %v3317
      %v3319 = vrot.slane %v3318, 2
      %v3320 = vadd.f32 %v3318, %v3319
      %v3321 = vrot.slane %v3320, 1
      %v3322 = vadd.f32 %v3320, %v3321
      %s3323 = vtos %v3322
      %v3324 = vstv %s3323
      %v3325 = vrcp.pop %v3324
      %v3326 = vmul.f32 %v3313, %v3325
      %v3328 = vsel %vm3298, %v3326, 0
      %3330 = vmatprep.subr.mxu0 %v2936
      %3331 = vmatpush1.msra.mxu0 %v2934
      %3332 = vmatprep.subr.mxu0 0.0
      %3333 = vmatpush1.msra.mxu0 0.0
      %3334 = vmatprep.subr.mxu0 0.0
      %3335 = vmatpush1.msra.mxu0 0.0
      %3336 = vmatprep.subr.mxu0 0.0
      %3337 = vmatpush1.msra.mxu0 0.0
      %3338 = vmatprep.subr.mxu0 0.0
      %3339 = vmatpush1.msra.mxu0 0.0
      %3340 = vmatprep.subr.mxu0 0.0
      %3341 = vmatpush1.msra.mxu0 0.0
      %3342 = vmatprep.subr.mxu0 0.0
      %3343 = vmatpush1.msra.mxu0 0.0
      %3344 = vmatprep.subr.mxu0 0.0
      %3345 = vmatpush1.msra.mxu0 0.0
      %3346 = vmatprep.subr.mxu0 0.0
      %3347 = vmatpush1.msra.mxu0 0.0
      %3348 = vmatprep.subr.mxu0 0.0
      %3349 = vmatpush1.msra.mxu0 0.0
      %3350 = vmatprep.subr.mxu0 0.0
      %3351 = vmatpush1.msra.mxu0 0.0
      %3352 = vmatprep.subr.mxu0 0.0
      %3353 = vmatpush1.msra.mxu0 0.0
      %3354 = vmatprep.subr.mxu0 0.0
      %3355 = vmatpush1.msra.mxu0 0.0
      %3356 = vmatprep.subr.mxu0 0.0
      %3357 = vmatpush1.msra.mxu0 0.0
      %3358 = vmatprep.subr.mxu0 0.0
      %3359 = vmatpush1.msra.mxu0 0.0
      %3360 = vmatprep.subr.mxu0 0.0
      %3361 = vmatpush1.msra.mxu0 0.0
      %3362 = vmatprep.subr.mxu0 0.0
      %3363 = vmatpush1.msra.mxu0 0.0
      %3364 = vmatprep.subr.mxu0 0.0
      %3365 = vmatpush1.msra.mxu0 0.0
      %3366 = vmatprep.subr.mxu0 0.0
      %3367 = vmatpush1.msra.mxu0 0.0
      %3368 = vmatprep.subr.mxu0 0.0
      %3369 = vmatpush1.msra.mxu0 0.0
      %3370 = vmatprep.subr.mxu0 0.0
      %3371 = vmatpush1.msra.mxu0 0.0
      %3372 = vmatprep.subr.mxu0 0.0
      %3373 = vmatpush1.msra.mxu0 0.0
      %3374 = vmatprep.subr.mxu0 0.0
      %3375 = vmatpush1.msra.mxu0 0.0
      %3376 = vmatprep.subr.mxu0 0.0
      %3377 = vmatpush1.msra.mxu0 0.0
      %3378 = vmatprep.subr.mxu0 0.0
      %3379 = vmatpush1.msra.mxu0 0.0
      %3380 = vmatprep.subr.mxu0 0.0
      %3381 = vmatpush1.msra.mxu0 0.0
      %3382 = vmatprep.subr.mxu0 0.0
      %3383 = vmatpush1.msra.mxu0 0.0
      %3384 = vmatprep.subr.mxu0 0.0
      %3385 = vmatpush1.msra.mxu0 0.0
      %3386 = vmatprep.subr.mxu0 0.0
      %3387 = vmatpush1.msra.mxu0 0.0
      %3388 = vmatprep.subr.mxu0 0.0
      %3389 = vmatpush1.msra.mxu0 0.0
      %3390 = vmatprep.subr.mxu0 0.0
      %3391 = vmatpush1.msra.mxu0 0.0
      %3392 = vmatprep.subr.mxu0 0.0
      %3393 = vmatpush1.msra.mxu0 0.0
      %3394 = vmatprep.mubr.f32.mxu0 0.0
      %3395 = vmatmul.mubr.f32.gmra.mrb[0].mxu0 %v3328
      %v3396 = vpop.f32.mrb[0].mxu0
      %v3397 = vadd.f32 0.0, %v3396
      %v3398 = vpop.f32.mrb[0].mxu0
      %v3399 = vadd.f32 0.0, %v3398
      %3400 = vdwg.mxu0
      %3401 = vmatprep.subr.mxu0 %v2854
      %3402 = vmatpush1.xpose.msra.mxu0 %v2852
      %3403 = vmatprep.subr.mxu0 0.0
      %3404 = vmatpush1.xpose.msra.mxu0 0.0
      %3405 = vmatprep.subr.mxu0 0.0
      %3406 = vmatpush1.xpose.msra.mxu0 0.0
      %3407 = vmatprep.subr.mxu0 0.0
      %3408 = vmatpush1.xpose.msra.mxu0 0.0
      %3409 = vmatprep.subr.mxu0 0.0
      %3410 = vmatpush1.xpose.msra.mxu0 0.0
      %3411 = vmatprep.subr.mxu0 0.0
      %3412 = vmatpush1.xpose.msra.mxu0 0.0
      %3413 = vmatprep.subr.mxu0 0.0
      %3414 = vmatpush1.xpose.msra.mxu0 0.0
      %3415 = vmatprep.subr.mxu0 0.0
      %3416 = vmatpush1.xpose.msra.mxu0 0.0
      %3417 = vmatprep.subr.mxu0 0.0
      %3418 = vmatpush1.xpose.msra.mxu0 0.0
      %3419 = vmatprep.subr.mxu0 0.0
      %3420 = vmatpush1.xpose.msra.mxu0 0.0
      %3421 = vmatprep.subr.mxu0 0.0
      %3422 = vmatpush1.xpose.msra.mxu0 0.0
      %3423 = vmatprep.subr.mxu0 0.0
      %3424 = vmatpush1.xpose.msra.mxu0 0.0
      %3425 = vmatprep.subr.mxu0 0.0
      %3426 = vmatpush1.xpose.msra.mxu0 0.0
      %3427 = vmatprep.subr.mxu0 0.0
      %3428 = vmatpush1.xpose.msra.mxu0 0.0
      %3429 = vmatprep.subr.mxu0 0.0
      %3430 = vmatpush1.xpose.msra.mxu0 0.0
      %3431 = vmatprep.subr.mxu0 0.0
      %3432 = vmatpush1.xpose.msra.mxu0 0.0
      %3433 = vmatprep.subr.mxu0 0.0
      %3434 = vmatpush1.xpose.msra.mxu0 0.0
      %3435 = vmatprep.subr.mxu0 0.0
      %3436 = vmatpush1.xpose.msra.mxu0 0.0
      %3437 = vmatprep.subr.mxu0 0.0
      %3438 = vmatpush1.xpose.msra.mxu0 0.0
      %3439 = vmatprep.subr.mxu0 0.0
      %3440 = vmatpush1.xpose.msra.mxu0 0.0
      %3441 = vmatprep.subr.mxu0 0.0
      %3442 = vmatpush1.xpose.msra.mxu0 0.0
      %3443 = vmatprep.subr.mxu0 0.0
      %3444 = vmatpush1.xpose.msra.mxu0 0.0
      %3445 = vmatprep.subr.mxu0 0.0
      %3446 = vmatpush1.xpose.msra.mxu0 0.0
      %3447 = vmatprep.subr.mxu0 0.0
      %3448 = vmatpush1.xpose.msra.mxu0 0.0
      %3449 = vmatprep.subr.mxu0 0.0
      %3450 = vmatpush1.xpose.msra.mxu0 0.0
      %3451 = vmatprep.subr.mxu0 0.0
      %3452 = vmatpush1.xpose.msra.mxu0 0.0
      %3453 = vmatprep.subr.mxu0 0.0
      %3454 = vmatpush1.xpose.msra.mxu0 0.0
      %3455 = vmatprep.subr.mxu0 0.0
      %3456 = vmatpush1.xpose.msra.mxu0 0.0
      %3457 = vmatprep.subr.mxu0 0.0
      %3458 = vmatpush1.xpose.msra.mxu0 0.0
      %3459 = vmatprep.subr.mxu0 0.0
      %3460 = vmatpush1.xpose.msra.mxu0 0.0
      %3461 = vmatprep.subr.mxu0 0.0
      %3462 = vmatpush1.xpose.msra.mxu0 0.0
      %3463 = vmatprep.subr.mxu0 0.0
      %3464 = vmatpush1.xpose.msra.mxu0 0.0
      %3465 = vmatprep.mubr.f32.mxu0 %v2690
      %3466 = vmatmul.mubr.f32.gmra.mrb[0].mxu0 %v2688
      %v3467 = vpop.f32.mrb[0].mxu0
      %v3468 = vadd.f32 0.0, %v3467
      %v3469 = vpop.f32.mrb[0].mxu0
      %3470 = vdwg.mxu0
      %3471 = vmatprep.subr.mxu0 %v3153
      %3472 = vmatpush1.xpose.msra.mxu0 %v3151
      %3473 = vmatprep.subr.mxu0 0.0
      %3474 = vmatpush1.xpose.msra.mxu0 0.0
      %3475 = vmatprep.subr.mxu0 0.0
      %3476 = vmatpush1.xpose.msra.mxu0 0.0
      %3477 = vmatprep.subr.mxu0 0.0
      %3478 = vmatpush1.xpose.msra.mxu0 0.0
      %3479 = vmatprep.subr.mxu0 0.0
      %3480 = vmatpush1.xpose.msra.mxu0 0.0
      %3481 = vmatprep.subr.mxu0 0.0
      %3482 = vmatpush1.xpose.msra.mxu0 0.0
      %3483 = vmatprep.subr.mxu0 0.0
      %3484 = vmatpush1.xpose.msra.mxu0 0.0
      %3485 = vmatprep.subr.mxu0 0.0
      %3486 = vmatpush1.xpose.msra.mxu0 0.0
      %3487 = vmatprep.subr.mxu0 0.0
      %3488 = vmatpush1.xpose.msra.mxu0 0.0
      %3489 = vmatprep.subr.mxu0 0.0
      %3490 = vmatpush1.xpose.msra.mxu0 0.0
      %3491 = vmatprep.subr.mxu0 0.0
      %3492 = vmatpush1.xpose.msra.mxu0 0.0
      %3493 = vmatprep.subr.mxu0 0.0
      %3494 = vmatpush1.xpose.msra.mxu0 0.0
      %3495 = vmatprep.subr.mxu0 0.0
      %3496 = vmatpush1.xpose.msra.mxu0 0.0
      %3497 = vmatprep.subr.mxu0 0.0
      %3498 = vmatpush1.xpose.msra.mxu0 0.0
      %3499 = vmatprep.subr.mxu0 0.0
      %3500 = vmatpush1.xpose.msra.mxu0 0.0
      %3501 = vmatprep.subr.mxu0 0.0
      %3502 = vmatpush1.xpose.msra.mxu0 0.0
      %3503 = vmatprep.subr.mxu0 0.0
      %3504 = vmatpush1.xpose.msra.mxu0 0.0
      %3505 = vmatprep.subr.mxu0 0.0
      %3506 = vmatpush1.xpose.msra.mxu0 0.0
      %3507 = vmatprep.subr.mxu0 0.0
      %3508 = vmatpush1.xpose.msra.mxu0 0.0
      %3509 = vmatprep.subr.mxu0 0.0
      %3510 = vmatpush1.xpose.msra.mxu0 0.0
      %3511 = vmatprep.subr.mxu0 0.0
      %3512 = vmatpush1.xpose.msra.mxu0 0.0
      %3513 = vmatprep.subr.mxu0 0.0
      %3514 = vmatpush1.xpose.msra.mxu0 0.0
      %3515 = vmatprep.subr.mxu0 0.0
      %3516 = vmatpush1.xpose.msra.mxu0 0.0
      %3517 = vmatprep.subr.mxu0 0.0
      %3518 = vmatpush1.xpose.msra.mxu0 0.0
      %3519 = vmatprep.subr.mxu0 0.0
      %3520 = vmatpush1.xpose.msra.mxu0 0.0
      %3521 = vmatprep.subr.mxu0 0.0
      %3522 = vmatpush1.xpose.msra.mxu0 0.0
      %3523 = vmatprep.subr.mxu0 0.0
      %3524 = vmatpush1.xpose.msra.mxu0 0.0
      %3525 = vmatprep.subr.mxu0 0.0
      %3526 = vmatpush1.xpose.msra.mxu0 0.0
      %3527 = vmatprep.subr.mxu0 0.0
      %3528 = vmatpush1.xpose.msra.mxu0 0.0
      %3529 = vmatprep.subr.mxu0 0.0
      %3530 = vmatpush1.xpose.msra.mxu0 0.0
      %3531 = vmatprep.subr.mxu0 0.0
      %3532 = vmatpush1.xpose.msra.mxu0 0.0
      %3533 = vmatprep.subr.mxu0 0.0
      %3534 = vmatpush1.xpose.msra.mxu0 0.0
      %3535 = vmatprep.mubr.f32.mxu0 %v3153
      %3536 = vmatmul.mubr.f32.gmra.mrb[0].mxu0 %v3151
      %v3537 = vpop.f32.mrb[0].mxu0
      %v3538 = vadd.f32 0.0, %v3537
      %v3539 = vpop.f32.mrb[0].mxu0
      %3540 = vdwg.mxu0
      %v3541 = vmax.f32 %v3538, 0.0
      %v3542 = vsel %vm3298, %v3468, -inf
      %3543 = vmax.xlane.f32.xlu0 %v3542
      %v3544 = vpop.xlane.xlu0 %3543
      %v3545 = vrot.slane %v3544, 4
      %v3546 = vmax.f32 %v3544, %v3545
      %v3547 = vrot.slane %v3546, 2
      %v3548 = vmax.f32 %v3546, %v3547
      %v3549 = vrot.slane %v3548, 1
      %v3550 = vmax.f32 %v3548, %v3549
      %s3551 = vtos %v3550
      %v3552 = vstv %s3551
      %v3553 = vsub.f32 %v3468, %v3552
      %v3554 = vmul.f32 %v3553, 1.442695
      %v3555 = vpow.pop %v3554
      %v3556 = vmul.f32 %v3541, %v3555
      %v3557 = vsel %vm3298, %v3556, 0.0
      %3558 = vadd.xlane.f32.xlu0 %v3557
      %v3559 = vpop.xlane.xlu0 %3558
      %v3560 = vrot.slane %v3559, 4
      %v3561 = vadd.f32 %v3559, %v3560
      %v3562 = vrot.slane %v3561, 2
      %v3563 = vadd.f32 %v3561, %v3562
      %v3564 = vrot.slane %v3563, 1
      %v3565 = vadd.f32 %v3563, %v3564
      %s3566 = vtos %v3565
      %v3567 = vstv %s3566
      %v3568 = vrcp.pop %v3567
      %v3569 = vmul.f32 %v3556, %v3568
      %v3571 = vsel %vm3298, %v3569, 0
      %3573 = vmatprep.subr.mxu0 %v3018
      %3574 = vmatpush1.msra.mxu0 %v3016
      %3575 = vmatprep.subr.mxu0 0.0
      %3576 = vmatpush1.msra.mxu0 0.0
      %3577 = vmatprep.subr.mxu0 0.0
      %3578 = vmatpush1.msra.mxu0 0.0
      %3579 = vmatprep.subr.mxu0 0.0
      %3580 = vmatpush1.msra.mxu0 0.0
      %3581 = vmatprep.subr.mxu0 0.0
      %3582 = vmatpush1.msra.mxu0 0.0
      %3583 = vmatprep.subr.mxu0 0.0
      %3584 = vmatpush1.msra.mxu0 0.0
      %3585 = vmatprep.subr.mxu0 0.0
      %3586 = vmatpush1.msra.mxu0 0.0
      %3587 = vmatprep.subr.mxu0 0.0
      %3588 = vmatpush1.msra.mxu0 0.0
      %3589 = vmatprep.subr.mxu0 0.0
      %3590 = vmatpush1.msra.mxu0 0.0
      %3591 = vmatprep.subr.mxu0 0.0
      %3592 = vmatpush1.msra.mxu0 0.0
      %3593 = vmatprep.subr.mxu0 0.0
      %3594 = vmatpush1.msra.mxu0 0.0
      %3595 = vmatprep.subr.mxu0 0.0
      %3596 = vmatpush1.msra.mxu0 0.0
      %3597 = vmatprep.subr.mxu0 0.0
      %3598 = vmatpush1.msra.mxu0 0.0
      %3599 = vmatprep.subr.mxu0 0.0
      %3600 = vmatpush1.msra.mxu0 0.0
      %3601 = vmatprep.subr.mxu0 0.0
      %3602 = vmatpush1.msra.mxu0 0.0
      %3603 = vmatprep.subr.mxu0 0.0
      %3604 = vmatpush1.msra.mxu0 0.0
      %3605 = vmatprep.subr.mxu0 0.0
      %3606 = vmatpush1.msra.mxu0 0.0
      %3607 = vmatprep.subr.mxu0 0.0
      %3608 = vmatpush1.msra.mxu0 0.0
      %3609 = vmatprep.subr.mxu0 0.0
      %3610 = vmatpush1.msra.mxu0 0.0
      %3611 = vmatprep.subr.mxu0 0.0
      %3612 = vmatpush1.msra.mxu0 0.0
      %3613 = vmatprep.subr.mxu0 0.0
      %3614 = vmatpush1.msra.mxu0 0.0
      %3615 = vmatprep.subr.mxu0 0.0
      %3616 = vmatpush1.msra.mxu0 0.0
      %3617 = vmatprep.subr.mxu0 0.0
      %3618 = vmatpush1.msra.mxu0 0.0
      %3619 = vmatprep.subr.mxu0 0.0
      %3620 = vmatpush1.msra.mxu0 0.0
      %3621 = vmatprep.subr.mxu0 0.0
      %3622 = vmatpush1.msra.mxu0 0.0
      %3623 = vmatprep.subr.mxu0 0.0
      %3624 = vmatpush1.msra.mxu0 0.0
      %3625 = vmatprep.subr.mxu0 0.0
      %3626 = vmatpush1.msra.mxu0 0.0
      %3627 = vmatprep.subr.mxu0 0.0
      %3628 = vmatpush1.msra.mxu0 0.0
      %3629 = vmatprep.subr.mxu0 0.0
      %3630 = vmatpush1.msra.mxu0 0.0
      %3631 = vmatprep.subr.mxu0 0.0
      %3632 = vmatpush1.msra.mxu0 0.0
      %3633 = vmatprep.subr.mxu0 0.0
      %3634 = vmatpush1.msra.mxu0 0.0
      %3635 = vmatprep.subr.mxu0 0.0
      %3636 = vmatpush1.msra.mxu0 0.0
      %3637 = vmatprep.mubr.f32.mxu0 0.0
      %3638 = vmatmul.mubr.f32.gmra.mrb[0].mxu0 %v3571
      %v3639 = vpop.f32.mrb[0].mxu0
      %v3640 = vadd.f32 0.0, %v3639
      %v3641 = vpop.f32.mrb[0].mxu0
      %v3642 = vadd.f32 0.0, %v3641
      %3643 = vdwg.mxu0
      %v3644 = vadd.f32 %v3397, %v216
      %v3645 = vadd.f32 %v3399, %v217
      %v3646 = vadd.f32 %v3640, %v218
      %v3647 = vadd.f32 %v3642, %v219
      %3648 = vst [vmem:[%s4] sm:$0xff] %v3644
      %3649 = vst [vmem:[%s4 + $0x8] sm:$0xff] %v3645
      %3650 = vst [vmem:[%s4 + $0x10] sm:$0xff] %v3646
      %3651 = vst [vmem:[%s4 + $0x18] sm:$0xff] %v3647
      // Predicated region
      $region41: #{resgcn_forward.6} parent=35 // pred_check
        %p3652 = pneg %p122
      $region42: #{resgcn_forward.6} parent=35 // pred_check_branch
        %3654 = sbr.rel (%p3652) target = $region44
      $region43: #{resgcn_forward.6} parent=35 // pred_region
        _
      $region44: #{resgcn_forward.6} parent=35 // pred_fallthru
        _
      // Predicated region
      $region45: #{resgcn_forward.6} parent=35 // pred_check
        %p3655 = pneg %p122
      $region46: #{resgcn_forward.6} parent=35 // pred_check_branch
        %3657 = sbr.rel (%p3655) target = $region48
      $region47: #{resgcn_forward.6} parent=35 // pred_region
        _
      $region48: #{resgcn_forward.6} parent=35 // pred_fallthru
        _
    $region36: #{resgcn_forward.6} parent=5 // pred_fallthru
      _
    %p3658 = scmp.le.s32.totalorder 2, %s10
    // Predicated region
    $region49: #{resgcn_forward.6} parent=5 // pred_check
      %p3659 = pneg %p3658
    $region50: #{resgcn_forward.6} parent=5 // pred_check_branch
      %3661 = sbr.rel (%p3659) target = $region52
    $region51: #{resgcn_forward.6} parent=5 // pred_region
      %s3662 = ssub.s32 %s10, 2
    $region52: #{resgcn_forward.6} parent=5 // pred_fallthru
      _
  $region6: #{resgcn_forward.6} parent=0 // loop_footer
    %s14 = sadd.s32 1, %s10
  $region7: #{resgcn_forward.6} parent=0 // loop_footer_branch
    %9 = sbr.rel target = $region3
  $region8: #{resgcn_forward.6} parent=0 // loop_exit
    _

// kernel: resgcn_forward.5
$region0: #{resgcn_forward.5}
  #allocation0 [shape = 'u32[]', space=smem, size = 0x4, offset = 0x4, fixed_abs, tag = 'smem constant byte address 0x4 - core index']
  #allocation1 [shape = 'u32[144,128]{1,0:T(1,128)}', space=vmem, size = 0x12000, scoped, tag = 'internal scratch']
  %s0 = inlined_call_operand.vmem [shape: f32[8,1536], index: 0, kind: input, shape index: {}]
  %s1 = inlined_call_operand.vmem [shape: bf16[1536,512], index: 1, kind: input, shape index: {}]
  %s2 = inlined_call_operand.vmem [shape: f32[1,512], index: 2, kind: input, shape index: {}]
  %s3 = inlined_call_operand.vmem [shape: f32[8,200], index: 3, kind: input, shape index: {}]
  %s4 = inlined_call_operand.vmem [shape: f32[8,200], index: 4, kind: input, shape index: {}]
  %s5 = inlined_call_operand.vmem [shape: bf16[200,512], index: 5, kind: input, shape index: {}]
  %s6 = inlined_call_operand.vmem [shape: bf16[512,512], index: 6, kind: input, shape index: {}]
  %s7 = inlined_call_operand.vmem [shape: bf16[200,512], index: 7, kind: input, shape index: {}]
  %s8 = inlined_call_operand.vmem [shape: f32[1,512], index: 8, kind: input, shape index: {}]
  %s9 = inlined_call_operand.vmem [shape: f32[8,512], index: 9, kind: output, shape index: {}]
  %s10 = sld [smem:[#allocation0]]
  $region46: #{resgcn_forward.5} parent=0
    _
  %s12 = ssub.s32 1, %s10
  %s13 = scalar_select 0, %s12, %s10
  // Predicated region
  $region2: #{resgcn_forward.5} parent=0 // pred_check
    _
  $region3: #{resgcn_forward.5} parent=0 // pred_check_branch
    %15 = sbr.rel (0) target = $region5
  $region4: #{resgcn_forward.5} parent=0 // pred_region
    _
  $region5: #{resgcn_forward.5} parent=0 // pred_fallthru
    _
  // Predicated region
  $region6: #{resgcn_forward.5} parent=0 // pred_check
    _
  $region7: #{resgcn_forward.5} parent=0 // pred_check_branch
    %17 = sbr.rel (0) target = $region9
  $region8: #{resgcn_forward.5} parent=0 // pred_region
    _
  $region9: #{resgcn_forward.5} parent=0 // pred_fallthru
    _
  // Predicated region
  $region10: #{resgcn_forward.5} parent=0 // pred_check
    _
  $region11: #{resgcn_forward.5} parent=0 // pred_check_branch
    %19 = sbr.rel (0) target = $region13
  $region12: #{resgcn_forward.5} parent=0 // pred_region
    _
  $region13: #{resgcn_forward.5} parent=0 // pred_fallthru
    _
  // Predicated region
  $region14: #{resgcn_forward.5} parent=0 // pred_check
    _
  $region15: #{resgcn_forward.5} parent=0 // pred_check_branch
    %21 = sbr.rel (0) target = $region17
  $region16: #{resgcn_forward.5} parent=0 // pred_region
    _
  $region17: #{resgcn_forward.5} parent=0 // pred_fallthru
    _
  // Predicated region
  $region18: #{resgcn_forward.5} parent=0 // pred_check
    _
  $region19: #{resgcn_forward.5} parent=0 // pred_check_branch
    %23 = sbr.rel (0) target = $region21
  $region20: #{resgcn_forward.5} parent=0 // pred_region
    _
  $region21: #{resgcn_forward.5} parent=0 // pred_fallthru
    _
  // Predicated region
  $region22: #{resgcn_forward.5} parent=0 // pred_check
    _
  $region23: #{resgcn_forward.5} parent=0 // pred_check_branch
    %25 = sbr.rel (0) target = $region25
  $region24: #{resgcn_forward.5} parent=0 // pred_region
    _
  $region25: #{resgcn_forward.5} parent=0 // pred_fallthru
    _
  // Predicated region
  $region26: #{resgcn_forward.5} parent=0 // pred_check
    _
  $region27: #{resgcn_forward.5} parent=0 // pred_check_branch
    %27 = sbr.rel (0) target = $region29
  $region28: #{resgcn_forward.5} parent=0 // pred_region
    _
  $region29: #{resgcn_forward.5} parent=0 // pred_fallthru
    _
  // Predicated region
  $region30: #{resgcn_forward.5} parent=0 // pred_check
    _
  $region31: #{resgcn_forward.5} parent=0 // pred_check_branch
    %29 = sbr.rel (0) target = $region33
  $region32: #{resgcn_forward.5} parent=0 // pred_region
    _
  $region33: #{resgcn_forward.5} parent=0 // pred_fallthru
    _
  // Predicated region
  $region34: #{resgcn_forward.5} parent=0 // pred_check
    _
  $region35: #{resgcn_forward.5} parent=0 // pred_check_branch
    %31 = sbr.rel (0) target = $region37
  $region36: #{resgcn_forward.5} parent=0 // pred_region
    _
  $region37: #{resgcn_forward.5} parent=0 // pred_fallthru
    _
  %v33 = vld [vmem:[%s1] sm:$0xff]
  %v34 = vld [vmem:[%s1 + $0x8] sm:$0xff]
  %v35 = vld [vmem:[%s1 + $0x10] sm:$0xff]
  %v36 = vld [vmem:[%s1 + $0x18] sm:$0xff]
  %v37 = vld [vmem:[%s1 + $0x20] sm:$0xff]
  %v38 = vld [vmem:[%s1 + $0x28] sm:$0xff]
  %v39 = vld [vmem:[%s1 + $0x30] sm:$0xff]
  %v40 = vld [vmem:[%s1 + $0x38] sm:$0xff]
  %v41 = vld [vmem:[%s1 + $0x40] sm:$0xff]
  %v42 = vld [vmem:[%s1 + $0x48] sm:$0xff]
  %v43 = vld [vmem:[%s1 + $0x50] sm:$0xff]
  %v44 = vld [vmem:[%s1 + $0x58] sm:$0xff]
  %v45 = vld [vmem:[%s1 + $0x60] sm:$0xff]
  %v46 = vld [vmem:[%s1 + $0x68] sm:$0xff]
  %v47 = vld [vmem:[%s1 + $0x70] sm:$0xff]
  %v48 = vld [vmem:[%s1 + $0x78] sm:$0xff]
  %v49 = vld [vmem:[%s1 + $0x80] sm:$0xff]
  %v50 = vld [vmem:[%s1 + $0x88] sm:$0xff]
  %v51 = vld [vmem:[%s1 + $0x90] sm:$0xff]
  %v52 = vld [vmem:[%s1 + $0x98] sm:$0xff]
  %v53 = vld [vmem:[%s1 + $0xa0] sm:$0xff]
  %v54 = vld [vmem:[%s1 + $0xa8] sm:$0xff]
  %v55 = vld [vmem:[%s1 + $0xb0] sm:$0xff]
  %v56 = vld [vmem:[%s1 + $0xb8] sm:$0xff]
  %v57 = vld [vmem:[%s1 + $0xc0] sm:$0xff]
  %v58 = vld [vmem:[%s1 + $0xc8] sm:$0xff]
  %v59 = vld [vmem:[%s1 + $0xd0] sm:$0xff]
  %v60 = vld [vmem:[%s1 + $0xd8] sm:$0xff]
  %v61 = vld [vmem:[%s1 + $0xe0] sm:$0xff]
  %v62 = vld [vmem:[%s1 + $0xe8] sm:$0xff]
  %v63 = vld [vmem:[%s1 + $0xf0] sm:$0xff]
  %v64 = vld [vmem:[%s1 + $0xf8] sm:$0xff]
  %v65 = vld [vmem:[%s1 + $0x100] sm:$0xff]
  %v66 = vld [vmem:[%s1 + $0x108] sm:$0xff]
  %v67 = vld [vmem:[%s1 + $0x110] sm:$0xff]
  %v68 = vld [vmem:[%s1 + $0x118] sm:$0xff]
  %v69 = vld [vmem:[%s1 + $0x120] sm:$0xff]
  %v70 = vld [vmem:[%s1 + $0x128] sm:$0xff]
  %v71 = vld [vmem:[%s1 + $0x130] sm:$0xff]
  %v72 = vld [vmem:[%s1 + $0x138] sm:$0xff]
  %v73 = vld [vmem:[%s1 + $0x140] sm:$0xff]
  %v74 = vld [vmem:[%s1 + $0x148] sm:$0xff]
  %v75 = vld [vmem:[%s1 + $0x150] sm:$0xff]
  %v76 = vld [vmem:[%s1 + $0x158] sm:$0xff]
  %v77 = vld [vmem:[%s1 + $0x160] sm:$0xff]
  %v78 = vld [vmem:[%s1 + $0x168] sm:$0xff]
  %v79 = vld [vmem:[%s1 + $0x170] sm:$0xff]
  %v80 = vld [vmem:[%s1 + $0x178] sm:$0xff]
  %v81 = vld [vmem:[%s1 + $0x180] sm:$0xff]
  %v82 = vld [vmem:[%s1 + $0x188] sm:$0xff]
  %v83 = vld [vmem:[%s1 + $0x190] sm:$0xff]
  %v84 = vld [vmem:[%s1 + $0x198] sm:$0xff]
  %v85 = vld [vmem:[%s1 + $0x1a0] sm:$0xff]
  %v86 = vld [vmem:[%s1 + $0x1a8] sm:$0xff]
  %v87 = vld [vmem:[%s1 + $0x1b0] sm:$0xff]
  %v88 = vld [vmem:[%s1 + $0x1b8] sm:$0xff]
  %v89 = vld [vmem:[%s1 + $0x1c0] sm:$0xff]
  %v90 = vld [vmem:[%s1 + $0x1c8] sm:$0xff]
  %v91 = vld [vmem:[%s1 + $0x1d0] sm:$0xff]
  %v92 = vld [vmem:[%s1 + $0x1d8] sm:$0xff]
  %v93 = vld [vmem:[%s1 + $0x1e0] sm:$0xff]
  %v94 = vld [vmem:[%s1 + $0x1e8] sm:$0xff]
  %v95 = vld [vmem:[%s1 + $0x1f0] sm:$0xff]
  %v96 = vld [vmem:[%s1 + $0x1f8] sm:$0xff]
  %v97 = vld [vmem:[%s1 + $0x200] sm:$0xff]
  %v98 = vld [vmem:[%s1 + $0x208] sm:$0xff]
  %v99 = vld [vmem:[%s1 + $0x210] sm:$0xff]
  %v100 = vld [vmem:[%s1 + $0x218] sm:$0xff]
  %v101 = vld [vmem:[%s1 + $0x220] sm:$0xff]
  %v102 = vld [vmem:[%s1 + $0x228] sm:$0xff]
  %v103 = vld [vmem:[%s1 + $0x230] sm:$0xff]
  %v104 = vld [vmem:[%s1 + $0x238] sm:$0xff]
  %v105 = vld [vmem:[%s1 + $0x240] sm:$0xff]
  %v106 = vld [vmem:[%s1 + $0x248] sm:$0xff]
  %v107 = vld [vmem:[%s1 + $0x250] sm:$0xff]
  %v108 = vld [vmem:[%s1 + $0x258] sm:$0xff]
  %v109 = vld [vmem:[%s1 + $0x260] sm:$0xff]
  %v110 = vld [vmem:[%s1 + $0x268] sm:$0xff]
  %v111 = vld [vmem:[%s1 + $0x270] sm:$0xff]
  %v112 = vld [vmem:[%s1 + $0x278] sm:$0xff]
  %v113 = vld [vmem:[%s1 + $0x280] sm:$0xff]
  %v114 = vld [vmem:[%s1 + $0x288] sm:$0xff]
  %v115 = vld [vmem:[%s1 + $0x290] sm:$0xff]
  %v116 = vld [vmem:[%s1 + $0x298] sm:$0xff]
  %v117 = vld [vmem:[%s1 + $0x2a0] sm:$0xff]
  %v118 = vld [vmem:[%s1 + $0x2a8] sm:$0xff]
  %v119 = vld [vmem:[%s1 + $0x2b0] sm:$0xff]
  %v120 = vld [vmem:[%s1 + $0x2b8] sm:$0xff]
  %v121 = vld [vmem:[%s1 + $0x2c0] sm:$0xff]
  %v122 = vld [vmem:[%s1 + $0x2c8] sm:$0xff]
  %v123 = vld [vmem:[%s1 + $0x2d0] sm:$0xff]
  %v124 = vld [vmem:[%s1 + $0x2d8] sm:$0xff]
  %v125 = vld [vmem:[%s1 + $0x2e0] sm:$0xff]
  %v126 = vld [vmem:[%s1 + $0x2e8] sm:$0xff]
  %v127 = vld [vmem:[%s1 + $0x2f0] sm:$0xff]
  %v128 = vld [vmem:[%s1 + $0x2f8] sm:$0xff]
  %v129 = vld [vmem:[%s1 + $0x300] sm:$0xff]
  %v130 = vld [vmem:[%s1 + $0x308] sm:$0xff]
  %v131 = vld [vmem:[%s1 + $0x310] sm:$0xff]
  %v132 = vld [vmem:[%s1 + $0x318] sm:$0xff]
  %v133 = vld [vmem:[%s1 + $0x320] sm:$0xff]
  %v134 = vld [vmem:[%s1 + $0x328] sm:$0xff]
  %v135 = vld [vmem:[%s1 + $0x330] sm:$0xff]
  %v136 = vld [vmem:[%s1 + $0x338] sm:$0xff]
  %v137 = vld [vmem:[%s1 + $0x340] sm:$0xff]
  %v138 = vld [vmem:[%s1 + $0x348] sm:$0xff]
  %v139 = vld [vmem:[%s1 + $0x350] sm:$0xff]
  %v140 = vld [vmem:[%s1 + $0x358] sm:$0xff]
  %v141 = vld [vmem:[%s1 + $0x360] sm:$0xff]
  %v142 = vld [vmem:[%s1 + $0x368] sm:$0xff]
  %v143 = vld [vmem:[%s1 + $0x370] sm:$0xff]
  %v144 = vld [vmem:[%s1 + $0x378] sm:$0xff]
  %v145 = vld [vmem:[%s1 + $0x380] sm:$0xff]
  %v146 = vld [vmem:[%s1 + $0x388] sm:$0xff]
  %v147 = vld [vmem:[%s1 + $0x390] sm:$0xff]
  %v148 = vld [vmem:[%s1 + $0x398] sm:$0xff]
  %v149 = vld [vmem:[%s1 + $0x3a0] sm:$0xff]
  %v150 = vld [vmem:[%s1 + $0x3a8] sm:$0xff]
  %v151 = vld [vmem:[%s1 + $0x3b0] sm:$0xff]
  %v152 = vld [vmem:[%s1 + $0x3b8] sm:$0xff]
  %v153 = vld [vmem:[%s1 + $0x3c0] sm:$0xff]
  %v154 = vld [vmem:[%s1 + $0x3c8] sm:$0xff]
  %v155 = vld [vmem:[%s1 + $0x3d0] sm:$0xff]
  %v156 = vld [vmem:[%s1 + $0x3d8] sm:$0xff]
  %v157 = vld [vmem:[%s1 + $0x3e0] sm:$0xff]
  %v158 = vld [vmem:[%s1 + $0x3e8] sm:$0xff]
  %v159 = vld [vmem:[%s1 + $0x3f0] sm:$0xff]
  %v160 = vld [vmem:[%s1 + $0x3f8] sm:$0xff]
  %v161 = vld [vmem:[%s1 + $0x400] sm:$0xff]
  %v162 = vld [vmem:[%s1 + $0x408] sm:$0xff]
  %v163 = vld [vmem:[%s1 + $0x410] sm:$0xff]
  %v164 = vld [vmem:[%s1 + $0x418] sm:$0xff]
  %v165 = vld [vmem:[%s1 + $0x420] sm:$0xff]
  %v166 = vld [vmem:[%s1 + $0x428] sm:$0xff]
  %v167 = vld [vmem:[%s1 + $0x430] sm:$0xff]
  %v168 = vld [vmem:[%s1 + $0x438] sm:$0xff]
  %v169 = vld [vmem:[%s1 + $0x440] sm:$0xff]
  %v170 = vld [vmem:[%s1 + $0x448] sm:$0xff]
  %v171 = vld [vmem:[%s1 + $0x450] sm:$0xff]
  %v172 = vld [vmem:[%s1 + $0x458] sm:$0xff]
  %v173 = vld [vmem:[%s1 + $0x460] sm:$0xff]
  %v174 = vld [vmem:[%s1 + $0x468] sm:$0xff]
  %v175 = vld [vmem:[%s1 + $0x470] sm:$0xff]
  %v176 = vld [vmem:[%s1 + $0x478] sm:$0xff]
  %v177 = vld [vmem:[%s1 + $0x480] sm:$0xff]
  %v178 = vld [vmem:[%s1 + $0x488] sm:$0xff]
  %v179 = vld [vmem:[%s1 + $0x490] sm:$0xff]
  %v180 = vld [vmem:[%s1 + $0x498] sm:$0xff]
  %v181 = vld [vmem:[%s1 + $0x4a0] sm:$0xff]
  %v182 = vld [vmem:[%s1 + $0x4a8] sm:$0xff]
  %v183 = vld [vmem:[%s1 + $0x4b0] sm:$0xff]
  %v184 = vld [vmem:[%s1 + $0x4b8] sm:$0xff]
  %v185 = vld [vmem:[%s1 + $0x4c0] sm:$0xff]
  %v186 = vld [vmem:[%s1 + $0x4c8] sm:$0xff]
  %v187 = vld [vmem:[%s1 + $0x4d0] sm:$0xff]
  %v188 = vld [vmem:[%s1 + $0x4d8] sm:$0xff]
  %v189 = vld [vmem:[%s1 + $0x4e0] sm:$0xff]
  %v190 = vld [vmem:[%s1 + $0x4e8] sm:$0xff]
  %v191 = vld [vmem:[%s1 + $0x4f0] sm:$0xff]
  %v192 = vld [vmem:[%s1 + $0x4f8] sm:$0xff]
  %v193 = vld [vmem:[%s1 + $0x500] sm:$0xff]
  %v194 = vld [vmem:[%s1 + $0x508] sm:$0xff]
  %v195 = vld [vmem:[%s1 + $0x510] sm:$0xff]
  %v196 = vld [vmem:[%s1 + $0x518] sm:$0xff]
  %v197 = vld [vmem:[%s1 + $0x520] sm:$0xff]
  %v198 = vld [vmem:[%s1 + $0x528] sm:$0xff]
  %v199 = vld [vmem:[%s1 + $0x530] sm:$0xff]
  %v200 = vld [vmem:[%s1 + $0x538] sm:$0xff]
  %v201 = vld [vmem:[%s1 + $0x540] sm:$0xff]
  %v202 = vld [vmem:[%s1 + $0x548] sm:$0xff]
  %v203 = vld [vmem:[%s1 + $0x550] sm:$0xff]
  %v204 = vld [vmem:[%s1 + $0x558] sm:$0xff]
  %v205 = vld [vmem:[%s1 + $0x560] sm:$0xff]
  %v206 = vld [vmem:[%s1 + $0x568] sm:$0xff]
  %v207 = vld [vmem:[%s1 + $0x570] sm:$0xff]
  %v208 = vld [vmem:[%s1 + $0x578] sm:$0xff]
  %v209 = vld [vmem:[%s1 + $0x580] sm:$0xff]
  %v210 = vld [vmem:[%s1 + $0x588] sm:$0xff]
  %v211 = vld [vmem:[%s1 + $0x590] sm:$0xff]
  %v212 = vld [vmem:[%s1 + $0x598] sm:$0xff]
  %v213 = vld [vmem:[%s1 + $0x5a0] sm:$0xff]
  %v214 = vld [vmem:[%s1 + $0x5a8] sm:$0xff]
  %v215 = vld [vmem:[%s1 + $0x5b0] sm:$0xff]
  %v216 = vld [vmem:[%s1 + $0x5b8] sm:$0xff]
  %v217 = vld [vmem:[%s1 + $0x5c0] sm:$0xff]
  %v218 = vld [vmem:[%s1 + $0x5c8] sm:$0xff]
  %v219 = vld [vmem:[%s1 + $0x5d0] sm:$0xff]
  %v220 = vld [vmem:[%s1 + $0x5d8] sm:$0xff]
  %v221 = vld [vmem:[%s1 + $0x5e0] sm:$0xff]
  %v222 = vld [vmem:[%s1 + $0x5e8] sm:$0xff]
  %v223 = vld [vmem:[%s1 + $0x5f0] sm:$0xff]
  %v224 = vld [vmem:[%s1 + $0x5f8] sm:$0xff]
  %v225 = vld [vmem:[%s1 + $0x600] sm:$0xff]
  %v226 = vld [vmem:[%s1 + $0x608] sm:$0xff]
  %v227 = vld [vmem:[%s1 + $0x610] sm:$0xff]
  %v228 = vld [vmem:[%s1 + $0x618] sm:$0xff]
  %v229 = vld [vmem:[%s1 + $0x620] sm:$0xff]
  %v230 = vld [vmem:[%s1 + $0x628] sm:$0xff]
  %v231 = vld [vmem:[%s1 + $0x630] sm:$0xff]
  %v232 = vld [vmem:[%s1 + $0x638] sm:$0xff]
  %v233 = vld [vmem:[%s1 + $0x640] sm:$0xff]
  %v234 = vld [vmem:[%s1 + $0x648] sm:$0xff]
  %v235 = vld [vmem:[%s1 + $0x650] sm:$0xff]
  %v236 = vld [vmem:[%s1 + $0x658] sm:$0xff]
  %v237 = vld [vmem:[%s1 + $0x660] sm:$0xff]
  %v238 = vld [vmem:[%s1 + $0x668] sm:$0xff]
  %v239 = vld [vmem:[%s1 + $0x670] sm:$0xff]
  %v240 = vld [vmem:[%s1 + $0x678] sm:$0xff]
  %v241 = vld [vmem:[%s1 + $0x680] sm:$0xff]
  %v242 = vld [vmem:[%s1 + $0x688] sm:$0xff]
  %v243 = vld [vmem:[%s1 + $0x690] sm:$0xff]
  %v244 = vld [vmem:[%s1 + $0x698] sm:$0xff]
  %v245 = vld [vmem:[%s1 + $0x6a0] sm:$0xff]
  %v246 = vld [vmem:[%s1 + $0x6a8] sm:$0xff]
  %v247 = vld [vmem:[%s1 + $0x6b0] sm:$0xff]
  %v248 = vld [vmem:[%s1 + $0x6b8] sm:$0xff]
  %v249 = vld [vmem:[%s1 + $0x6c0] sm:$0xff]
  %v250 = vld [vmem:[%s1 + $0x6c8] sm:$0xff]
  %v251 = vld [vmem:[%s1 + $0x6d0] sm:$0xff]
  %v252 = vld [vmem:[%s1 + $0x6d8] sm:$0xff]
  %v253 = vld [vmem:[%s1 + $0x6e0] sm:$0xff]
  %v254 = vld [vmem:[%s1 + $0x6e8] sm:$0xff]
  %v255 = vld [vmem:[%s1 + $0x6f0] sm:$0xff]
  %v256 = vld [vmem:[%s1 + $0x6f8] sm:$0xff]
  %v257 = vld [vmem:[%s1 + $0x700] sm:$0xff]
  %v258 = vld [vmem:[%s1 + $0x708] sm:$0xff]
  %v259 = vld [vmem:[%s1 + $0x710] sm:$0xff]
  %v260 = vld [vmem:[%s1 + $0x718] sm:$0xff]
  %v261 = vld [vmem:[%s1 + $0x720] sm:$0xff]
  %v262 = vld [vmem:[%s1 + $0x728] sm:$0xff]
  %v263 = vld [vmem:[%s1 + $0x730] sm:$0xff]
  %v264 = vld [vmem:[%s1 + $0x738] sm:$0xff]
  %v265 = vld [vmem:[%s1 + $0x740] sm:$0xff]
  %v266 = vld [vmem:[%s1 + $0x748] sm:$0xff]
  %v267 = vld [vmem:[%s1 + $0x750] sm:$0xff]
  %v268 = vld [vmem:[%s1 + $0x758] sm:$0xff]
  %v269 = vld [vmem:[%s1 + $0x760] sm:$0xff]
  %v270 = vld [vmem:[%s1 + $0x768] sm:$0xff]
  %v271 = vld [vmem:[%s1 + $0x770] sm:$0xff]
  %v272 = vld [vmem:[%s1 + $0x778] sm:$0xff]
  %v273 = vld [vmem:[%s1 + $0x780] sm:$0xff]
  %v274 = vld [vmem:[%s1 + $0x788] sm:$0xff]
  %v275 = vld [vmem:[%s1 + $0x790] sm:$0xff]
  %v276 = vld [vmem:[%s1 + $0x798] sm:$0xff]
  %v277 = vld [vmem:[%s1 + $0x7a0] sm:$0xff]
  %v278 = vld [vmem:[%s1 + $0x7a8] sm:$0xff]
  %v279 = vld [vmem:[%s1 + $0x7b0] sm:$0xff]
  %v280 = vld [vmem:[%s1 + $0x7b8] sm:$0xff]
  %v281 = vld [vmem:[%s1 + $0x7c0] sm:$0xff]
  %v282 = vld [vmem:[%s1 + $0x7c8] sm:$0xff]
  %v283 = vld [vmem:[%s1 + $0x7d0] sm:$0xff]
  %v284 = vld [vmem:[%s1 + $0x7d8] sm:$0xff]
  %v285 = vld [vmem:[%s1 + $0x7e0] sm:$0xff]
  %v286 = vld [vmem:[%s1 + $0x7e8] sm:$0xff]
  %v287 = vld [vmem:[%s1 + $0x7f0] sm:$0xff]
  %v288 = vld [vmem:[%s1 + $0x7f8] sm:$0xff]
  %v289 = vld [vmem:[%s1 + $0x800] sm:$0xff]
  %v290 = vld [vmem:[%s1 + $0x808] sm:$0xff]
  %v291 = vld [vmem:[%s1 + $0x810] sm:$0xff]
  %v292 = vld [vmem:[%s1 + $0x818] sm:$0xff]
  %v293 = vld [vmem:[%s1 + $0x820] sm:$0xff]
  %v294 = vld [vmem:[%s1 + $0x828] sm:$0xff]
  %v295 = vld [vmem:[%s1 + $0x830] sm:$0xff]
  %v296 = vld [vmem:[%s1 + $0x838] sm:$0xff]
  %v297 = vld [vmem:[%s1 + $0x840] sm:$0xff]
  %v298 = vld [vmem:[%s1 + $0x848] sm:$0xff]
  %v299 = vld [vmem:[%s1 + $0x850] sm:$0xff]
  %v300 = vld [vmem:[%s1 + $0x858] sm:$0xff]
  %v301 = vld [vmem:[%s1 + $0x860] sm:$0xff]
  %v302 = vld [vmem:[%s1 + $0x868] sm:$0xff]
  %v303 = vld [vmem:[%s1 + $0x870] sm:$0xff]
  %v304 = vld [vmem:[%s1 + $0x878] sm:$0xff]
  %v305 = vld [vmem:[%s1 + $0x880] sm:$0xff]
  %v306 = vld [vmem:[%s1 + $0x888] sm:$0xff]
  %v307 = vld [vmem:[%s1 + $0x890] sm:$0xff]
  %v308 = vld [vmem:[%s1 + $0x898] sm:$0xff]
  %v309 = vld [vmem:[%s1 + $0x8a0] sm:$0xff]
  %v310 = vld [vmem:[%s1 + $0x8a8] sm:$0xff]
  %v311 = vld [vmem:[%s1 + $0x8b0] sm:$0xff]
  %v312 = vld [vmem:[%s1 + $0x8b8] sm:$0xff]
  %v313 = vld [vmem:[%s1 + $0x8c0] sm:$0xff]
  %v314 = vld [vmem:[%s1 + $0x8c8] sm:$0xff]
  %v315 = vld [vmem:[%s1 + $0x8d0] sm:$0xff]
  %v316 = vld [vmem:[%s1 + $0x8d8] sm:$0xff]
  %v317 = vld [vmem:[%s1 + $0x8e0] sm:$0xff]
  %v318 = vld [vmem:[%s1 + $0x8e8] sm:$0xff]
  %v319 = vld [vmem:[%s1 + $0x8f0] sm:$0xff]
  %v320 = vld [vmem:[%s1 + $0x8f8] sm:$0xff]
  %v321 = vld [vmem:[%s1 + $0x900] sm:$0xff]
  %v322 = vld [vmem:[%s1 + $0x908] sm:$0xff]
  %v323 = vld [vmem:[%s1 + $0x910] sm:$0xff]
  %v324 = vld [vmem:[%s1 + $0x918] sm:$0xff]
  %v325 = vld [vmem:[%s1 + $0x920] sm:$0xff]
  %v326 = vld [vmem:[%s1 + $0x928] sm:$0xff]
  %v327 = vld [vmem:[%s1 + $0x930] sm:$0xff]
  %v328 = vld [vmem:[%s1 + $0x938] sm:$0xff]
  %v329 = vld [vmem:[%s1 + $0x940] sm:$0xff]
  %v330 = vld [vmem:[%s1 + $0x948] sm:$0xff]
  %v331 = vld [vmem:[%s1 + $0x950] sm:$0xff]
  %v332 = vld [vmem:[%s1 + $0x958] sm:$0xff]
  %v333 = vld [vmem:[%s1 + $0x960] sm:$0xff]
  %v334 = vld [vmem:[%s1 + $0x968] sm:$0xff]
  %v335 = vld [vmem:[%s1 + $0x970] sm:$0xff]
  %v336 = vld [vmem:[%s1 + $0x978] sm:$0xff]
  %v337 = vld [vmem:[%s1 + $0x980] sm:$0xff]
  %v338 = vld [vmem:[%s1 + $0x988] sm:$0xff]
  %v339 = vld [vmem:[%s1 + $0x990] sm:$0xff]
  %v340 = vld [vmem:[%s1 + $0x998] sm:$0xff]
  %v341 = vld [vmem:[%s1 + $0x9a0] sm:$0xff]
  %v342 = vld [vmem:[%s1 + $0x9a8] sm:$0xff]
  %v343 = vld [vmem:[%s1 + $0x9b0] sm:$0xff]
  %v344 = vld [vmem:[%s1 + $0x9b8] sm:$0xff]
  %v345 = vld [vmem:[%s1 + $0x9c0] sm:$0xff]
  %v346 = vld [vmem:[%s1 + $0x9c8] sm:$0xff]
  %v347 = vld [vmem:[%s1 + $0x9d0] sm:$0xff]
  %v348 = vld [vmem:[%s1 + $0x9d8] sm:$0xff]
  %v349 = vld [vmem:[%s1 + $0x9e0] sm:$0xff]
  %v350 = vld [vmem:[%s1 + $0x9e8] sm:$0xff]
  %v351 = vld [vmem:[%s1 + $0x9f0] sm:$0xff]
  %v352 = vld [vmem:[%s1 + $0x9f8] sm:$0xff]
  %v353 = vld [vmem:[%s1 + $0xa00] sm:$0xff]
  %v354 = vld [vmem:[%s1 + $0xa08] sm:$0xff]
  %v355 = vld [vmem:[%s1 + $0xa10] sm:$0xff]
  %v356 = vld [vmem:[%s1 + $0xa18] sm:$0xff]
  %v357 = vld [vmem:[%s1 + $0xa20] sm:$0xff]
  %v358 = vld [vmem:[%s1 + $0xa28] sm:$0xff]
  %v359 = vld [vmem:[%s1 + $0xa30] sm:$0xff]
  %v360 = vld [vmem:[%s1 + $0xa38] sm:$0xff]
  %v361 = vld [vmem:[%s1 + $0xa40] sm:$0xff]
  %v362 = vld [vmem:[%s1 + $0xa48] sm:$0xff]
  %v363 = vld [vmem:[%s1 + $0xa50] sm:$0xff]
  %v364 = vld [vmem:[%s1 + $0xa58] sm:$0xff]
  %v365 = vld [vmem:[%s1 + $0xa60] sm:$0xff]
  %v366 = vld [vmem:[%s1 + $0xa68] sm:$0xff]
  %v367 = vld [vmem:[%s1 + $0xa70] sm:$0xff]
  %v368 = vld [vmem:[%s1 + $0xa78] sm:$0xff]
  %v369 = vld [vmem:[%s1 + $0xa80] sm:$0xff]
  %v370 = vld [vmem:[%s1 + $0xa88] sm:$0xff]
  %v371 = vld [vmem:[%s1 + $0xa90] sm:$0xff]
  %v372 = vld [vmem:[%s1 + $0xa98] sm:$0xff]
  %v373 = vld [vmem:[%s1 + $0xaa0] sm:$0xff]
  %v374 = vld [vmem:[%s1 + $0xaa8] sm:$0xff]
  %v375 = vld [vmem:[%s1 + $0xab0] sm:$0xff]
  %v376 = vld [vmem:[%s1 + $0xab8] sm:$0xff]
  %v377 = vld [vmem:[%s1 + $0xac0] sm:$0xff]
  %v378 = vld [vmem:[%s1 + $0xac8] sm:$0xff]
  %v379 = vld [vmem:[%s1 + $0xad0] sm:$0xff]
  %v380 = vld [vmem:[%s1 + $0xad8] sm:$0xff]
  %v381 = vld [vmem:[%s1 + $0xae0] sm:$0xff]
  %v382 = vld [vmem:[%s1 + $0xae8] sm:$0xff]
  %v383 = vld [vmem:[%s1 + $0xaf0] sm:$0xff]
  %v384 = vld [vmem:[%s1 + $0xaf8] sm:$0xff]
  %v385 = vld [vmem:[%s1 + $0xb00] sm:$0xff]
  %v386 = vld [vmem:[%s1 + $0xb08] sm:$0xff]
  %v387 = vld [vmem:[%s1 + $0xb10] sm:$0xff]
  %v388 = vld [vmem:[%s1 + $0xb18] sm:$0xff]
  %v389 = vld [vmem:[%s1 + $0xb20] sm:$0xff]
  %v390 = vld [vmem:[%s1 + $0xb28] sm:$0xff]
  %v391 = vld [vmem:[%s1 + $0xb30] sm:$0xff]
  %v392 = vld [vmem:[%s1 + $0xb38] sm:$0xff]
  %v393 = vld [vmem:[%s1 + $0xb40] sm:$0xff]
  %v394 = vld [vmem:[%s1 + $0xb48] sm:$0xff]
  %v395 = vld [vmem:[%s1 + $0xb50] sm:$0xff]
  %v396 = vld [vmem:[%s1 + $0xb58] sm:$0xff]
  %v397 = vld [vmem:[%s1 + $0xb60] sm:$0xff]
  %v398 = vld [vmem:[%s1 + $0xb68] sm:$0xff]
  %v399 = vld [vmem:[%s1 + $0xb70] sm:$0xff]
  %v400 = vld [vmem:[%s1 + $0xb78] sm:$0xff]
  %v401 = vld [vmem:[%s1 + $0xb80] sm:$0xff]
  %v402 = vld [vmem:[%s1 + $0xb88] sm:$0xff]
  %v403 = vld [vmem:[%s1 + $0xb90] sm:$0xff]
  %v404 = vld [vmem:[%s1 + $0xb98] sm:$0xff]
  %v405 = vld [vmem:[%s1 + $0xba0] sm:$0xff]
  %v406 = vld [vmem:[%s1 + $0xba8] sm:$0xff]
  %v407 = vld [vmem:[%s1 + $0xbb0] sm:$0xff]
  %v408 = vld [vmem:[%s1 + $0xbb8] sm:$0xff]
  %v409 = vld [vmem:[%s1 + $0xbc0] sm:$0xff]
  %v410 = vld [vmem:[%s1 + $0xbc8] sm:$0xff]
  %v411 = vld [vmem:[%s1 + $0xbd0] sm:$0xff]
  %v412 = vld [vmem:[%s1 + $0xbd8] sm:$0xff]
  %v413 = vld [vmem:[%s1 + $0xbe0] sm:$0xff]
  %v414 = vld [vmem:[%s1 + $0xbe8] sm:$0xff]
  %v415 = vld [vmem:[%s1 + $0xbf0] sm:$0xff]
  %v416 = vld [vmem:[%s1 + $0xbf8] sm:$0xff]
  %v417 = vld [vmem:[%s0] sm:$0xff]
  %v418 = vld [vmem:[%s0 + $0x8] sm:$0xff]
  %v419 = vld [vmem:[%s0 + $0x10] sm:$0xff]
  %v420 = vld [vmem:[%s0 + $0x18] sm:$0xff]
  %v421 = vld [vmem:[%s0 + $0x20] sm:$0xff]
  %v422 = vld [vmem:[%s0 + $0x28] sm:$0xff]
  %v423 = vld [vmem:[%s0 + $0x30] sm:$0xff]
  %v424 = vld [vmem:[%s0 + $0x38] sm:$0xff]
  %v425 = vld [vmem:[%s0 + $0x40] sm:$0xff]
  %v426 = vld [vmem:[%s0 + $0x48] sm:$0xff]
  %v427 = vld [vmem:[%s0 + $0x50] sm:$0xff]
  %v428 = vld [vmem:[%s0 + $0x58] sm:$0xff]
  %v429 = vpack.c.bf16 %v417, %v417
  %v430 = vpack.c.bf16 %v418, %v418
  %v431 = vpack.c.bf16 %v419, %v419
  %v432 = vpack.c.bf16 %v420, %v420
  %v433 = vpack.c.bf16 %v421, %v421
  %v434 = vpack.c.bf16 %v422, %v422
  %v435 = vpack.c.bf16 %v423, %v423
  %v436 = vpack.c.bf16 %v424, %v424
  %v437 = vpack.c.bf16 %v425, %v425
  %v438 = vpack.c.bf16 %v426, %v426
  %v439 = vpack.c.bf16 %v427, %v427
  %v440 = vpack.c.bf16 %v428, %v428
  %v441 = vld [vmem:[%s2] sm:$0xf]
  %v443 = vlaneseq
  %v444 = vshrl.u32 %v443, 7
  %v445 = vsub.s32 0, %v444
  %v446 = vrot.slane %v441, %v445
  %v447 = vlaneseq
  %v448 = vshrl.u32 %v447, 7
  %v449 = vsub.s32 1, %v448
  %v450 = vrot.slane %v441, %v449
  %v451 = vlaneseq
  %v452 = vshrl.u32 %v451, 7
  %v453 = vsub.s32 2, %v452
  %v454 = vrot.slane %v441, %v453
  %v455 = vlaneseq
  %v456 = vshrl.u32 %v455, 7
  %v457 = vsub.s32 3, %v456
  %v458 = vrot.slane %v441, %v457
  %v847 = vunpack.c.l.b16 %v33
  %v848 = vunpack.c.h.b16 %v33
  %v849 = vunpack.c.l.b16 %v34
  %v850 = vunpack.c.h.b16 %v34
  %v851 = vunpack.c.l.b16 %v35
  %v852 = vunpack.c.h.b16 %v35
  %v853 = vunpack.c.l.b16 %v36
  %v854 = vunpack.c.h.b16 %v36
  %v855 = vunpack.c.l.b16 %v37
  %v856 = vunpack.c.h.b16 %v37
  %v857 = vunpack.c.l.b16 %v38
  %v858 = vunpack.c.h.b16 %v38
  %v859 = vunpack.c.l.b16 %v39
  %v860 = vunpack.c.h.b16 %v39
  %v861 = vunpack.c.l.b16 %v40
  %v862 = vunpack.c.h.b16 %v40
  %v863 = vunpack.c.l.b16 %v41
  %v864 = vunpack.c.h.b16 %v41
  %v865 = vunpack.c.l.b16 %v42
  %v866 = vunpack.c.h.b16 %v42
  %v867 = vunpack.c.l.b16 %v43
  %v868 = vunpack.c.h.b16 %v43
  %v869 = vunpack.c.l.b16 %v44
  %v870 = vunpack.c.h.b16 %v44
  %v871 = vunpack.c.l.b16 %v45
  %v872 = vunpack.c.h.b16 %v45
  %v873 = vunpack.c.l.b16 %v46
  %v874 = vunpack.c.h.b16 %v46
  %v875 = vunpack.c.l.b16 %v47
  %v876 = vunpack.c.h.b16 %v47
  %v877 = vunpack.c.l.b16 %v48
  %v878 = vunpack.c.h.b16 %v48
  %v879 = vunpack.c.l.b16 %v49
  %v880 = vunpack.c.h.b16 %v49
  %v881 = vunpack.c.l.b16 %v50
  %v882 = vunpack.c.h.b16 %v50
  %v883 = vunpack.c.l.b16 %v51
  %v884 = vunpack.c.h.b16 %v51
  %v885 = vunpack.c.l.b16 %v52
  %v886 = vunpack.c.h.b16 %v52
  %v887 = vunpack.c.l.b16 %v53
  %v888 = vunpack.c.h.b16 %v53
  %v889 = vunpack.c.l.b16 %v54
  %v890 = vunpack.c.h.b16 %v54
  %v891 = vunpack.c.l.b16 %v55
  %v892 = vunpack.c.h.b16 %v55
  %v893 = vunpack.c.l.b16 %v56
  %v894 = vunpack.c.h.b16 %v56
  %v895 = vunpack.c.l.b16 %v57
  %v896 = vunpack.c.h.b16 %v57
  %v897 = vunpack.c.l.b16 %v58
  %v898 = vunpack.c.h.b16 %v58
  %v899 = vunpack.c.l.b16 %v59
  %v900 = vunpack.c.h.b16 %v59
  %v901 = vunpack.c.l.b16 %v60
  %v902 = vunpack.c.h.b16 %v60
  %v903 = vunpack.c.l.b16 %v61
  %v904 = vunpack.c.h.b16 %v61
  %v905 = vunpack.c.l.b16 %v62
  %v906 = vunpack.c.h.b16 %v62
  %v907 = vunpack.c.l.b16 %v63
  %v908 = vunpack.c.h.b16 %v63
  %v909 = vunpack.c.l.b16 %v64
  %v910 = vunpack.c.h.b16 %v64
  %v911 = vunpack.c.l.b16 %v65
  %v912 = vunpack.c.h.b16 %v65
  %v913 = vunpack.c.l.b16 %v66
  %v914 = vunpack.c.h.b16 %v66
  %v915 = vunpack.c.l.b16 %v67
  %v916 = vunpack.c.h.b16 %v67
  %v917 = vunpack.c.l.b16 %v68
  %v918 = vunpack.c.h.b16 %v68
  %v919 = vunpack.c.l.b16 %v69
  %v920 = vunpack.c.h.b16 %v69
  %v921 = vunpack.c.l.b16 %v70
  %v922 = vunpack.c.h.b16 %v70
  %v923 = vunpack.c.l.b16 %v71
  %v924 = vunpack.c.h.b16 %v71
  %v925 = vunpack.c.l.b16 %v72
  %v926 = vunpack.c.h.b16 %v72
  %v927 = vunpack.c.l.b16 %v73
  %v928 = vunpack.c.h.b16 %v73
  %v929 = vunpack.c.l.b16 %v74
  %v930 = vunpack.c.h.b16 %v74
  %v931 = vunpack.c.l.b16 %v75
  %v932 = vunpack.c.h.b16 %v75
  %v933 = vunpack.c.l.b16 %v76
  %v934 = vunpack.c.h.b16 %v76
  %v935 = vunpack.c.l.b16 %v77
  %v936 = vunpack.c.h.b16 %v77
  %v937 = vunpack.c.l.b16 %v78
  %v938 = vunpack.c.h.b16 %v78
  %v939 = vunpack.c.l.b16 %v79
  %v940 = vunpack.c.h.b16 %v79
  %v941 = vunpack.c.l.b16 %v80
  %v942 = vunpack.c.h.b16 %v80
  %v943 = vunpack.c.l.b16 %v81
  %v944 = vunpack.c.h.b16 %v81
  %v945 = vunpack.c.l.b16 %v82
  %v946 = vunpack.c.h.b16 %v82
  %v947 = vunpack.c.l.b16 %v83
  %v948 = vunpack.c.h.b16 %v83
  %v949 = vunpack.c.l.b16 %v84
  %v950 = vunpack.c.h.b16 %v84
  %v951 = vunpack.c.l.b16 %v85
  %v952 = vunpack.c.h.b16 %v85
  %v953 = vunpack.c.l.b16 %v86
  %v954 = vunpack.c.h.b16 %v86
  %v955 = vunpack.c.l.b16 %v87
  %v956 = vunpack.c.h.b16 %v87
  %v957 = vunpack.c.l.b16 %v88
  %v958 = vunpack.c.h.b16 %v88
  %v959 = vunpack.c.l.b16 %v89
  %v960 = vunpack.c.h.b16 %v89
  %v961 = vunpack.c.l.b16 %v90
  %v962 = vunpack.c.h.b16 %v90
  %v963 = vunpack.c.l.b16 %v91
  %v964 = vunpack.c.h.b16 %v91
  %v965 = vunpack.c.l.b16 %v92
  %v966 = vunpack.c.h.b16 %v92
  %v967 = vunpack.c.l.b16 %v93
  %v968 = vunpack.c.h.b16 %v93
  %v969 = vunpack.c.l.b16 %v94
  %v970 = vunpack.c.h.b16 %v94
  %v971 = vunpack.c.l.b16 %v95
  %v972 = vunpack.c.h.b16 %v95
  %v973 = vunpack.c.l.b16 %v96
  %v974 = vunpack.c.h.b16 %v96
  %v975 = vunpack.c.l.b16 %v97
  %v976 = vunpack.c.h.b16 %v97
  %v977 = vunpack.c.l.b16 %v98
  %v978 = vunpack.c.h.b16 %v98
  %v979 = vunpack.c.l.b16 %v99
  %v980 = vunpack.c.h.b16 %v99
  %v981 = vunpack.c.l.b16 %v100
  %v982 = vunpack.c.h.b16 %v100
  %v983 = vunpack.c.l.b16 %v101
  %v984 = vunpack.c.h.b16 %v101
  %v985 = vunpack.c.l.b16 %v102
  %v986 = vunpack.c.h.b16 %v102
  %v987 = vunpack.c.l.b16 %v103
  %v988 = vunpack.c.h.b16 %v103
  %v989 = vunpack.c.l.b16 %v104
  %v990 = vunpack.c.h.b16 %v104
  %v991 = vunpack.c.l.b16 %v105
  %v992 = vunpack.c.h.b16 %v105
  %v993 = vunpack.c.l.b16 %v106
  %v994 = vunpack.c.h.b16 %v106
  %v995 = vunpack.c.l.b16 %v107
  %v996 = vunpack.c.h.b16 %v107
  %v997 = vunpack.c.l.b16 %v108
  %v998 = vunpack.c.h.b16 %v108
  %v999 = vunpack.c.l.b16 %v109
  %v1000 = vunpack.c.h.b16 %v109
  %v1001 = vunpack.c.l.b16 %v110
  %v1002 = vunpack.c.h.b16 %v110
  %v1003 = vunpack.c.l.b16 %v111
  %v1004 = vunpack.c.h.b16 %v111
  %v1005 = vunpack.c.l.b16 %v112
  %v1006 = vunpack.c.h.b16 %v112
  %v1007 = vunpack.c.l.b16 %v113
  %v1008 = vunpack.c.h.b16 %v113
  %v1009 = vunpack.c.l.b16 %v114
  %v1010 = vunpack.c.h.b16 %v114
  %v1011 = vunpack.c.l.b16 %v115
  %v1012 = vunpack.c.h.b16 %v115
  %v1013 = vunpack.c.l.b16 %v116
  %v1014 = vunpack.c.h.b16 %v116
  %v1015 = vunpack.c.l.b16 %v117
  %v1016 = vunpack.c.h.b16 %v117
  %v1017 = vunpack.c.l.b16 %v118
  %v1018 = vunpack.c.h.b16 %v118
  %v1019 = vunpack.c.l.b16 %v119
  %v1020 = vunpack.c.h.b16 %v119
  %v1021 = vunpack.c.l.b16 %v120
  %v1022 = vunpack.c.h.b16 %v120
  %v1023 = vunpack.c.l.b16 %v121
  %v1024 = vunpack.c.h.b16 %v121
  %v1025 = vunpack.c.l.b16 %v122
  %v1026 = vunpack.c.h.b16 %v122
  %v1027 = vunpack.c.l.b16 %v123
  %v1028 = vunpack.c.h.b16 %v123
  %v1029 = vunpack.c.l.b16 %v124
  %v1030 = vunpack.c.h.b16 %v124
  %v1031 = vunpack.c.l.b16 %v125
  %v1032 = vunpack.c.h.b16 %v125
  %v1033 = vunpack.c.l.b16 %v126
  %v1034 = vunpack.c.h.b16 %v126
  %v1035 = vunpack.c.l.b16 %v127
  %v1036 = vunpack.c.h.b16 %v127
  %v1037 = vunpack.c.l.b16 %v128
  %v1038 = vunpack.c.h.b16 %v128
  %v1039 = vunpack.c.l.b16 %v129
  %v1040 = vunpack.c.h.b16 %v129
  %v1041 = vunpack.c.l.b16 %v130
  %v1042 = vunpack.c.h.b16 %v130
  %v1043 = vunpack.c.l.b16 %v131
  %v1044 = vunpack.c.h.b16 %v131
  %v1045 = vunpack.c.l.b16 %v132
  %v1046 = vunpack.c.h.b16 %v132
  %v1047 = vunpack.c.l.b16 %v133
  %v1048 = vunpack.c.h.b16 %v133
  %v1049 = vunpack.c.l.b16 %v134
  %v1050 = vunpack.c.h.b16 %v134
  %v1051 = vunpack.c.l.b16 %v135
  %v1052 = vunpack.c.h.b16 %v135
  %v1053 = vunpack.c.l.b16 %v136
  %v1054 = vunpack.c.h.b16 %v136
  %v1055 = vunpack.c.l.b16 %v137
  %v1056 = vunpack.c.h.b16 %v137
  %v1057 = vunpack.c.l.b16 %v138
  %v1058 = vunpack.c.h.b16 %v138
  %v1059 = vunpack.c.l.b16 %v139
  %v1060 = vunpack.c.h.b16 %v139
  %v1061 = vunpack.c.l.b16 %v140
  %v1062 = vunpack.c.h.b16 %v140
  %v1063 = vunpack.c.l.b16 %v141
  %v1064 = vunpack.c.h.b16 %v141
  %v1065 = vunpack.c.l.b16 %v142
  %v1066 = vunpack.c.h.b16 %v142
  %v1067 = vunpack.c.l.b16 %v143
  %v1068 = vunpack.c.h.b16 %v143
  %v1069 = vunpack.c.l.b16 %v144
  %v1070 = vunpack.c.h.b16 %v144
  %v1071 = vunpack.c.l.b16 %v145
  %v1072 = vunpack.c.h.b16 %v145
  %v1073 = vunpack.c.l.b16 %v146
  %v1074 = vunpack.c.h.b16 %v146
  %v1075 = vunpack.c.l.b16 %v147
  %v1076 = vunpack.c.h.b16 %v147
  %v1077 = vunpack.c.l.b16 %v148
  %v1078 = vunpack.c.h.b16 %v148
  %v1079 = vunpack.c.l.b16 %v149
  %v1080 = vunpack.c.h.b16 %v149
  %v1081 = vunpack.c.l.b16 %v150
  %v1082 = vunpack.c.h.b16 %v150
  %v1083 = vunpack.c.l.b16 %v151
  %v1084 = vunpack.c.h.b16 %v151
  %v1085 = vunpack.c.l.b16 %v152
  %v1086 = vunpack.c.h.b16 %v152
  %v1087 = vunpack.c.l.b16 %v153
  %v1088 = vunpack.c.h.b16 %v153
  %v1089 = vunpack.c.l.b16 %v154
  %v1090 = vunpack.c.h.b16 %v154
  %v1091 = vunpack.c.l.b16 %v155
  %v1092 = vunpack.c.h.b16 %v155
  %v1093 = vunpack.c.l.b16 %v156
  %v1094 = vunpack.c.h.b16 %v156
  %v1095 = vunpack.c.l.b16 %v157
  %v1096 = vunpack.c.h.b16 %v157
  %v1097 = vunpack.c.l.b16 %v158
  %v1098 = vunpack.c.h.b16 %v158
  %v1099 = vunpack.c.l.b16 %v159
  %v1100 = vunpack.c.h.b16 %v159
  %v1101 = vunpack.c.l.b16 %v160
  %v1102 = vunpack.c.h.b16 %v160
  %v1103 = vunpack.c.l.b16 %v161
  %v1104 = vunpack.c.h.b16 %v161
  %v1105 = vunpack.c.l.b16 %v162
  %v1106 = vunpack.c.h.b16 %v162
  %v1107 = vunpack.c.l.b16 %v163
  %v1108 = vunpack.c.h.b16 %v163
  %v1109 = vunpack.c.l.b16 %v164
  %v1110 = vunpack.c.h.b16 %v164
  %v1111 = vunpack.c.l.b16 %v165
  %v1112 = vunpack.c.h.b16 %v165
  %v1113 = vunpack.c.l.b16 %v166
  %v1114 = vunpack.c.h.b16 %v166
  %v1115 = vunpack.c.l.b16 %v167
  %v1116 = vunpack.c.h.b16 %v167
  %v1117 = vunpack.c.l.b16 %v168
  %v1118 = vunpack.c.h.b16 %v168
  %v1119 = vunpack.c.l.b16 %v169
  %v1120 = vunpack.c.h.b16 %v169
  %v1121 = vunpack.c.l.b16 %v170
  %v1122 = vunpack.c.h.b16 %v170
  %v1123 = vunpack.c.l.b16 %v171
  %v1124 = vunpack.c.h.b16 %v171
  %v1125 = vunpack.c.l.b16 %v172
  %v1126 = vunpack.c.h.b16 %v172
  %v1127 = vunpack.c.l.b16 %v173
  %v1128 = vunpack.c.h.b16 %v173
  %v1129 = vunpack.c.l.b16 %v174
  %v1130 = vunpack.c.h.b16 %v174
  %v1131 = vunpack.c.l.b16 %v175
  %v1132 = vunpack.c.h.b16 %v175
  %v1133 = vunpack.c.l.b16 %v176
  %v1134 = vunpack.c.h.b16 %v176
  %v1135 = vunpack.c.l.b16 %v177
  %v1136 = vunpack.c.h.b16 %v177
  %v1137 = vunpack.c.l.b16 %v178
  %v1138 = vunpack.c.h.b16 %v178
  %v1139 = vunpack.c.l.b16 %v179
  %v1140 = vunpack.c.h.b16 %v179
  %v1141 = vunpack.c.l.b16 %v180
  %v1142 = vunpack.c.h.b16 %v180
  %v1143 = vunpack.c.l.b16 %v181
  %v1144 = vunpack.c.h.b16 %v181
  %v1145 = vunpack.c.l.b16 %v182
  %v1146 = vunpack.c.h.b16 %v182
  %v1147 = vunpack.c.l.b16 %v183
  %v1148 = vunpack.c.h.b16 %v183
  %v1149 = vunpack.c.l.b16 %v184
  %v1150 = vunpack.c.h.b16 %v184
  %v1151 = vunpack.c.l.b16 %v185
  %v1152 = vunpack.c.h.b16 %v185
  %v1153 = vunpack.c.l.b16 %v186
  %v1154 = vunpack.c.h.b16 %v186
  %v1155 = vunpack.c.l.b16 %v187
  %v1156 = vunpack.c.h.b16 %v187
  %v1157 = vunpack.c.l.b16 %v188
  %v1158 = vunpack.c.h.b16 %v188
  %v1159 = vunpack.c.l.b16 %v189
  %v1160 = vunpack.c.h.b16 %v189
  %v1161 = vunpack.c.l.b16 %v190
  %v1162 = vunpack.c.h.b16 %v190
  %v1163 = vunpack.c.l.b16 %v191
  %v1164 = vunpack.c.h.b16 %v191
  %v1165 = vunpack.c.l.b16 %v192
  %v1166 = vunpack.c.h.b16 %v192
  %v1167 = vunpack.c.l.b16 %v193
  %v1168 = vunpack.c.h.b16 %v193
  %v1169 = vunpack.c.l.b16 %v194
  %v1170 = vunpack.c.h.b16 %v194
  %v1171 = vunpack.c.l.b16 %v195
  %v1172 = vunpack.c.h.b16 %v195
  %v1173 = vunpack.c.l.b16 %v196
  %v1174 = vunpack.c.h.b16 %v196
  %v1175 = vunpack.c.l.b16 %v197
  %v1176 = vunpack.c.h.b16 %v197
  %v1177 = vunpack.c.l.b16 %v198
  %v1178 = vunpack.c.h.b16 %v198
  %v1179 = vunpack.c.l.b16 %v199
  %v1180 = vunpack.c.h.b16 %v199
  %v1181 = vunpack.c.l.b16 %v200
  %v1182 = vunpack.c.h.b16 %v200
  %v1183 = vunpack.c.l.b16 %v201
  %v1184 = vunpack.c.h.b16 %v201
  %v1185 = vunpack.c.l.b16 %v202
  %v1186 = vunpack.c.h.b16 %v202
  %v1187 = vunpack.c.l.b16 %v203
  %v1188 = vunpack.c.h.b16 %v203
  %v1189 = vunpack.c.l.b16 %v204
  %v1190 = vunpack.c.h.b16 %v204
  %v1191 = vunpack.c.l.b16 %v205
  %v1192 = vunpack.c.h.b16 %v205
  %v1193 = vunpack.c.l.b16 %v206
  %v1194 = vunpack.c.h.b16 %v206
  %v1195 = vunpack.c.l.b16 %v207
  %v1196 = vunpack.c.h.b16 %v207
  %v1197 = vunpack.c.l.b16 %v208
  %v1198 = vunpack.c.h.b16 %v208
  %v1199 = vunpack.c.l.b16 %v209
  %v1200 = vunpack.c.h.b16 %v209
  %v1201 = vunpack.c.l.b16 %v210
  %v1202 = vunpack.c.h.b16 %v210
  %v1203 = vunpack.c.l.b16 %v211
  %v1204 = vunpack.c.h.b16 %v211
  %v1205 = vunpack.c.l.b16 %v212
  %v1206 = vunpack.c.h.b16 %v212
  %v1207 = vunpack.c.l.b16 %v213
  %v1208 = vunpack.c.h.b16 %v213
  %v1209 = vunpack.c.l.b16 %v214
  %v1210 = vunpack.c.h.b16 %v214
  %v1211 = vunpack.c.l.b16 %v215
  %v1212 = vunpack.c.h.b16 %v215
  %v1213 = vunpack.c.l.b16 %v216
  %v1214 = vunpack.c.h.b16 %v216
  %v1215 = vunpack.c.l.b16 %v217
  %v1216 = vunpack.c.h.b16 %v217
  %v1217 = vunpack.c.l.b16 %v218
  %v1218 = vunpack.c.h.b16 %v218
  %v1219 = vunpack.c.l.b16 %v219
  %v1220 = vunpack.c.h.b16 %v219
  %v1221 = vunpack.c.l.b16 %v220
  %v1222 = vunpack.c.h.b16 %v220
  %v1223 = vunpack.c.l.b16 %v221
  %v1224 = vunpack.c.h.b16 %v221
  %v1225 = vunpack.c.l.b16 %v222
  %v1226 = vunpack.c.h.b16 %v222
  %v1227 = vunpack.c.l.b16 %v223
  %v1228 = vunpack.c.h.b16 %v223
  %v1229 = vunpack.c.l.b16 %v224
  %v1230 = vunpack.c.h.b16 %v224
  %v1231 = vunpack.c.l.b16 %v225
  %v1232 = vunpack.c.h.b16 %v225
  %v1233 = vunpack.c.l.b16 %v226
  %v1234 = vunpack.c.h.b16 %v226
  %v1235 = vunpack.c.l.b16 %v227
  %v1236 = vunpack.c.h.b16 %v227
  %v1237 = vunpack.c.l.b16 %v228
  %v1238 = vunpack.c.h.b16 %v228
  %v1239 = vunpack.c.l.b16 %v229
  %v1240 = vunpack.c.h.b16 %v229
  %v1241 = vunpack.c.l.b16 %v230
  %v1242 = vunpack.c.h.b16 %v230
  %v1243 = vunpack.c.l.b16 %v231
  %v1244 = vunpack.c.h.b16 %v231
  %v1245 = vunpack.c.l.b16 %v232
  %v1246 = vunpack.c.h.b16 %v232
  %v1247 = vunpack.c.l.b16 %v233
  %v1248 = vunpack.c.h.b16 %v233
  %v1249 = vunpack.c.l.b16 %v234
  %v1250 = vunpack.c.h.b16 %v234
  %v1251 = vunpack.c.l.b16 %v235
  %v1252 = vunpack.c.h.b16 %v235
  %v1253 = vunpack.c.l.b16 %v236
  %v1254 = vunpack.c.h.b16 %v236
  %v1255 = vunpack.c.l.b16 %v237
  %v1256 = vunpack.c.h.b16 %v237
  %v1257 = vunpack.c.l.b16 %v238
  %v1258 = vunpack.c.h.b16 %v238
  %v1259 = vunpack.c.l.b16 %v239
  %v1260 = vunpack.c.h.b16 %v239
  %v1261 = vunpack.c.l.b16 %v240
  %v1262 = vunpack.c.h.b16 %v240
  %v1263 = vunpack.c.l.b16 %v241
  %v1264 = vunpack.c.h.b16 %v241
  %v1265 = vunpack.c.l.b16 %v242
  %v1266 = vunpack.c.h.b16 %v242
  %v1267 = vunpack.c.l.b16 %v243
  %v1268 = vunpack.c.h.b16 %v243
  %v1269 = vunpack.c.l.b16 %v244
  %v1270 = vunpack.c.h.b16 %v244
  %v1271 = vunpack.c.l.b16 %v245
  %v1272 = vunpack.c.h.b16 %v245
  %v1273 = vunpack.c.l.b16 %v246
  %v1274 = vunpack.c.h.b16 %v246
  %v1275 = vunpack.c.l.b16 %v247
  %v1276 = vunpack.c.h.b16 %v247
  %v1277 = vunpack.c.l.b16 %v248
  %v1278 = vunpack.c.h.b16 %v248
  %v1279 = vunpack.c.l.b16 %v249
  %v1280 = vunpack.c.h.b16 %v249
  %v1281 = vunpack.c.l.b16 %v250
  %v1282 = vunpack.c.h.b16 %v250
  %v1283 = vunpack.c.l.b16 %v251
  %v1284 = vunpack.c.h.b16 %v251
  %v1285 = vunpack.c.l.b16 %v252
  %v1286 = vunpack.c.h.b16 %v252
  %v1287 = vunpack.c.l.b16 %v253
  %v1288 = vunpack.c.h.b16 %v253
  %v1289 = vunpack.c.l.b16 %v254
  %v1290 = vunpack.c.h.b16 %v254
  %v1291 = vunpack.c.l.b16 %v255
  %v1292 = vunpack.c.h.b16 %v255
  %v1293 = vunpack.c.l.b16 %v256
  %v1294 = vunpack.c.h.b16 %v256
  %v1295 = vunpack.c.l.b16 %v257
  %v1296 = vunpack.c.h.b16 %v257
  %v1297 = vunpack.c.l.b16 %v258
  %v1298 = vunpack.c.h.b16 %v258
  %v1299 = vunpack.c.l.b16 %v259
  %v1300 = vunpack.c.h.b16 %v259
  %v1301 = vunpack.c.l.b16 %v260
  %v1302 = vunpack.c.h.b16 %v260
  %v1303 = vunpack.c.l.b16 %v261
  %v1304 = vunpack.c.h.b16 %v261
  %v1305 = vunpack.c.l.b16 %v262
  %v1306 = vunpack.c.h.b16 %v262
  %v1307 = vunpack.c.l.b16 %v263
  %v1308 = vunpack.c.h.b16 %v263
  %v1309 = vunpack.c.l.b16 %v264
  %v1310 = vunpack.c.h.b16 %v264
  %v1311 = vunpack.c.l.b16 %v265
  %v1312 = vunpack.c.h.b16 %v265
  %v1313 = vunpack.c.l.b16 %v266
  %v1314 = vunpack.c.h.b16 %v266
  %v1315 = vunpack.c.l.b16 %v267
  %v1316 = vunpack.c.h.b16 %v267
  %v1317 = vunpack.c.l.b16 %v268
  %v1318 = vunpack.c.h.b16 %v268
  %v1319 = vunpack.c.l.b16 %v269
  %v1320 = vunpack.c.h.b16 %v269
  %v1321 = vunpack.c.l.b16 %v270
  %v1322 = vunpack.c.h.b16 %v270
  %v1323 = vunpack.c.l.b16 %v271
  %v1324 = vunpack.c.h.b16 %v271
  %v1325 = vunpack.c.l.b16 %v272
  %v1326 = vunpack.c.h.b16 %v272
  %v1327 = vunpack.c.l.b16 %v273
  %v1328 = vunpack.c.h.b16 %v273
  %v1329 = vunpack.c.l.b16 %v274
  %v1330 = vunpack.c.h.b16 %v274
  %v1331 = vunpack.c.l.b16 %v275
  %v1332 = vunpack.c.h.b16 %v275
  %v1333 = vunpack.c.l.b16 %v276
  %v1334 = vunpack.c.h.b16 %v276
  %v1335 = vunpack.c.l.b16 %v277
  %v1336 = vunpack.c.h.b16 %v277
  %v1337 = vunpack.c.l.b16 %v278
  %v1338 = vunpack.c.h.b16 %v278
  %v1339 = vunpack.c.l.b16 %v279
  %v1340 = vunpack.c.h.b16 %v279
  %v1341 = vunpack.c.l.b16 %v280
  %v1342 = vunpack.c.h.b16 %v280
  %v1343 = vunpack.c.l.b16 %v281
  %v1344 = vunpack.c.h.b16 %v281
  %v1345 = vunpack.c.l.b16 %v282
  %v1346 = vunpack.c.h.b16 %v282
  %v1347 = vunpack.c.l.b16 %v283
  %v1348 = vunpack.c.h.b16 %v283
  %v1349 = vunpack.c.l.b16 %v284
  %v1350 = vunpack.c.h.b16 %v284
  %v1351 = vunpack.c.l.b16 %v285
  %v1352 = vunpack.c.h.b16 %v285
  %v1353 = vunpack.c.l.b16 %v286
  %v1354 = vunpack.c.h.b16 %v286
  %v1355 = vunpack.c.l.b16 %v287
  %v1356 = vunpack.c.h.b16 %v287
  %v1357 = vunpack.c.l.b16 %v288
  %v1358 = vunpack.c.h.b16 %v288
  %v1359 = vunpack.c.l.b16 %v289
  %v1360 = vunpack.c.h.b16 %v289
  %v1361 = vunpack.c.l.b16 %v290
  %v1362 = vunpack.c.h.b16 %v290
  %v1363 = vunpack.c.l.b16 %v291
  %v1364 = vunpack.c.h.b16 %v291
  %v1365 = vunpack.c.l.b16 %v292
  %v1366 = vunpack.c.h.b16 %v292
  %v1367 = vunpack.c.l.b16 %v293
  %v1368 = vunpack.c.h.b16 %v293
  %v1369 = vunpack.c.l.b16 %v294
  %v1370 = vunpack.c.h.b16 %v294
  %v1371 = vunpack.c.l.b16 %v295
  %v1372 = vunpack.c.h.b16 %v295
  %v1373 = vunpack.c.l.b16 %v296
  %v1374 = vunpack.c.h.b16 %v296
  %v1375 = vunpack.c.l.b16 %v297
  %v1376 = vunpack.c.h.b16 %v297
  %v1377 = vunpack.c.l.b16 %v298
  %v1378 = vunpack.c.h.b16 %v298
  %v1379 = vunpack.c.l.b16 %v299
  %v1380 = vunpack.c.h.b16 %v299
  %v1381 = vunpack.c.l.b16 %v300
  %v1382 = vunpack.c.h.b16 %v300
  %v1383 = vunpack.c.l.b16 %v301
  %v1384 = vunpack.c.h.b16 %v301
  %v1385 = vunpack.c.l.b16 %v302
  %v1386 = vunpack.c.h.b16 %v302
  %v1387 = vunpack.c.l.b16 %v303
  %v1388 = vunpack.c.h.b16 %v303
  %v1389 = vunpack.c.l.b16 %v304
  %v1390 = vunpack.c.h.b16 %v304
  %v1391 = vunpack.c.l.b16 %v305
  %v1392 = vunpack.c.h.b16 %v305
  %v1393 = vunpack.c.l.b16 %v306
  %v1394 = vunpack.c.h.b16 %v306
  %v1395 = vunpack.c.l.b16 %v307
  %v1396 = vunpack.c.h.b16 %v307
  %v1397 = vunpack.c.l.b16 %v308
  %v1398 = vunpack.c.h.b16 %v308
  %v1399 = vunpack.c.l.b16 %v309
  %v1400 = vunpack.c.h.b16 %v309
  %v1401 = vunpack.c.l.b16 %v310
  %v1402 = vunpack.c.h.b16 %v310
  %v1403 = vunpack.c.l.b16 %v311
  %v1404 = vunpack.c.h.b16 %v311
  %v1405 = vunpack.c.l.b16 %v312
  %v1406 = vunpack.c.h.b16 %v312
  %v1407 = vunpack.c.l.b16 %v313
  %v1408 = vunpack.c.h.b16 %v313
  %v1409 = vunpack.c.l.b16 %v314
  %v1410 = vunpack.c.h.b16 %v314
  %v1411 = vunpack.c.l.b16 %v315
  %v1412 = vunpack.c.h.b16 %v315
  %v1413 = vunpack.c.l.b16 %v316
  %v1414 = vunpack.c.h.b16 %v316
  %v1415 = vunpack.c.l.b16 %v317
  %v1416 = vunpack.c.h.b16 %v317
  %v1417 = vunpack.c.l.b16 %v318
  %v1418 = vunpack.c.h.b16 %v318
  %v1419 = vunpack.c.l.b16 %v319
  %v1420 = vunpack.c.h.b16 %v319
  %v1421 = vunpack.c.l.b16 %v320
  %v1422 = vunpack.c.h.b16 %v320
  %v1423 = vunpack.c.l.b16 %v321
  %v1424 = vunpack.c.h.b16 %v321
  %v1425 = vunpack.c.l.b16 %v322
  %v1426 = vunpack.c.h.b16 %v322
  %v1427 = vunpack.c.l.b16 %v323
  %v1428 = vunpack.c.h.b16 %v323
  %v1429 = vunpack.c.l.b16 %v324
  %v1430 = vunpack.c.h.b16 %v324
  %v1431 = vunpack.c.l.b16 %v325
  %v1432 = vunpack.c.h.b16 %v325
  %v1433 = vunpack.c.l.b16 %v326
  %v1434 = vunpack.c.h.b16 %v326
  %v1435 = vunpack.c.l.b16 %v327
  %v1436 = vunpack.c.h.b16 %v327
  %v1437 = vunpack.c.l.b16 %v328
  %v1438 = vunpack.c.h.b16 %v328
  %v1439 = vunpack.c.l.b16 %v329
  %v1440 = vunpack.c.h.b16 %v329
  %v1441 = vunpack.c.l.b16 %v330
  %v1442 = vunpack.c.h.b16 %v330
  %v1443 = vunpack.c.l.b16 %v331
  %v1444 = vunpack.c.h.b16 %v331
  %v1445 = vunpack.c.l.b16 %v332
  %v1446 = vunpack.c.h.b16 %v332
  %v1447 = vunpack.c.l.b16 %v333
  %v1448 = vunpack.c.h.b16 %v333
  %v1449 = vunpack.c.l.b16 %v334
  %v1450 = vunpack.c.h.b16 %v334
  %v1451 = vunpack.c.l.b16 %v335
  %v1452 = vunpack.c.h.b16 %v335
  %v1453 = vunpack.c.l.b16 %v336
  %v1454 = vunpack.c.h.b16 %v336
  %v1455 = vunpack.c.l.b16 %v337
  %v1456 = vunpack.c.h.b16 %v337
  %v1457 = vunpack.c.l.b16 %v338
  %v1458 = vunpack.c.h.b16 %v338
  %v1459 = vunpack.c.l.b16 %v339
  %v1460 = vunpack.c.h.b16 %v339
  %v1461 = vunpack.c.l.b16 %v340
  %v1462 = vunpack.c.h.b16 %v340
  %v1463 = vunpack.c.l.b16 %v341
  %v1464 = vunpack.c.h.b16 %v341
  %v1465 = vunpack.c.l.b16 %v342
  %v1466 = vunpack.c.h.b16 %v342
  %v1467 = vunpack.c.l.b16 %v343
  %v1468 = vunpack.c.h.b16 %v343
  %v1469 = vunpack.c.l.b16 %v344
  %v1470 = vunpack.c.h.b16 %v344
  %v1471 = vunpack.c.l.b16 %v345
  %v1472 = vunpack.c.h.b16 %v345
  %v1473 = vunpack.c.l.b16 %v346
  %v1474 = vunpack.c.h.b16 %v346
  %v1475 = vunpack.c.l.b16 %v347
  %v1476 = vunpack.c.h.b16 %v347
  %v1477 = vunpack.c.l.b16 %v348
  %v1478 = vunpack.c.h.b16 %v348
  %v1479 = vunpack.c.l.b16 %v349
  %v1480 = vunpack.c.h.b16 %v349
  %v1481 = vunpack.c.l.b16 %v350
  %v1482 = vunpack.c.h.b16 %v350
  %v1483 = vunpack.c.l.b16 %v351
  %v1484 = vunpack.c.h.b16 %v351
  %v1485 = vunpack.c.l.b16 %v352
  %v1486 = vunpack.c.h.b16 %v352
  %v1487 = vunpack.c.l.b16 %v353
  %v1488 = vunpack.c.h.b16 %v353
  %v1489 = vunpack.c.l.b16 %v354
  %v1490 = vunpack.c.h.b16 %v354
  %v1491 = vunpack.c.l.b16 %v355
  %v1492 = vunpack.c.h.b16 %v355
  %v1493 = vunpack.c.l.b16 %v356
  %v1494 = vunpack.c.h.b16 %v356
  %v1495 = vunpack.c.l.b16 %v357
  %v1496 = vunpack.c.h.b16 %v357
  %v1497 = vunpack.c.l.b16 %v358
  %v1498 = vunpack.c.h.b16 %v358
  %v1499 = vunpack.c.l.b16 %v359
  %v1500 = vunpack.c.h.b16 %v359
  %v1501 = vunpack.c.l.b16 %v360
  %v1502 = vunpack.c.h.b16 %v360
  %v1503 = vunpack.c.l.b16 %v361
  %v1504 = vunpack.c.h.b16 %v361
  %v1505 = vunpack.c.l.b16 %v362
  %v1506 = vunpack.c.h.b16 %v362
  %v1507 = vunpack.c.l.b16 %v363
  %v1508 = vunpack.c.h.b16 %v363
  %v1509 = vunpack.c.l.b16 %v364
  %v1510 = vunpack.c.h.b16 %v364
  %v1511 = vunpack.c.l.b16 %v365
  %v1512 = vunpack.c.h.b16 %v365
  %v1513 = vunpack.c.l.b16 %v366
  %v1514 = vunpack.c.h.b16 %v366
  %v1515 = vunpack.c.l.b16 %v367
  %v1516 = vunpack.c.h.b16 %v367
  %v1517 = vunpack.c.l.b16 %v368
  %v1518 = vunpack.c.h.b16 %v368
  %v1519 = vunpack.c.l.b16 %v369
  %v1520 = vunpack.c.h.b16 %v369
  %v1521 = vunpack.c.l.b16 %v370
  %v1522 = vunpack.c.h.b16 %v370
  %v1523 = vunpack.c.l.b16 %v371
  %v1524 = vunpack.c.h.b16 %v371
  %v1525 = vunpack.c.l.b16 %v372
  %v1526 = vunpack.c.h.b16 %v372
  %v1527 = vunpack.c.l.b16 %v373
  %v1528 = vunpack.c.h.b16 %v373
  %v1529 = vunpack.c.l.b16 %v374
  %v1530 = vunpack.c.h.b16 %v374
  %v1531 = vunpack.c.l.b16 %v375
  %v1532 = vunpack.c.h.b16 %v375
  %v1533 = vunpack.c.l.b16 %v376
  %v1534 = vunpack.c.h.b16 %v376
  %v1535 = vunpack.c.l.b16 %v377
  %v1536 = vunpack.c.h.b16 %v377
  %v1537 = vunpack.c.l.b16 %v378
  %v1538 = vunpack.c.h.b16 %v378
  %v1539 = vunpack.c.l.b16 %v379
  %v1540 = vunpack.c.h.b16 %v379
  %v1541 = vunpack.c.l.b16 %v380
  %v1542 = vunpack.c.h.b16 %v380
  %v1543 = vunpack.c.l.b16 %v381
  %v1544 = vunpack.c.h.b16 %v381
  %v1545 = vunpack.c.l.b16 %v382
  %v1546 = vunpack.c.h.b16 %v382
  %v1547 = vunpack.c.l.b16 %v383
  %v1548 = vunpack.c.h.b16 %v383
  %v1549 = vunpack.c.l.b16 %v384
  %v1550 = vunpack.c.h.b16 %v384
  %v1551 = vunpack.c.l.b16 %v385
  %v1552 = vunpack.c.h.b16 %v385
  %v1553 = vunpack.c.l.b16 %v386
  %v1554 = vunpack.c.h.b16 %v386
  %v1555 = vunpack.c.l.b16 %v387
  %v1556 = vunpack.c.h.b16 %v387
  %v1557 = vunpack.c.l.b16 %v388
  %v1558 = vunpack.c.h.b16 %v388
  %v1559 = vunpack.c.l.b16 %v389
  %v1560 = vunpack.c.h.b16 %v389
  %v1561 = vunpack.c.l.b16 %v390
  %v1562 = vunpack.c.h.b16 %v390
  %v1563 = vunpack.c.l.b16 %v391
  %v1564 = vunpack.c.h.b16 %v391
  %v1565 = vunpack.c.l.b16 %v392
  %v1566 = vunpack.c.h.b16 %v392
  %v1567 = vunpack.c.l.b16 %v393
  %v1568 = vunpack.c.h.b16 %v393
  %v1569 = vunpack.c.l.b16 %v394
  %v1570 = vunpack.c.h.b16 %v394
  %v1571 = vunpack.c.l.b16 %v395
  %v1572 = vunpack.c.h.b16 %v395
  %v1573 = vunpack.c.l.b16 %v396
  %v1574 = vunpack.c.h.b16 %v396
  %v1575 = vunpack.c.l.b16 %v397
  %v1576 = vunpack.c.h.b16 %v397
  %v1577 = vunpack.c.l.b16 %v398
  %v1578 = vunpack.c.h.b16 %v398
  %v1579 = vunpack.c.l.b16 %v399
  %v1580 = vunpack.c.h.b16 %v399
  %v1581 = vunpack.c.l.b16 %v400
  %v1582 = vunpack.c.h.b16 %v400
  %v1583 = vunpack.c.l.b16 %v401
  %v1584 = vunpack.c.h.b16 %v401
  %v1585 = vunpack.c.l.b16 %v402
  %v1586 = vunpack.c.h.b16 %v402
  %v1587 = vunpack.c.l.b16 %v403
  %v1588 = vunpack.c.h.b16 %v403
  %v1589 = vunpack.c.l.b16 %v404
  %v1590 = vunpack.c.h.b16 %v404
  %v1591 = vunpack.c.l.b16 %v405
  %v1592 = vunpack.c.h.b16 %v405
  %v1593 = vunpack.c.l.b16 %v406
  %v1594 = vunpack.c.h.b16 %v406
  %v1595 = vunpack.c.l.b16 %v407
  %v1596 = vunpack.c.h.b16 %v407
  %v1597 = vunpack.c.l.b16 %v408
  %v1598 = vunpack.c.h.b16 %v408
  %v1599 = vunpack.c.l.b16 %v409
  %v1600 = vunpack.c.h.b16 %v409
  %v1601 = vunpack.c.l.b16 %v410
  %v1602 = vunpack.c.h.b16 %v410
  %v1603 = vunpack.c.l.b16 %v411
  %v1604 = vunpack.c.h.b16 %v411
  %v1605 = vunpack.c.l.b16 %v412
  %v1606 = vunpack.c.h.b16 %v412
  %v1607 = vunpack.c.l.b16 %v413
  %v1608 = vunpack.c.h.b16 %v413
  %v1609 = vunpack.c.l.b16 %v414
  %v1610 = vunpack.c.h.b16 %v414
  %v1611 = vunpack.c.l.b16 %v415
  %v1612 = vunpack.c.h.b16 %v415
  %v1613 = vunpack.c.l.b16 %v416
  %v1614 = vunpack.c.h.b16 %v416
  %v1615 = vpack.c.b16 %v851, %v847
  %v1616 = vpack.c.b16 %v852, %v848
  %v1617 = vpack.c.b16 %v853, %v849
  %v1618 = vpack.c.b16 %v854, %v850
  %v1619 = vpack.c.b16 %v859, %v855
  %v1620 = vpack.c.b16 %v860, %v856
  %v1621 = vpack.c.b16 %v861, %v857
  %v1622 = vpack.c.b16 %v862, %v858
  %v1623 = vpack.c.b16 %v867, %v863
  %v1624 = vpack.c.b16 %v868, %v864
  %v1625 = vpack.c.b16 %v869, %v865
  %v1626 = vpack.c.b16 %v870, %v866
  %v1627 = vpack.c.b16 %v875, %v871
  %v1628 = vpack.c.b16 %v876, %v872
  %v1629 = vpack.c.b16 %v877, %v873
  %v1630 = vpack.c.b16 %v878, %v874
  %v1631 = vpack.c.b16 %v883, %v879
  %v1632 = vpack.c.b16 %v884, %v880
  %v1633 = vpack.c.b16 %v885, %v881
  %v1634 = vpack.c.b16 %v886, %v882
  %v1635 = vpack.c.b16 %v891, %v887
  %v1636 = vpack.c.b16 %v892, %v888
  %v1637 = vpack.c.b16 %v893, %v889
  %v1638 = vpack.c.b16 %v894, %v890
  %v1639 = vpack.c.b16 %v899, %v895
  %v1640 = vpack.c.b16 %v900, %v896
  %v1641 = vpack.c.b16 %v901, %v897
  %v1642 = vpack.c.b16 %v902, %v898
  %v1643 = vpack.c.b16 %v907, %v903
  %v1644 = vpack.c.b16 %v908, %v904
  %v1645 = vpack.c.b16 %v909, %v905
  %v1646 = vpack.c.b16 %v910, %v906
  %v1647 = vpack.c.b16 %v915, %v911
  %v1648 = vpack.c.b16 %v916, %v912
  %v1649 = vpack.c.b16 %v917, %v913
  %v1650 = vpack.c.b16 %v918, %v914
  %v1651 = vpack.c.b16 %v923, %v919
  %v1652 = vpack.c.b16 %v924, %v920
  %v1653 = vpack.c.b16 %v925, %v921
  %v1654 = vpack.c.b16 %v926, %v922
  %v1655 = vpack.c.b16 %v931, %v927
  %v1656 = vpack.c.b16 %v932, %v928
  %v1657 = vpack.c.b16 %v933, %v929
  %v1658 = vpack.c.b16 %v934, %v930
  %v1659 = vpack.c.b16 %v939, %v935
  %v1660 = vpack.c.b16 %v940, %v936
  %v1661 = vpack.c.b16 %v941, %v937
  %v1662 = vpack.c.b16 %v942, %v938
  %v1663 = vpack.c.b16 %v947, %v943
  %v1664 = vpack.c.b16 %v948, %v944
  %v1665 = vpack.c.b16 %v949, %v945
  %v1666 = vpack.c.b16 %v950, %v946
  %v1667 = vpack.c.b16 %v955, %v951
  %v1668 = vpack.c.b16 %v956, %v952
  %v1669 = vpack.c.b16 %v957, %v953
  %v1670 = vpack.c.b16 %v958, %v954
  %v1671 = vpack.c.b16 %v963, %v959
  %v1672 = vpack.c.b16 %v964, %v960
  %v1673 = vpack.c.b16 %v965, %v961
  %v1674 = vpack.c.b16 %v966, %v962
  %v1675 = vpack.c.b16 %v971, %v967
  %v1676 = vpack.c.b16 %v972, %v968
  %v1677 = vpack.c.b16 %v973, %v969
  %v1678 = vpack.c.b16 %v974, %v970
  %v1679 = vpack.c.b16 %v979, %v975
  %v1680 = vpack.c.b16 %v980, %v976
  %v1681 = vpack.c.b16 %v981, %v977
  %v1682 = vpack.c.b16 %v982, %v978
  %v1683 = vpack.c.b16 %v987, %v983
  %v1684 = vpack.c.b16 %v988, %v984
  %v1685 = vpack.c.b16 %v989, %v985
  %v1686 = vpack.c.b16 %v990, %v986
  %v1687 = vpack.c.b16 %v995, %v991
  %v1688 = vpack.c.b16 %v996, %v992
  %v1689 = vpack.c.b16 %v997, %v993
  %v1690 = vpack.c.b16 %v998, %v994
  %v1691 = vpack.c.b16 %v1003, %v999
  %v1692 = vpack.c.b16 %v1004, %v1000
  %v1693 = vpack.c.b16 %v1005, %v1001
  %v1694 = vpack.c.b16 %v1006, %v1002
  %v1695 = vpack.c.b16 %v1011, %v1007
  %v1696 = vpack.c.b16 %v1012, %v1008
  %v1697 = vpack.c.b16 %v1013, %v1009
  %v1698 = vpack.c.b16 %v1014, %v1010
  %v1699 = vpack.c.b16 %v1019, %v1015
  %v1700 = vpack.c.b16 %v1020, %v1016
  %v1701 = vpack.c.b16 %v1021, %v1017
  %v1702 = vpack.c.b16 %v1022, %v1018
  %v1703 = vpack.c.b16 %v1027, %v1023
  %v1704 = vpack.c.b16 %v1028, %v1024
  %v1705 = vpack.c.b16 %v1029, %v1025
  %v1706 = vpack.c.b16 %v1030, %v1026
  %v1707 = vpack.c.b16 %v1035, %v1031
  %v1708 = vpack.c.b16 %v1036, %v1032
  %v1709 = vpack.c.b16 %v1037, %v1033
  %v1710 = vpack.c.b16 %v1038, %v1034
  %v1711 = vpack.c.b16 %v1043, %v1039
  %v1712 = vpack.c.b16 %v1044, %v1040
  %v1713 = vpack.c.b16 %v1045, %v1041
  %v1714 = vpack.c.b16 %v1046, %v1042
  %v1715 = vpack.c.b16 %v1051, %v1047
  %v1716 = vpack.c.b16 %v1052, %v1048
  %v1717 = vpack.c.b16 %v1053, %v1049
  %v1718 = vpack.c.b16 %v1054, %v1050
  %v1719 = vpack.c.b16 %v1059, %v1055
  %v1720 = vpack.c.b16 %v1060, %v1056
  %v1721 = vpack.c.b16 %v1061, %v1057
  %v1722 = vpack.c.b16 %v1062, %v1058
  %v1723 = vpack.c.b16 %v1067, %v1063
  %v1724 = vpack.c.b16 %v1068, %v1064
  %v1725 = vpack.c.b16 %v1069, %v1065
  %v1726 = vpack.c.b16 %v1070, %v1066
  %v1727 = vpack.c.b16 %v1075, %v1071
  %v1728 = vpack.c.b16 %v1076, %v1072
  %v1729 = vpack.c.b16 %v1077, %v1073
  %v1730 = vpack.c.b16 %v1078, %v1074
  %v1731 = vpack.c.b16 %v1083, %v1079
  %v1732 = vpack.c.b16 %v1084, %v1080
  %v1733 = vpack.c.b16 %v1085, %v1081
  %v1734 = vpack.c.b16 %v1086, %v1082
  %v1735 = vpack.c.b16 %v1091, %v1087
  %v1736 = vpack.c.b16 %v1092, %v1088
  %v1737 = vpack.c.b16 %v1093, %v1089
  %v1738 = vpack.c.b16 %v1094, %v1090
  %v1739 = vpack.c.b16 %v1099, %v1095
  %v1740 = vpack.c.b16 %v1100, %v1096
  %v1741 = vpack.c.b16 %v1101, %v1097
  %v1742 = vpack.c.b16 %v1102, %v1098
  %v1743 = vpack.c.b16 %v1107, %v1103
  %v1744 = vpack.c.b16 %v1108, %v1104
  %v1745 = vpack.c.b16 %v1109, %v1105
  %v1746 = vpack.c.b16 %v1110, %v1106
  %v1747 = vpack.c.b16 %v1115, %v1111
  %v1748 = vpack.c.b16 %v1116, %v1112
  %v1749 = vpack.c.b16 %v1117, %v1113
  %v1750 = vpack.c.b16 %v1118, %v1114
  %v1751 = vpack.c.b16 %v1123, %v1119
  %v1752 = vpack.c.b16 %v1124, %v1120
  %v1753 = vpack.c.b16 %v1125, %v1121
  %v1754 = vpack.c.b16 %v1126, %v1122
  %v1755 = vpack.c.b16 %v1131, %v1127
  %v1756 = vpack.c.b16 %v1132, %v1128
  %v1757 = vpack.c.b16 %v1133, %v1129
  %v1758 = vpack.c.b16 %v1134, %v1130
  %v1759 = vpack.c.b16 %v1139, %v1135
  %v1760 = vpack.c.b16 %v1140, %v1136
  %v1761 = vpack.c.b16 %v1141, %v1137
  %v1762 = vpack.c.b16 %v1142, %v1138
  %v1763 = vpack.c.b16 %v1147, %v1143
  %v1764 = vpack.c.b16 %v1148, %v1144
  %v1765 = vpack.c.b16 %v1149, %v1145
  %v1766 = vpack.c.b16 %v1150, %v1146
  %v1767 = vpack.c.b16 %v1155, %v1151
  %v1768 = vpack.c.b16 %v1156, %v1152
  %v1769 = vpack.c.b16 %v1157, %v1153
  %v1770 = vpack.c.b16 %v1158, %v1154
  %v1771 = vpack.c.b16 %v1163, %v1159
  %v1772 = vpack.c.b16 %v1164, %v1160
  %v1773 = vpack.c.b16 %v1165, %v1161
  %v1774 = vpack.c.b16 %v1166, %v1162
  %v1775 = vpack.c.b16 %v1171, %v1167
  %v1776 = vpack.c.b16 %v1172, %v1168
  %v1777 = vpack.c.b16 %v1173, %v1169
  %v1778 = vpack.c.b16 %v1174, %v1170
  %v1779 = vpack.c.b16 %v1179, %v1175
  %v1780 = vpack.c.b16 %v1180, %v1176
  %v1781 = vpack.c.b16 %v1181, %v1177
  %v1782 = vpack.c.b16 %v1182, %v1178
  %v1783 = vpack.c.b16 %v1187, %v1183
  %v1784 = vpack.c.b16 %v1188, %v1184
  %v1785 = vpack.c.b16 %v1189, %v1185
  %v1786 = vpack.c.b16 %v1190, %v1186
  %v1787 = vpack.c.b16 %v1195, %v1191
  %v1788 = vpack.c.b16 %v1196, %v1192
  %v1789 = vpack.c.b16 %v1197, %v1193
  %v1790 = vpack.c.b16 %v1198, %v1194
  %v1791 = vpack.c.b16 %v1203, %v1199
  %v1792 = vpack.c.b16 %v1204, %v1200
  %v1793 = vpack.c.b16 %v1205, %v1201
  %v1794 = vpack.c.b16 %v1206, %v1202
  %v1795 = vpack.c.b16 %v1211, %v1207
  %v1796 = vpack.c.b16 %v1212, %v1208
  %v1797 = vpack.c.b16 %v1213, %v1209
  %v1798 = vpack.c.b16 %v1214, %v1210
  %v1799 = vpack.c.b16 %v1219, %v1215
  %v1800 = vpack.c.b16 %v1220, %v1216
  %v1801 = vpack.c.b16 %v1221, %v1217
  %v1802 = vpack.c.b16 %v1222, %v1218
  %v1803 = vpack.c.b16 %v1227, %v1223
  %v1804 = vpack.c.b16 %v1228, %v1224
  %v1805 = vpack.c.b16 %v1229, %v1225
  %v1806 = vpack.c.b16 %v1230, %v1226
  %v1807 = vpack.c.b16 %v1235, %v1231
  %v1808 = vpack.c.b16 %v1236, %v1232
  %v1809 = vpack.c.b16 %v1237, %v1233
  %v1810 = vpack.c.b16 %v1238, %v1234
  %v1811 = vpack.c.b16 %v1243, %v1239
  %v1812 = vpack.c.b16 %v1244, %v1240
  %v1813 = vpack.c.b16 %v1245, %v1241
  %v1814 = vpack.c.b16 %v1246, %v1242
  %v1815 = vpack.c.b16 %v1251, %v1247
  %v1816 = vpack.c.b16 %v1252, %v1248
  %v1817 = vpack.c.b16 %v1253, %v1249
  %v1818 = vpack.c.b16 %v1254, %v1250
  %v1819 = vpack.c.b16 %v1259, %v1255
  %v1820 = vpack.c.b16 %v1260, %v1256
  %v1821 = vpack.c.b16 %v1261, %v1257
  %v1822 = vpack.c.b16 %v1262, %v1258
  %v1823 = vpack.c.b16 %v1267, %v1263
  %v1824 = vpack.c.b16 %v1268, %v1264
  %v1825 = vpack.c.b16 %v1269, %v1265
  %v1826 = vpack.c.b16 %v1270, %v1266
  %v1827 = vpack.c.b16 %v1275, %v1271
  %v1828 = vpack.c.b16 %v1276, %v1272
  %v1829 = vpack.c.b16 %v1277, %v1273
  %v1830 = vpack.c.b16 %v1278, %v1274
  %v1831 = vpack.c.b16 %v1283, %v1279
  %v1832 = vpack.c.b16 %v1284, %v1280
  %v1833 = vpack.c.b16 %v1285, %v1281
  %v1834 = vpack.c.b16 %v1286, %v1282
  %v1835 = vpack.c.b16 %v1291, %v1287
  %v1836 = vpack.c.b16 %v1292, %v1288
  %v1837 = vpack.c.b16 %v1293, %v1289
  %v1838 = vpack.c.b16 %v1294, %v1290
  %v1839 = vpack.c.b16 %v1299, %v1295
  %v1840 = vpack.c.b16 %v1300, %v1296
  %v1841 = vpack.c.b16 %v1301, %v1297
  %v1842 = vpack.c.b16 %v1302, %v1298
  %v1843 = vpack.c.b16 %v1307, %v1303
  %v1844 = vpack.c.b16 %v1308, %v1304
  %v1845 = vpack.c.b16 %v1309, %v1305
  %v1846 = vpack.c.b16 %v1310, %v1306
  %v1847 = vpack.c.b16 %v1315, %v1311
  %v1848 = vpack.c.b16 %v1316, %v1312
  %v1849 = vpack.c.b16 %v1317, %v1313
  %v1850 = vpack.c.b16 %v1318, %v1314
  %v1851 = vpack.c.b16 %v1323, %v1319
  %v1852 = vpack.c.b16 %v1324, %v1320
  %v1853 = vpack.c.b16 %v1325, %v1321
  %v1854 = vpack.c.b16 %v1326, %v1322
  %v1855 = vpack.c.b16 %v1331, %v1327
  %v1856 = vpack.c.b16 %v1332, %v1328
  %v1857 = vpack.c.b16 %v1333, %v1329
  %v1858 = vpack.c.b16 %v1334, %v1330
  %v1859 = vpack.c.b16 %v1339, %v1335
  %v1860 = vpack.c.b16 %v1340, %v1336
  %v1861 = vpack.c.b16 %v1341, %v1337
  %v1862 = vpack.c.b16 %v1342, %v1338
  %v1863 = vpack.c.b16 %v1347, %v1343
  %v1864 = vpack.c.b16 %v1348, %v1344
  %v1865 = vpack.c.b16 %v1349, %v1345
  %v1866 = vpack.c.b16 %v1350, %v1346
  %v1867 = vpack.c.b16 %v1355, %v1351
  %v1868 = vpack.c.b16 %v1356, %v1352
  %v1869 = vpack.c.b16 %v1357, %v1353
  %v1870 = vpack.c.b16 %v1358, %v1354
  %v1871 = vpack.c.b16 %v1363, %v1359
  %v1872 = vpack.c.b16 %v1364, %v1360
  %v1873 = vpack.c.b16 %v1365, %v1361
  %v1874 = vpack.c.b16 %v1366, %v1362
  %v1875 = vpack.c.b16 %v1371, %v1367
  %v1876 = vpack.c.b16 %v1372, %v1368
  %v1877 = vpack.c.b16 %v1373, %v1369
  %v1878 = vpack.c.b16 %v1374, %v1370
  %v1879 = vpack.c.b16 %v1379, %v1375
  %v1880 = vpack.c.b16 %v1380, %v1376
  %v1881 = vpack.c.b16 %v1381, %v1377
  %v1882 = vpack.c.b16 %v1382, %v1378
  %v1883 = vpack.c.b16 %v1387, %v1383
  %v1884 = vpack.c.b16 %v1388, %v1384
  %v1885 = vpack.c.b16 %v1389, %v1385
  %v1886 = vpack.c.b16 %v1390, %v1386
  %v1887 = vpack.c.b16 %v1395, %v1391
  %v1888 = vpack.c.b16 %v1396, %v1392
  %v1889 = vpack.c.b16 %v1397, %v1393
  %v1890 = vpack.c.b16 %v1398, %v1394
  %v1891 = vpack.c.b16 %v1403, %v1399
  %v1892 = vpack.c.b16 %v1404, %v1400
  %v1893 = vpack.c.b16 %v1405, %v1401
  %v1894 = vpack.c.b16 %v1406, %v1402
  %v1895 = vpack.c.b16 %v1411, %v1407
  %v1896 = vpack.c.b16 %v1412, %v1408
  %v1897 = vpack.c.b16 %v1413, %v1409
  %v1898 = vpack.c.b16 %v1414, %v1410
  %v1899 = vpack.c.b16 %v1419, %v1415
  %v1900 = vpack.c.b16 %v1420, %v1416
  %v1901 = vpack.c.b16 %v1421, %v1417
  %v1902 = vpack.c.b16 %v1422, %v1418
  %v1903 = vpack.c.b16 %v1427, %v1423
  %v1904 = vpack.c.b16 %v1428, %v1424
  %v1905 = vpack.c.b16 %v1429, %v1425
  %v1906 = vpack.c.b16 %v1430, %v1426
  %v1907 = vpack.c.b16 %v1435, %v1431
  %v1908 = vpack.c.b16 %v1436, %v1432
  %v1909 = vpack.c.b16 %v1437, %v1433
  %v1910 = vpack.c.b16 %v1438, %v1434
  %v1911 = vpack.c.b16 %v1443, %v1439
  %v1912 = vpack.c.b16 %v1444, %v1440
  %v1913 = vpack.c.b16 %v1445, %v1441
  %v1914 = vpack.c.b16 %v1446, %v1442
  %v1915 = vpack.c.b16 %v1451, %v1447
  %v1916 = vpack.c.b16 %v1452, %v1448
  %v1917 = vpack.c.b16 %v1453, %v1449
  %v1918 = vpack.c.b16 %v1454, %v1450
  %v1919 = vpack.c.b16 %v1459, %v1455
  %v1920 = vpack.c.b16 %v1460, %v1456
  %v1921 = vpack.c.b16 %v1461, %v1457
  %v1922 = vpack.c.b16 %v1462, %v1458
  %v1923 = vpack.c.b16 %v1467, %v1463
  %v1924 = vpack.c.b16 %v1468, %v1464
  %v1925 = vpack.c.b16 %v1469, %v1465
  %v1926 = vpack.c.b16 %v1470, %v1466
  %v1927 = vpack.c.b16 %v1475, %v1471
  %v1928 = vpack.c.b16 %v1476, %v1472
  %v1929 = vpack.c.b16 %v1477, %v1473
  %v1930 = vpack.c.b16 %v1478, %v1474
  %v1931 = vpack.c.b16 %v1483, %v1479
  %v1932 = vpack.c.b16 %v1484, %v1480
  %v1933 = vpack.c.b16 %v1485, %v1481
  %v1934 = vpack.c.b16 %v1486, %v1482
  %v1935 = vpack.c.b16 %v1491, %v1487
  %v1936 = vpack.c.b16 %v1492, %v1488
  %v1937 = vpack.c.b16 %v1493, %v1489
  %v1938 = vpack.c.b16 %v1494, %v1490
  %v1939 = vpack.c.b16 %v1499, %v1495
  %v1940 = vpack.c.b16 %v1500, %v1496
  %v1941 = vpack.c.b16 %v1501, %v1497
  %v1942 = vpack.c.b16 %v1502, %v1498
  %v1943 = vpack.c.b16 %v1507, %v1503
  %v1944 = vpack.c.b16 %v1508, %v1504
  %v1945 = vpack.c.b16 %v1509, %v1505
  %v1946 = vpack.c.b16 %v1510, %v1506
  %v1947 = vpack.c.b16 %v1515, %v1511
  %v1948 = vpack.c.b16 %v1516, %v1512
  %v1949 = vpack.c.b16 %v1517, %v1513
  %v1950 = vpack.c.b16 %v1518, %v1514
  %v1951 = vpack.c.b16 %v1523, %v1519
  %v1952 = vpack.c.b16 %v1524, %v1520
  %v1953 = vpack.c.b16 %v1525, %v1521
  %v1954 = vpack.c.b16 %v1526, %v1522
  %v1955 = vpack.c.b16 %v1531, %v1527
  %v1956 = vpack.c.b16 %v1532, %v1528
  %v1957 = vpack.c.b16 %v1533, %v1529
  %v1958 = vpack.c.b16 %v1534, %v1530
  %v1959 = vpack.c.b16 %v1539, %v1535
  %v1960 = vpack.c.b16 %v1540, %v1536
  %v1961 = vpack.c.b16 %v1541, %v1537
  %v1962 = vpack.c.b16 %v1542, %v1538
  %v1963 = vpack.c.b16 %v1547, %v1543
  %v1964 = vpack.c.b16 %v1548, %v1544
  %v1965 = vpack.c.b16 %v1549, %v1545
  %v1966 = vpack.c.b16 %v1550, %v1546
  %v1967 = vpack.c.b16 %v1555, %v1551
  %v1968 = vpack.c.b16 %v1556, %v1552
  %v1969 = vpack.c.b16 %v1557, %v1553
  %v1970 = vpack.c.b16 %v1558, %v1554
  %v1971 = vpack.c.b16 %v1563, %v1559
  %v1972 = vpack.c.b16 %v1564, %v1560
  %v1973 = vpack.c.b16 %v1565, %v1561
  %v1974 = vpack.c.b16 %v1566, %v1562
  %v1975 = vpack.c.b16 %v1571, %v1567
  %v1976 = vpack.c.b16 %v1572, %v1568
  %v1977 = vpack.c.b16 %v1573, %v1569
  %v1978 = vpack.c.b16 %v1574, %v1570
  %v1979 = vpack.c.b16 %v1579, %v1575
  %v1980 = vpack.c.b16 %v1580, %v1576
  %v1981 = vpack.c.b16 %v1581, %v1577
  %v1982 = vpack.c.b16 %v1582, %v1578
  %v1983 = vpack.c.b16 %v1587, %v1583
  %v1984 = vpack.c.b16 %v1588, %v1584
  %v1985 = vpack.c.b16 %v1589, %v1585
  %v1986 = vpack.c.b16 %v1590, %v1586
  %v1987 = vpack.c.b16 %v1595, %v1591
  %v1988 = vpack.c.b16 %v1596, %v1592
  %v1989 = vpack.c.b16 %v1597, %v1593
  %v1990 = vpack.c.b16 %v1598, %v1594
  %v1991 = vpack.c.b16 %v1603, %v1599
  %v1992 = vpack.c.b16 %v1604, %v1600
  %v1993 = vpack.c.b16 %v1605, %v1601
  %v1994 = vpack.c.b16 %v1606, %v1602
  %v1995 = vpack.c.b16 %v1611, %v1607
  %v1996 = vpack.c.b16 %v1612, %v1608
  %v1997 = vpack.c.b16 %v1613, %v1609
  %v1998 = vpack.c.b16 %v1614, %v1610
  %2383 = vmatprep.subr.bf16.mxu0 %v1616
  %2384 = vmatpush1.bf16.msra.mxu0 %v1615
  %2385 = vmatprep.subr.bf16.mxu0 %v1620
  %2386 = vmatpush1.bf16.msra.mxu0 %v1619
  %2387 = vmatprep.subr.bf16.mxu0 %v1624
  %2388 = vmatpush1.bf16.msra.mxu0 %v1623
  %2389 = vmatprep.subr.bf16.mxu0 %v1628
  %2390 = vmatpush1.bf16.msra.mxu0 %v1627
  %2391 = vmatprep.subr.bf16.mxu0 %v1632
  %2392 = vmatpush1.bf16.msra.mxu0 %v1631
  %2393 = vmatprep.subr.bf16.mxu0 %v1636
  %2394 = vmatpush1.bf16.msra.mxu0 %v1635
  %2395 = vmatprep.subr.bf16.mxu0 %v1640
  %2396 = vmatpush1.bf16.msra.mxu0 %v1639
  %2397 = vmatprep.subr.bf16.mxu0 %v1644
  %2398 = vmatpush1.bf16.msra.mxu0 %v1643
  %2399 = vmatprep.subr.bf16.mxu0 %v1648
  %2400 = vmatpush1.bf16.msra.mxu0 %v1647
  %2401 = vmatprep.subr.bf16.mxu0 %v1652
  %2402 = vmatpush1.bf16.msra.mxu0 %v1651
  %2403 = vmatprep.subr.bf16.mxu0 %v1656
  %2404 = vmatpush1.bf16.msra.mxu0 %v1655
  %2405 = vmatprep.subr.bf16.mxu0 %v1660
  %2406 = vmatpush1.bf16.msra.mxu0 %v1659
  %2407 = vmatprep.subr.bf16.mxu0 %v1664
  %2408 = vmatpush1.bf16.msra.mxu0 %v1663
  %2409 = vmatprep.subr.bf16.mxu0 %v1668
  %2410 = vmatpush1.bf16.msra.mxu0 %v1667
  %2411 = vmatprep.subr.bf16.mxu0 %v1672
  %2412 = vmatpush1.bf16.msra.mxu0 %v1671
  %2413 = vmatprep.subr.bf16.mxu0 %v1676
  %2414 = vmatpush1.bf16.msra.mxu0 %v1675
  %2415 = vmatprep.mubr.bf16.mxu0 %v430
  %2416 = vmatmul.mubr.bf16.gmra.mrb[0].mxu0 %v429
  %v2417 = vpop.f32.mrb[0].mxu0
  %v2418 = vadd.f32 %v446, %v2417
  %v2419 = vpop.f32.mrb[0].mxu0
  %v2420 = vadd.f32 %v450, %v2419
  %v2421 = vpop.f32.mrb[0].mxu0
  %v2422 = vpop.f32.mrb[0].mxu0
  %2423 = vdwg.mxu0
  %2424 = vmatprep.subr.bf16.mxu0 %v1680
  %2425 = vmatpush1.bf16.msra.mxu0 %v1679
  %2426 = vmatprep.subr.bf16.mxu0 %v1684
  %2427 = vmatpush1.bf16.msra.mxu0 %v1683
  %2428 = vmatprep.subr.bf16.mxu0 %v1688
  %2429 = vmatpush1.bf16.msra.mxu0 %v1687
  %2430 = vmatprep.subr.bf16.mxu0 %v1692
  %2431 = vmatpush1.bf16.msra.mxu0 %v1691
  %2432 = vmatprep.subr.bf16.mxu0 %v1696
  %2433 = vmatpush1.bf16.msra.mxu0 %v1695
  %2434 = vmatprep.subr.bf16.mxu0 %v1700
  %2435 = vmatpush1.bf16.msra.mxu0 %v1699
  %2436 = vmatprep.subr.bf16.mxu0 %v1704
  %2437 = vmatpush1.bf16.msra.mxu0 %v1703
  %2438 = vmatprep.subr.bf16.mxu0 %v1708
  %2439 = vmatpush1.bf16.msra.mxu0 %v1707
  %2440 = vmatprep.subr.bf16.mxu0 %v1712
  %2441 = vmatpush1.bf16.msra.mxu0 %v1711
  %2442 = vmatprep.subr.bf16.mxu0 %v1716
  %2443 = vmatpush1.bf16.msra.mxu0 %v1715
  %2444 = vmatprep.subr.bf16.mxu0 %v1720
  %2445 = vmatpush1.bf16.msra.mxu0 %v1719
  %2446 = vmatprep.subr.bf16.mxu0 %v1724
  %2447 = vmatpush1.bf16.msra.mxu0 %v1723
  %2448 = vmatprep.subr.bf16.mxu0 %v1728
  %2449 = vmatpush1.bf16.msra.mxu0 %v1727
  %2450 = vmatprep.subr.bf16.mxu0 %v1732
  %2451 = vmatpush1.bf16.msra.mxu0 %v1731
  %2452 = vmatprep.subr.bf16.mxu0 %v1736
  %2453 = vmatpush1.bf16.msra.mxu0 %v1735
  %2454 = vmatprep.subr.bf16.mxu0 %v1740
  %2455 = vmatpush1.bf16.msra.mxu0 %v1739
  %2456 = vmatprep.mubr.bf16.mxu0 %v432
  %2457 = vmatmul.mubr.bf16.gmra.mrb[0].mxu0 %v431
  %v2458 = vpop.f32.mrb[0].mxu0
  %v2459 = vadd.f32 %v2418, %v2458
  %v2460 = vpop.f32.mrb[0].mxu0
  %v2461 = vadd.f32 %v2420, %v2460
  %v2462 = vpop.f32.mrb[0].mxu0
  %v2463 = vpop.f32.mrb[0].mxu0
  %2464 = vdwg.mxu0
  %2465 = vmatprep.subr.bf16.mxu0 %v1744
  %2466 = vmatpush1.bf16.msra.mxu0 %v1743
  %2467 = vmatprep.subr.bf16.mxu0 %v1748
  %2468 = vmatpush1.bf16.msra.mxu0 %v1747
  %2469 = vmatprep.subr.bf16.mxu0 %v1752
  %2470 = vmatpush1.bf16.msra.mxu0 %v1751
  %2471 = vmatprep.subr.bf16.mxu0 %v1756
  %2472 = vmatpush1.bf16.msra.mxu0 %v1755
  %2473 = vmatprep.subr.bf16.mxu0 %v1760
  %2474 = vmatpush1.bf16.msra.mxu0 %v1759
  %2475 = vmatprep.subr.bf16.mxu0 %v1764
  %2476 = vmatpush1.bf16.msra.mxu0 %v1763
  %2477 = vmatprep.subr.bf16.mxu0 %v1768
  %2478 = vmatpush1.bf16.msra.mxu0 %v1767
  %2479 = vmatprep.subr.bf16.mxu0 %v1772
  %2480 = vmatpush1.bf16.msra.mxu0 %v1771
  %2481 = vmatprep.subr.bf16.mxu0 %v1776
  %2482 = vmatpush1.bf16.msra.mxu0 %v1775
  %2483 = vmatprep.subr.bf16.mxu0 %v1780
  %2484 = vmatpush1.bf16.msra.mxu0 %v1779
  %2485 = vmatprep.subr.bf16.mxu0 %v1784
  %2486 = vmatpush1.bf16.msra.mxu0 %v1783
  %2487 = vmatprep.subr.bf16.mxu0 %v1788
  %2488 = vmatpush1.bf16.msra.mxu0 %v1787
  %2489 = vmatprep.subr.bf16.mxu0 %v1792
  %2490 = vmatpush1.bf16.msra.mxu0 %v1791
  %2491 = vmatprep.subr.bf16.mxu0 %v1796
  %2492 = vmatpush1.bf16.msra.mxu0 %v1795
  %2493 = vmatprep.subr.bf16.mxu0 %v1800
  %2494 = vmatpush1.bf16.msra.mxu0 %v1799
  %2495 = vmatprep.subr.bf16.mxu0 %v1804
  %2496 = vmatpush1.bf16.msra.mxu0 %v1803
  %2497 = vmatprep.mubr.bf16.mxu0 %v434
  %2498 = vmatmul.mubr.bf16.gmra.mrb[0].mxu0 %v433
  %v2499 = vpop.f32.mrb[0].mxu0
  %v2500 = vadd.f32 %v2459, %v2499
  %v2501 = vpop.f32.mrb[0].mxu0
  %v2502 = vadd.f32 %v2461, %v2501
  %v2503 = vpop.f32.mrb[0].mxu0
  %v2504 = vpop.f32.mrb[0].mxu0
  %2505 = vdwg.mxu0
  %2506 = vmatprep.subr.bf16.mxu0 %v1808
  %2507 = vmatpush1.bf16.msra.mxu0 %v1807
  %2508 = vmatprep.subr.bf16.mxu0 %v1812
  %2509 = vmatpush1.bf16.msra.mxu0 %v1811
  %2510 = vmatprep.subr.bf16.mxu0 %v1816
  %2511 = vmatpush1.bf16.msra.mxu0 %v1815
  %2512 = vmatprep.subr.bf16.mxu0 %v1820
  %2513 = vmatpush1.bf16.msra.mxu0 %v1819
  %2514 = vmatprep.subr.bf16.mxu0 %v1824
  %2515 = vmatpush1.bf16.msra.mxu0 %v1823
  %2516 = vmatprep.subr.bf16.mxu0 %v1828
  %2517 = vmatpush1.bf16.msra.mxu0 %v1827
  %2518 = vmatprep.subr.bf16.mxu0 %v1832
  %2519 = vmatpush1.bf16.msra.mxu0 %v1831
  %2520 = vmatprep.subr.bf16.mxu0 %v1836
  %2521 = vmatpush1.bf16.msra.mxu0 %v1835
  %2522 = vmatprep.subr.bf16.mxu0 %v1840
  %2523 = vmatpush1.bf16.msra.mxu0 %v1839
  %2524 = vmatprep.subr.bf16.mxu0 %v1844
  %2525 = vmatpush1.bf16.msra.mxu0 %v1843
  %2526 = vmatprep.subr.bf16.mxu0 %v1848
  %2527 = vmatpush1.bf16.msra.mxu0 %v1847
  %2528 = vmatprep.subr.bf16.mxu0 %v1852
  %2529 = vmatpush1.bf16.msra.mxu0 %v1851
  %2530 = vmatprep.subr.bf16.mxu0 %v1856
  %2531 = vmatpush1.bf16.msra.mxu0 %v1855
  %2532 = vmatprep.subr.bf16.mxu0 %v1860
  %2533 = vmatpush1.bf16.msra.mxu0 %v1859
  %2534 = vmatprep.subr.bf16.mxu0 %v1864
  %2535 = vmatpush1.bf16.msra.mxu0 %v1863
  %2536 = vmatprep.subr.bf16.mxu0 %v1868
  %2537 = vmatpush1.bf16.msra.mxu0 %v1867
  %2538 = vmatprep.mubr.bf16.mxu0 %v436
  %2539 = vmatmul.mubr.bf16.gmra.mrb[0].mxu0 %v435
  %v2540 = vpop.f32.mrb[0].mxu0
  %v2541 = vadd.f32 %v2500, %v2540
  %v2542 = vpop.f32.mrb[0].mxu0
  %v2543 = vadd.f32 %v2502, %v2542
  %v2544 = vpop.f32.mrb[0].mxu0
  %v2545 = vpop.f32.mrb[0].mxu0
  %2546 = vdwg.mxu0
  %2547 = vmatprep.subr.bf16.mxu0 %v1872
  %2548 = vmatpush1.bf16.msra.mxu0 %v1871
  %2549 = vmatprep.subr.bf16.mxu0 %v1876
  %2550 = vmatpush1.bf16.msra.mxu0 %v1875
  %2551 = vmatprep.subr.bf16.mxu0 %v1880
  %2552 = vmatpush1.bf16.msra.mxu0 %v1879
  %2553 = vmatprep.subr.bf16.mxu0 %v1884
  %2554 = vmatpush1.bf16.msra.mxu0 %v1883
  %2555 = vmatprep.subr.bf16.mxu0 %v1888
  %2556 = vmatpush1.bf16.msra.mxu0 %v1887
  %2557 = vmatprep.subr.bf16.mxu0 %v1892
  %2558 = vmatpush1.bf16.msra.mxu0 %v1891
  %2559 = vmatprep.subr.bf16.mxu0 %v1896
  %2560 = vmatpush1.bf16.msra.mxu0 %v1895
  %2561 = vmatprep.subr.bf16.mxu0 %v1900
  %2562 = vmatpush1.bf16.msra.mxu0 %v1899
  %2563 = vmatprep.subr.bf16.mxu0 %v1904
  %2564 = vmatpush1.bf16.msra.mxu0 %v1903
  %2565 = vmatprep.subr.bf16.mxu0 %v1908
  %2566 = vmatpush1.bf16.msra.mxu0 %v1907
  %2567 = vmatprep.subr.bf16.mxu0 %v1912
  %2568 = vmatpush1.bf16.msra.mxu0 %v1911
  %2569 = vmatprep.subr.bf16.mxu0 %v1916
  %2570 = vmatpush1.bf16.msra.mxu0 %v1915
  %2571 = vmatprep.subr.bf16.mxu0 %v1920
  %2572 = vmatpush1.bf16.msra.mxu0 %v1919
  %2573 = vmatprep.subr.bf16.mxu0 %v1924
  %2574 = vmatpush1.bf16.msra.mxu0 %v1923
  %2575 = vmatprep.subr.bf16.mxu0 %v1928
  %2576 = vmatpush1.bf16.msra.mxu0 %v1927
  %2577 = vmatprep.subr.bf16.mxu0 %v1932
  %2578 = vmatpush1.bf16.msra.mxu0 %v1931
  %2579 = vmatprep.mubr.bf16.mxu0 %v438
  %2580 = vmatmul.mubr.bf16.gmra.mrb[0].mxu0 %v437
  %v2581 = vpop.f32.mrb[0].mxu0
  %v2582 = vadd.f32 %v2541, %v2581
  %v2583 = vpop.f32.mrb[0].mxu0
  %v2584 = vadd.f32 %v2543, %v2583
  %v2585 = vpop.f32.mrb[0].mxu0
  %v2586 = vpop.f32.mrb[0].mxu0
  %2587 = vdwg.mxu0
  %2588 = vmatprep.subr.bf16.mxu0 %v1936
  %2589 = vmatpush1.bf16.msra.mxu0 %v1935
  %2590 = vmatprep.subr.bf16.mxu0 %v1940
  %2591 = vmatpush1.bf16.msra.mxu0 %v1939
  %2592 = vmatprep.subr.bf16.mxu0 %v1944
  %2593 = vmatpush1.bf16.msra.mxu0 %v1943
  %2594 = vmatprep.subr.bf16.mxu0 %v1948
  %2595 = vmatpush1.bf16.msra.mxu0 %v1947
  %2596 = vmatprep.subr.bf16.mxu0 %v1952
  %2597 = vmatpush1.bf16.msra.mxu0 %v1951
  %2598 = vmatprep.subr.bf16.mxu0 %v1956
  %2599 = vmatpush1.bf16.msra.mxu0 %v1955
  %2600 = vmatprep.subr.bf16.mxu0 %v1960
  %2601 = vmatpush1.bf16.msra.mxu0 %v1959
  %2602 = vmatprep.subr.bf16.mxu0 %v1964
  %2603 = vmatpush1.bf16.msra.mxu0 %v1963
  %2604 = vmatprep.subr.bf16.mxu0 %v1968
  %2605 = vmatpush1.bf16.msra.mxu0 %v1967
  %2606 = vmatprep.subr.bf16.mxu0 %v1972
  %2607 = vmatpush1.bf16.msra.mxu0 %v1971
  %2608 = vmatprep.subr.bf16.mxu0 %v1976
  %2609 = vmatpush1.bf16.msra.mxu0 %v1975
  %2610 = vmatprep.subr.bf16.mxu0 %v1980
  %2611 = vmatpush1.bf16.msra.mxu0 %v1979
  %2612 = vmatprep.subr.bf16.mxu0 %v1984
  %2613 = vmatpush1.bf16.msra.mxu0 %v1983
  %2614 = vmatprep.subr.bf16.mxu0 %v1988
  %2615 = vmatpush1.bf16.msra.mxu0 %v1987
  %2616 = vmatprep.subr.bf16.mxu0 %v1992
  %2617 = vmatpush1.bf16.msra.mxu0 %v1991
  %2618 = vmatprep.subr.bf16.mxu0 %v1996
  %2619 = vmatpush1.bf16.msra.mxu0 %v1995
  %2620 = vmatprep.mubr.bf16.mxu0 %v440
  %2621 = vmatmul.mubr.bf16.gmra.mrb[0].mxu0 %v439
  %v2622 = vpop.f32.mrb[0].mxu0
  %v2623 = vadd.f32 %v2582, %v2622
  %v2624 = vpop.f32.mrb[0].mxu0
  %v2625 = vadd.f32 %v2584, %v2624
  %v2626 = vpop.f32.mrb[0].mxu0
  %v2627 = vpop.f32.mrb[0].mxu0
  %2628 = vdwg.mxu0
  %2629 = vmatprep.subr.bf16.mxu0 %v1618
  %2630 = vmatpush1.bf16.msra.mxu0 %v1617
  %2631 = vmatprep.subr.bf16.mxu0 %v1622
  %2632 = vmatpush1.bf16.msra.mxu0 %v1621
  %2633 = vmatprep.subr.bf16.mxu0 %v1626
  %2634 = vmatpush1.bf16.msra.mxu0 %v1625
  %2635 = vmatprep.subr.bf16.mxu0 %v1630
  %2636 = vmatpush1.bf16.msra.mxu0 %v1629
  %2637 = vmatprep.subr.bf16.mxu0 %v1634
  %2638 = vmatpush1.bf16.msra.mxu0 %v1633
  %2639 = vmatprep.subr.bf16.mxu0 %v1638
  %2640 = vmatpush1.bf16.msra.mxu0 %v1637
  %2641 = vmatprep.subr.bf16.mxu0 %v1642
  %2642 = vmatpush1.bf16.msra.mxu0 %v1641
  %2643 = vmatprep.subr.bf16.mxu0 %v1646
  %2644 = vmatpush1.bf16.msra.mxu0 %v1645
  %2645 = vmatprep.subr.bf16.mxu0 %v1650
  %2646 = vmatpush1.bf16.msra.mxu0 %v1649
  %2647 = vmatprep.subr.bf16.mxu0 %v1654
  %2648 = vmatpush1.bf16.msra.mxu0 %v1653
  %2649 = vmatprep.subr.bf16.mxu0 %v1658
  %2650 = vmatpush1.bf16.msra.mxu0 %v1657
  %2651 = vmatprep.subr.bf16.mxu0 %v1662
  %2652 = vmatpush1.bf16.msra.mxu0 %v1661
  %2653 = vmatprep.subr.bf16.mxu0 %v1666
  %2654 = vmatpush1.bf16.msra.mxu0 %v1665
  %2655 = vmatprep.subr.bf16.mxu0 %v1670
  %2656 = vmatpush1.bf16.msra.mxu0 %v1669
  %2657 = vmatprep.subr.bf16.mxu0 %v1674
  %2658 = vmatpush1.bf16.msra.mxu0 %v1673
  %2659 = vmatprep.subr.bf16.mxu0 %v1678
  %2660 = vmatpush1.bf16.msra.mxu0 %v1677
  %2661 = vmatprep.mubr.bf16.mxu0 %v430
  %2662 = vmatmul.mubr.bf16.gmra.mrb[0].mxu0 %v429
  %v2663 = vpop.f32.mrb[0].mxu0
  %v2664 = vadd.f32 %v454, %v2663
  %v2665 = vpop.f32.mrb[0].mxu0
  %v2666 = vadd.f32 %v458, %v2665
  %v2667 = vpop.f32.mrb[0].mxu0
  %v2668 = vpop.f32.mrb[0].mxu0
  %2669 = vdwg.mxu0
  %2670 = vmatprep.subr.bf16.mxu0 %v1682
  %2671 = vmatpush1.bf16.msra.mxu0 %v1681
  %2672 = vmatprep.subr.bf16.mxu0 %v1686
  %2673 = vmatpush1.bf16.msra.mxu0 %v1685
  %2674 = vmatprep.subr.bf16.mxu0 %v1690
  %2675 = vmatpush1.bf16.msra.mxu0 %v1689
  %2676 = vmatprep.subr.bf16.mxu0 %v1694
  %2677 = vmatpush1.bf16.msra.mxu0 %v1693
  %2678 = vmatprep.subr.bf16.mxu0 %v1698
  %2679 = vmatpush1.bf16.msra.mxu0 %v1697
  %2680 = vmatprep.subr.bf16.mxu0 %v1702
  %2681 = vmatpush1.bf16.msra.mxu0 %v1701
  %2682 = vmatprep.subr.bf16.mxu0 %v1706
  %2683 = vmatpush1.bf16.msra.mxu0 %v1705
  %2684 = vmatprep.subr.bf16.mxu0 %v1710
  %2685 = vmatpush1.bf16.msra.mxu0 %v1709
  %2686 = vmatprep.subr.bf16.mxu0 %v1714
  %2687 = vmatpush1.bf16.msra.mxu0 %v1713
  %2688 = vmatprep.subr.bf16.mxu0 %v1718
  %2689 = vmatpush1.bf16.msra.mxu0 %v1717
  %2690 = vmatprep.subr.bf16.mxu0 %v1722
  %2691 = vmatpush1.bf16.msra.mxu0 %v1721
  %2692 = vmatprep.subr.bf16.mxu0 %v1726
  %2693 = vmatpush1.bf16.msra.mxu0 %v1725
  %2694 = vmatprep.subr.bf16.mxu0 %v1730
  %2695 = vmatpush1.bf16.msra.mxu0 %v1729
  %2696 = vmatprep.subr.bf16.mxu0 %v1734
  %2697 = vmatpush1.bf16.msra.mxu0 %v1733
  %2698 = vmatprep.subr.bf16.mxu0 %v1738
  %2699 = vmatpush1.bf16.msra.mxu0 %v1737
  %2700 = vmatprep.subr.bf16.mxu0 %v1742
  %2701 = vmatpush1.bf16.msra.mxu0 %v1741
  %2702 = vmatprep.mubr.bf16.mxu0 %v432
  %2703 = vmatmul.mubr.bf16.gmra.mrb[0].mxu0 %v431
  %v2704 = vpop.f32.mrb[0].mxu0
  %v2705 = vadd.f32 %v2664, %v2704
  %v2706 = vpop.f32.mrb[0].mxu0
  %v2707 = vadd.f32 %v2666, %v2706
  %v2708 = vpop.f32.mrb[0].mxu0
  %v2709 = vpop.f32.mrb[0].mxu0
  %2710 = vdwg.mxu0
  %2711 = vmatprep.subr.bf16.mxu0 %v1746
  %2712 = vmatpush1.bf16.msra.mxu0 %v1745
  %2713 = vmatprep.subr.bf16.mxu0 %v1750
  %2714 = vmatpush1.bf16.msra.mxu0 %v1749
  %2715 = vmatprep.subr.bf16.mxu0 %v1754
  %2716 = vmatpush1.bf16.msra.mxu0 %v1753
  %2717 = vmatprep.subr.bf16.mxu0 %v1758
  %2718 = vmatpush1.bf16.msra.mxu0 %v1757
  %2719 = vmatprep.subr.bf16.mxu0 %v1762
  %2720 = vmatpush1.bf16.msra.mxu0 %v1761
  %2721 = vmatprep.subr.bf16.mxu0 %v1766
  %2722 = vmatpush1.bf16.msra.mxu0 %v1765
  %2723 = vmatprep.subr.bf16.mxu0 %v1770
  %2724 = vmatpush1.bf16.msra.mxu0 %v1769
  %2725 = vmatprep.subr.bf16.mxu0 %v1774
  %2726 = vmatpush1.bf16.msra.mxu0 %v1773
  %2727 = vmatprep.subr.bf16.mxu0 %v1778
  %2728 = vmatpush1.bf16.msra.mxu0 %v1777
  %2729 = vmatprep.subr.bf16.mxu0 %v1782
  %2730 = vmatpush1.bf16.msra.mxu0 %v1781
  %2731 = vmatprep.subr.bf16.mxu0 %v1786
  %2732 = vmatpush1.bf16.msra.mxu0 %v1785
  %2733 = vmatprep.subr.bf16.mxu0 %v1790
  %2734 = vmatpush1.bf16.msra.mxu0 %v1789
  %2735 = vmatprep.subr.bf16.mxu0 %v1794
  %2736 = vmatpush1.bf16.msra.mxu0 %v1793
  %2737 = vmatprep.subr.bf16.mxu0 %v1798
  %2738 = vmatpush1.bf16.msra.mxu0 %v1797
  %2739 = vmatprep.subr.bf16.mxu0 %v1802
  %2740 = vmatpush1.bf16.msra.mxu0 %v1801
  %2741 = vmatprep.subr.bf16.mxu0 %v1806
  %2742 = vmatpush1.bf16.msra.mxu0 %v1805
  %2743 = vmatprep.mubr.bf16.mxu0 %v434
  %2744 = vmatmul.mubr.bf16.gmra.mrb[0].mxu0 %v433
  %v2745 = vpop.f32.mrb[0].mxu0
  %v2746 = vadd.f32 %v2705, %v2745
  %v2747 = vpop.f32.mrb[0].mxu0
  %v2748 = vadd.f32 %v2707, %v2747
  %v2749 = vpop.f32.mrb[0].mxu0
  %v2750 = vpop.f32.mrb[0].mxu0
  %2751 = vdwg.mxu0
  %2752 = vmatprep.subr.bf16.mxu0 %v1810
  %2753 = vmatpush1.bf16.msra.mxu0 %v1809
  %2754 = vmatprep.subr.bf16.mxu0 %v1814
  %2755 = vmatpush1.bf16.msra.mxu0 %v1813
  %2756 = vmatprep.subr.bf16.mxu0 %v1818
  %2757 = vmatpush1.bf16.msra.mxu0 %v1817
  %2758 = vmatprep.subr.bf16.mxu0 %v1822
  %2759 = vmatpush1.bf16.msra.mxu0 %v1821
  %2760 = vmatprep.subr.bf16.mxu0 %v1826
  %2761 = vmatpush1.bf16.msra.mxu0 %v1825
  %2762 = vmatprep.subr.bf16.mxu0 %v1830
  %2763 = vmatpush1.bf16.msra.mxu0 %v1829
  %2764 = vmatprep.subr.bf16.mxu0 %v1834
  %2765 = vmatpush1.bf16.msra.mxu0 %v1833
  %2766 = vmatprep.subr.bf16.mxu0 %v1838
  %2767 = vmatpush1.bf16.msra.mxu0 %v1837
  %2768 = vmatprep.subr.bf16.mxu0 %v1842
  %2769 = vmatpush1.bf16.msra.mxu0 %v1841
  %2770 = vmatprep.subr.bf16.mxu0 %v1846
  %2771 = vmatpush1.bf16.msra.mxu0 %v1845
  %2772 = vmatprep.subr.bf16.mxu0 %v1850
  %2773 = vmatpush1.bf16.msra.mxu0 %v1849
  %2774 = vmatprep.subr.bf16.mxu0 %v1854
  %2775 = vmatpush1.bf16.msra.mxu0 %v1853
  %2776 = vmatprep.subr.bf16.mxu0 %v1858
  %2777 = vmatpush1.bf16.msra.mxu0 %v1857
  %2778 = vmatprep.subr.bf16.mxu0 %v1862
  %2779 = vmatpush1.bf16.msra.mxu0 %v1861
  %2780 = vmatprep.subr.bf16.mxu0 %v1866
  %2781 = vmatpush1.bf16.msra.mxu0 %v1865
  %2782 = vmatprep.subr.bf16.mxu0 %v1870
  %2783 = vmatpush1.bf16.msra.mxu0 %v1869
  %2784 = vmatprep.mubr.bf16.mxu0 %v436
  %2785 = vmatmul.mubr.bf16.gmra.mrb[0].mxu0 %v435
  %v2786 = vpop.f32.mrb[0].mxu0
  %v2787 = vadd.f32 %v2746, %v2786
  %v2788 = vpop.f32.mrb[0].mxu0
  %v2789 = vadd.f32 %v2748, %v2788
  %v2790 = vpop.f32.mrb[0].mxu0
  %v2791 = vpop.f32.mrb[0].mxu0
  %2792 = vdwg.mxu0
  %2793 = vmatprep.subr.bf16.mxu0 %v1874
  %2794 = vmatpush1.bf16.msra.mxu0 %v1873
  %2795 = vmatprep.subr.bf16.mxu0 %v1878
  %2796 = vmatpush1.bf16.msra.mxu0 %v1877
  %2797 = vmatprep.subr.bf16.mxu0 %v1882
  %2798 = vmatpush1.bf16.msra.mxu0 %v1881
  %2799 = vmatprep.subr.bf16.mxu0 %v1886
  %2800 = vmatpush1.bf16.msra.mxu0 %v1885
  %2801 = vmatprep.subr.bf16.mxu0 %v1890
  %2802 = vmatpush1.bf16.msra.mxu0 %v1889
  %2803 = vmatprep.subr.bf16.mxu0 %v1894
  %2804 = vmatpush1.bf16.msra.mxu0 %v1893
  %2805 = vmatprep.subr.bf16.mxu0 %v1898
  %2806 = vmatpush1.bf16.msra.mxu0 %v1897
  %2807 = vmatprep.subr.bf16.mxu0 %v1902
  %2808 = vmatpush1.bf16.msra.mxu0 %v1901
  %2809 = vmatprep.subr.bf16.mxu0 %v1906
  %2810 = vmatpush1.bf16.msra.mxu0 %v1905
  %2811 = vmatprep.subr.bf16.mxu0 %v1910
  %2812 = vmatpush1.bf16.msra.mxu0 %v1909
  %2813 = vmatprep.subr.bf16.mxu0 %v1914
  %2814 = vmatpush1.bf16.msra.mxu0 %v1913
  %2815 = vmatprep.subr.bf16.mxu0 %v1918
  %2816 = vmatpush1.bf16.msra.mxu0 %v1917
  %2817 = vmatprep.subr.bf16.mxu0 %v1922
  %2818 = vmatpush1.bf16.msra.mxu0 %v1921
  %2819 = vmatprep.subr.bf16.mxu0 %v1926
  %2820 = vmatpush1.bf16.msra.mxu0 %v1925
  %2821 = vmatprep.subr.bf16.mxu0 %v1930
  %2822 = vmatpush1.bf16.msra.mxu0 %v1929
  %2823 = vmatprep.subr.bf16.mxu0 %v1934
  %2824 = vmatpush1.bf16.msra.mxu0 %v1933
  %2825 = vmatprep.mubr.bf16.mxu0 %v438
  %2826 = vmatmul.mubr.bf16.gmra.mrb[0].mxu0 %v437
  %v2827 = vpop.f32.mrb[0].mxu0
  %v2828 = vadd.f32 %v2787, %v2827
  %v2829 = vpop.f32.mrb[0].mxu0
  %v2830 = vadd.f32 %v2789, %v2829
  %v2831 = vpop.f32.mrb[0].mxu0
  %v2832 = vpop.f32.mrb[0].mxu0
  %2833 = vdwg.mxu0
  %2834 = vmatprep.subr.bf16.mxu0 %v1938
  %2835 = vmatpush1.bf16.msra.mxu0 %v1937
  %2836 = vmatprep.subr.bf16.mxu0 %v1942
  %2837 = vmatpush1.bf16.msra.mxu0 %v1941
  %2838 = vmatprep.subr.bf16.mxu0 %v1946
  %2839 = vmatpush1.bf16.msra.mxu0 %v1945
  %2840 = vmatprep.subr.bf16.mxu0 %v1950
  %2841 = vmatpush1.bf16.msra.mxu0 %v1949
  %2842 = vmatprep.subr.bf16.mxu0 %v1954
  %2843 = vmatpush1.bf16.msra.mxu0 %v1953
  %2844 = vmatprep.subr.bf16.mxu0 %v1958
  %2845 = vmatpush1.bf16.msra.mxu0 %v1957
  %2846 = vmatprep.subr.bf16.mxu0 %v1962
  %2847 = vmatpush1.bf16.msra.mxu0 %v1961
  %2848 = vmatprep.subr.bf16.mxu0 %v1966
  %2849 = vmatpush1.bf16.msra.mxu0 %v1965
  %2850 = vmatprep.subr.bf16.mxu0 %v1970
  %2851 = vmatpush1.bf16.msra.mxu0 %v1969
  %2852 = vmatprep.subr.bf16.mxu0 %v1974
  %2853 = vmatpush1.bf16.msra.mxu0 %v1973
  %2854 = vmatprep.subr.bf16.mxu0 %v1978
  %2855 = vmatpush1.bf16.msra.mxu0 %v1977
  %2856 = vmatprep.subr.bf16.mxu0 %v1982
  %2857 = vmatpush1.bf16.msra.mxu0 %v1981
  %2858 = vmatprep.subr.bf16.mxu0 %v1986
  %2859 = vmatpush1.bf16.msra.mxu0 %v1985
  %2860 = vmatprep.subr.bf16.mxu0 %v1990
  %2861 = vmatpush1.bf16.msra.mxu0 %v1989
  %2862 = vmatprep.subr.bf16.mxu0 %v1994
  %2863 = vmatpush1.bf16.msra.mxu0 %v1993
  %2864 = vmatprep.subr.bf16.mxu0 %v1998
  %2865 = vmatpush1.bf16.msra.mxu0 %v1997
  %2866 = vmatprep.mubr.bf16.mxu0 %v440
  %2867 = vmatmul.mubr.bf16.gmra.mrb[0].mxu0 %v439
  %v2868 = vpop.f32.mrb[0].mxu0
  %v2869 = vadd.f32 %v2828, %v2868
  %v2870 = vpop.f32.mrb[0].mxu0
  %v2871 = vadd.f32 %v2830, %v2870
  %v2872 = vpop.f32.mrb[0].mxu0
  %v2873 = vpop.f32.mrb[0].mxu0
  %2874 = vdwg.mxu0
  %v2875 = vld [vmem:[%s5] sm:$0xff]
  %v2876 = vld [vmem:[%s5 + $0x8] sm:$0xff]
  %v2877 = vld [vmem:[%s5 + $0x10] sm:$0xff]
  %v2878 = vld [vmem:[%s5 + $0x18] sm:$0xff]
  %v2879 = vld [vmem:[%s5 + $0x20] sm:$0xff]
  %v2880 = vld [vmem:[%s5 + $0x28] sm:$0xff]
  %v2881 = vld [vmem:[%s5 + $0x30] sm:$0xff]
  %v2882 = vld [vmem:[%s5 + $0x38] sm:$0xff]
  %v2883 = vld [vmem:[%s5 + $0x40] sm:$0xff]
  %v2884 = vld [vmem:[%s5 + $0x48] sm:$0xff]
  %v2885 = vld [vmem:[%s5 + $0x50] sm:$0xff]
  %v2886 = vld [vmem:[%s5 + $0x58] sm:$0xff]
  %v2887 = vld [vmem:[%s5 + $0x60] sm:$0xff]
  %v2888 = vld [vmem:[%s5 + $0x68] sm:$0xff]
  %v2889 = vld [vmem:[%s5 + $0x70] sm:$0xff]
  %v2890 = vld [vmem:[%s5 + $0x78] sm:$0xff]
  %v2891 = vld [vmem:[%s5 + $0x80] sm:$0xff]
  %v2892 = vld [vmem:[%s5 + $0x88] sm:$0xff]
  %v2893 = vld [vmem:[%s5 + $0x90] sm:$0xff]
  %v2894 = vld [vmem:[%s5 + $0x98] sm:$0xff]
  %v2895 = vld [vmem:[%s5 + $0xa0] sm:$0xff]
  %v2896 = vld [vmem:[%s5 + $0xa8] sm:$0xff]
  %v2897 = vld [vmem:[%s5 + $0xb0] sm:$0xff]
  %v2898 = vld [vmem:[%s5 + $0xb8] sm:$0xff]
  %v2899 = vld [vmem:[%s5 + $0xc0] sm:$0xff]
  %v2900 = vld [vmem:[%s5 + $0xc8] sm:$0xff]
  %v2901 = vld [vmem:[%s5 + $0xd0] sm:$0xff]
  %v2902 = vld [vmem:[%s5 + $0xd8] sm:$0xff]
  %v2903 = vld [vmem:[%s5 + $0xe0] sm:$0xff]
  %v2904 = vld [vmem:[%s5 + $0xe8] sm:$0xff]
  %v2905 = vld [vmem:[%s5 + $0xf0] sm:$0xff]
  %v2906 = vld [vmem:[%s5 + $0xf8] sm:$0xff]
  %v2907 = vld [vmem:[%s5 + $0x100] sm:$0xff]
  %v2908 = vld [vmem:[%s5 + $0x108] sm:$0xff]
  %v2909 = vld [vmem:[%s5 + $0x110] sm:$0xff]
  %v2910 = vld [vmem:[%s5 + $0x118] sm:$0xff]
  %v2911 = vld [vmem:[%s5 + $0x120] sm:$0xff]
  %v2912 = vld [vmem:[%s5 + $0x128] sm:$0xff]
  %v2913 = vld [vmem:[%s5 + $0x130] sm:$0xff]
  %v2914 = vld [vmem:[%s5 + $0x138] sm:$0xff]
  %v2915 = vld [vmem:[%s5 + $0x140] sm:$0xff]
  %v2916 = vld [vmem:[%s5 + $0x148] sm:$0xff]
  %v2917 = vld [vmem:[%s5 + $0x150] sm:$0xff]
  %v2918 = vld [vmem:[%s5 + $0x158] sm:$0xff]
  %v2919 = vld [vmem:[%s5 + $0x160] sm:$0xff]
  %v2920 = vld [vmem:[%s5 + $0x168] sm:$0xff]
  %v2921 = vld [vmem:[%s5 + $0x170] sm:$0xff]
  %v2922 = vld [vmem:[%s5 + $0x178] sm:$0xff]
  %v2923 = vld [vmem:[%s5 + $0x180] sm:$0xff]
  %v2924 = vld [vmem:[%s5 + $0x188] sm:$0xff]
  %v2925 = vld [vmem:[%s6] sm:$0xff]
  %v2926 = vld [vmem:[%s6 + $0x8] sm:$0xff]
  %v2927 = vld [vmem:[%s6 + $0x10] sm:$0xff]
  %v2928 = vld [vmem:[%s6 + $0x18] sm:$0xff]
  %v2929 = vld [vmem:[%s6 + $0x20] sm:$0xff]
  %v2930 = vld [vmem:[%s6 + $0x28] sm:$0xff]
  %v2931 = vld [vmem:[%s6 + $0x30] sm:$0xff]
  %v2932 = vld [vmem:[%s6 + $0x38] sm:$0xff]
  %v2933 = vld [vmem:[%s6 + $0x40] sm:$0xff]
  %v2934 = vld [vmem:[%s6 + $0x48] sm:$0xff]
  %v2935 = vld [vmem:[%s6 + $0x50] sm:$0xff]
  %v2936 = vld [vmem:[%s6 + $0x58] sm:$0xff]
  %v2937 = vld [vmem:[%s6 + $0x60] sm:$0xff]
  %v2938 = vld [vmem:[%s6 + $0x68] sm:$0xff]
  %v2939 = vld [vmem:[%s6 + $0x70] sm:$0xff]
  %v2940 = vld [vmem:[%s6 + $0x78] sm:$0xff]
  %v2941 = vld [vmem:[%s6 + $0x80] sm:$0xff]
  %v2942 = vld [vmem:[%s6 + $0x88] sm:$0xff]
  %v2943 = vld [vmem:[%s6 + $0x90] sm:$0xff]
  %v2944 = vld [vmem:[%s6 + $0x98] sm:$0xff]
  %v2945 = vld [vmem:[%s6 + $0xa0] sm:$0xff]
  %v2946 = vld [vmem:[%s6 + $0xa8] sm:$0xff]
  %v2947 = vld [vmem:[%s6 + $0xb0] sm:$0xff]
  %v2948 = vld [vmem:[%s6 + $0xb8] sm:$0xff]
  %v2949 = vld [vmem:[%s6 + $0xc0] sm:$0xff]
  %v2950 = vld [vmem:[%s6 + $0xc8] sm:$0xff]
  %v2951 = vld [vmem:[%s6 + $0xd0] sm:$0xff]
  %v2952 = vld [vmem:[%s6 + $0xd8] sm:$0xff]
  %v2953 = vld [vmem:[%s6 + $0xe0] sm:$0xff]
  %v2954 = vld [vmem:[%s6 + $0xe8] sm:$0xff]
  %v2955 = vld [vmem:[%s6 + $0xf0] sm:$0xff]
  %v2956 = vld [vmem:[%s6 + $0xf8] sm:$0xff]
  %v2957 = vld [vmem:[%s6 + $0x100] sm:$0xff]
  %v2958 = vld [vmem:[%s6 + $0x108] sm:$0xff]
  %v2959 = vld [vmem:[%s6 + $0x110] sm:$0xff]
  %v2960 = vld [vmem:[%s6 + $0x118] sm:$0xff]
  %v2961 = vld [vmem:[%s6 + $0x120] sm:$0xff]
  %v2962 = vld [vmem:[%s6 + $0x128] sm:$0xff]
  %v2963 = vld [vmem:[%s6 + $0x130] sm:$0xff]
  %v2964 = vld [vmem:[%s6 + $0x138] sm:$0xff]
  %v2965 = vld [vmem:[%s6 + $0x140] sm:$0xff]
  %v2966 = vld [vmem:[%s6 + $0x148] sm:$0xff]
  %v2967 = vld [vmem:[%s6 + $0x150] sm:$0xff]
  %v2968 = vld [vmem:[%s6 + $0x158] sm:$0xff]
  %v2969 = vld [vmem:[%s6 + $0x160] sm:$0xff]
  %v2970 = vld [vmem:[%s6 + $0x168] sm:$0xff]
  %v2971 = vld [vmem:[%s6 + $0x170] sm:$0xff]
  %v2972 = vld [vmem:[%s6 + $0x178] sm:$0xff]
  %v2973 = vld [vmem:[%s6 + $0x180] sm:$0xff]
  %v2974 = vld [vmem:[%s6 + $0x188] sm:$0xff]
  %v2975 = vld [vmem:[%s6 + $0x190] sm:$0xff]
  %v2976 = vld [vmem:[%s6 + $0x198] sm:$0xff]
  %v2977 = vld [vmem:[%s6 + $0x1a0] sm:$0xff]
  %v2978 = vld [vmem:[%s6 + $0x1a8] sm:$0xff]
  %v2979 = vld [vmem:[%s6 + $0x1b0] sm:$0xff]
  %v2980 = vld [vmem:[%s6 + $0x1b8] sm:$0xff]
  %v2981 = vld [vmem:[%s6 + $0x1c0] sm:$0xff]
  %v2982 = vld [vmem:[%s6 + $0x1c8] sm:$0xff]
  %v2983 = vld [vmem:[%s6 + $0x1d0] sm:$0xff]
  %v2984 = vld [vmem:[%s6 + $0x1d8] sm:$0xff]
  %v2985 = vld [vmem:[%s6 + $0x1e0] sm:$0xff]
  %v2986 = vld [vmem:[%s6 + $0x1e8] sm:$0xff]
  %v2987 = vld [vmem:[%s6 + $0x1f0] sm:$0xff]
  %v2988 = vld [vmem:[%s6 + $0x1f8] sm:$0xff]
  %v2989 = vld [vmem:[%s6 + $0x200] sm:$0xff]
  %v2990 = vld [vmem:[%s6 + $0x208] sm:$0xff]
  %v2991 = vld [vmem:[%s6 + $0x210] sm:$0xff]
  %v2992 = vld [vmem:[%s6 + $0x218] sm:$0xff]
  %v2993 = vld [vmem:[%s6 + $0x220] sm:$0xff]
  %v2994 = vld [vmem:[%s6 + $0x228] sm:$0xff]
  %v2995 = vld [vmem:[%s6 + $0x230] sm:$0xff]
  %v2996 = vld [vmem:[%s6 + $0x238] sm:$0xff]
  %v2997 = vld [vmem:[%s6 + $0x240] sm:$0xff]
  %v2998 = vld [vmem:[%s6 + $0x248] sm:$0xff]
  %v2999 = vld [vmem:[%s6 + $0x250] sm:$0xff]
  %v3000 = vld [vmem:[%s6 + $0x258] sm:$0xff]
  %v3001 = vld [vmem:[%s6 + $0x260] sm:$0xff]
  %v3002 = vld [vmem:[%s6 + $0x268] sm:$0xff]
  %v3003 = vld [vmem:[%s6 + $0x270] sm:$0xff]
  %v3004 = vld [vmem:[%s6 + $0x278] sm:$0xff]
  %v3005 = vld [vmem:[%s6 + $0x280] sm:$0xff]
  %v3006 = vld [vmem:[%s6 + $0x288] sm:$0xff]
  %v3007 = vld [vmem:[%s6 + $0x290] sm:$0xff]
  %v3008 = vld [vmem:[%s6 + $0x298] sm:$0xff]
  %v3009 = vld [vmem:[%s6 + $0x2a0] sm:$0xff]
  %v3010 = vld [vmem:[%s6 + $0x2a8] sm:$0xff]
  %v3011 = vld [vmem:[%s6 + $0x2b0] sm:$0xff]
  %v3012 = vld [vmem:[%s6 + $0x2b8] sm:$0xff]
  %v3013 = vld [vmem:[%s6 + $0x2c0] sm:$0xff]
  %v3014 = vld [vmem:[%s6 + $0x2c8] sm:$0xff]
  %v3015 = vld [vmem:[%s6 + $0x2d0] sm:$0xff]
  %v3016 = vld [vmem:[%s6 + $0x2d8] sm:$0xff]
  %v3017 = vld [vmem:[%s6 + $0x2e0] sm:$0xff]
  %v3018 = vld [vmem:[%s6 + $0x2e8] sm:$0xff]
  %v3019 = vld [vmem:[%s6 + $0x2f0] sm:$0xff]
  %v3020 = vld [vmem:[%s6 + $0x2f8] sm:$0xff]
  %v3021 = vld [vmem:[%s6 + $0x300] sm:$0xff]
  %v3022 = vld [vmem:[%s6 + $0x308] sm:$0xff]
  %v3023 = vld [vmem:[%s6 + $0x310] sm:$0xff]
  %v3024 = vld [vmem:[%s6 + $0x318] sm:$0xff]
  %v3025 = vld [vmem:[%s6 + $0x320] sm:$0xff]
  %v3026 = vld [vmem:[%s6 + $0x328] sm:$0xff]
  %v3027 = vld [vmem:[%s6 + $0x330] sm:$0xff]
  %v3028 = vld [vmem:[%s6 + $0x338] sm:$0xff]
  %v3029 = vld [vmem:[%s6 + $0x340] sm:$0xff]
  %v3030 = vld [vmem:[%s6 + $0x348] sm:$0xff]
  %v3031 = vld [vmem:[%s6 + $0x350] sm:$0xff]
  %v3032 = vld [vmem:[%s6 + $0x358] sm:$0xff]
  %v3033 = vld [vmem:[%s6 + $0x360] sm:$0xff]
  %v3034 = vld [vmem:[%s6 + $0x368] sm:$0xff]
  %v3035 = vld [vmem:[%s6 + $0x370] sm:$0xff]
  %v3036 = vld [vmem:[%s6 + $0x378] sm:$0xff]
  %v3037 = vld [vmem:[%s6 + $0x380] sm:$0xff]
  %v3038 = vld [vmem:[%s6 + $0x388] sm:$0xff]
  %v3039 = vld [vmem:[%s6 + $0x390] sm:$0xff]
  %v3040 = vld [vmem:[%s6 + $0x398] sm:$0xff]
  %v3041 = vld [vmem:[%s6 + $0x3a0] sm:$0xff]
  %v3042 = vld [vmem:[%s6 + $0x3a8] sm:$0xff]
  %v3043 = vld [vmem:[%s6 + $0x3b0] sm:$0xff]
  %v3044 = vld [vmem:[%s6 + $0x3b8] sm:$0xff]
  %v3045 = vld [vmem:[%s6 + $0x3c0] sm:$0xff]
  %v3046 = vld [vmem:[%s6 + $0x3c8] sm:$0xff]
  %v3047 = vld [vmem:[%s6 + $0x3d0] sm:$0xff]
  %v3048 = vld [vmem:[%s6 + $0x3d8] sm:$0xff]
  %v3049 = vld [vmem:[%s6 + $0x3e0] sm:$0xff]
  %v3050 = vld [vmem:[%s6 + $0x3e8] sm:$0xff]
  %v3051 = vld [vmem:[%s6 + $0x3f0] sm:$0xff]
  %v3052 = vld [vmem:[%s6 + $0x3f8] sm:$0xff]
  %v3053 = vld [vmem:[%s7] sm:$0xff]
  %v3054 = vld [vmem:[%s7 + $0x8] sm:$0xff]
  %v3055 = vld [vmem:[%s7 + $0x10] sm:$0xff]
  %v3056 = vld [vmem:[%s7 + $0x18] sm:$0xff]
  %v3057 = vld [vmem:[%s7 + $0x20] sm:$0xff]
  %v3058 = vld [vmem:[%s7 + $0x28] sm:$0xff]
  %v3059 = vld [vmem:[%s7 + $0x30] sm:$0xff]
  %v3060 = vld [vmem:[%s7 + $0x38] sm:$0xff]
  %v3061 = vld [vmem:[%s7 + $0x40] sm:$0xff]
  %v3062 = vld [vmem:[%s7 + $0x48] sm:$0xff]
  %v3063 = vld [vmem:[%s7 + $0x50] sm:$0xff]
  %v3064 = vld [vmem:[%s7 + $0x58] sm:$0xff]
  %v3065 = vld [vmem:[%s7 + $0x60] sm:$0xff]
  %v3066 = vld [vmem:[%s7 + $0x68] sm:$0xff]
  %v3067 = vld [vmem:[%s7 + $0x70] sm:$0xff]
  %v3068 = vld [vmem:[%s7 + $0x78] sm:$0xff]
  %v3069 = vld [vmem:[%s7 + $0x80] sm:$0xff]
  %v3070 = vld [vmem:[%s7 + $0x88] sm:$0xff]
  %v3071 = vld [vmem:[%s7 + $0x90] sm:$0xff]
  %v3072 = vld [vmem:[%s7 + $0x98] sm:$0xff]
  %v3073 = vld [vmem:[%s7 + $0xa0] sm:$0xff]
  %v3074 = vld [vmem:[%s7 + $0xa8] sm:$0xff]
  %v3075 = vld [vmem:[%s7 + $0xb0] sm:$0xff]
  %v3076 = vld [vmem:[%s7 + $0xb8] sm:$0xff]
  %v3077 = vld [vmem:[%s7 + $0xc0] sm:$0xff]
  %v3078 = vld [vmem:[%s7 + $0xc8] sm:$0xff]
  %v3079 = vld [vmem:[%s7 + $0xd0] sm:$0xff]
  %v3080 = vld [vmem:[%s7 + $0xd8] sm:$0xff]
  %v3081 = vld [vmem:[%s7 + $0xe0] sm:$0xff]
  %v3082 = vld [vmem:[%s7 + $0xe8] sm:$0xff]
  %v3083 = vld [vmem:[%s7 + $0xf0] sm:$0xff]
  %v3084 = vld [vmem:[%s7 + $0xf8] sm:$0xff]
  %v3085 = vld [vmem:[%s7 + $0x100] sm:$0xff]
  %v3086 = vld [vmem:[%s7 + $0x108] sm:$0xff]
  %v3087 = vld [vmem:[%s7 + $0x110] sm:$0xff]
  %v3088 = vld [vmem:[%s7 + $0x118] sm:$0xff]
  %v3089 = vld [vmem:[%s7 + $0x120] sm:$0xff]
  %v3090 = vld [vmem:[%s7 + $0x128] sm:$0xff]
  %v3091 = vld [vmem:[%s7 + $0x130] sm:$0xff]
  %v3092 = vld [vmem:[%s7 + $0x138] sm:$0xff]
  %v3093 = vld [vmem:[%s7 + $0x140] sm:$0xff]
  %v3094 = vld [vmem:[%s7 + $0x148] sm:$0xff]
  %v3095 = vld [vmem:[%s7 + $0x150] sm:$0xff]
  %v3096 = vld [vmem:[%s7 + $0x158] sm:$0xff]
  %v3097 = vld [vmem:[%s7 + $0x160] sm:$0xff]
  %v3098 = vld [vmem:[%s7 + $0x168] sm:$0xff]
  %v3099 = vld [vmem:[%s7 + $0x170] sm:$0xff]
  %v3100 = vld [vmem:[%s7 + $0x178] sm:$0xff]
  %v3101 = vld [vmem:[%s7 + $0x180] sm:$0xff]
  %v3102 = vld [vmem:[%s7 + $0x188] sm:$0xff]
  %v3103 = vld [vmem:[%s3] sm:$0xff]
  %v3104 = vld [vmem:[%s3 + $0x8] sm:$0xff]
  %v3105 = vpack.c.bf16 %v3103, %v3103
  %v3106 = vpack.c.bf16 %v3104, %v3104
  %v3107 = vpack.c.bf16 %v2623, %v2623
  %v3108 = vpack.c.bf16 %v2625, %v2625
  %v3109 = vpack.c.bf16 %v2869, %v2869
  %v3110 = vpack.c.bf16 %v2871, %v2871
  %v3239 = vunpack.c.l.b16 %v2925
  %v3240 = vunpack.c.h.b16 %v2925
  %v3241 = vunpack.c.l.b16 %v2926
  %v3242 = vunpack.c.h.b16 %v2926
  %v3243 = vunpack.c.l.b16 %v2927
  %v3244 = vunpack.c.h.b16 %v2927
  %v3245 = vunpack.c.l.b16 %v2928
  %v3246 = vunpack.c.h.b16 %v2928
  %v3247 = vunpack.c.l.b16 %v2929
  %v3248 = vunpack.c.h.b16 %v2929
  %v3249 = vunpack.c.l.b16 %v2930
  %v3250 = vunpack.c.h.b16 %v2930
  %v3251 = vunpack.c.l.b16 %v2931
  %v3252 = vunpack.c.h.b16 %v2931
  %v3253 = vunpack.c.l.b16 %v2932
  %v3254 = vunpack.c.h.b16 %v2932
  %v3255 = vunpack.c.l.b16 %v2933
  %v3256 = vunpack.c.h.b16 %v2933
  %v3257 = vunpack.c.l.b16 %v2934
  %v3258 = vunpack.c.h.b16 %v2934
  %v3259 = vunpack.c.l.b16 %v2935
  %v3260 = vunpack.c.h.b16 %v2935
  %v3261 = vunpack.c.l.b16 %v2936
  %v3262 = vunpack.c.h.b16 %v2936
  %v3263 = vunpack.c.l.b16 %v2937
  %v3264 = vunpack.c.h.b16 %v2937
  %v3265 = vunpack.c.l.b16 %v2938
  %v3266 = vunpack.c.h.b16 %v2938
  %v3267 = vunpack.c.l.b16 %v2939
  %v3268 = vunpack.c.h.b16 %v2939
  %v3269 = vunpack.c.l.b16 %v2940
  %v3270 = vunpack.c.h.b16 %v2940
  %v3271 = vunpack.c.l.b16 %v2941
  %v3272 = vunpack.c.h.b16 %v2941
  %v3273 = vunpack.c.l.b16 %v2942
  %v3274 = vunpack.c.h.b16 %v2942
  %v3275 = vunpack.c.l.b16 %v2943
  %v3276 = vunpack.c.h.b16 %v2943
  %v3277 = vunpack.c.l.b16 %v2944
  %v3278 = vunpack.c.h.b16 %v2944
  %v3279 = vunpack.c.l.b16 %v2945
  %v3280 = vunpack.c.h.b16 %v2945
  %v3281 = vunpack.c.l.b16 %v2946
  %v3282 = vunpack.c.h.b16 %v2946
  %v3283 = vunpack.c.l.b16 %v2947
  %v3284 = vunpack.c.h.b16 %v2947
  %v3285 = vunpack.c.l.b16 %v2948
  %v3286 = vunpack.c.h.b16 %v2948
  %v3287 = vunpack.c.l.b16 %v2949
  %v3288 = vunpack.c.h.b16 %v2949
  %v3289 = vunpack.c.l.b16 %v2950
  %v3290 = vunpack.c.h.b16 %v2950
  %v3291 = vunpack.c.l.b16 %v2951
  %v3292 = vunpack.c.h.b16 %v2951
  %v3293 = vunpack.c.l.b16 %v2952
  %v3294 = vunpack.c.h.b16 %v2952
  %v3295 = vunpack.c.l.b16 %v2953
  %v3296 = vunpack.c.h.b16 %v2953
  %v3297 = vunpack.c.l.b16 %v2954
  %v3298 = vunpack.c.h.b16 %v2954
  %v3299 = vunpack.c.l.b16 %v2955
  %v3300 = vunpack.c.h.b16 %v2955
  %v3301 = vunpack.c.l.b16 %v2956
  %v3302 = vunpack.c.h.b16 %v2956
  %v3303 = vunpack.c.l.b16 %v2957
  %v3304 = vunpack.c.h.b16 %v2957
  %v3305 = vunpack.c.l.b16 %v2958
  %v3306 = vunpack.c.h.b16 %v2958
  %v3307 = vunpack.c.l.b16 %v2959
  %v3308 = vunpack.c.h.b16 %v2959
  %v3309 = vunpack.c.l.b16 %v2960
  %v3310 = vunpack.c.h.b16 %v2960
  %v3311 = vunpack.c.l.b16 %v2961
  %v3312 = vunpack.c.h.b16 %v2961
  %v3313 = vunpack.c.l.b16 %v2962
  %v3314 = vunpack.c.h.b16 %v2962
  %v3315 = vunpack.c.l.b16 %v2963
  %v3316 = vunpack.c.h.b16 %v2963
  %v3317 = vunpack.c.l.b16 %v2964
  %v3318 = vunpack.c.h.b16 %v2964
  %v3319 = vunpack.c.l.b16 %v2965
  %v3320 = vunpack.c.h.b16 %v2965
  %v3321 = vunpack.c.l.b16 %v2966
  %v3322 = vunpack.c.h.b16 %v2966
  %v3323 = vunpack.c.l.b16 %v2967
  %v3324 = vunpack.c.h.b16 %v2967
  %v3325 = vunpack.c.l.b16 %v2968
  %v3326 = vunpack.c.h.b16 %v2968
  %v3327 = vunpack.c.l.b16 %v2969
  %v3328 = vunpack.c.h.b16 %v2969
  %v3329 = vunpack.c.l.b16 %v2970
  %v3330 = vunpack.c.h.b16 %v2970
  %v3331 = vunpack.c.l.b16 %v2971
  %v3332 = vunpack.c.h.b16 %v2971
  %v3333 = vunpack.c.l.b16 %v2972
  %v3334 = vunpack.c.h.b16 %v2972
  %v3335 = vunpack.c.l.b16 %v2973
  %v3336 = vunpack.c.h.b16 %v2973
  %v3337 = vunpack.c.l.b16 %v2974
  %v3338 = vunpack.c.h.b16 %v2974
  %v3339 = vunpack.c.l.b16 %v2975
  %v3340 = vunpack.c.h.b16 %v2975
  %v3341 = vunpack.c.l.b16 %v2976
  %v3342 = vunpack.c.h.b16 %v2976
  %v3343 = vunpack.c.l.b16 %v2977
  %v3344 = vunpack.c.h.b16 %v2977
  %v3345 = vunpack.c.l.b16 %v2978
  %v3346 = vunpack.c.h.b16 %v2978
  %v3347 = vunpack.c.l.b16 %v2979
  %v3348 = vunpack.c.h.b16 %v2979
  %v3349 = vunpack.c.l.b16 %v2980
  %v3350 = vunpack.c.h.b16 %v2980
  %v3351 = vunpack.c.l.b16 %v2981
  %v3352 = vunpack.c.h.b16 %v2981
  %v3353 = vunpack.c.l.b16 %v2982
  %v3354 = vunpack.c.h.b16 %v2982
  %v3355 = vunpack.c.l.b16 %v2983
  %v3356 = vunpack.c.h.b16 %v2983
  %v3357 = vunpack.c.l.b16 %v2984
  %v3358 = vunpack.c.h.b16 %v2984
  %v3359 = vunpack.c.l.b16 %v2985
  %v3360 = vunpack.c.h.b16 %v2985
  %v3361 = vunpack.c.l.b16 %v2986
  %v3362 = vunpack.c.h.b16 %v2986
  %v3363 = vunpack.c.l.b16 %v2987
  %v3364 = vunpack.c.h.b16 %v2987
  %v3365 = vunpack.c.l.b16 %v2988
  %v3366 = vunpack.c.h.b16 %v2988
  %v3367 = vunpack.c.l.b16 %v2989
  %v3368 = vunpack.c.h.b16 %v2989
  %v3369 = vunpack.c.l.b16 %v2990
  %v3370 = vunpack.c.h.b16 %v2990
  %v3371 = vunpack.c.l.b16 %v2991
  %v3372 = vunpack.c.h.b16 %v2991
  %v3373 = vunpack.c.l.b16 %v2992
  %v3374 = vunpack.c.h.b16 %v2992
  %v3375 = vunpack.c.l.b16 %v2993
  %v3376 = vunpack.c.h.b16 %v2993
  %v3377 = vunpack.c.l.b16 %v2994
  %v3378 = vunpack.c.h.b16 %v2994
  %v3379 = vunpack.c.l.b16 %v2995
  %v3380 = vunpack.c.h.b16 %v2995
  %v3381 = vunpack.c.l.b16 %v2996
  %v3382 = vunpack.c.h.b16 %v2996
  %v3383 = vunpack.c.l.b16 %v2997
  %v3384 = vunpack.c.h.b16 %v2997
  %v3385 = vunpack.c.l.b16 %v2998
  %v3386 = vunpack.c.h.b16 %v2998
  %v3387 = vunpack.c.l.b16 %v2999
  %v3388 = vunpack.c.h.b16 %v2999
  %v3389 = vunpack.c.l.b16 %v3000
  %v3390 = vunpack.c.h.b16 %v3000
  %v3391 = vunpack.c.l.b16 %v3001
  %v3392 = vunpack.c.h.b16 %v3001
  %v3393 = vunpack.c.l.b16 %v3002
  %v3394 = vunpack.c.h.b16 %v3002
  %v3395 = vunpack.c.l.b16 %v3003
  %v3396 = vunpack.c.h.b16 %v3003
  %v3397 = vunpack.c.l.b16 %v3004
  %v3398 = vunpack.c.h.b16 %v3004
  %v3399 = vunpack.c.l.b16 %v3005
  %v3400 = vunpack.c.h.b16 %v3005
  %v3401 = vunpack.c.l.b16 %v3006
  %v3402 = vunpack.c.h.b16 %v3006
  %v3403 = vunpack.c.l.b16 %v3007
  %v3404 = vunpack.c.h.b16 %v3007
  %v3405 = vunpack.c.l.b16 %v3008
  %v3406 = vunpack.c.h.b16 %v3008
  %v3407 = vunpack.c.l.b16 %v3009
  %v3408 = vunpack.c.h.b16 %v3009
  %v3409 = vunpack.c.l.b16 %v3010
  %v3410 = vunpack.c.h.b16 %v3010
  %v3411 = vunpack.c.l.b16 %v3011
  %v3412 = vunpack.c.h.b16 %v3011
  %v3413 = vunpack.c.l.b16 %v3012
  %v3414 = vunpack.c.h.b16 %v3012
  %v3415 = vunpack.c.l.b16 %v3013
  %v3416 = vunpack.c.h.b16 %v3013
  %v3417 = vunpack.c.l.b16 %v3014
  %v3418 = vunpack.c.h.b16 %v3014
  %v3419 = vunpack.c.l.b16 %v3015
  %v3420 = vunpack.c.h.b16 %v3015
  %v3421 = vunpack.c.l.b16 %v3016
  %v3422 = vunpack.c.h.b16 %v3016
  %v3423 = vunpack.c.l.b16 %v3017
  %v3424 = vunpack.c.h.b16 %v3017
  %v3425 = vunpack.c.l.b16 %v3018
  %v3426 = vunpack.c.h.b16 %v3018
  %v3427 = vunpack.c.l.b16 %v3019
  %v3428 = vunpack.c.h.b16 %v3019
  %v3429 = vunpack.c.l.b16 %v3020
  %v3430 = vunpack.c.h.b16 %v3020
  %v3431 = vunpack.c.l.b16 %v3021
  %v3432 = vunpack.c.h.b16 %v3021
  %v3433 = vunpack.c.l.b16 %v3022
  %v3434 = vunpack.c.h.b16 %v3022
  %v3435 = vunpack.c.l.b16 %v3023
  %v3436 = vunpack.c.h.b16 %v3023
  %v3437 = vunpack.c.l.b16 %v3024
  %v3438 = vunpack.c.h.b16 %v3024
  %v3439 = vunpack.c.l.b16 %v3025
  %v3440 = vunpack.c.h.b16 %v3025
  %v3441 = vunpack.c.l.b16 %v3026
  %v3442 = vunpack.c.h.b16 %v3026
  %v3443 = vunpack.c.l.b16 %v3027
  %v3444 = vunpack.c.h.b16 %v3027
  %v3445 = vunpack.c.l.b16 %v3028
  %v3446 = vunpack.c.h.b16 %v3028
  %v3447 = vunpack.c.l.b16 %v3029
  %v3448 = vunpack.c.h.b16 %v3029
  %v3449 = vunpack.c.l.b16 %v3030
  %v3450 = vunpack.c.h.b16 %v3030
  %v3451 = vunpack.c.l.b16 %v3031
  %v3452 = vunpack.c.h.b16 %v3031
  %v3453 = vunpack.c.l.b16 %v3032
  %v3454 = vunpack.c.h.b16 %v3032
  %v3455 = vunpack.c.l.b16 %v3033
  %v3456 = vunpack.c.h.b16 %v3033
  %v3457 = vunpack.c.l.b16 %v3034
  %v3458 = vunpack.c.h.b16 %v3034
  %v3459 = vunpack.c.l.b16 %v3035
  %v3460 = vunpack.c.h.b16 %v3035
  %v3461 = vunpack.c.l.b16 %v3036
  %v3462 = vunpack.c.h.b16 %v3036
  %v3463 = vunpack.c.l.b16 %v3037
  %v3464 = vunpack.c.h.b16 %v3037
  %v3465 = vunpack.c.l.b16 %v3038
  %v3466 = vunpack.c.h.b16 %v3038
  %v3467 = vunpack.c.l.b16 %v3039
  %v3468 = vunpack.c.h.b16 %v3039
  %v3469 = vunpack.c.l.b16 %v3040
  %v3470 = vunpack.c.h.b16 %v3040
  %v3471 = vunpack.c.l.b16 %v3041
  %v3472 = vunpack.c.h.b16 %v3041
  %v3473 = vunpack.c.l.b16 %v3042
  %v3474 = vunpack.c.h.b16 %v3042
  %v3475 = vunpack.c.l.b16 %v3043
  %v3476 = vunpack.c.h.b16 %v3043
  %v3477 = vunpack.c.l.b16 %v3044
  %v3478 = vunpack.c.h.b16 %v3044
  %v3479 = vunpack.c.l.b16 %v3045
  %v3480 = vunpack.c.h.b16 %v3045
  %v3481 = vunpack.c.l.b16 %v3046
  %v3482 = vunpack.c.h.b16 %v3046
  %v3483 = vunpack.c.l.b16 %v3047
  %v3484 = vunpack.c.h.b16 %v3047
  %v3485 = vunpack.c.l.b16 %v3048
  %v3486 = vunpack.c.h.b16 %v3048
  %v3487 = vunpack.c.l.b16 %v3049
  %v3488 = vunpack.c.h.b16 %v3049
  %v3489 = vunpack.c.l.b16 %v3050
  %v3490 = vunpack.c.h.b16 %v3050
  %v3491 = vunpack.c.l.b16 %v3051
  %v3492 = vunpack.c.h.b16 %v3051
  %v3493 = vunpack.c.l.b16 %v3052
  %v3494 = vunpack.c.h.b16 %v3052
  %v3495 = vpack.c.b16 %v3243, %v3239
  %v3496 = vpack.c.b16 %v3244, %v3240
  %v3497 = vpack.c.b16 %v3245, %v3241
  %v3498 = vpack.c.b16 %v3246, %v3242
  %v3499 = vpack.c.b16 %v3251, %v3247
  %v3500 = vpack.c.b16 %v3252, %v3248
  %v3501 = vpack.c.b16 %v3253, %v3249
  %v3502 = vpack.c.b16 %v3254, %v3250
  %v3503 = vpack.c.b16 %v3259, %v3255
  %v3504 = vpack.c.b16 %v3260, %v3256
  %v3505 = vpack.c.b16 %v3261, %v3257
  %v3506 = vpack.c.b16 %v3262, %v3258
  %v3507 = vpack.c.b16 %v3267, %v3263
  %v3508 = vpack.c.b16 %v3268, %v3264
  %v3509 = vpack.c.b16 %v3269, %v3265
  %v3510 = vpack.c.b16 %v3270, %v3266
  %v3511 = vpack.c.b16 %v3275, %v3271
  %v3512 = vpack.c.b16 %v3276, %v3272
  %v3513 = vpack.c.b16 %v3277, %v3273
  %v3514 = vpack.c.b16 %v3278, %v3274
  %v3515 = vpack.c.b16 %v3283, %v3279
  %v3516 = vpack.c.b16 %v3284, %v3280
  %v3517 = vpack.c.b16 %v3285, %v3281
  %v3518 = vpack.c.b16 %v3286, %v3282
  %v3519 = vpack.c.b16 %v3291, %v3287
  %v3520 = vpack.c.b16 %v3292, %v3288
  %v3521 = vpack.c.b16 %v3293, %v3289
  %v3522 = vpack.c.b16 %v3294, %v3290
  %v3523 = vpack.c.b16 %v3299, %v3295
  %v3524 = vpack.c.b16 %v3300, %v3296
  %v3525 = vpack.c.b16 %v3301, %v3297
  %v3526 = vpack.c.b16 %v3302, %v3298
  %v3527 = vpack.c.b16 %v3307, %v3303
  %v3528 = vpack.c.b16 %v3308, %v3304
  %v3529 = vpack.c.b16 %v3309, %v3305
  %v3530 = vpack.c.b16 %v3310, %v3306
  %v3531 = vpack.c.b16 %v3315, %v3311
  %v3532 = vpack.c.b16 %v3316, %v3312
  %v3533 = vpack.c.b16 %v3317, %v3313
  %v3534 = vpack.c.b16 %v3318, %v3314
  %v3535 = vpack.c.b16 %v3323, %v3319
  %v3536 = vpack.c.b16 %v3324, %v3320
  %v3537 = vpack.c.b16 %v3325, %v3321
  %v3538 = vpack.c.b16 %v3326, %v3322
  %v3539 = vpack.c.b16 %v3331, %v3327
  %v3540 = vpack.c.b16 %v3332, %v3328
  %v3541 = vpack.c.b16 %v3333, %v3329
  %v3542 = vpack.c.b16 %v3334, %v3330
  %v3543 = vpack.c.b16 %v3339, %v3335
  %v3544 = vpack.c.b16 %v3340, %v3336
  %v3545 = vpack.c.b16 %v3341, %v3337
  %v3546 = vpack.c.b16 %v3342, %v3338
  %v3547 = vpack.c.b16 %v3347, %v3343
  %v3548 = vpack.c.b16 %v3348, %v3344
  %v3549 = vpack.c.b16 %v3349, %v3345
  %v3550 = vpack.c.b16 %v3350, %v3346
  %v3551 = vpack.c.b16 %v3355, %v3351
  %v3552 = vpack.c.b16 %v3356, %v3352
  %v3553 = vpack.c.b16 %v3357, %v3353
  %v3554 = vpack.c.b16 %v3358, %v3354
  %v3555 = vpack.c.b16 %v3363, %v3359
  %v3556 = vpack.c.b16 %v3364, %v3360
  %v3557 = vpack.c.b16 %v3365, %v3361
  %v3558 = vpack.c.b16 %v3366, %v3362
  %v3559 = vpack.c.b16 %v3371, %v3367
  %v3560 = vpack.c.b16 %v3372, %v3368
  %v3561 = vpack.c.b16 %v3373, %v3369
  %v3562 = vpack.c.b16 %v3374, %v3370
  %v3563 = vpack.c.b16 %v3379, %v3375
  %v3564 = vpack.c.b16 %v3380, %v3376
  %v3565 = vpack.c.b16 %v3381, %v3377
  %v3566 = vpack.c.b16 %v3382, %v3378
  %v3567 = vpack.c.b16 %v3387, %v3383
  %v3568 = vpack.c.b16 %v3388, %v3384
  %v3569 = vpack.c.b16 %v3389, %v3385
  %v3570 = vpack.c.b16 %v3390, %v3386
  %v3571 = vpack.c.b16 %v3395, %v3391
  %v3572 = vpack.c.b16 %v3396, %v3392
  %v3573 = vpack.c.b16 %v3397, %v3393
  %v3574 = vpack.c.b16 %v3398, %v3394
  %v3575 = vpack.c.b16 %v3403, %v3399
  %v3576 = vpack.c.b16 %v3404, %v3400
  %v3577 = vpack.c.b16 %v3405, %v3401
  %v3578 = vpack.c.b16 %v3406, %v3402
  %v3579 = vpack.c.b16 %v3411, %v3407
  %v3580 = vpack.c.b16 %v3412, %v3408
  %v3581 = vpack.c.b16 %v3413, %v3409
  %v3582 = vpack.c.b16 %v3414, %v3410
  %v3583 = vpack.c.b16 %v3419, %v3415
  %v3584 = vpack.c.b16 %v3420, %v3416
  %v3585 = vpack.c.b16 %v3421, %v3417
  %v3586 = vpack.c.b16 %v3422, %v3418
  %v3587 = vpack.c.b16 %v3427, %v3423
  %v3588 = vpack.c.b16 %v3428, %v3424
  %v3589 = vpack.c.b16 %v3429, %v3425
  %v3590 = vpack.c.b16 %v3430, %v3426
  %v3591 = vpack.c.b16 %v3435, %v3431
  %v3592 = vpack.c.b16 %v3436, %v3432
  %v3593 = vpack.c.b16 %v3437, %v3433
  %v3594 = vpack.c.b16 %v3438, %v3434
  %v3595 = vpack.c.b16 %v3443, %v3439
  %v3596 = vpack.c.b16 %v3444, %v3440
  %v3597 = vpack.c.b16 %v3445, %v3441
  %v3598 = vpack.c.b16 %v3446, %v3442
  %v3599 = vpack.c.b16 %v3451, %v3447
  %v3600 = vpack.c.b16 %v3452, %v3448
  %v3601 = vpack.c.b16 %v3453, %v3449
  %v3602 = vpack.c.b16 %v3454, %v3450
  %v3603 = vpack.c.b16 %v3459, %v3455
  %v3604 = vpack.c.b16 %v3460, %v3456
  %v3605 = vpack.c.b16 %v3461, %v3457
  %v3606 = vpack.c.b16 %v3462, %v3458
  %v3607 = vpack.c.b16 %v3467, %v3463
  %v3608 = vpack.c.b16 %v3468, %v3464
  %v3609 = vpack.c.b16 %v3469, %v3465
  %v3610 = vpack.c.b16 %v3470, %v3466
  %v3611 = vpack.c.b16 %v3475, %v3471
  %v3612 = vpack.c.b16 %v3476, %v3472
  %v3613 = vpack.c.b16 %v3477, %v3473
  %v3614 = vpack.c.b16 %v3478, %v3474
  %v3615 = vpack.c.b16 %v3483, %v3479
  %v3616 = vpack.c.b16 %v3484, %v3480
  %v3617 = vpack.c.b16 %v3485, %v3481
  %v3618 = vpack.c.b16 %v3486, %v3482
  %v3619 = vpack.c.b16 %v3491, %v3487
  %v3620 = vpack.c.b16 %v3492, %v3488
  %v3621 = vpack.c.b16 %v3493, %v3489
  %v3622 = vpack.c.b16 %v3494, %v3490
  %3751 = vmatprep.subr.bf16.mxu0 %v3496
  %3752 = vmatpush1.bf16.msra.mxu0 %v3495
  %3753 = vmatprep.subr.bf16.mxu0 %v3500
  %3754 = vmatpush1.bf16.msra.mxu0 %v3499
  %3755 = vmatprep.subr.bf16.mxu0 %v3504
  %3756 = vmatpush1.bf16.msra.mxu0 %v3503
  %3757 = vmatprep.subr.bf16.mxu0 %v3508
  %3758 = vmatpush1.bf16.msra.mxu0 %v3507
  %3759 = vmatprep.subr.bf16.mxu0 %v3512
  %3760 = vmatpush1.bf16.msra.mxu0 %v3511
  %3761 = vmatprep.subr.bf16.mxu0 %v3516
  %3762 = vmatpush1.bf16.msra.mxu0 %v3515
  %3763 = vmatprep.subr.bf16.mxu0 %v3520
  %3764 = vmatpush1.bf16.msra.mxu0 %v3519
  %3765 = vmatprep.subr.bf16.mxu0 %v3524
  %3766 = vmatpush1.bf16.msra.mxu0 %v3523
  %3767 = vmatprep.subr.bf16.mxu0 %v3528
  %3768 = vmatpush1.bf16.msra.mxu0 %v3527
  %3769 = vmatprep.subr.bf16.mxu0 %v3532
  %3770 = vmatpush1.bf16.msra.mxu0 %v3531
  %3771 = vmatprep.subr.bf16.mxu0 %v3536
  %3772 = vmatpush1.bf16.msra.mxu0 %v3535
  %3773 = vmatprep.subr.bf16.mxu0 %v3540
  %3774 = vmatpush1.bf16.msra.mxu0 %v3539
  %3775 = vmatprep.subr.bf16.mxu0 %v3544
  %3776 = vmatpush1.bf16.msra.mxu0 %v3543
  %3777 = vmatprep.subr.bf16.mxu0 %v3548
  %3778 = vmatpush1.bf16.msra.mxu0 %v3547
  %3779 = vmatprep.subr.bf16.mxu0 %v3552
  %3780 = vmatpush1.bf16.msra.mxu0 %v3551
  %3781 = vmatprep.subr.bf16.mxu0 %v3556
  %3782 = vmatpush1.bf16.msra.mxu0 %v3555
  %3783 = vmatprep.mubr.bf16.mxu0 %v3108
  %3784 = vmatmul.mubr.bf16.gmra.mrb[0].mxu0 %v3107
  %v3785 = vpop.f32.mrb[0].mxu0
  %v3786 = vadd.f32 0.0, %v3785
  %v3787 = vpop.f32.mrb[0].mxu0
  %v3788 = vadd.f32 0.0, %v3787
  %v3789 = vpop.f32.mrb[0].mxu0
  %v3790 = vpop.f32.mrb[0].mxu0
  %3791 = vdwg.mxu0
  %3792 = vmatprep.subr.bf16.mxu0 %v3560
  %3793 = vmatpush1.bf16.msra.mxu0 %v3559
  %3794 = vmatprep.subr.bf16.mxu0 %v3564
  %3795 = vmatpush1.bf16.msra.mxu0 %v3563
  %3796 = vmatprep.subr.bf16.mxu0 %v3568
  %3797 = vmatpush1.bf16.msra.mxu0 %v3567
  %3798 = vmatprep.subr.bf16.mxu0 %v3572
  %3799 = vmatpush1.bf16.msra.mxu0 %v3571
  %3800 = vmatprep.subr.bf16.mxu0 %v3576
  %3801 = vmatpush1.bf16.msra.mxu0 %v3575
  %3802 = vmatprep.subr.bf16.mxu0 %v3580
  %3803 = vmatpush1.bf16.msra.mxu0 %v3579
  %3804 = vmatprep.subr.bf16.mxu0 %v3584
  %3805 = vmatpush1.bf16.msra.mxu0 %v3583
  %3806 = vmatprep.subr.bf16.mxu0 %v3588
  %3807 = vmatpush1.bf16.msra.mxu0 %v3587
  %3808 = vmatprep.subr.bf16.mxu0 %v3592
  %3809 = vmatpush1.bf16.msra.mxu0 %v3591
  %3810 = vmatprep.subr.bf16.mxu0 %v3596
  %3811 = vmatpush1.bf16.msra.mxu0 %v3595
  %3812 = vmatprep.subr.bf16.mxu0 %v3600
  %3813 = vmatpush1.bf16.msra.mxu0 %v3599
  %3814 = vmatprep.subr.bf16.mxu0 %v3604
  %3815 = vmatpush1.bf16.msra.mxu0 %v3603
  %3816 = vmatprep.subr.bf16.mxu0 %v3608
  %3817 = vmatpush1.bf16.msra.mxu0 %v3607
  %3818 = vmatprep.subr.bf16.mxu0 %v3612
  %3819 = vmatpush1.bf16.msra.mxu0 %v3611
  %3820 = vmatprep.subr.bf16.mxu0 %v3616
  %3821 = vmatpush1.bf16.msra.mxu0 %v3615
  %3822 = vmatprep.subr.bf16.mxu0 %v3620
  %3823 = vmatpush1.bf16.msra.mxu0 %v3619
  %3824 = vmatprep.mubr.bf16.mxu0 %v3110
  %3825 = vmatmul.mubr.bf16.gmra.mrb[0].mxu0 %v3109
  %v3826 = vpop.f32.mrb[0].mxu0
  %v3827 = vadd.f32 %v3786, %v3826
  %v3828 = vpop.f32.mrb[0].mxu0
  %v3829 = vadd.f32 %v3788, %v3828
  %v3830 = vpop.f32.mrb[0].mxu0
  %v3831 = vpop.f32.mrb[0].mxu0
  %3832 = vdwg.mxu0
  %3833 = vmatprep.subr.bf16.mxu0 %v3498
  %3834 = vmatpush1.bf16.msra.mxu0 %v3497
  %3835 = vmatprep.subr.bf16.mxu0 %v3502
  %3836 = vmatpush1.bf16.msra.mxu0 %v3501
  %3837 = vmatprep.subr.bf16.mxu0 %v3506
  %3838 = vmatpush1.bf16.msra.mxu0 %v3505
  %3839 = vmatprep.subr.bf16.mxu0 %v3510
  %3840 = vmatpush1.bf16.msra.mxu0 %v3509
  %3841 = vmatprep.subr.bf16.mxu0 %v3514
  %3842 = vmatpush1.bf16.msra.mxu0 %v3513
  %3843 = vmatprep.subr.bf16.mxu0 %v3518
  %3844 = vmatpush1.bf16.msra.mxu0 %v3517
  %3845 = vmatprep.subr.bf16.mxu0 %v3522
  %3846 = vmatpush1.bf16.msra.mxu0 %v3521
  %3847 = vmatprep.subr.bf16.mxu0 %v3526
  %3848 = vmatpush1.bf16.msra.mxu0 %v3525
  %3849 = vmatprep.subr.bf16.mxu0 %v3530
  %3850 = vmatpush1.bf16.msra.mxu0 %v3529
  %3851 = vmatprep.subr.bf16.mxu0 %v3534
  %3852 = vmatpush1.bf16.msra.mxu0 %v3533
  %3853 = vmatprep.subr.bf16.mxu0 %v3538
  %3854 = vmatpush1.bf16.msra.mxu0 %v3537
  %3855 = vmatprep.subr.bf16.mxu0 %v3542
  %3856 = vmatpush1.bf16.msra.mxu0 %v3541
  %3857 = vmatprep.subr.bf16.mxu0 %v3546
  %3858 = vmatpush1.bf16.msra.mxu0 %v3545
  %3859 = vmatprep.subr.bf16.mxu0 %v3550
  %3860 = vmatpush1.bf16.msra.mxu0 %v3549
  %3861 = vmatprep.subr.bf16.mxu0 %v3554
  %3862 = vmatpush1.bf16.msra.mxu0 %v3553
  %3863 = vmatprep.subr.bf16.mxu0 %v3558
  %3864 = vmatpush1.bf16.msra.mxu0 %v3557
  %3865 = vmatprep.mubr.bf16.mxu0 %v3108
  %3866 = vmatmul.mubr.bf16.gmra.mrb[0].mxu0 %v3107
  %v3867 = vpop.f32.mrb[0].mxu0
  %v3868 = vadd.f32 0.0, %v3867
  %v3869 = vpop.f32.mrb[0].mxu0
  %v3870 = vadd.f32 0.0, %v3869
  %v3871 = vpop.f32.mrb[0].mxu0
  %v3872 = vpop.f32.mrb[0].mxu0
  %3873 = vdwg.mxu0
  %3874 = vmatprep.subr.bf16.mxu0 %v3562
  %3875 = vmatpush1.bf16.msra.mxu0 %v3561
  %3876 = vmatprep.subr.bf16.mxu0 %v3566
  %3877 = vmatpush1.bf16.msra.mxu0 %v3565
  %3878 = vmatprep.subr.bf16.mxu0 %v3570
  %3879 = vmatpush1.bf16.msra.mxu0 %v3569
  %3880 = vmatprep.subr.bf16.mxu0 %v3574
  %3881 = vmatpush1.bf16.msra.mxu0 %v3573
  %3882 = vmatprep.subr.bf16.mxu0 %v3578
  %3883 = vmatpush1.bf16.msra.mxu0 %v3577
  %3884 = vmatprep.subr.bf16.mxu0 %v3582
  %3885 = vmatpush1.bf16.msra.mxu0 %v3581
  %3886 = vmatprep.subr.bf16.mxu0 %v3586
  %3887 = vmatpush1.bf16.msra.mxu0 %v3585
  %3888 = vmatprep.subr.bf16.mxu0 %v3590
  %3889 = vmatpush1.bf16.msra.mxu0 %v3589
  %3890 = vmatprep.subr.bf16.mxu0 %v3594
  %3891 = vmatpush1.bf16.msra.mxu0 %v3593
  %3892 = vmatprep.subr.bf16.mxu0 %v3598
  %3893 = vmatpush1.bf16.msra.mxu0 %v3597
  %3894 = vmatprep.subr.bf16.mxu0 %v3602
  %3895 = vmatpush1.bf16.msra.mxu0 %v3601
  %3896 = vmatprep.subr.bf16.mxu0 %v3606
  %3897 = vmatpush1.bf16.msra.mxu0 %v3605
  %3898 = vmatprep.subr.bf16.mxu0 %v3610
  %3899 = vmatpush1.bf16.msra.mxu0 %v3609
  %3900 = vmatprep.subr.bf16.mxu0 %v3614
  %3901 = vmatpush1.bf16.msra.mxu0 %v3613
  %3902 = vmatprep.subr.bf16.mxu0 %v3618
  %3903 = vmatpush1.bf16.msra.mxu0 %v3617
  %3904 = vmatprep.subr.bf16.mxu0 %v3622
  %3905 = vmatpush1.bf16.msra.mxu0 %v3621
  %3906 = vmatprep.mubr.bf16.mxu0 %v3110
  %3907 = vmatmul.mubr.bf16.gmra.mrb[0].mxu0 %v3109
  %v3908 = vpop.f32.mrb[0].mxu0
  %v3909 = vadd.f32 %v3868, %v3908
  %v3910 = vpop.f32.mrb[0].mxu0
  %v3911 = vadd.f32 %v3870, %v3910
  %v3912 = vpop.f32.mrb[0].mxu0
  %v3913 = vpop.f32.mrb[0].mxu0
  %3914 = vdwg.mxu0
  %v3965 = vunpack.c.l.b16 %v2875
  %v3966 = vunpack.c.h.b16 %v2875
  %v3967 = vunpack.c.l.b16 %v2876
  %v3968 = vunpack.c.h.b16 %v2876
  %v3969 = vunpack.c.l.b16 %v2877
  %v3970 = vunpack.c.h.b16 %v2877
  %v3971 = vunpack.c.l.b16 %v2878
  %v3972 = vunpack.c.h.b16 %v2878
  %v3973 = vunpack.c.l.b16 %v2879
  %v3974 = vunpack.c.h.b16 %v2879
  %v3975 = vunpack.c.l.b16 %v2880
  %v3976 = vunpack.c.h.b16 %v2880
  %v3977 = vunpack.c.l.b16 %v2881
  %v3978 = vunpack.c.h.b16 %v2881
  %v3979 = vunpack.c.l.b16 %v2882
  %v3980 = vunpack.c.h.b16 %v2882
  %v3981 = vunpack.c.l.b16 %v2883
  %v3982 = vunpack.c.h.b16 %v2883
  %v3983 = vunpack.c.l.b16 %v2884
  %v3984 = vunpack.c.h.b16 %v2884
  %v3985 = vunpack.c.l.b16 %v2885
  %v3986 = vunpack.c.h.b16 %v2885
  %v3987 = vunpack.c.l.b16 %v2886
  %v3988 = vunpack.c.h.b16 %v2886
  %v3989 = vunpack.c.l.b16 %v2887
  %v3990 = vunpack.c.h.b16 %v2887
  %v3991 = vunpack.c.l.b16 %v2888
  %v3992 = vunpack.c.h.b16 %v2888
  %v3993 = vunpack.c.l.b16 %v2889
  %v3994 = vunpack.c.h.b16 %v2889
  %v3995 = vunpack.c.l.b16 %v2890
  %v3996 = vunpack.c.h.b16 %v2890
  %v3997 = vunpack.c.l.b16 %v2891
  %v3998 = vunpack.c.h.b16 %v2891
  %v3999 = vunpack.c.l.b16 %v2892
  %v4000 = vunpack.c.h.b16 %v2892
  %v4001 = vunpack.c.l.b16 %v2893
  %v4002 = vunpack.c.h.b16 %v2893
  %v4003 = vunpack.c.l.b16 %v2894
  %v4004 = vunpack.c.h.b16 %v2894
  %v4005 = vunpack.c.l.b16 %v2895
  %v4006 = vunpack.c.h.b16 %v2895
  %v4007 = vunpack.c.l.b16 %v2896
  %v4008 = vunpack.c.h.b16 %v2896
  %v4009 = vunpack.c.l.b16 %v2897
  %v4010 = vunpack.c.h.b16 %v2897
  %v4011 = vunpack.c.l.b16 %v2898
  %v4012 = vunpack.c.h.b16 %v2898
  %v4013 = vunpack.c.l.b16 %v2899
  %v4014 = vunpack.c.h.b16 %v2899
  %v4015 = vunpack.c.l.b16 %v2900
  %v4016 = vunpack.c.h.b16 %v2900
  %v4017 = vunpack.c.l.b16 %v2901
  %v4018 = vunpack.c.h.b16 %v2901
  %v4019 = vunpack.c.l.b16 %v2902
  %v4020 = vunpack.c.h.b16 %v2902
  %v4021 = vunpack.c.l.b16 %v2903
  %v4022 = vunpack.c.h.b16 %v2903
  %v4023 = vunpack.c.l.b16 %v2904
  %v4024 = vunpack.c.h.b16 %v2904
  %v4025 = vunpack.c.l.b16 %v2905
  %v4026 = vunpack.c.h.b16 %v2905
  %v4027 = vunpack.c.l.b16 %v2906
  %v4028 = vunpack.c.h.b16 %v2906
  %v4029 = vunpack.c.l.b16 %v2907
  %v4030 = vunpack.c.h.b16 %v2907
  %v4031 = vunpack.c.l.b16 %v2908
  %v4032 = vunpack.c.h.b16 %v2908
  %v4033 = vunpack.c.l.b16 %v2909
  %v4034 = vunpack.c.h.b16 %v2909
  %v4035 = vunpack.c.l.b16 %v2910
  %v4036 = vunpack.c.h.b16 %v2910
  %v4037 = vunpack.c.l.b16 %v2911
  %v4038 = vunpack.c.h.b16 %v2911
  %v4039 = vunpack.c.l.b16 %v2912
  %v4040 = vunpack.c.h.b16 %v2912
  %v4041 = vunpack.c.l.b16 %v2913
  %v4042 = vunpack.c.h.b16 %v2913
  %v4043 = vunpack.c.l.b16 %v2914
  %v4044 = vunpack.c.h.b16 %v2914
  %v4045 = vunpack.c.l.b16 %v2915
  %v4046 = vunpack.c.h.b16 %v2915
  %v4047 = vunpack.c.l.b16 %v2916
  %v4048 = vunpack.c.h.b16 %v2916
  %v4049 = vunpack.c.l.b16 %v2917
  %v4050 = vunpack.c.h.b16 %v2917
  %v4051 = vunpack.c.l.b16 %v2918
  %v4052 = vunpack.c.h.b16 %v2918
  %v4053 = vunpack.c.l.b16 %v2919
  %v4054 = vunpack.c.h.b16 %v2919
  %v4055 = vunpack.c.l.b16 %v2920
  %v4056 = vunpack.c.h.b16 %v2920
  %v4057 = vunpack.c.l.b16 %v2921
  %v4058 = vunpack.c.h.b16 %v2921
  %v4059 = vunpack.c.l.b16 %v2922
  %v4060 = vunpack.c.h.b16 %v2922
  %v4061 = vunpack.c.l.b16 %v2923
  %v4062 = vunpack.c.h.b16 %v2923
  %v4063 = vunpack.c.l.b16 %v2924
  %v4064 = vunpack.c.h.b16 %v2924
  %v4065 = vpack.c.b16 %v3969, %v3965
  %v4066 = vpack.c.b16 %v3970, %v3966
  %v4067 = vpack.c.b16 %v3971, %v3967
  %v4068 = vpack.c.b16 %v3972, %v3968
  %v4069 = vpack.c.b16 %v3977, %v3973
  %v4070 = vpack.c.b16 %v3978, %v3974
  %v4071 = vpack.c.b16 %v3979, %v3975
  %v4072 = vpack.c.b16 %v3980, %v3976
  %v4073 = vpack.c.b16 %v3985, %v3981
  %v4074 = vpack.c.b16 %v3986, %v3982
  %v4075 = vpack.c.b16 %v3987, %v3983
  %v4076 = vpack.c.b16 %v3988, %v3984
  %v4077 = vpack.c.b16 %v3993, %v3989
  %v4078 = vpack.c.b16 %v3994, %v3990
  %v4079 = vpack.c.b16 %v3995, %v3991
  %v4080 = vpack.c.b16 %v3996, %v3992
  %v4081 = vpack.c.b16 %v4001, %v3997
  %v4082 = vpack.c.b16 %v4002, %v3998
  %v4083 = vpack.c.b16 %v4003, %v3999
  %v4084 = vpack.c.b16 %v4004, %v4000
  %v4085 = vpack.c.b16 %v4009, %v4005
  %v4086 = vpack.c.b16 %v4010, %v4006
  %v4087 = vpack.c.b16 %v4011, %v4007
  %v4088 = vpack.c.b16 %v4012, %v4008
  %v4089 = vpack.c.b16 %v4017, %v4013
  %v4090 = vpack.c.b16 %v4018, %v4014
  %v4091 = vpack.c.b16 %v4019, %v4015
  %v4092 = vpack.c.b16 %v4020, %v4016
  %v4093 = vpack.c.b16 %v4025, %v4021
  %v4094 = vpack.c.b16 %v4026, %v4022
  %v4095 = vpack.c.b16 %v4027, %v4023
  %v4096 = vpack.c.b16 %v4028, %v4024
  %v4097 = vpack.c.b16 %v4033, %v4029
  %v4098 = vpack.c.b16 %v4034, %v4030
  %v4099 = vpack.c.b16 %v4035, %v4031
  %v4100 = vpack.c.b16 %v4036, %v4032
  %v4101 = vpack.c.b16 %v4041, %v4037
  %v4102 = vpack.c.b16 %v4042, %v4038
  %v4103 = vpack.c.b16 %v4043, %v4039
  %v4104 = vpack.c.b16 %v4044, %v4040
  %v4105 = vpack.c.b16 %v4049, %v4045
  %v4106 = vpack.c.b16 %v4050, %v4046
  %v4107 = vpack.c.b16 %v4051, %v4047
  %v4108 = vpack.c.b16 %v4052, %v4048
  %v4109 = vpack.c.b16 %v4057, %v4053
  %v4110 = vpack.c.b16 %v4058, %v4054
  %v4111 = vpack.c.b16 %v4059, %v4055
  %v4112 = vpack.c.b16 %v4060, %v4056
  %v4113 = vpack.c.b16 %v4061, %v4061
  %v4114 = vpack.c.b16 %v4062, %v4062
  %v4115 = vpack.c.b16 %v4063, %v4063
  %v4116 = vpack.c.b16 %v4064, %v4064
  %vm4165 = vcmask 588800
  %v4167 = vsel %vm4165, %v3106, 0
  %vm4169 = vcmask 1043456
  %v4171 = vsel %vm4169, %v4113, 0
  %v4174 = vsel %vm4169, %v4114, 0
  %v4177 = vsel %vm4169, %v4115, 0
  %v4180 = vsel %vm4169, %v4116, 0
  %4182 = vmatprep.subr.bf16.mxu0 %v4066
  %4183 = vmatpush1.bf16.msra.mxu0 %v4065
  %4184 = vmatprep.subr.bf16.mxu0 %v4070
  %4185 = vmatpush1.bf16.msra.mxu0 %v4069
  %4186 = vmatprep.subr.bf16.mxu0 %v4074
  %4187 = vmatpush1.bf16.msra.mxu0 %v4073
  %4188 = vmatprep.subr.bf16.mxu0 %v4078
  %4189 = vmatpush1.bf16.msra.mxu0 %v4077
  %4190 = vmatprep.subr.bf16.mxu0 %v4082
  %4191 = vmatpush1.bf16.msra.mxu0 %v4081
  %4192 = vmatprep.subr.bf16.mxu0 %v4086
  %4193 = vmatpush1.bf16.msra.mxu0 %v4085
  %4194 = vmatprep.subr.bf16.mxu0 %v4090
  %4195 = vmatpush1.bf16.msra.mxu0 %v4089
  %4196 = vmatprep.subr.bf16.mxu0 %v4094
  %4197 = vmatpush1.bf16.msra.mxu0 %v4093
  %4198 = vmatprep.subr.bf16.mxu0 %v4098
  %4199 = vmatpush1.bf16.msra.mxu0 %v4097
  %4200 = vmatprep.subr.bf16.mxu0 %v4102
  %4201 = vmatpush1.bf16.msra.mxu0 %v4101
  %4202 = vmatprep.subr.bf16.mxu0 %v4106
  %4203 = vmatpush1.bf16.msra.mxu0 %v4105
  %4204 = vmatprep.subr.bf16.mxu0 %v4110
  %4205 = vmatpush1.bf16.msra.mxu0 %v4109
  %4206 = vmatprep.subr.bf16.mxu0 %v4174
  %4207 = vmatpush1.bf16.msra.mxu0 %v4171
  %4208 = vmatprep.subr.bf16.mxu0 0
  %4209 = vmatpush1.bf16.msra.mxu0 0
  %4210 = vmatprep.subr.bf16.mxu0 0
  %4211 = vmatpush1.bf16.msra.mxu0 0
  %4212 = vmatprep.subr.bf16.mxu0 0
  %4213 = vmatpush1.bf16.msra.mxu0 0
  %4214 = vmatprep.mubr.bf16.mxu0 %v4167
  %4215 = vmatmul.mubr.bf16.gmra.mrb[0].mxu0 %v3105
  %v4216 = vpop.f32.mrb[0].mxu0
  %v4217 = vadd.f32 %v3827, %v4216
  %v4218 = vpop.f32.mrb[0].mxu0
  %v4219 = vadd.f32 %v3829, %v4218
  %v4220 = vpop.f32.mrb[0].mxu0
  %v4221 = vpop.f32.mrb[0].mxu0
  %4222 = vdwg.mxu0
  %4223 = vmatprep.subr.bf16.mxu0 %v4068
  %4224 = vmatpush1.bf16.msra.mxu0 %v4067
  %4225 = vmatprep.subr.bf16.mxu0 %v4072
  %4226 = vmatpush1.bf16.msra.mxu0 %v4071
  %4227 = vmatprep.subr.bf16.mxu0 %v4076
  %4228 = vmatpush1.bf16.msra.mxu0 %v4075
  %4229 = vmatprep.subr.bf16.mxu0 %v4080
  %4230 = vmatpush1.bf16.msra.mxu0 %v4079
  %4231 = vmatprep.subr.bf16.mxu0 %v4084
  %4232 = vmatpush1.bf16.msra.mxu0 %v4083
  %4233 = vmatprep.subr.bf16.mxu0 %v4088
  %4234 = vmatpush1.bf16.msra.mxu0 %v4087
  %4235 = vmatprep.subr.bf16.mxu0 %v4092
  %4236 = vmatpush1.bf16.msra.mxu0 %v4091
  %4237 = vmatprep.subr.bf16.mxu0 %v4096
  %4238 = vmatpush1.bf16.msra.mxu0 %v4095
  %4239 = vmatprep.subr.bf16.mxu0 %v4100
  %4240 = vmatpush1.bf16.msra.mxu0 %v4099
  %4241 = vmatprep.subr.bf16.mxu0 %v4104
  %4242 = vmatpush1.bf16.msra.mxu0 %v4103
  %4243 = vmatprep.subr.bf16.mxu0 %v4108
  %4244 = vmatpush1.bf16.msra.mxu0 %v4107
  %4245 = vmatprep.subr.bf16.mxu0 %v4112
  %4246 = vmatpush1.bf16.msra.mxu0 %v4111
  %4247 = vmatprep.subr.bf16.mxu0 %v4180
  %4248 = vmatpush1.bf16.msra.mxu0 %v4177
  %4249 = vmatprep.subr.bf16.mxu0 0
  %4250 = vmatpush1.bf16.msra.mxu0 0
  %4251 = vmatprep.subr.bf16.mxu0 0
  %4252 = vmatpush1.bf16.msra.mxu0 0
  %4253 = vmatprep.subr.bf16.mxu0 0
  %4254 = vmatpush1.bf16.msra.mxu0 0
  %4255 = vmatprep.mubr.bf16.mxu0 %v4167
  %4256 = vmatmul.mubr.bf16.gmra.mrb[0].mxu0 %v3105
  %v4257 = vpop.f32.mrb[0].mxu0
  %v4258 = vadd.f32 %v3909, %v4257
  %v4259 = vpop.f32.mrb[0].mxu0
  %v4260 = vadd.f32 %v3911, %v4259
  %v4261 = vpop.f32.mrb[0].mxu0
  %v4262 = vpop.f32.mrb[0].mxu0
  %4263 = vdwg.mxu0
  %v4264 = vld [vmem:[%s4] sm:$0xff]
  %v4265 = vld [vmem:[%s4 + $0x8] sm:$0xff]
  %v4266 = vpack.c.bf16 %v4264, %v4264
  %v4267 = vpack.c.bf16 %v4265, %v4265
  %v4318 = vunpack.c.l.b16 %v3053
  %v4319 = vunpack.c.h.b16 %v3053
  %v4320 = vunpack.c.l.b16 %v3054
  %v4321 = vunpack.c.h.b16 %v3054
  %v4322 = vunpack.c.l.b16 %v3055
  %v4323 = vunpack.c.h.b16 %v3055
  %v4324 = vunpack.c.l.b16 %v3056
  %v4325 = vunpack.c.h.b16 %v3056
  %v4326 = vunpack.c.l.b16 %v3057
  %v4327 = vunpack.c.h.b16 %v3057
  %v4328 = vunpack.c.l.b16 %v3058
  %v4329 = vunpack.c.h.b16 %v3058
  %v4330 = vunpack.c.l.b16 %v3059
  %v4331 = vunpack.c.h.b16 %v3059
  %v4332 = vunpack.c.l.b16 %v3060
  %v4333 = vunpack.c.h.b16 %v3060
  %v4334 = vunpack.c.l.b16 %v3061
  %v4335 = vunpack.c.h.b16 %v3061
  %v4336 = vunpack.c.l.b16 %v3062
  %v4337 = vunpack.c.h.b16 %v3062
  %v4338 = vunpack.c.l.b16 %v3063
  %v4339 = vunpack.c.h.b16 %v3063
  %v4340 = vunpack.c.l.b16 %v3064
  %v4341 = vunpack.c.h.b16 %v3064
  %v4342 = vunpack.c.l.b16 %v3065
  %v4343 = vunpack.c.h.b16 %v3065
  %v4344 = vunpack.c.l.b16 %v3066
  %v4345 = vunpack.c.h.b16 %v3066
  %v4346 = vunpack.c.l.b16 %v3067
  %v4347 = vunpack.c.h.b16 %v3067
  %v4348 = vunpack.c.l.b16 %v3068
  %v4349 = vunpack.c.h.b16 %v3068
  %v4350 = vunpack.c.l.b16 %v3069
  %v4351 = vunpack.c.h.b16 %v3069
  %v4352 = vunpack.c.l.b16 %v3070
  %v4353 = vunpack.c.h.b16 %v3070
  %v4354 = vunpack.c.l.b16 %v3071
  %v4355 = vunpack.c.h.b16 %v3071
  %v4356 = vunpack.c.l.b16 %v3072
  %v4357 = vunpack.c.h.b16 %v3072
  %v4358 = vunpack.c.l.b16 %v3073
  %v4359 = vunpack.c.h.b16 %v3073
  %v4360 = vunpack.c.l.b16 %v3074
  %v4361 = vunpack.c.h.b16 %v3074
  %v4362 = vunpack.c.l.b16 %v3075
  %v4363 = vunpack.c.h.b16 %v3075
  %v4364 = vunpack.c.l.b16 %v3076
  %v4365 = vunpack.c.h.b16 %v3076
  %v4366 = vunpack.c.l.b16 %v3077
  %v4367 = vunpack.c.h.b16 %v3077
  %v4368 = vunpack.c.l.b16 %v3078
  %v4369 = vunpack.c.h.b16 %v3078
  %v4370 = vunpack.c.l.b16 %v3079
  %v4371 = vunpack.c.h.b16 %v3079
  %v4372 = vunpack.c.l.b16 %v3080
  %v4373 = vunpack.c.h.b16 %v3080
  %v4374 = vunpack.c.l.b16 %v3081
  %v4375 = vunpack.c.h.b16 %v3081
  %v4376 = vunpack.c.l.b16 %v3082
  %v4377 = vunpack.c.h.b16 %v3082
  %v4378 = vunpack.c.l.b16 %v3083
  %v4379 = vunpack.c.h.b16 %v3083
  %v4380 = vunpack.c.l.b16 %v3084
  %v4381 = vunpack.c.h.b16 %v3084
  %v4382 = vunpack.c.l.b16 %v3085
  %v4383 = vunpack.c.h.b16 %v3085
  %v4384 = vunpack.c.l.b16 %v3086
  %v4385 = vunpack.c.h.b16 %v3086
  %v4386 = vunpack.c.l.b16 %v3087
  %v4387 = vunpack.c.h.b16 %v3087
  %v4388 = vunpack.c.l.b16 %v3088
  %v4389 = vunpack.c.h.b16 %v3088
  %v4390 = vunpack.c.l.b16 %v3089
  %v4391 = vunpack.c.h.b16 %v3089
  %v4392 = vunpack.c.l.b16 %v3090
  %v4393 = vunpack.c.h.b16 %v3090
  %v4394 = vunpack.c.l.b16 %v3091
  %v4395 = vunpack.c.h.b16 %v3091
  %v4396 = vunpack.c.l.b16 %v3092
  %v4397 = vunpack.c.h.b16 %v3092
  %v4398 = vunpack.c.l.b16 %v3093
  %v4399 = vunpack.c.h.b16 %v3093
  %v4400 = vunpack.c.l.b16 %v3094
  %v4401 = vunpack.c.h.b16 %v3094
  %v4402 = vunpack.c.l.b16 %v3095
  %v4403 = vunpack.c.h.b16 %v3095
  %v4404 = vunpack.c.l.b16 %v3096
  %v4405 = vunpack.c.h.b16 %v3096
  %v4406 = vunpack.c.l.b16 %v3097
  %v4407 = vunpack.c.h.b16 %v3097
  %v4408 = vunpack.c.l.b16 %v3098
  %v4409 = vunpack.c.h.b16 %v3098
  %v4410 = vunpack.c.l.b16 %v3099
  %v4411 = vunpack.c.h.b16 %v3099
  %v4412 = vunpack.c.l.b16 %v3100
  %v4413 = vunpack.c.h.b16 %v3100
  %v4414 = vunpack.c.l.b16 %v3101
  %v4415 = vunpack.c.h.b16 %v3101
  %v4416 = vunpack.c.l.b16 %v3102
  %v4417 = vunpack.c.h.b16 %v3102
  %v4418 = vpack.c.b16 %v4322, %v4318
  %v4419 = vpack.c.b16 %v4323, %v4319
  %v4420 = vpack.c.b16 %v4324, %v4320
  %v4421 = vpack.c.b16 %v4325, %v4321
  %v4422 = vpack.c.b16 %v4330, %v4326
  %v4423 = vpack.c.b16 %v4331, %v4327
  %v4424 = vpack.c.b16 %v4332, %v4328
  %v4425 = vpack.c.b16 %v4333, %v4329
  %v4426 = vpack.c.b16 %v4338, %v4334
  %v4427 = vpack.c.b16 %v4339, %v4335
  %v4428 = vpack.c.b16 %v4340, %v4336
  %v4429 = vpack.c.b16 %v4341, %v4337
  %v4430 = vpack.c.b16 %v4346, %v4342
  %v4431 = vpack.c.b16 %v4347, %v4343
  %v4432 = vpack.c.b16 %v4348, %v4344
  %v4433 = vpack.c.b16 %v4349, %v4345
  %v4434 = vpack.c.b16 %v4354, %v4350
  %v4435 = vpack.c.b16 %v4355, %v4351
  %v4436 = vpack.c.b16 %v4356, %v4352
  %v4437 = vpack.c.b16 %v4357, %v4353
  %v4438 = vpack.c.b16 %v4362, %v4358
  %v4439 = vpack.c.b16 %v4363, %v4359
  %v4440 = vpack.c.b16 %v4364, %v4360
  %v4441 = vpack.c.b16 %v4365, %v4361
  %v4442 = vpack.c.b16 %v4370, %v4366
  %v4443 = vpack.c.b16 %v4371, %v4367
  %v4444 = vpack.c.b16 %v4372, %v4368
  %v4445 = vpack.c.b16 %v4373, %v4369
  %v4446 = vpack.c.b16 %v4378, %v4374
  %v4447 = vpack.c.b16 %v4379, %v4375
  %v4448 = vpack.c.b16 %v4380, %v4376
  %v4449 = vpack.c.b16 %v4381, %v4377
  %v4450 = vpack.c.b16 %v4386, %v4382
  %v4451 = vpack.c.b16 %v4387, %v4383
  %v4452 = vpack.c.b16 %v4388, %v4384
  %v4453 = vpack.c.b16 %v4389, %v4385
  %v4454 = vpack.c.b16 %v4394, %v4390
  %v4455 = vpack.c.b16 %v4395, %v4391
  %v4456 = vpack.c.b16 %v4396, %v4392
  %v4457 = vpack.c.b16 %v4397, %v4393
  %v4458 = vpack.c.b16 %v4402, %v4398
  %v4459 = vpack.c.b16 %v4403, %v4399
  %v4460 = vpack.c.b16 %v4404, %v4400
  %v4461 = vpack.c.b16 %v4405, %v4401
  %v4462 = vpack.c.b16 %v4410, %v4406
  %v4463 = vpack.c.b16 %v4411, %v4407
  %v4464 = vpack.c.b16 %v4412, %v4408
  %v4465 = vpack.c.b16 %v4413, %v4409
  %v4466 = vpack.c.b16 %v4414, %v4414
  %v4467 = vpack.c.b16 %v4415, %v4415
  %v4468 = vpack.c.b16 %v4416, %v4416
  %v4469 = vpack.c.b16 %v4417, %v4417
  %v4519 = vsel %vm4165, %v4267, 0
  %v4522 = vsel %vm4169, %v4466, 0
  %v4525 = vsel %vm4169, %v4467, 0
  %v4528 = vsel %vm4169, %v4468, 0
  %v4531 = vsel %vm4169, %v4469, 0
  %4533 = vmatprep.subr.bf16.mxu0 %v4419
  %4534 = vmatpush1.bf16.msra.mxu0 %v4418
  %4535 = vmatprep.subr.bf16.mxu0 %v4423
  %4536 = vmatpush1.bf16.msra.mxu0 %v4422
  %4537 = vmatprep.subr.bf16.mxu0 %v4427
  %4538 = vmatpush1.bf16.msra.mxu0 %v4426
  %4539 = vmatprep.subr.bf16.mxu0 %v4431
  %4540 = vmatpush1.bf16.msra.mxu0 %v4430
  %4541 = vmatprep.subr.bf16.mxu0 %v4435
  %4542 = vmatpush1.bf16.msra.mxu0 %v4434
  %4543 = vmatprep.subr.bf16.mxu0 %v4439
  %4544 = vmatpush1.bf16.msra.mxu0 %v4438
  %4545 = vmatprep.subr.bf16.mxu0 %v4443
  %4546 = vmatpush1.bf16.msra.mxu0 %v4442
  %4547 = vmatprep.subr.bf16.mxu0 %v4447
  %4548 = vmatpush1.bf16.msra.mxu0 %v4446
  %4549 = vmatprep.subr.bf16.mxu0 %v4451
  %4550 = vmatpush1.bf16.msra.mxu0 %v4450
  %4551 = vmatprep.subr.bf16.mxu0 %v4455
  %4552 = vmatpush1.bf16.msra.mxu0 %v4454
  %4553 = vmatprep.subr.bf16.mxu0 %v4459
  %4554 = vmatpush1.bf16.msra.mxu0 %v4458
  %4555 = vmatprep.subr.bf16.mxu0 %v4463
  %4556 = vmatpush1.bf16.msra.mxu0 %v4462
  %4557 = vmatprep.subr.bf16.mxu0 %v4525
  %4558 = vmatpush1.bf16.msra.mxu0 %v4522
  %4559 = vmatprep.subr.bf16.mxu0 0
  %4560 = vmatpush1.bf16.msra.mxu0 0
  %4561 = vmatprep.subr.bf16.mxu0 0
  %4562 = vmatpush1.bf16.msra.mxu0 0
  %4563 = vmatprep.subr.bf16.mxu0 0
  %4564 = vmatpush1.bf16.msra.mxu0 0
  %4565 = vmatprep.mubr.bf16.mxu0 %v4519
  %4566 = vmatmul.mubr.bf16.gmra.mrb[0].mxu0 %v4266
  %v4567 = vpop.f32.mrb[0].mxu0
  %v4568 = vadd.f32 0.0, %v4567
  %v4569 = vpop.f32.mrb[0].mxu0
  %v4570 = vadd.f32 0.0, %v4569
  %v4571 = vpop.f32.mrb[0].mxu0
  %v4572 = vpop.f32.mrb[0].mxu0
  %4573 = vdwg.mxu0
  %4574 = vmatprep.subr.bf16.mxu0 %v4421
  %4575 = vmatpush1.bf16.msra.mxu0 %v4420
  %4576 = vmatprep.subr.bf16.mxu0 %v4425
  %4577 = vmatpush1.bf16.msra.mxu0 %v4424
  %4578 = vmatprep.subr.bf16.mxu0 %v4429
  %4579 = vmatpush1.bf16.msra.mxu0 %v4428
  %4580 = vmatprep.subr.bf16.mxu0 %v4433
  %4581 = vmatpush1.bf16.msra.mxu0 %v4432
  %4582 = vmatprep.subr.bf16.mxu0 %v4437
  %4583 = vmatpush1.bf16.msra.mxu0 %v4436
  %4584 = vmatprep.subr.bf16.mxu0 %v4441
  %4585 = vmatpush1.bf16.msra.mxu0 %v4440
  %4586 = vmatprep.subr.bf16.mxu0 %v4445
  %4587 = vmatpush1.bf16.msra.mxu0 %v4444
  %4588 = vmatprep.subr.bf16.mxu0 %v4449
  %4589 = vmatpush1.bf16.msra.mxu0 %v4448
  %4590 = vmatprep.subr.bf16.mxu0 %v4453
  %4591 = vmatpush1.bf16.msra.mxu0 %v4452
  %4592 = vmatprep.subr.bf16.mxu0 %v4457
  %4593 = vmatpush1.bf16.msra.mxu0 %v4456
  %4594 = vmatprep.subr.bf16.mxu0 %v4461
  %4595 = vmatpush1.bf16.msra.mxu0 %v4460
  %4596 = vmatprep.subr.bf16.mxu0 %v4465
  %4597 = vmatpush1.bf16.msra.mxu0 %v4464
  %4598 = vmatprep.subr.bf16.mxu0 %v4531
  %4599 = vmatpush1.bf16.msra.mxu0 %v4528
  %4600 = vmatprep.subr.bf16.mxu0 0
  %4601 = vmatpush1.bf16.msra.mxu0 0
  %4602 = vmatprep.subr.bf16.mxu0 0
  %4603 = vmatpush1.bf16.msra.mxu0 0
  %4604 = vmatprep.subr.bf16.mxu0 0
  %4605 = vmatpush1.bf16.msra.mxu0 0
  %4606 = vmatprep.mubr.bf16.mxu0 %v4519
  %4607 = vmatmul.mubr.bf16.gmra.mrb[0].mxu0 %v4266
  %v4608 = vpop.f32.mrb[0].mxu0
  %v4609 = vadd.f32 0.0, %v4608
  %v4610 = vpop.f32.mrb[0].mxu0
  %v4611 = vadd.f32 0.0, %v4610
  %v4612 = vpop.f32.mrb[0].mxu0
  %v4613 = vpop.f32.mrb[0].mxu0
  %4614 = vdwg.mxu0
  %v4615 = vadd.f32 %v4217, %v4568
  %v4616 = vadd.f32 %v4219, %v4570
  %v4617 = vadd.f32 %v4258, %v4609
  %v4618 = vadd.f32 %v4260, %v4611
  %v4619 = vld [vmem:[%s8] sm:$0xf]
  %v4621 = vlaneseq
  %v4622 = vshrl.u32 %v4621, 7
  %v4623 = vsub.s32 0, %v4622
  %v4624 = vrot.slane %v4619, %v4623
  %v4625 = vlaneseq
  %v4626 = vshrl.u32 %v4625, 7
  %v4627 = vsub.s32 1, %v4626
  %v4628 = vrot.slane %v4619, %v4627
  %v4629 = vlaneseq
  %v4630 = vshrl.u32 %v4629, 7
  %v4631 = vsub.s32 2, %v4630
  %v4632 = vrot.slane %v4619, %v4631
  %v4633 = vlaneseq
  %v4634 = vshrl.u32 %v4633, 7
  %v4635 = vsub.s32 3, %v4634
  %v4636 = vrot.slane %v4619, %v4635
  %v4641 = vadd.f32 %v4615, %v4624
  %v4642 = vadd.f32 %v4616, %v4628
  %v4643 = vadd.f32 %v4617, %v4632
  %v4644 = vadd.f32 %v4618, %v4636
  %v4645 = vmax.f32 %v4641, 0.0
  %v4646 = vmax.f32 %v4642, 0.0
  %v4647 = vmax.f32 %v4643, 0.0
  %v4648 = vmax.f32 %v4644, 0.0
  %4649 = vst [vmem:[%s9] sm:$0xff] %v4645
  %4650 = vst [vmem:[%s9 + $0x8] sm:$0xff] %v4646
  %4651 = vst [vmem:[%s9 + $0x10] sm:$0xff] %v4647
  %4652 = vst [vmem:[%s9 + $0x18] sm:$0xff] %v4648
  // Predicated region
  $region38: #{resgcn_forward.5} parent=0 // pred_check
    _
  $region39: #{resgcn_forward.5} parent=0 // pred_check_branch
    %4654 = sbr.rel (0) target = $region41
  $region40: #{resgcn_forward.5} parent=0 // pred_region
    _
  $region41: #{resgcn_forward.5} parent=0 // pred_fallthru
    _
  // Predicated region
  $region42: #{resgcn_forward.5} parent=0 // pred_check
    _
  $region43: #{resgcn_forward.5} parent=0 // pred_check_branch
    %4656 = sbr.rel (0) target = $region45
  $region44: #{resgcn_forward.5} parent=0 // pred_region
    _
  $region45: #{resgcn_forward.5} parent=0 // pred_fallthru
    _

// kernel: resgcn_forward.9
$region0: #{resgcn_forward.9}
  #allocation0 [shape = 'u32[]', space=smem, size = 0x4, offset = 0x4, fixed_abs, tag = 'smem constant byte address 0x4 - core index']
  #allocation1 [shape = 'u32[144,128]{1,0:T(1,128)}', space=vmem, size = 0x12000, scoped, tag = 'internal scratch']
  %s0 = inlined_call_operand.vmem [shape: f32[8,22], index: 0, kind: input, shape index: {}]
  %s1 = inlined_call_operand.vmem [shape: f32[22,64], index: 1, kind: input, shape index: {}]
  %s2 = inlined_call_operand.vmem [shape: f32[1,64], index: 2, kind: input, shape index: {}]
  %s3 = inlined_call_operand.vmem [shape: f32[64,51], index: 3, kind: input, shape index: {}]
  %s4 = inlined_call_operand.vmem [shape: f32[1,51], index: 4, kind: input, shape index: {}]
  %s5 = inlined_call_operand.vmem [shape: f32[8,51], index: 5, kind: output, shape index: {}]
  %s6 = sld [smem:[#allocation0]]
  $region30: #{resgcn_forward.9} parent=0
    _
  %s8 = ssub.s32 1, %s6
  %s9 = scalar_select 0, %s8, %s6
  // Predicated region
  $region2: #{resgcn_forward.9} parent=0 // pred_check
    _
  $region3: #{resgcn_forward.9} parent=0 // pred_check_branch
    %11 = sbr.rel (0) target = $region5
  $region4: #{resgcn_forward.9} parent=0 // pred_region
    _
  $region5: #{resgcn_forward.9} parent=0 // pred_fallthru
    _
  // Predicated region
  $region6: #{resgcn_forward.9} parent=0 // pred_check
    _
  $region7: #{resgcn_forward.9} parent=0 // pred_check_branch
    %13 = sbr.rel (0) target = $region9
  $region8: #{resgcn_forward.9} parent=0 // pred_region
    _
  $region9: #{resgcn_forward.9} parent=0 // pred_fallthru
    _
  // Predicated region
  $region10: #{resgcn_forward.9} parent=0 // pred_check
    _
  $region11: #{resgcn_forward.9} parent=0 // pred_check_branch
    %15 = sbr.rel (0) target = $region13
  $region12: #{resgcn_forward.9} parent=0 // pred_region
    _
  $region13: #{resgcn_forward.9} parent=0 // pred_fallthru
    _
  // Predicated region
  $region14: #{resgcn_forward.9} parent=0 // pred_check
    _
  $region15: #{resgcn_forward.9} parent=0 // pred_check_branch
    %17 = sbr.rel (0) target = $region17
  $region16: #{resgcn_forward.9} parent=0 // pred_region
    _
  $region17: #{resgcn_forward.9} parent=0 // pred_fallthru
    _
  // Predicated region
  $region18: #{resgcn_forward.9} parent=0 // pred_check
    _
  $region19: #{resgcn_forward.9} parent=0 // pred_check_branch
    %19 = sbr.rel (0) target = $region21
  $region20: #{resgcn_forward.9} parent=0 // pred_region
    _
  $region21: #{resgcn_forward.9} parent=0 // pred_fallthru
    _
  %v20 = vld [vmem:[%s0] sm:$0xff]
  %v21 = vld [vmem:[%s1] sm:$0xff]
  %v22 = vld [vmem:[%s1 + $0x8] sm:$0xff]
  %v23 = vld [vmem:[%s1 + $0x10] sm:$0x3f]
  %v24 = vld [vmem:[%s2] sm:$0x1]
  %v26 = vlaneseq
  %v27 = vshrl.u32 %v26, 7
  %v28 = vsub.s32 0, %v27
  %v29 = vrot.slane %v24, %v28
  %vm31 = vcmask 179200
  %v33 = vsel %vm31, %v20, 0
  %vm35 = vcmask 1045504
  %v37 = vsel %vm35, %v23, 0
  %39 = vmatprep.subr.mxu0 0.0
  %40 = vmatpush1.msra.mxu0 %v21
  %41 = vmatprep.subr.mxu0 0.0
  %42 = vmatpush1.msra.mxu0 %v22
  %43 = vmatprep.subr.mxu0 0.0
  %44 = vmatpush1.msra.mxu0 %v37
  %45 = vmatprep.subr.mxu0 0.0
  %46 = vmatpush1.msra.mxu0 0.0
  %47 = vmatprep.subr.mxu0 0.0
  %48 = vmatpush1.msra.mxu0 0.0
  %49 = vmatprep.subr.mxu0 0.0
  %50 = vmatpush1.msra.mxu0 0.0
  %51 = vmatprep.subr.mxu0 0.0
  %52 = vmatpush1.msra.mxu0 0.0
  %53 = vmatprep.subr.mxu0 0.0
  %54 = vmatpush1.msra.mxu0 0.0
  %55 = vmatprep.subr.mxu0 0.0
  %56 = vmatpush1.msra.mxu0 0.0
  %57 = vmatprep.subr.mxu0 0.0
  %58 = vmatpush1.msra.mxu0 0.0
  %59 = vmatprep.subr.mxu0 0.0
  %60 = vmatpush1.msra.mxu0 0.0
  %61 = vmatprep.subr.mxu0 0.0
  %62 = vmatpush1.msra.mxu0 0.0
  %63 = vmatprep.subr.mxu0 0.0
  %64 = vmatpush1.msra.mxu0 0.0
  %65 = vmatprep.subr.mxu0 0.0
  %66 = vmatpush1.msra.mxu0 0.0
  %67 = vmatprep.subr.mxu0 0.0
  %68 = vmatpush1.msra.mxu0 0.0
  %69 = vmatprep.subr.mxu0 0.0
  %70 = vmatpush1.msra.mxu0 0.0
  %71 = vmatprep.subr.mxu0 0.0
  %72 = vmatpush1.msra.mxu0 0.0
  %73 = vmatprep.subr.mxu0 0.0
  %74 = vmatpush1.msra.mxu0 0.0
  %75 = vmatprep.subr.mxu0 0.0
  %76 = vmatpush1.msra.mxu0 0.0
  %77 = vmatprep.subr.mxu0 0.0
  %78 = vmatpush1.msra.mxu0 0.0
  %79 = vmatprep.subr.mxu0 0.0
  %80 = vmatpush1.msra.mxu0 0.0
  %81 = vmatprep.subr.mxu0 0.0
  %82 = vmatpush1.msra.mxu0 0.0
  %83 = vmatprep.subr.mxu0 0.0
  %84 = vmatpush1.msra.mxu0 0.0
  %85 = vmatprep.subr.mxu0 0.0
  %86 = vmatpush1.msra.mxu0 0.0
  %87 = vmatprep.subr.mxu0 0.0
  %88 = vmatpush1.msra.mxu0 0.0
  %89 = vmatprep.subr.mxu0 0.0
  %90 = vmatpush1.msra.mxu0 0.0
  %91 = vmatprep.subr.mxu0 0.0
  %92 = vmatpush1.msra.mxu0 0.0
  %93 = vmatprep.subr.mxu0 0.0
  %94 = vmatpush1.msra.mxu0 0.0
  %95 = vmatprep.subr.mxu0 0.0
  %96 = vmatpush1.msra.mxu0 0.0
  %97 = vmatprep.subr.mxu0 0.0
  %98 = vmatpush1.msra.mxu0 0.0
  %99 = vmatprep.subr.mxu0 0.0
  %100 = vmatpush1.msra.mxu0 0.0
  %101 = vmatprep.subr.mxu0 0.0
  %102 = vmatpush1.msra.mxu0 0.0
  %103 = vmatprep.mubr.f32.mxu0 0.0
  %104 = vmatmul.mubr.f32.gmra.mrb[0].mxu0 %v33
  %v105 = vpop.f32.mrb[0].mxu0
  %v106 = vadd.f32 %v29, %v105
  %v107 = vpop.f32.mrb[0].mxu0
  %108 = vdwg.mxu0
  %v109 = vmax.f32 %v106, 0.0
  %v110 = vld [vmem:[%s3] sm:$0xff]
  %v111 = vld [vmem:[%s3 + $0x8] sm:$0xff]
  %v112 = vld [vmem:[%s3 + $0x10] sm:$0xff]
  %v113 = vld [vmem:[%s3 + $0x18] sm:$0xff]
  %v114 = vld [vmem:[%s3 + $0x20] sm:$0xff]
  %v115 = vld [vmem:[%s3 + $0x28] sm:$0xff]
  %v116 = vld [vmem:[%s3 + $0x30] sm:$0xff]
  %v117 = vld [vmem:[%s3 + $0x38] sm:$0xff]
  %v118 = vld [vmem:[%s4] sm:$0x1]
  %v120 = vlaneseq
  %v121 = vshrl.u32 %v120, 7
  %v122 = vsub.s32 0, %v121
  %v123 = vrot.slane %v118, %v122
  %vm125 = vcmask 523264
  %v127 = vsel %vm125, %v109, 0
  %129 = vmatprep.subr.mxu0 0.0
  %130 = vmatpush1.msra.mxu0 %v110
  %131 = vmatprep.subr.mxu0 0.0
  %132 = vmatpush1.msra.mxu0 %v111
  %133 = vmatprep.subr.mxu0 0.0
  %134 = vmatpush1.msra.mxu0 %v112
  %135 = vmatprep.subr.mxu0 0.0
  %136 = vmatpush1.msra.mxu0 %v113
  %137 = vmatprep.subr.mxu0 0.0
  %138 = vmatpush1.msra.mxu0 %v114
  %139 = vmatprep.subr.mxu0 0.0
  %140 = vmatpush1.msra.mxu0 %v115
  %141 = vmatprep.subr.mxu0 0.0
  %142 = vmatpush1.msra.mxu0 %v116
  %143 = vmatprep.subr.mxu0 0.0
  %144 = vmatpush1.msra.mxu0 %v117
  %145 = vmatprep.subr.mxu0 0.0
  %146 = vmatpush1.msra.mxu0 0.0
  %147 = vmatprep.subr.mxu0 0.0
  %148 = vmatpush1.msra.mxu0 0.0
  %149 = vmatprep.subr.mxu0 0.0
  %150 = vmatpush1.msra.mxu0 0.0
  %151 = vmatprep.subr.mxu0 0.0
  %152 = vmatpush1.msra.mxu0 0.0
  %153 = vmatprep.subr.mxu0 0.0
  %154 = vmatpush1.msra.mxu0 0.0
  %155 = vmatprep.subr.mxu0 0.0
  %156 = vmatpush1.msra.mxu0 0.0
  %157 = vmatprep.subr.mxu0 0.0
  %158 = vmatpush1.msra.mxu0 0.0
  %159 = vmatprep.subr.mxu0 0.0
  %160 = vmatpush1.msra.mxu0 0.0
  %161 = vmatprep.subr.mxu0 0.0
  %162 = vmatpush1.msra.mxu0 0.0
  %163 = vmatprep.subr.mxu0 0.0
  %164 = vmatpush1.msra.mxu0 0.0
  %165 = vmatprep.subr.mxu0 0.0
  %166 = vmatpush1.msra.mxu0 0.0
  %167 = vmatprep.subr.mxu0 0.0
  %168 = vmatpush1.msra.mxu0 0.0
  %169 = vmatprep.subr.mxu0 0.0
  %170 = vmatpush1.msra.mxu0 0.0
  %171 = vmatprep.subr.mxu0 0.0
  %172 = vmatpush1.msra.mxu0 0.0
  %173 = vmatprep.subr.mxu0 0.0
  %174 = vmatpush1.msra.mxu0 0.0
  %175 = vmatprep.subr.mxu0 0.0
  %176 = vmatpush1.msra.mxu0 0.0
  %177 = vmatprep.subr.mxu0 0.0
  %178 = vmatpush1.msra.mxu0 0.0
  %179 = vmatprep.subr.mxu0 0.0
  %180 = vmatpush1.msra.mxu0 0.0
  %181 = vmatprep.subr.mxu0 0.0
  %182 = vmatpush1.msra.mxu0 0.0
  %183 = vmatprep.subr.mxu0 0.0
  %184 = vmatpush1.msra.mxu0 0.0
  %185 = vmatprep.subr.mxu0 0.0
  %186 = vmatpush1.msra.mxu0 0.0
  %187 = vmatprep.subr.mxu0 0.0
  %188 = vmatpush1.msra.mxu0 0.0
  %189 = vmatprep.subr.mxu0 0.0
  %190 = vmatpush1.msra.mxu0 0.0
  %191 = vmatprep.subr.mxu0 0.0
  %192 = vmatpush1.msra.mxu0 0.0
  %193 = vmatprep.mubr.f32.mxu0 0.0
  %194 = vmatmul.mubr.f32.gmra.mrb[0].mxu0 %v127
  %v195 = vpop.f32.mrb[0].mxu0
  %v196 = vadd.f32 %v123, %v195
  %v197 = vpop.f32.mrb[0].mxu0
  %198 = vdwg.mxu0
  %vm199 = vcmask 416768
  %200 = vst.msk [vmem:[%s5] sm:$0xff] %vm199, %v196
  // Predicated region
  $region22: #{resgcn_forward.9} parent=0 // pred_check
    _
  $region23: #{resgcn_forward.9} parent=0 // pred_check_branch
    %202 = sbr.rel (0) target = $region25
  $region24: #{resgcn_forward.9} parent=0 // pred_region
    _
  $region25: #{resgcn_forward.9} parent=0 // pred_fallthru
    _
  // Predicated region
  $region26: #{resgcn_forward.9} parent=0 // pred_check
    _
  $region27: #{resgcn_forward.9} parent=0 // pred_check_branch
    %204 = sbr.rel (0) target = $region29
  $region28: #{resgcn_forward.9} parent=0 // pred_region
    _
  $region29: #{resgcn_forward.9} parent=0 // pred_fallthru
    _

</llo_original>
